<compile_context>
chip_gen: v5e
topology: v5e:2x2
jax: 0.10.0
libtpu: 0.0.40
codegen_flags: <defaults>
</compile_context>

<pallas_src>
import functools
import math

import jax
import jax.numpy as jnp
from jax.experimental import pallas as pl
from jax.experimental.pallas import tpu as pltpu


# ------------------------------ small helpers -------------------------------

def _round8(n):
    return max(8, ((n + 7) // 8) * 8)


def _elu(v):
    # ELU(alpha=1).  exp (not expm1) for guaranteed Mosaic lowering; the
    # difference is far below the 1e-3 tolerance.
    return jnp.where(v > 0, v, jnp.exp(v) - 1.0)


def _pack_conv(w, b, cin_pad, cout_pad):
    """(K, Cin, Cout) -> flat (Cout_pad, K*Cin_pad) weight (zero padded) and
    (Cout_pad, 1) bias.  Column index k*Cin_pad + ci matches the in-kernel tap
    concatenation order; padded rows/cols are zero so padded channels stay 0."""
    K, cin, cout = w.shape
    wp = jnp.zeros((K, cin_pad, cout_pad), w.dtype).at[:, :cin, :cout].set(w)
    w_flat = wp.transpose(2, 0, 1).reshape(cout_pad, K * cin_pad)
    b_col = jnp.zeros((cout_pad, 1), b.dtype).at[:cout, 0].set(b)
    return w_flat, b_col


def _subsample_matrix(t_in, stride):
    """(t_in, t_in//stride) 0/1 matrix; right-multiplying picks columns t*stride
    exactly (adds only exact zeros), replacing strided gathers."""
    t_out = t_in // stride
    sel = jnp.zeros((t_in, t_out), jnp.float32)
    return sel.at[jnp.arange(t_out) * stride, jnp.arange(t_out)].set(1.0)


# ------------------------------ fused kernel --------------------------------

def _conv_value(act, w_ref, b_ref, K, dil):
    """Causal stride-1 conv on an on-chip value.  act: (Cin_pad, T) f32.
    Returns (Cout_pad, T).  One MXU matmul with the K taps folded into the
    contraction dim; the causal left pad (dil*(K-1) zeros) is built on-chip."""
    cin, t = act.shape
    if K == 1:
        taps = act
    else:
        pad = dil * (K - 1)
        padded = jnp.concatenate(
            [jnp.zeros((cin, pad), act.dtype), act], axis=1)        # (Cin, T+pad)
        taps = jnp.concatenate(
            [padded[:, k * dil:k * dil + t] for k in range(K)], axis=0)  # (K*Cin, T)
    y = jnp.dot(w_ref[...], taps, preferred_element_type=jnp.float32)
    return y + b_ref[...]


def make_encoder_kernel(layers):
    """Build the fused whole-encoder kernel body.  `layers` is a static tuple of
    per-layer descriptors; packed params arrive as refs in the same order."""
    def kernel(x_ref, *refs):
        o_ref = refs[-1]
        params = refs[:-1]
        p = 0
        act = x_ref[...].astype(jnp.float32)          # (8, T): channel-padded input
        for lyr in layers:
            kind = lyr["kind"]
            if kind == "conv":                         # plain causal conv (+ ELU)
                w, b = params[p], params[p + 1]
                p += 2
                act = _conv_value(act, w, b, lyr["K"], lyr["dil"])
                if lyr["elu"]:
                    act = _elu(act)
            elif kind == "ru":                         # fused ResidualUnit + trailing ELU
                w1, b1, w2, b2 = params[p:p + 4]
                p += 4
                h = _elu(_conv_value(act, w1, b1, 7, lyr["dil"]))
                y = _conv_value(h, w2, b2, 1, 1)       # 1x1 conv
                act = _elu(act + y)
            else:                                      # "down": strided causal conv + ELU
                w, b, sel = params[p:p + 3]
                p += 3
                full = _conv_value(act, w, b, lyr["K"], 1)     # stride-1 result
                act = jnp.dot(full, sel[...],
                              preferred_element_type=jnp.float32)  # exact subsample
                act = _elu(act)
        o_ref[...] = act.astype(o_ref.dtype)
    return kernel


# --------------------------- parameter preparation ---------------------------

def prepare_encoder(params, factors, T):
    """One-time (outside jit) packing of all conv weights into MXU-friendly flat
    layouts, plus the static layer descriptors and subsample matrices."""
    (w0, b0), blocks, (wf, bf) = params
    flat, layers = [], []

    cin0_pad = _round8(w0.shape[1])          # input channel (=1) padded to 8
    c0_pad = _round8(w0.shape[2])
    wfl, bcl = _pack_conv(w0, b0, cin0_pad, c0_pad)
    flat += [wfl, bcl]
    layers.append(dict(kind="conv", K=int(w0.shape[0]), dil=1, elu=True))

    t = T
    for bp, s in zip(blocks, factors):
        ru1, ru2, ru3, (wd, bd) = bp
        half = wd.shape[1]
        hp = _round8(half)
        op = _round8(wd.shape[2])
        for ((w1, b1), (w2, b2)), d in zip((ru1, ru2, ru3), (1, 3, 9)):
            w1f, b1c = _pack_conv(w1, b1, hp, hp)
            w2f, b2c = _pack_conv(w2, b2, hp, hp)
            flat += [w1f, b1c, w2f, b2c]
            layers.append(dict(kind="ru", dil=d))
        assert t % s == 0, "sequence length must be divisible by the stride chain"
        wdf, bdc = _pack_conv(wd, bd, hp, op)
        flat += [wdf, bdc, _subsample_matrix(t, s)]
        layers.append(dict(kind="down", K=int(wd.shape[0])))
        t //= s

    d_pad = _round8(wf.shape[2])
    wff, bfc = _pack_conv(wf, bf, _round8(wf.shape[1]), d_pad)
    flat += [wff, bfc]
    layers.append(dict(kind="conv", K=int(wf.shape[0]), dil=1, elu=False))

    return tuple(flat), tuple(layers), cin0_pad, d_pad, t


# -------------------------------- forward ------------------------------------

def encoder_forward(x, flat_params, *, layers, cin_pad, d_out, d_pad, t_out):
    """x: (B, 1, T) NCW (same layout as the PyTorch module).  Single fused
    pallas_call over grid=(B,).  Returns (B, D, T / prod(factors))."""
    B, cin, T = x.shape
    # Only per-call glue: zero-pad the 1 input channel to a sublane-aligned 8.
    x = jnp.pad(x, ((0, 0), (0, cin_pad - cin), (0, 0)))

    kernel = make_encoder_kernel(layers)
    in_specs = [pl.BlockSpec((None, cin_pad, T), lambda b: (b, 0, 0))]
    # Weights / biases / subsample matrices: constant block index -> fetched
    # once, VMEM-resident across grid steps.
    in_specs += [pl.BlockSpec(a.shape, lambda b: (0, 0)) for a in flat_params]

    out = pl.pallas_call(
        kernel,
        out_shape=jax.ShapeDtypeStruct((B, d_pad, t_out), x.dtype),
        grid=(B,),
        in_specs=in_specs,
        out_specs=pl.BlockSpec((None, d_pad, t_out), lambda b: (b, 0, 0)),
        compiler_params=pltpu.CompilerParams(dimension_semantics=("parallel",)),
    )(x, *flat_params)
    return out[:, :d_out, :]           # drop channel padding (no-op when D % 8 == 0)


# ----------------------------- initialization --------------------------------

def _init_conv(key, cin, cout, k):
    bound = 1.0 / math.sqrt(cin * k)
    kw, kb = jax.random.split(key)
    w = jax.random.uniform(kw, (k, cin, cout), jnp.float32, -bound, bound)
    b = jax.random.uniform(kb, (cout,), jnp.float32, -bound, bound)
    return w, b


def init_encoder_params(key, C, D, factors):
    keys = iter(jax.random.split(key, 64))
    first = _init_conv(next(keys), 1, C, 7)
    blocks = []
    cin = C
    for s in factors:
        out_ch = 2 * cin
        half = out_ch // 2          # == cin
        rus = []
        for _d in (1, 3, 9):
            rus.append((_init_conv(next(keys), half, half, 7),
                        _init_conv(next(keys), half, half, 1)))
        down = _init_conv(next(keys), half, out_ch, 2 * s)
        blocks.append((rus[0], rus[1], rus[2], down))
        cin = out_ch
    final = _init_conv(next(keys), cin, D, 3)
    return first, tuple(blocks), final


# ----------------------------- pure-JAX reference ----------------------------

def _conv_ref(x, w, b, dilation, stride):
    K = w.shape[0]
    pad = dilation * (K - 1)
    y = jax.lax.conv_general_dilated(
        x, w, window_strides=(stride,), padding=[(pad, 0)],
        rhs_dilation=(dilation,),
        dimension_numbers=("NCW", "WIO", "NCW"),
        precision=jax.lax.Precision.HIGHEST)
    return y + b[None, :, None]


def encoder_forward_ref(x, params, factors):
    (w0, b0), blocks, (wf, bf) = params
    h = jax.nn.elu(_conv_ref(x, w0, b0, 1, 1))
    for bp, s in zip(blocks, factors):
        for p, d in zip(bp[:3], (1, 3, 9)):
            (w1, b1), (w2, b2) = p
            t = jax.nn.elu(_conv_ref(h, w1, b1, d, 1))
            h = jax.nn.elu(h + _conv_ref(t, w2, b2, 1, 1))
        wd, bd = bp[3]
        h = jax.nn.elu(_conv_ref(h, wd, bd, 1, s))
    return _conv_ref(h, wf, bf, 1, 1)


# ----------------------------------- main -------------------------------------

if __name__ == "__main__":
    C, D = 4, 32
    factors = (2, 2, 2, 2)      # total downsampling 16x
    B, T = 2, 512

    key = jax.random.PRNGKey(0)
    kx, kp = jax.random.split(key)
    # NCW input, identical to the PyTorch module's (B, 1, T)
    x = jax.random.normal(kx, (B, 1, T), jnp.float32)
    params = init_encoder_params(kp, C, D, factors)

    # One-time weight packing / layer descriptors (hoisted out of the jit).
    flat_params, layers, cin_pad, d_pad, t_out = prepare_encoder(params, factors, T)

    fwd = jax.jit(functools.partial(
        encoder_forward, layers=layers, cin_pad=cin_pad,
        d_out=D, d_pad=d_pad, t_out=t_out))
    out = jax.block_until_ready(fwd(x, flat_params))
    assert out.shape == (B, D, T // math.prod(factors)), out.shape

    ref = encoder_forward_ref(x, params, factors)
    err = float(jnp.max(jnp.abs(out - ref)))
    if not jnp.allclose(out, ref, atol=1e-3, rtol=1e-3):
        raise AssertionError("mismatch vs reference: max abs err = %g" % err)
    print("KERNEL_OK")
</pallas_src>

<mosaic_0001>
module attributes {stable_mosaic.version = 11 : i64} {
  func.func @kernel(%arg0: i32, %arg1: memref<1x8x512xf32, #tpu.memory_space<vmem>>, %arg2: memref<8x56xf32, #tpu.memory_space<vmem>>, %arg3: memref<8x1xf32, #tpu.memory_space<vmem>>, %arg4: memref<8x56xf32, #tpu.memory_space<vmem>>, %arg5: memref<8x1xf32, #tpu.memory_space<vmem>>, %arg6: memref<8x8xf32, #tpu.memory_space<vmem>>, %arg7: memref<8x1xf32, #tpu.memory_space<vmem>>, %arg8: memref<8x56xf32, #tpu.memory_space<vmem>>, %arg9: memref<8x1xf32, #tpu.memory_space<vmem>>, %arg10: memref<8x8xf32, #tpu.memory_space<vmem>>, %arg11: memref<8x1xf32, #tpu.memory_space<vmem>>, %arg12: memref<8x56xf32, #tpu.memory_space<vmem>>, %arg13: memref<8x1xf32, #tpu.memory_space<vmem>>, %arg14: memref<8x8xf32, #tpu.memory_space<vmem>>, %arg15: memref<8x1xf32, #tpu.memory_space<vmem>>, %arg16: memref<8x32xf32, #tpu.memory_space<vmem>>, %arg17: memref<8x1xf32, #tpu.memory_space<vmem>>, %arg18: memref<512x256xf32, #tpu.memory_space<vmem>>, %arg19: memref<8x56xf32, #tpu.memory_space<vmem>>, %arg20: memref<8x1xf32, #tpu.memory_space<vmem>>, %arg21: memref<8x8xf32, #tpu.memory_space<vmem>>, %arg22: memref<8x1xf32, #tpu.memory_space<vmem>>, %arg23: memref<8x56xf32, #tpu.memory_space<vmem>>, %arg24: memref<8x1xf32, #tpu.memory_space<vmem>>, %arg25: memref<8x8xf32, #tpu.memory_space<vmem>>, %arg26: memref<8x1xf32, #tpu.memory_space<vmem>>, %arg27: memref<8x56xf32, #tpu.memory_space<vmem>>, %arg28: memref<8x1xf32, #tpu.memory_space<vmem>>, %arg29: memref<8x8xf32, #tpu.memory_space<vmem>>, %arg30: memref<8x1xf32, #tpu.memory_space<vmem>>, %arg31: memref<16x32xf32, #tpu.memory_space<vmem>>, %arg32: memref<16x1xf32, #tpu.memory_space<vmem>>, %arg33: memref<256x128xf32, #tpu.memory_space<vmem>>, %arg34: memref<16x112xf32, #tpu.memory_space<vmem>>, %arg35: memref<16x1xf32, #tpu.memory_space<vmem>>, %arg36: memref<16x16xf32, #tpu.memory_space<vmem>>, %arg37: memref<16x1xf32, #tpu.memory_space<vmem>>, %arg38: memref<16x112xf32, #tpu.memory_space<vmem>>, %arg39: memref<16x1xf32, #tpu.memory_space<vmem>>, %arg40: memref<16x16xf32, #tpu.memory_space<vmem>>, %arg41: memref<16x1xf32, #tpu.memory_space<vmem>>, %arg42: memref<16x112xf32, #tpu.memory_space<vmem>>, %arg43: memref<16x1xf32, #tpu.memory_space<vmem>>, %arg44: memref<16x16xf32, #tpu.memory_space<vmem>>, %arg45: memref<16x1xf32, #tpu.memory_space<vmem>>, %arg46: memref<32x64xf32, #tpu.memory_space<vmem>>, %arg47: memref<32x1xf32, #tpu.memory_space<vmem>>, %arg48: memref<128x64xf32, #tpu.memory_space<vmem>>, %arg49: memref<32x224xf32, #tpu.memory_space<vmem>>, %arg50: memref<32x1xf32, #tpu.memory_space<vmem>>, %arg51: memref<32x32xf32, #tpu.memory_space<vmem>>, %arg52: memref<32x1xf32, #tpu.memory_space<vmem>>, %arg53: memref<32x224xf32, #tpu.memory_space<vmem>>, %arg54: memref<32x1xf32, #tpu.memory_space<vmem>>, %arg55: memref<32x32xf32, #tpu.memory_space<vmem>>, %arg56: memref<32x1xf32, #tpu.memory_space<vmem>>, %arg57: memref<32x224xf32, #tpu.memory_space<vmem>>, %arg58: memref<32x1xf32, #tpu.memory_space<vmem>>, %arg59: memref<32x32xf32, #tpu.memory_space<vmem>>, %arg60: memref<32x1xf32, #tpu.memory_space<vmem>>, %arg61: memref<64x128xf32, #tpu.memory_space<vmem>>, %arg62: memref<64x1xf32, #tpu.memory_space<vmem>>, %arg63: memref<64x32xf32, #tpu.memory_space<vmem>>, %arg64: memref<32x192xf32, #tpu.memory_space<vmem>>, %arg65: memref<32x1xf32, #tpu.memory_space<vmem>>, %arg66: memref<1x32x32xf32, #tpu.memory_space<vmem>>) attributes {dimension_semantics = [#tpu.dimension_semantics<parallel>], iteration_bounds = array<i64: 2>, scalar_prefetch = 0 : i64, scratch_operands = 0 : i64, tpu.core_type = #tpu.core_type<tc>, window_params = [{transform_indices = @transform_0, window_bounds = array<i64: 1, 8, 512>}, {pipeline_mode = #tpu.pipeline_mode<synchronous>, transform_indices = @transform_1, window_bounds = array<i64: 8, 56>}, {pipeline_mode = #tpu.pipeline_mode<synchronous>, transform_indices = @transform_2, window_bounds = array<i64: 8, 1>}, {pipeline_mode = #tpu.pipeline_mode<synchronous>, transform_indices = @transform_3, window_bounds = array<i64: 8, 56>}, {pipeline_mode = #tpu.pipeline_mode<synchronous>, transform_indices = @transform_4, window_bounds = array<i64: 8, 1>}, {pipeline_mode = #tpu.pipeline_mode<synchronous>, transform_indices = @transform_5, window_bounds = array<i64: 8, 8>}, {pipeline_mode = #tpu.pipeline_mode<synchronous>, transform_indices = @transform_6, window_bounds = array<i64: 8, 1>}, {pipeline_mode = #tpu.pipeline_mode<synchronous>, transform_indices = @transform_7, window_bounds = array<i64: 8, 56>}, {pipeline_mode = #tpu.pipeline_mode<synchronous>, transform_indices = @transform_8, window_bounds = array<i64: 8, 1>}, {pipeline_mode = #tpu.pipeline_mode<synchronous>, transform_indices = @transform_9, window_bounds = array<i64: 8, 8>}, {pipeline_mode = #tpu.pipeline_mode<synchronous>, transform_indices = @transform_10, window_bounds = array<i64: 8, 1>}, {pipeline_mode = #tpu.pipeline_mode<synchronous>, transform_indices = @transform_11, window_bounds = array<i64: 8, 56>}, {pipeline_mode = #tpu.pipeline_mode<synchronous>, transform_indices = @transform_12, window_bounds = array<i64: 8, 1>}, {pipeline_mode = #tpu.pipeline_mode<synchronous>, transform_indices = @transform_13, window_bounds = array<i64: 8, 8>}, {pipeline_mode = #tpu.pipeline_mode<synchronous>, transform_indices = @transform_14, window_bounds = array<i64: 8, 1>}, {pipeline_mode = #tpu.pipeline_mode<synchronous>, transform_indices = @transform_15, window_bounds = array<i64: 8, 32>}, {pipeline_mode = #tpu.pipeline_mode<synchronous>, transform_indices = @transform_16, window_bounds = array<i64: 8, 1>}, {pipeline_mode = #tpu.pipeline_mode<synchronous>, transform_indices = @transform_17, window_bounds = array<i64: 512, 256>}, {pipeline_mode = #tpu.pipeline_mode<synchronous>, transform_indices = @transform_18, window_bounds = array<i64: 8, 56>}, {pipeline_mode = #tpu.pipeline_mode<synchronous>, transform_indices = @transform_19, window_bounds = array<i64: 8, 1>}, {pipeline_mode = #tpu.pipeline_mode<synchronous>, transform_indices = @transform_20, window_bounds = array<i64: 8, 8>}, {pipeline_mode = #tpu.pipeline_mode<synchronous>, transform_indices = @transform_21, window_bounds = array<i64: 8, 1>}, {pipeline_mode = #tpu.pipeline_mode<synchronous>, transform_indices = @transform_22, window_bounds = array<i64: 8, 56>}, {pipeline_mode = #tpu.pipeline_mode<synchronous>, transform_indices = @transform_23, window_bounds = array<i64: 8, 1>}, {pipeline_mode = #tpu.pipeline_mode<synchronous>, transform_indices = @transform_24, window_bounds = array<i64: 8, 8>}, {pipeline_mode = #tpu.pipeline_mode<synchronous>, transform_indices = @transform_25, window_bounds = array<i64: 8, 1>}, {pipeline_mode = #tpu.pipeline_mode<synchronous>, transform_indices = @transform_26, window_bounds = array<i64: 8, 56>}, {pipeline_mode = #tpu.pipeline_mode<synchronous>, transform_indices = @transform_27, window_bounds = array<i64: 8, 1>}, {pipeline_mode = #tpu.pipeline_mode<synchronous>, transform_indices = @transform_28, window_bounds = array<i64: 8, 8>}, {pipeline_mode = #tpu.pipeline_mode<synchronous>, transform_indices = @transform_29, window_bounds = array<i64: 8, 1>}, {pipeline_mode = #tpu.pipeline_mode<synchronous>, transform_indices = @transform_30, window_bounds = array<i64: 16, 32>}, {pipeline_mode = #tpu.pipeline_mode<synchronous>, transform_indices = @transform_31, window_bounds = array<i64: 16, 1>}, {pipeline_mode = #tpu.pipeline_mode<synchronous>, transform_indices = @transform_32, window_bounds = array<i64: 256, 128>}, {pipeline_mode = #tpu.pipeline_mode<synchronous>, transform_indices = @transform_33, window_bounds = array<i64: 16, 112>}, {pipeline_mode = #tpu.pipeline_mode<synchronous>, transform_indices = @transform_34, window_bounds = array<i64: 16, 1>}, {pipeline_mode = #tpu.pipeline_mode<synchronous>, transform_indices = @transform_35, window_bounds = array<i64: 16, 16>}, {pipeline_mode = #tpu.pipeline_mode<synchronous>, transform_indices = @transform_36, window_bounds = array<i64: 16, 1>}, {pipeline_mode = #tpu.pipeline_mode<synchronous>, transform_indices = @transform_37, window_bounds = array<i64: 16, 112>}, {pipeline_mode = #tpu.pipeline_mode<synchronous>, transform_indices = @transform_38, window_bounds = array<i64: 16, 1>}, {pipeline_mode = #tpu.pipeline_mode<synchronous>, transform_indices = @transform_39, window_bounds = array<i64: 16, 16>}, {pipeline_mode = #tpu.pipeline_mode<synchronous>, transform_indices = @transform_40, window_bounds = array<i64: 16, 1>}, {pipeline_mode = #tpu.pipeline_mode<synchronous>, transform_indices = @transform_41, window_bounds = array<i64: 16, 112>}, {pipeline_mode = #tpu.pipeline_mode<synchronous>, transform_indices = @transform_42, window_bounds = array<i64: 16, 1>}, {pipeline_mode = #tpu.pipeline_mode<synchronous>, transform_indices = @transform_43, window_bounds = array<i64: 16, 16>}, {pipeline_mode = #tpu.pipeline_mode<synchronous>, transform_indices = @transform_44, window_bounds = array<i64: 16, 1>}, {pipeline_mode = #tpu.pipeline_mode<synchronous>, transform_indices = @transform_45, window_bounds = array<i64: 32, 64>}, {pipeline_mode = #tpu.pipeline_mode<synchronous>, transform_indices = @transform_46, window_bounds = array<i64: 32, 1>}, {pipeline_mode = #tpu.pipeline_mode<synchronous>, transform_indices = @transform_47, window_bounds = array<i64: 128, 64>}, {pipeline_mode = #tpu.pipeline_mode<synchronous>, transform_indices = @transform_48, window_bounds = array<i64: 32, 224>}, {pipeline_mode = #tpu.pipeline_mode<synchronous>, transform_indices = @transform_49, window_bounds = array<i64: 32, 1>}, {pipeline_mode = #tpu.pipeline_mode<synchronous>, transform_indices = @transform_50, window_bounds = array<i64: 32, 32>}, {pipeline_mode = #tpu.pipeline_mode<synchronous>, transform_indices = @transform_51, window_bounds = array<i64: 32, 1>}, {pipeline_mode = #tpu.pipeline_mode<synchronous>, transform_indices = @transform_52, window_bounds = array<i64: 32, 224>}, {pipeline_mode = #tpu.pipeline_mode<synchronous>, transform_indices = @transform_53, window_bounds = array<i64: 32, 1>}, {pipeline_mode = #tpu.pipeline_mode<synchronous>, transform_indices = @transform_54, window_bounds = array<i64: 32, 32>}, {pipeline_mode = #tpu.pipeline_mode<synchronous>, transform_indices = @transform_55, window_bounds = array<i64: 32, 1>}, {pipeline_mode = #tpu.pipeline_mode<synchronous>, transform_indices = @transform_56, window_bounds = array<i64: 32, 224>}, {pipeline_mode = #tpu.pipeline_mode<synchronous>, transform_indices = @transform_57, window_bounds = array<i64: 32, 1>}, {pipeline_mode = #tpu.pipeline_mode<synchronous>, transform_indices = @transform_58, window_bounds = array<i64: 32, 32>}, {pipeline_mode = #tpu.pipeline_mode<synchronous>, transform_indices = @transform_59, window_bounds = array<i64: 32, 1>}, {pipeline_mode = #tpu.pipeline_mode<synchronous>, transform_indices = @transform_60, window_bounds = array<i64: 64, 128>}, {pipeline_mode = #tpu.pipeline_mode<synchronous>, transform_indices = @transform_61, window_bounds = array<i64: 64, 1>}, {pipeline_mode = #tpu.pipeline_mode<synchronous>, transform_indices = @transform_62, window_bounds = array<i64: 64, 32>}, {pipeline_mode = #tpu.pipeline_mode<synchronous>, transform_indices = @transform_63, window_bounds = array<i64: 32, 192>}, {pipeline_mode = #tpu.pipeline_mode<synchronous>, transform_indices = @transform_64, window_bounds = array<i64: 32, 1>}, {transform_indices = @transform_65, window_bounds = array<i64: 1, 32, 32>}]} {
    %c0 = arith.constant 0 : index
    %c0_0 = arith.constant 0 : index
    %c0_1 = arith.constant 0 : index
    %0 = vector.load %arg1[%c0, %c0_0, %c0_1] : memref<1x8x512xf32, #tpu.memory_space<vmem>>, vector<1x8x512xf32>
    %1 = vector.shape_cast %0 : vector<1x8x512xf32> to vector<8x512xf32>
    %cst = arith.constant 0.000000e+00 : f32
    %2 = vector.broadcast %cst : f32 to vector<8x6xf32>
    %3 = tpu.concatenate %2, %1 in 1 : vector<8x6xf32>, vector<8x512xf32> -> vector<8x518xf32>
    %4 = vector.extract_strided_slice %3 {offsets = [0, 0], sizes = [8, 512], strides = [1, 1]} : vector<8x518xf32> to vector<8x512xf32>
    %5 = vector.extract_strided_slice %3 {offsets = [0, 1], sizes = [8, 512], strides = [1, 1]} : vector<8x518xf32> to vector<8x512xf32>
    %6 = vector.extract_strided_slice %3 {offsets = [0, 2], sizes = [8, 512], strides = [1, 1]} : vector<8x518xf32> to vector<8x512xf32>
    %7 = vector.extract_strided_slice %3 {offsets = [0, 3], sizes = [8, 512], strides = [1, 1]} : vector<8x518xf32> to vector<8x512xf32>
    %8 = vector.extract_strided_slice %3 {offsets = [0, 4], sizes = [8, 512], strides = [1, 1]} : vector<8x518xf32> to vector<8x512xf32>
    %9 = vector.extract_strided_slice %3 {offsets = [0, 5], sizes = [8, 512], strides = [1, 1]} : vector<8x518xf32> to vector<8x512xf32>
    %10 = vector.extract_strided_slice %3 {offsets = [0, 6], sizes = [8, 512], strides = [1, 1]} : vector<8x518xf32> to vector<8x512xf32>
    %11 = tpu.concatenate %4, %5, %6, %7, %8, %9, %10 in 0 : vector<8x512xf32>, vector<8x512xf32>, vector<8x512xf32>, vector<8x512xf32>, vector<8x512xf32>, vector<8x512xf32>, vector<8x512xf32> -> vector<56x512xf32>
    %c0_2 = arith.constant 0 : index
    %c0_3 = arith.constant 0 : index
    %12 = vector.load %arg2[%c0_2, %c0_3] : memref<8x56xf32, #tpu.memory_space<vmem>>, vector<8x56xf32>
    %cst_4 = arith.constant dense<0.000000e+00> : vector<8x512xf32>
    %13 = tpu.matmul %12, %11, %cst_4 {dimension_numbers = #tpu.dot_dimension_numbers<[1], [0], [0], [1], [0, 0, 1, 1], [], []>} : vector<8x56xf32>, vector<56x512xf32>, vector<8x512xf32> -> vector<8x512xf32>
    %c0_5 = arith.constant 0 : index
    %c0_6 = arith.constant 0 : index
    %14 = vector.load %arg3[%c0_5, %c0_6] : memref<8x1xf32, #tpu.memory_space<vmem>>, vector<8x1xf32>
    %15 = vector.broadcast %14 : vector<8x1xf32> to vector<8x512xf32>
    %16 = arith.addf %13, %15 : vector<8x512xf32>
    %cst_7 = arith.constant 0.000000e+00 : f32
    %17 = vector.broadcast %cst_7 : f32 to vector<8x512xf32>
    %18 = arith.cmpf ogt, %16, %17 : vector<8x512xf32>
    %19 = math.exp %16 : vector<8x512xf32>
    %cst_8 = arith.constant 1.000000e+00 : f32
    %20 = vector.broadcast %cst_8 : f32 to vector<8x512xf32>
    %21 = arith.subf %19, %20 : vector<8x512xf32>
    %22 = arith.select %18, %16, %21 : vector<8x512xi1>, vector<8x512xf32>
    %cst_9 = arith.constant 0.000000e+00 : f32
    %23 = vector.broadcast %cst_9 : f32 to vector<8x6xf32>
    %24 = tpu.concatenate %23, %22 in 1 : vector<8x6xf32>, vector<8x512xf32> -> vector<8x518xf32>
    %25 = vector.extract_strided_slice %24 {offsets = [0, 0], sizes = [8, 512], strides = [1, 1]} : vector<8x518xf32> to vector<8x512xf32>
    %26 = vector.extract_strided_slice %24 {offsets = [0, 1], sizes = [8, 512], strides = [1, 1]} : vector<8x518xf32> to vector<8x512xf32>
    %27 = vector.extract_strided_slice %24 {offsets = [0, 2], sizes = [8, 512], strides = [1, 1]} : vector<8x518xf32> to vector<8x512xf32>
    %28 = vector.extract_strided_slice %24 {offsets = [0, 3], sizes = [8, 512], strides = [1, 1]} : vector<8x518xf32> to vector<8x512xf32>
    %29 = vector.extract_strided_slice %24 {offsets = [0, 4], sizes = [8, 512], strides = [1, 1]} : vector<8x518xf32> to vector<8x512xf32>
    %30 = vector.extract_strided_slice %24 {offsets = [0, 5], sizes = [8, 512], strides = [1, 1]} : vector<8x518xf32> to vector<8x512xf32>
    %31 = vector.extract_strided_slice %24 {offsets = [0, 6], sizes = [8, 512], strides = [1, 1]} : vector<8x518xf32> to vector<8x512xf32>
    %32 = tpu.concatenate %25, %26, %27, %28, %29, %30, %31 in 0 : vector<8x512xf32>, vector<8x512xf32>, vector<8x512xf32>, vector<8x512xf32>, vector<8x512xf32>, vector<8x512xf32>, vector<8x512xf32> -> vector<56x512xf32>
    %c0_10 = arith.constant 0 : index
    %c0_11 = arith.constant 0 : index
    %33 = vector.load %arg4[%c0_10, %c0_11] : memref<8x56xf32, #tpu.memory_space<vmem>>, vector<8x56xf32>
    %cst_12 = arith.constant dense<0.000000e+00> : vector<8x512xf32>
    %34 = tpu.matmul %33, %32, %cst_12 {dimension_numbers = #tpu.dot_dimension_numbers<[1], [0], [0], [1], [0, 0, 1, 1], [], []>} : vector<8x56xf32>, vector<56x512xf32>, vector<8x512xf32> -> vector<8x512xf32>
    %c0_13 = arith.constant 0 : index
    %c0_14 = arith.constant 0 : index
    %35 = vector.load %arg5[%c0_13, %c0_14] : memref<8x1xf32, #tpu.memory_space<vmem>>, vector<8x1xf32>
    %36 = vector.broadcast %35 : vector<8x1xf32> to vector<8x512xf32>
    %37 = arith.addf %34, %36 : vector<8x512xf32>
    %cst_15 = arith.constant 0.000000e+00 : f32
    %38 = vector.broadcast %cst_15 : f32 to vector<8x512xf32>
    %39 = arith.cmpf ogt, %37, %38 : vector<8x512xf32>
    %40 = math.exp %37 : vector<8x512xf32>
    %cst_16 = arith.constant 1.000000e+00 : f32
    %41 = vector.broadcast %cst_16 : f32 to vector<8x512xf32>
    %42 = arith.subf %40, %41 : vector<8x512xf32>
    %43 = arith.select %39, %37, %42 : vector<8x512xi1>, vector<8x512xf32>
    %c0_17 = arith.constant 0 : index
    %c0_18 = arith.constant 0 : index
    %44 = vector.load %arg6[%c0_17, %c0_18] : memref<8x8xf32, #tpu.memory_space<vmem>>, vector<8x8xf32>
    %cst_19 = arith.constant dense<0.000000e+00> : vector<8x512xf32>
    %45 = tpu.matmul %44, %43, %cst_19 {dimension_numbers = #tpu.dot_dimension_numbers<[1], [0], [0], [1], [0, 0, 1, 1], [], []>} : vector<8x8xf32>, vector<8x512xf32>, vector<8x512xf32> -> vector<8x512xf32>
    %c0_20 = arith.constant 0 : index
    %c0_21 = arith.constant 0 : index
    %46 = vector.load %arg7[%c0_20, %c0_21] : memref<8x1xf32, #tpu.memory_space<vmem>>, vector<8x1xf32>
    %47 = vector.broadcast %46 : vector<8x1xf32> to vector<8x512xf32>
    %48 = arith.addf %45, %47 : vector<8x512xf32>
    %49 = arith.addf %22, %48 : vector<8x512xf32>
    %cst_22 = arith.constant 0.000000e+00 : f32
    %50 = vector.broadcast %cst_22 : f32 to vector<8x512xf32>
    %51 = arith.cmpf ogt, %49, %50 : vector<8x512xf32>
    %52 = math.exp %49 : vector<8x512xf32>
    %cst_23 = arith.constant 1.000000e+00 : f32
    %53 = vector.broadcast %cst_23 : f32 to vector<8x512xf32>
    %54 = arith.subf %52, %53 : vector<8x512xf32>
    %55 = arith.select %51, %49, %54 : vector<8x512xi1>, vector<8x512xf32>
    %cst_24 = arith.constant 0.000000e+00 : f32
    %56 = vector.broadcast %cst_24 : f32 to vector<8x18xf32>
    %57 = tpu.concatenate %56, %55 in 1 : vector<8x18xf32>, vector<8x512xf32> -> vector<8x530xf32>
    %58 = vector.extract_strided_slice %57 {offsets = [0, 0], sizes = [8, 512], strides = [1, 1]} : vector<8x530xf32> to vector<8x512xf32>
    %59 = vector.extract_strided_slice %57 {offsets = [0, 3], sizes = [8, 512], strides = [1, 1]} : vector<8x530xf32> to vector<8x512xf32>
    %60 = vector.extract_strided_slice %57 {offsets = [0, 6], sizes = [8, 512], strides = [1, 1]} : vector<8x530xf32> to vector<8x512xf32>
    %61 = vector.extract_strided_slice %57 {offsets = [0, 9], sizes = [8, 512], strides = [1, 1]} : vector<8x530xf32> to vector<8x512xf32>
    %62 = vector.extract_strided_slice %57 {offsets = [0, 12], sizes = [8, 512], strides = [1, 1]} : vector<8x530xf32> to vector<8x512xf32>
    %63 = vector.extract_strided_slice %57 {offsets = [0, 15], sizes = [8, 512], strides = [1, 1]} : vector<8x530xf32> to vector<8x512xf32>
    %64 = vector.extract_strided_slice %57 {offsets = [0, 18], sizes = [8, 512], strides = [1, 1]} : vector<8x530xf32> to vector<8x512xf32>
    %65 = tpu.concatenate %58, %59, %60, %61, %62, %63, %64 in 0 : vector<8x512xf32>, vector<8x512xf32>, vector<8x512xf32>, vector<8x512xf32>, vector<8x512xf32>, vector<8x512xf32>, vector<8x512xf32> -> vector<56x512xf32>
    %c0_25 = arith.constant 0 : index
    %c0_26 = arith.constant 0 : index
    %66 = vector.load %arg8[%c0_25, %c0_26] : memref<8x56xf32, #tpu.memory_space<vmem>>, vector<8x56xf32>
    %cst_27 = arith.constant dense<0.000000e+00> : vector<8x512xf32>
    %67 = tpu.matmul %66, %65, %cst_27 {dimension_numbers = #tpu.dot_dimension_numbers<[1], [0], [0], [1], [0, 0, 1, 1], [], []>} : vector<8x56xf32>, vector<56x512xf32>, vector<8x512xf32> -> vector<8x512xf32>
    %c0_28 = arith.constant 0 : index
    %c0_29 = arith.constant 0 : index
    %68 = vector.load %arg9[%c0_28, %c0_29] : memref<8x1xf32, #tpu.memory_space<vmem>>, vector<8x1xf32>
    %69 = vector.broadcast %68 : vector<8x1xf32> to vector<8x512xf32>
    %70 = arith.addf %67, %69 : vector<8x512xf32>
    %cst_30 = arith.constant 0.000000e+00 : f32
    %71 = vector.broadcast %cst_30 : f32 to vector<8x512xf32>
    %72 = arith.cmpf ogt, %70, %71 : vector<8x512xf32>
    %73 = math.exp %70 : vector<8x512xf32>
    %cst_31 = arith.constant 1.000000e+00 : f32
    %74 = vector.broadcast %cst_31 : f32 to vector<8x512xf32>
    %75 = arith.subf %73, %74 : vector<8x512xf32>
    %76 = arith.select %72, %70, %75 : vector<8x512xi1>, vector<8x512xf32>
    %c0_32 = arith.constant 0 : index
    %c0_33 = arith.constant 0 : index
    %77 = vector.load %arg10[%c0_32, %c0_33] : memref<8x8xf32, #tpu.memory_space<vmem>>, vector<8x8xf32>
    %cst_34 = arith.constant dense<0.000000e+00> : vector<8x512xf32>
    %78 = tpu.matmul %77, %76, %cst_34 {dimension_numbers = #tpu.dot_dimension_numbers<[1], [0], [0], [1], [0, 0, 1, 1], [], []>} : vector<8x8xf32>, vector<8x512xf32>, vector<8x512xf32> -> vector<8x512xf32>
    %c0_35 = arith.constant 0 : index
    %c0_36 = arith.constant 0 : index
    %79 = vector.load %arg11[%c0_35, %c0_36] : memref<8x1xf32, #tpu.memory_space<vmem>>, vector<8x1xf32>
    %80 = vector.broadcast %79 : vector<8x1xf32> to vector<8x512xf32>
    %81 = arith.addf %78, %80 : vector<8x512xf32>
    %82 = arith.addf %55, %81 : vector<8x512xf32>
    %cst_37 = arith.constant 0.000000e+00 : f32
    %83 = vector.broadcast %cst_37 : f32 to vector<8x512xf32>
    %84 = arith.cmpf ogt, %82, %83 : vector<8x512xf32>
    %85 = math.exp %82 : vector<8x512xf32>
    %cst_38 = arith.constant 1.000000e+00 : f32
    %86 = vector.broadcast %cst_38 : f32 to vector<8x512xf32>
    %87 = arith.subf %85, %86 : vector<8x512xf32>
    %88 = arith.select %84, %82, %87 : vector<8x512xi1>, vector<8x512xf32>
    %cst_39 = arith.constant 0.000000e+00 : f32
    %89 = vector.broadcast %cst_39 : f32 to vector<8x54xf32>
    %90 = tpu.concatenate %89, %88 in 1 : vector<8x54xf32>, vector<8x512xf32> -> vector<8x566xf32>
    %91 = vector.extract_strided_slice %90 {offsets = [0, 0], sizes = [8, 512], strides = [1, 1]} : vector<8x566xf32> to vector<8x512xf32>
    %92 = vector.extract_strided_slice %90 {offsets = [0, 9], sizes = [8, 512], strides = [1, 1]} : vector<8x566xf32> to vector<8x512xf32>
    %93 = vector.extract_strided_slice %90 {offsets = [0, 18], sizes = [8, 512], strides = [1, 1]} : vector<8x566xf32> to vector<8x512xf32>
    %94 = vector.extract_strided_slice %90 {offsets = [0, 27], sizes = [8, 512], strides = [1, 1]} : vector<8x566xf32> to vector<8x512xf32>
    %95 = vector.extract_strided_slice %90 {offsets = [0, 36], sizes = [8, 512], strides = [1, 1]} : vector<8x566xf32> to vector<8x512xf32>
    %96 = vector.extract_strided_slice %90 {offsets = [0, 45], sizes = [8, 512], strides = [1, 1]} : vector<8x566xf32> to vector<8x512xf32>
    %97 = vector.extract_strided_slice %90 {offsets = [0, 54], sizes = [8, 512], strides = [1, 1]} : vector<8x566xf32> to vector<8x512xf32>
    %98 = tpu.concatenate %91, %92, %93, %94, %95, %96, %97 in 0 : vector<8x512xf32>, vector<8x512xf32>, vector<8x512xf32>, vector<8x512xf32>, vector<8x512xf32>, vector<8x512xf32>, vector<8x512xf32> -> vector<56x512xf32>
    %c0_40 = arith.constant 0 : index
    %c0_41 = arith.constant 0 : index
    %99 = vector.load %arg12[%c0_40, %c0_41] : memref<8x56xf32, #tpu.memory_space<vmem>>, vector<8x56xf32>
    %cst_42 = arith.constant dense<0.000000e+00> : vector<8x512xf32>
    %100 = tpu.matmul %99, %98, %cst_42 {dimension_numbers = #tpu.dot_dimension_numbers<[1], [0], [0], [1], [0, 0, 1, 1], [], []>} : vector<8x56xf32>, vector<56x512xf32>, vector<8x512xf32> -> vector<8x512xf32>
    %c0_43 = arith.constant 0 : index
    %c0_44 = arith.constant 0 : index
    %101 = vector.load %arg13[%c0_43, %c0_44] : memref<8x1xf32, #tpu.memory_space<vmem>>, vector<8x1xf32>
    %102 = vector.broadcast %101 : vector<8x1xf32> to vector<8x512xf32>
    %103 = arith.addf %100, %102 : vector<8x512xf32>
    %cst_45 = arith.constant 0.000000e+00 : f32
    %104 = vector.broadcast %cst_45 : f32 to vector<8x512xf32>
    %105 = arith.cmpf ogt, %103, %104 : vector<8x512xf32>
    %106 = math.exp %103 : vector<8x512xf32>
    %cst_46 = arith.constant 1.000000e+00 : f32
    %107 = vector.broadcast %cst_46 : f32 to vector<8x512xf32>
    %108 = arith.subf %106, %107 : vector<8x512xf32>
    %109 = arith.select %105, %103, %108 : vector<8x512xi1>, vector<8x512xf32>
    %c0_47 = arith.constant 0 : index
    %c0_48 = arith.constant 0 : index
    %110 = vector.load %arg14[%c0_47, %c0_48] : memref<8x8xf32, #tpu.memory_space<vmem>>, vector<8x8xf32>
    %cst_49 = arith.constant dense<0.000000e+00> : vector<8x512xf32>
    %111 = tpu.matmul %110, %109, %cst_49 {dimension_numbers = #tpu.dot_dimension_numbers<[1], [0], [0], [1], [0, 0, 1, 1], [], []>} : vector<8x8xf32>, vector<8x512xf32>, vector<8x512xf32> -> vector<8x512xf32>
    %c0_50 = arith.constant 0 : index
    %c0_51 = arith.constant 0 : index
    %112 = vector.load %arg15[%c0_50, %c0_51] : memref<8x1xf32, #tpu.memory_space<vmem>>, vector<8x1xf32>
    %113 = vector.broadcast %112 : vector<8x1xf32> to vector<8x512xf32>
    %114 = arith.addf %111, %113 : vector<8x512xf32>
    %115 = arith.addf %88, %114 : vector<8x512xf32>
    %cst_52 = arith.constant 0.000000e+00 : f32
    %116 = vector.broadcast %cst_52 : f32 to vector<8x512xf32>
    %117 = arith.cmpf ogt, %115, %116 : vector<8x512xf32>
    %118 = math.exp %115 : vector<8x512xf32>
    %cst_53 = arith.constant 1.000000e+00 : f32
    %119 = vector.broadcast %cst_53 : f32 to vector<8x512xf32>
    %120 = arith.subf %118, %119 : vector<8x512xf32>
    %121 = arith.select %117, %115, %120 : vector<8x512xi1>, vector<8x512xf32>
    %cst_54 = arith.constant 0.000000e+00 : f32
    %122 = vector.broadcast %cst_54 : f32 to vector<8x3xf32>
    %123 = tpu.concatenate %122, %121 in 1 : vector<8x3xf32>, vector<8x512xf32> -> vector<8x515xf32>
    %124 = vector.extract_strided_slice %123 {offsets = [0, 0], sizes = [8, 512], strides = [1, 1]} : vector<8x515xf32> to vector<8x512xf32>
    %125 = vector.extract_strided_slice %123 {offsets = [0, 1], sizes = [8, 512], strides = [1, 1]} : vector<8x515xf32> to vector<8x512xf32>
    %126 = vector.extract_strided_slice %123 {offsets = [0, 2], sizes = [8, 512], strides = [1, 1]} : vector<8x515xf32> to vector<8x512xf32>
    %127 = vector.extract_strided_slice %123 {offsets = [0, 3], sizes = [8, 512], strides = [1, 1]} : vector<8x515xf32> to vector<8x512xf32>
    %128 = tpu.concatenate %124, %125, %126, %127 in 0 : vector<8x512xf32>, vector<8x512xf32>, vector<8x512xf32>, vector<8x512xf32> -> vector<32x512xf32>
    %c0_55 = arith.constant 0 : index
    %c0_56 = arith.constant 0 : index
    %129 = vector.load %arg16[%c0_55, %c0_56] : memref<8x32xf32, #tpu.memory_space<vmem>>, vector<8x32xf32>
    %cst_57 = arith.constant dense<0.000000e+00> : vector<8x512xf32>
    %130 = tpu.matmul %129, %128, %cst_57 {dimension_numbers = #tpu.dot_dimension_numbers<[1], [0], [0], [1], [0, 0, 1, 1], [], []>} : vector<8x32xf32>, vector<32x512xf32>, vector<8x512xf32> -> vector<8x512xf32>
    %c0_58 = arith.constant 0 : index
    %c0_59 = arith.constant 0 : index
    %131 = vector.load %arg17[%c0_58, %c0_59] : memref<8x1xf32, #tpu.memory_space<vmem>>, vector<8x1xf32>
    %132 = vector.broadcast %131 : vector<8x1xf32> to vector<8x512xf32>
    %133 = arith.addf %130, %132 : vector<8x512xf32>
    %c0_60 = arith.constant 0 : index
    %c0_61 = arith.constant 0 : index
    %134 = vector.load %arg18[%c0_60, %c0_61] : memref<512x256xf32, #tpu.memory_space<vmem>>, vector<512x256xf32>
    %cst_62 = arith.constant dense<0.000000e+00> : vector<8x256xf32>
    %135 = tpu.matmul %133, %134, %cst_62 {dimension_numbers = #tpu.dot_dimension_numbers<[1], [0], [0], [1], [0, 0, 1, 1], [], []>} : vector<8x512xf32>, vector<512x256xf32>, vector<8x256xf32> -> vector<8x256xf32>
    %cst_63 = arith.constant 0.000000e+00 : f32
    %136 = vector.broadcast %cst_63 : f32 to vector<8x256xf32>
    %137 = arith.cmpf ogt, %135, %136 : vector<8x256xf32>
    %138 = math.exp %135 : vector<8x256xf32>
    %cst_64 = arith.constant 1.000000e+00 : f32
    %139 = vector.broadcast %cst_64 : f32 to vector<8x256xf32>
    %140 = arith.subf %138, %139 : vector<8x256xf32>
    %141 = arith.select %137, %135, %140 : vector<8x256xi1>, vector<8x256xf32>
    %cst_65 = arith.constant 0.000000e+00 : f32
    %142 = vector.broadcast %cst_65 : f32 to vector<8x6xf32>
    %143 = tpu.concatenate %142, %141 in 1 : vector<8x6xf32>, vector<8x256xf32> -> vector<8x262xf32>
    %144 = vector.extract_strided_slice %143 {offsets = [0, 0], sizes = [8, 256], strides = [1, 1]} : vector<8x262xf32> to vector<8x256xf32>
    %145 = vector.extract_strided_slice %143 {offsets = [0, 1], sizes = [8, 256], strides = [1, 1]} : vector<8x262xf32> to vector<8x256xf32>
    %146 = vector.extract_strided_slice %143 {offsets = [0, 2], sizes = [8, 256], strides = [1, 1]} : vector<8x262xf32> to vector<8x256xf32>
    %147 = vector.extract_strided_slice %143 {offsets = [0, 3], sizes = [8, 256], strides = [1, 1]} : vector<8x262xf32> to vector<8x256xf32>
    %148 = vector.extract_strided_slice %143 {offsets = [0, 4], sizes = [8, 256], strides = [1, 1]} : vector<8x262xf32> to vector<8x256xf32>
    %149 = vector.extract_strided_slice %143 {offsets = [0, 5], sizes = [8, 256], strides = [1, 1]} : vector<8x262xf32> to vector<8x256xf32>
    %150 = vector.extract_strided_slice %143 {offsets = [0, 6], sizes = [8, 256], strides = [1, 1]} : vector<8x262xf32> to vector<8x256xf32>
    %151 = tpu.concatenate %144, %145, %146, %147, %148, %149, %150 in 0 : vector<8x256xf32>, vector<8x256xf32>, vector<8x256xf32>, vector<8x256xf32>, vector<8x256xf32>, vector<8x256xf32>, vector<8x256xf32> -> vector<56x256xf32>
    %c0_66 = arith.constant 0 : index
    %c0_67 = arith.constant 0 : index
    %152 = vector.load %arg19[%c0_66, %c0_67] : memref<8x56xf32, #tpu.memory_space<vmem>>, vector<8x56xf32>
    %cst_68 = arith.constant dense<0.000000e+00> : vector<8x256xf32>
    %153 = tpu.matmul %152, %151, %cst_68 {dimension_numbers = #tpu.dot_dimension_numbers<[1], [0], [0], [1], [0, 0, 1, 1], [], []>} : vector<8x56xf32>, vector<56x256xf32>, vector<8x256xf32> -> vector<8x256xf32>
    %c0_69 = arith.constant 0 : index
    %c0_70 = arith.constant 0 : index
    %154 = vector.load %arg20[%c0_69, %c0_70] : memref<8x1xf32, #tpu.memory_space<vmem>>, vector<8x1xf32>
    %155 = vector.broadcast %154 : vector<8x1xf32> to vector<8x256xf32>
    %156 = arith.addf %153, %155 : vector<8x256xf32>
    %cst_71 = arith.constant 0.000000e+00 : f32
    %157 = vector.broadcast %cst_71 : f32 to vector<8x256xf32>
    %158 = arith.cmpf ogt, %156, %157 : vector<8x256xf32>
    %159 = math.exp %156 : vector<8x256xf32>
    %cst_72 = arith.constant 1.000000e+00 : f32
    %160 = vector.broadcast %cst_72 : f32 to vector<8x256xf32>
    %161 = arith.subf %159, %160 : vector<8x256xf32>
    %162 = arith.select %158, %156, %161 : vector<8x256xi1>, vector<8x256xf32>
    %c0_73 = arith.constant 0 : index
    %c0_74 = arith.constant 0 : index
    %163 = vector.load %arg21[%c0_73, %c0_74] : memref<8x8xf32, #tpu.memory_space<vmem>>, vector<8x8xf32>
    %cst_75 = arith.constant dense<0.000000e+00> : vector<8x256xf32>
    %164 = tpu.matmul %163, %162, %cst_75 {dimension_numbers = #tpu.dot_dimension_numbers<[1], [0], [0], [1], [0, 0, 1, 1], [], []>} : vector<8x8xf32>, vector<8x256xf32>, vector<8x256xf32> -> vector<8x256xf32>
    %c0_76 = arith.constant 0 : index
    %c0_77 = arith.constant 0 : index
    %165 = vector.load %arg22[%c0_76, %c0_77] : memref<8x1xf32, #tpu.memory_space<vmem>>, vector<8x1xf32>
    %166 = vector.broadcast %165 : vector<8x1xf32> to vector<8x256xf32>
    %167 = arith.addf %164, %166 : vector<8x256xf32>
    %168 = arith.addf %141, %167 : vector<8x256xf32>
    %cst_78 = arith.constant 0.000000e+00 : f32
    %169 = vector.broadcast %cst_78 : f32 to vector<8x256xf32>
    %170 = arith.cmpf ogt, %168, %169 : vector<8x256xf32>
    %171 = math.exp %168 : vector<8x256xf32>
    %cst_79 = arith.constant 1.000000e+00 : f32
    %172 = vector.broadcast %cst_79 : f32 to vector<8x256xf32>
    %173 = arith.subf %171, %172 : vector<8x256xf32>
    %174 = arith.select %170, %168, %173 : vector<8x256xi1>, vector<8x256xf32>
    %cst_80 = arith.constant 0.000000e+00 : f32
    %175 = vector.broadcast %cst_80 : f32 to vector<8x18xf32>
    %176 = tpu.concatenate %175, %174 in 1 : vector<8x18xf32>, vector<8x256xf32> -> vector<8x274xf32>
    %177 = vector.extract_strided_slice %176 {offsets = [0, 0], sizes = [8, 256], strides = [1, 1]} : vector<8x274xf32> to vector<8x256xf32>
    %178 = vector.extract_strided_slice %176 {offsets = [0, 3], sizes = [8, 256], strides = [1, 1]} : vector<8x274xf32> to vector<8x256xf32>
    %179 = vector.extract_strided_slice %176 {offsets = [0, 6], sizes = [8, 256], strides = [1, 1]} : vector<8x274xf32> to vector<8x256xf32>
    %180 = vector.extract_strided_slice %176 {offsets = [0, 9], sizes = [8, 256], strides = [1, 1]} : vector<8x274xf32> to vector<8x256xf32>
    %181 = vector.extract_strided_slice %176 {offsets = [0, 12], sizes = [8, 256], strides = [1, 1]} : vector<8x274xf32> to vector<8x256xf32>
    %182 = vector.extract_strided_slice %176 {offsets = [0, 15], sizes = [8, 256], strides = [1, 1]} : vector<8x274xf32> to vector<8x256xf32>
    %183 = vector.extract_strided_slice %176 {offsets = [0, 18], sizes = [8, 256], strides = [1, 1]} : vector<8x274xf32> to vector<8x256xf32>
    %184 = tpu.concatenate %177, %178, %179, %180, %181, %182, %183 in 0 : vector<8x256xf32>, vector<8x256xf32>, vector<8x256xf32>, vector<8x256xf32>, vector<8x256xf32>, vector<8x256xf32>, vector<8x256xf32> -> vector<56x256xf32>
    %c0_81 = arith.constant 0 : index
    %c0_82 = arith.constant 0 : index
    %185 = vector.load %arg23[%c0_81, %c0_82] : memref<8x56xf32, #tpu.memory_space<vmem>>, vector<8x56xf32>
    %cst_83 = arith.constant dense<0.000000e+00> : vector<8x256xf32>
    %186 = tpu.matmul %185, %184, %cst_83 {dimension_numbers = #tpu.dot_dimension_numbers<[1], [0], [0], [1], [0, 0, 1, 1], [], []>} : vector<8x56xf32>, vector<56x256xf32>, vector<8x256xf32> -> vector<8x256xf32>
    %c0_84 = arith.constant 0 : index
    %c0_85 = arith.constant 0 : index
    %187 = vector.load %arg24[%c0_84, %c0_85] : memref<8x1xf32, #tpu.memory_space<vmem>>, vector<8x1xf32>
    %188 = vector.broadcast %187 : vector<8x1xf32> to vector<8x256xf32>
    %189 = arith.addf %186, %188 : vector<8x256xf32>
    %cst_86 = arith.constant 0.000000e+00 : f32
    %190 = vector.broadcast %cst_86 : f32 to vector<8x256xf32>
    %191 = arith.cmpf ogt, %189, %190 : vector<8x256xf32>
    %192 = math.exp %189 : vector<8x256xf32>
    %cst_87 = arith.constant 1.000000e+00 : f32
    %193 = vector.broadcast %cst_87 : f32 to vector<8x256xf32>
    %194 = arith.subf %192, %193 : vector<8x256xf32>
    %195 = arith.select %191, %189, %194 : vector<8x256xi1>, vector<8x256xf32>
    %c0_88 = arith.constant 0 : index
    %c0_89 = arith.constant 0 : index
    %196 = vector.load %arg25[%c0_88, %c0_89] : memref<8x8xf32, #tpu.memory_space<vmem>>, vector<8x8xf32>
    %cst_90 = arith.constant dense<0.000000e+00> : vector<8x256xf32>
    %197 = tpu.matmul %196, %195, %cst_90 {dimension_numbers = #tpu.dot_dimension_numbers<[1], [0], [0], [1], [0, 0, 1, 1], [], []>} : vector<8x8xf32>, vector<8x256xf32>, vector<8x256xf32> -> vector<8x256xf32>
    %c0_91 = arith.constant 0 : index
    %c0_92 = arith.constant 0 : index
    %198 = vector.load %arg26[%c0_91, %c0_92] : memref<8x1xf32, #tpu.memory_space<vmem>>, vector<8x1xf32>
    %199 = vector.broadcast %198 : vector<8x1xf32> to vector<8x256xf32>
    %200 = arith.addf %197, %199 : vector<8x256xf32>
    %201 = arith.addf %174, %200 : vector<8x256xf32>
    %cst_93 = arith.constant 0.000000e+00 : f32
    %202 = vector.broadcast %cst_93 : f32 to vector<8x256xf32>
    %203 = arith.cmpf ogt, %201, %202 : vector<8x256xf32>
    %204 = math.exp %201 : vector<8x256xf32>
    %cst_94 = arith.constant 1.000000e+00 : f32
    %205 = vector.broadcast %cst_94 : f32 to vector<8x256xf32>
    %206 = arith.subf %204, %205 : vector<8x256xf32>
    %207 = arith.select %203, %201, %206 : vector<8x256xi1>, vector<8x256xf32>
    %cst_95 = arith.constant 0.000000e+00 : f32
    %208 = vector.broadcast %cst_95 : f32 to vector<8x54xf32>
    %209 = tpu.concatenate %208, %207 in 1 : vector<8x54xf32>, vector<8x256xf32> -> vector<8x310xf32>
    %210 = vector.extract_strided_slice %209 {offsets = [0, 0], sizes = [8, 256], strides = [1, 1]} : vector<8x310xf32> to vector<8x256xf32>
    %211 = vector.extract_strided_slice %209 {offsets = [0, 9], sizes = [8, 256], strides = [1, 1]} : vector<8x310xf32> to vector<8x256xf32>
    %212 = vector.extract_strided_slice %209 {offsets = [0, 18], sizes = [8, 256], strides = [1, 1]} : vector<8x310xf32> to vector<8x256xf32>
    %213 = vector.extract_strided_slice %209 {offsets = [0, 27], sizes = [8, 256], strides = [1, 1]} : vector<8x310xf32> to vector<8x256xf32>
    %214 = vector.extract_strided_slice %209 {offsets = [0, 36], sizes = [8, 256], strides = [1, 1]} : vector<8x310xf32> to vector<8x256xf32>
    %215 = vector.extract_strided_slice %209 {offsets = [0, 45], sizes = [8, 256], strides = [1, 1]} : vector<8x310xf32> to vector<8x256xf32>
    %216 = vector.extract_strided_slice %209 {offsets = [0, 54], sizes = [8, 256], strides = [1, 1]} : vector<8x310xf32> to vector<8x256xf32>
    %217 = tpu.concatenate %210, %211, %212, %213, %214, %215, %216 in 0 : vector<8x256xf32>, vector<8x256xf32>, vector<8x256xf32>, vector<8x256xf32>, vector<8x256xf32>, vector<8x256xf32>, vector<8x256xf32> -> vector<56x256xf32>
    %c0_96 = arith.constant 0 : index
    %c0_97 = arith.constant 0 : index
    %218 = vector.load %arg27[%c0_96, %c0_97] : memref<8x56xf32, #tpu.memory_space<vmem>>, vector<8x56xf32>
    %cst_98 = arith.constant dense<0.000000e+00> : vector<8x256xf32>
    %219 = tpu.matmul %218, %217, %cst_98 {dimension_numbers = #tpu.dot_dimension_numbers<[1], [0], [0], [1], [0, 0, 1, 1], [], []>} : vector<8x56xf32>, vector<56x256xf32>, vector<8x256xf32> -> vector<8x256xf32>
    %c0_99 = arith.constant 0 : index
    %c0_100 = arith.constant 0 : index
    %220 = vector.load %arg28[%c0_99, %c0_100] : memref<8x1xf32, #tpu.memory_space<vmem>>, vector<8x1xf32>
    %221 = vector.broadcast %220 : vector<8x1xf32> to vector<8x256xf32>
    %222 = arith.addf %219, %221 : vector<8x256xf32>
    %cst_101 = arith.constant 0.000000e+00 : f32
    %223 = vector.broadcast %cst_101 : f32 to vector<8x256xf32>
    %224 = arith.cmpf ogt, %222, %223 : vector<8x256xf32>
    %225 = math.exp %222 : vector<8x256xf32>
    %cst_102 = arith.constant 1.000000e+00 : f32
    %226 = vector.broadcast %cst_102 : f32 to vector<8x256xf32>
    %227 = arith.subf %225, %226 : vector<8x256xf32>
    %228 = arith.select %224, %222, %227 : vector<8x256xi1>, vector<8x256xf32>
    %c0_103 = arith.constant 0 : index
    %c0_104 = arith.constant 0 : index
    %229 = vector.load %arg29[%c0_103, %c0_104] : memref<8x8xf32, #tpu.memory_space<vmem>>, vector<8x8xf32>
    %cst_105 = arith.constant dense<0.000000e+00> : vector<8x256xf32>
    %230 = tpu.matmul %229, %228, %cst_105 {dimension_numbers = #tpu.dot_dimension_numbers<[1], [0], [0], [1], [0, 0, 1, 1], [], []>} : vector<8x8xf32>, vector<8x256xf32>, vector<8x256xf32> -> vector<8x256xf32>
    %c0_106 = arith.constant 0 : index
    %c0_107 = arith.constant 0 : index
    %231 = vector.load %arg30[%c0_106, %c0_107] : memref<8x1xf32, #tpu.memory_space<vmem>>, vector<8x1xf32>
    %232 = vector.broadcast %231 : vector<8x1xf32> to vector<8x256xf32>
    %233 = arith.addf %230, %232 : vector<8x256xf32>
    %234 = arith.addf %207, %233 : vector<8x256xf32>
    %cst_108 = arith.constant 0.000000e+00 : f32
    %235 = vector.broadcast %cst_108 : f32 to vector<8x256xf32>
    %236 = arith.cmpf ogt, %234, %235 : vector<8x256xf32>
    %237 = math.exp %234 : vector<8x256xf32>
    %cst_109 = arith.constant 1.000000e+00 : f32
    %238 = vector.broadcast %cst_109 : f32 to vector<8x256xf32>
    %239 = arith.subf %237, %238 : vector<8x256xf32>
    %240 = arith.select %236, %234, %239 : vector<8x256xi1>, vector<8x256xf32>
    %cst_110 = arith.constant 0.000000e+00 : f32
    %241 = vector.broadcast %cst_110 : f32 to vector<8x3xf32>
    %242 = tpu.concatenate %241, %240 in 1 : vector<8x3xf32>, vector<8x256xf32> -> vector<8x259xf32>
    %243 = vector.extract_strided_slice %242 {offsets = [0, 0], sizes = [8, 256], strides = [1, 1]} : vector<8x259xf32> to vector<8x256xf32>
    %244 = vector.extract_strided_slice %242 {offsets = [0, 1], sizes = [8, 256], strides = [1, 1]} : vector<8x259xf32> to vector<8x256xf32>
    %245 = vector.extract_strided_slice %242 {offsets = [0, 2], sizes = [8, 256], strides = [1, 1]} : vector<8x259xf32> to vector<8x256xf32>
    %246 = vector.extract_strided_slice %242 {offsets = [0, 3], sizes = [8, 256], strides = [1, 1]} : vector<8x259xf32> to vector<8x256xf32>
    %247 = tpu.concatenate %243, %244, %245, %246 in 0 : vector<8x256xf32>, vector<8x256xf32>, vector<8x256xf32>, vector<8x256xf32> -> vector<32x256xf32>
    %c0_111 = arith.constant 0 : index
    %c0_112 = arith.constant 0 : index
    %248 = vector.load %arg31[%c0_111, %c0_112] : memref<16x32xf32, #tpu.memory_space<vmem>>, vector<16x32xf32>
    %cst_113 = arith.constant dense<0.000000e+00> : vector<16x256xf32>
    %249 = tpu.matmul %248, %247, %cst_113 {dimension_numbers = #tpu.dot_dimension_numbers<[1], [0], [0], [1], [0, 0, 1, 1], [], []>} : vector<16x32xf32>, vector<32x256xf32>, vector<16x256xf32> -> vector<16x256xf32>
    %c0_114 = arith.constant 0 : index
    %c0_115 = arith.constant 0 : index
    %250 = vector.load %arg32[%c0_114, %c0_115] : memref<16x1xf32, #tpu.memory_space<vmem>>, vector<16x1xf32>
    %251 = vector.broadcast %250 : vector<16x1xf32> to vector<16x256xf32>
    %252 = arith.addf %249, %251 : vector<16x256xf32>
    %c0_116 = arith.constant 0 : index
    %c0_117 = arith.constant 0 : index
    %253 = vector.load %arg33[%c0_116, %c0_117] : memref<256x128xf32, #tpu.memory_space<vmem>>, vector<256x128xf32>
    %cst_118 = arith.constant dense<0.000000e+00> : vector<16x128xf32>
    %254 = tpu.matmul %252, %253, %cst_118 {dimension_numbers = #tpu.dot_dimension_numbers<[1], [0], [0], [1], [0, 0, 1, 1], [], []>} : vector<16x256xf32>, vector<256x128xf32>, vector<16x128xf32> -> vector<16x128xf32>
    %cst_119 = arith.constant 0.000000e+00 : f32
    %255 = vector.broadcast %cst_119 : f32 to vector<16x128xf32>
    %256 = arith.cmpf ogt, %254, %255 : vector<16x128xf32>
    %257 = math.exp %254 : vector<16x128xf32>
    %cst_120 = arith.constant 1.000000e+00 : f32
    %258 = vector.broadcast %cst_120 : f32 to vector<16x128xf32>
    %259 = arith.subf %257, %258 : vector<16x128xf32>
    %260 = arith.select %256, %254, %259 : vector<16x128xi1>, vector<16x128xf32>
    %cst_121 = arith.constant 0.000000e+00 : f32
    %261 = vector.broadcast %cst_121 : f32 to vector<16x6xf32>
    %262 = tpu.concatenate %261, %260 in 1 : vector<16x6xf32>, vector<16x128xf32> -> vector<16x134xf32>
    %263 = vector.extract_strided_slice %262 {offsets = [0, 0], sizes = [16, 128], strides = [1, 1]} : vector<16x134xf32> to vector<16x128xf32>
    %264 = vector.extract_strided_slice %262 {offsets = [0, 1], sizes = [16, 128], strides = [1, 1]} : vector<16x134xf32> to vector<16x128xf32>
    %265 = vector.extract_strided_slice %262 {offsets = [0, 2], sizes = [16, 128], strides = [1, 1]} : vector<16x134xf32> to vector<16x128xf32>
    %266 = vector.extract_strided_slice %262 {offsets = [0, 3], sizes = [16, 128], strides = [1, 1]} : vector<16x134xf32> to vector<16x128xf32>
    %267 = vector.extract_strided_slice %262 {offsets = [0, 4], sizes = [16, 128], strides = [1, 1]} : vector<16x134xf32> to vector<16x128xf32>
    %268 = vector.extract_strided_slice %262 {offsets = [0, 5], sizes = [16, 128], strides = [1, 1]} : vector<16x134xf32> to vector<16x128xf32>
    %269 = vector.extract_strided_slice %262 {offsets = [0, 6], sizes = [16, 128], strides = [1, 1]} : vector<16x134xf32> to vector<16x128xf32>
    %270 = tpu.concatenate %263, %264, %265, %266, %267, %268, %269 in 0 : vector<16x128xf32>, vector<16x128xf32>, vector<16x128xf32>, vector<16x128xf32>, vector<16x128xf32>, vector<16x128xf32>, vector<16x128xf32> -> vector<112x128xf32>
    %c0_122 = arith.constant 0 : index
    %c0_123 = arith.constant 0 : index
    %271 = vector.load %arg34[%c0_122, %c0_123] : memref<16x112xf32, #tpu.memory_space<vmem>>, vector<16x112xf32>
    %cst_124 = arith.constant dense<0.000000e+00> : vector<16x128xf32>
    %272 = tpu.matmul %271, %270, %cst_124 {dimension_numbers = #tpu.dot_dimension_numbers<[1], [0], [0], [1], [0, 0, 1, 1], [], []>} : vector<16x112xf32>, vector<112x128xf32>, vector<16x128xf32> -> vector<16x128xf32>
    %c0_125 = arith.constant 0 : index
    %c0_126 = arith.constant 0 : index
    %273 = vector.load %arg35[%c0_125, %c0_126] : memref<16x1xf32, #tpu.memory_space<vmem>>, vector<16x1xf32>
    %274 = vector.broadcast %273 : vector<16x1xf32> to vector<16x128xf32>
    %275 = arith.addf %272, %274 : vector<16x128xf32>
    %cst_127 = arith.constant 0.000000e+00 : f32
    %276 = vector.broadcast %cst_127 : f32 to vector<16x128xf32>
    %277 = arith.cmpf ogt, %275, %276 : vector<16x128xf32>
    %278 = math.exp %275 : vector<16x128xf32>
    %cst_128 = arith.constant 1.000000e+00 : f32
    %279 = vector.broadcast %cst_128 : f32 to vector<16x128xf32>
    %280 = arith.subf %278, %279 : vector<16x128xf32>
    %281 = arith.select %277, %275, %280 : vector<16x128xi1>, vector<16x128xf32>
    %c0_129 = arith.constant 0 : index
    %c0_130 = arith.constant 0 : index
    %282 = vector.load %arg36[%c0_129, %c0_130] : memref<16x16xf32, #tpu.memory_space<vmem>>, vector<16x16xf32>
    %cst_131 = arith.constant dense<0.000000e+00> : vector<16x128xf32>
    %283 = tpu.matmul %282, %281, %cst_131 {dimension_numbers = #tpu.dot_dimension_numbers<[1], [0], [0], [1], [0, 0, 1, 1], [], []>} : vector<16x16xf32>, vector<16x128xf32>, vector<16x128xf32> -> vector<16x128xf32>
    %c0_132 = arith.constant 0 : index
    %c0_133 = arith.constant 0 : index
    %284 = vector.load %arg37[%c0_132, %c0_133] : memref<16x1xf32, #tpu.memory_space<vmem>>, vector<16x1xf32>
    %285 = vector.broadcast %284 : vector<16x1xf32> to vector<16x128xf32>
    %286 = arith.addf %283, %285 : vector<16x128xf32>
    %287 = arith.addf %260, %286 : vector<16x128xf32>
    %cst_134 = arith.constant 0.000000e+00 : f32
    %288 = vector.broadcast %cst_134 : f32 to vector<16x128xf32>
    %289 = arith.cmpf ogt, %287, %288 : vector<16x128xf32>
    %290 = math.exp %287 : vector<16x128xf32>
    %cst_135 = arith.constant 1.000000e+00 : f32
    %291 = vector.broadcast %cst_135 : f32 to vector<16x128xf32>
    %292 = arith.subf %290, %291 : vector<16x128xf32>
    %293 = arith.select %289, %287, %292 : vector<16x128xi1>, vector<16x128xf32>
    %cst_136 = arith.constant 0.000000e+00 : f32
    %294 = vector.broadcast %cst_136 : f32 to vector<16x18xf32>
    %295 = tpu.concatenate %294, %293 in 1 : vector<16x18xf32>, vector<16x128xf32> -> vector<16x146xf32>
    %296 = vector.extract_strided_slice %295 {offsets = [0, 0], sizes = [16, 128], strides = [1, 1]} : vector<16x146xf32> to vector<16x128xf32>
    %297 = vector.extract_strided_slice %295 {offsets = [0, 3], sizes = [16, 128], strides = [1, 1]} : vector<16x146xf32> to vector<16x128xf32>
    %298 = vector.extract_strided_slice %295 {offsets = [0, 6], sizes = [16, 128], strides = [1, 1]} : vector<16x146xf32> to vector<16x128xf32>
    %299 = vector.extract_strided_slice %295 {offsets = [0, 9], sizes = [16, 128], strides = [1, 1]} : vector<16x146xf32> to vector<16x128xf32>
    %300 = vector.extract_strided_slice %295 {offsets = [0, 12], sizes = [16, 128], strides = [1, 1]} : vector<16x146xf32> to vector<16x128xf32>
    %301 = vector.extract_strided_slice %295 {offsets = [0, 15], sizes = [16, 128], strides = [1, 1]} : vector<16x146xf32> to vector<16x128xf32>
    %302 = vector.extract_strided_slice %295 {offsets = [0, 18], sizes = [16, 128], strides = [1, 1]} : vector<16x146xf32> to vector<16x128xf32>
    %303 = tpu.concatenate %296, %297, %298, %299, %300, %301, %302 in 0 : vector<16x128xf32>, vector<16x128xf32>, vector<16x128xf32>, vector<16x128xf32>, vector<16x128xf32>, vector<16x128xf32>, vector<16x128xf32> -> vector<112x128xf32>
    %c0_137 = arith.constant 0 : index
    %c0_138 = arith.constant 0 : index
    %304 = vector.load %arg38[%c0_137, %c0_138] : memref<16x112xf32, #tpu.memory_space<vmem>>, vector<16x112xf32>
    %cst_139 = arith.constant dense<0.000000e+00> : vector<16x128xf32>
    %305 = tpu.matmul %304, %303, %cst_139 {dimension_numbers = #tpu.dot_dimension_numbers<[1], [0], [0], [1], [0, 0, 1, 1], [], []>} : vector<16x112xf32>, vector<112x128xf32>, vector<16x128xf32> -> vector<16x128xf32>
    %c0_140 = arith.constant 0 : index
    %c0_141 = arith.constant 0 : index
    %306 = vector.load %arg39[%c0_140, %c0_141] : memref<16x1xf32, #tpu.memory_space<vmem>>, vector<16x1xf32>
    %307 = vector.broadcast %306 : vector<16x1xf32> to vector<16x128xf32>
    %308 = arith.addf %305, %307 : vector<16x128xf32>
    %cst_142 = arith.constant 0.000000e+00 : f32
    %309 = vector.broadcast %cst_142 : f32 to vector<16x128xf32>
    %310 = arith.cmpf ogt, %308, %309 : vector<16x128xf32>
    %311 = math.exp %308 : vector<16x128xf32>
    %cst_143 = arith.constant 1.000000e+00 : f32
    %312 = vector.broadcast %cst_143 : f32 to vector<16x128xf32>
    %313 = arith.subf %311, %312 : vector<16x128xf32>
    %314 = arith.select %310, %308, %313 : vector<16x128xi1>, vector<16x128xf32>
    %c0_144 = arith.constant 0 : index
    %c0_145 = arith.constant 0 : index
    %315 = vector.load %arg40[%c0_144, %c0_145] : memref<16x16xf32, #tpu.memory_space<vmem>>, vector<16x16xf32>
    %cst_146 = arith.constant dense<0.000000e+00> : vector<16x128xf32>
    %316 = tpu.matmul %315, %314, %cst_146 {dimension_numbers = #tpu.dot_dimension_numbers<[1], [0], [0], [1], [0, 0, 1, 1], [], []>} : vector<16x16xf32>, vector<16x128xf32>, vector<16x128xf32> -> vector<16x128xf32>
    %c0_147 = arith.constant 0 : index
    %c0_148 = arith.constant 0 : index
    %317 = vector.load %arg41[%c0_147, %c0_148] : memref<16x1xf32, #tpu.memory_space<vmem>>, vector<16x1xf32>
    %318 = vector.broadcast %317 : vector<16x1xf32> to vector<16x128xf32>
    %319 = arith.addf %316, %318 : vector<16x128xf32>
    %320 = arith.addf %293, %319 : vector<16x128xf32>
    %cst_149 = arith.constant 0.000000e+00 : f32
    %321 = vector.broadcast %cst_149 : f32 to vector<16x128xf32>
    %322 = arith.cmpf ogt, %320, %321 : vector<16x128xf32>
    %323 = math.exp %320 : vector<16x128xf32>
    %cst_150 = arith.constant 1.000000e+00 : f32
    %324 = vector.broadcast %cst_150 : f32 to vector<16x128xf32>
    %325 = arith.subf %323, %324 : vector<16x128xf32>
    %326 = arith.select %322, %320, %325 : vector<16x128xi1>, vector<16x128xf32>
    %cst_151 = arith.constant 0.000000e+00 : f32
    %327 = vector.broadcast %cst_151 : f32 to vector<16x54xf32>
    %328 = tpu.concatenate %327, %326 in 1 : vector<16x54xf32>, vector<16x128xf32> -> vector<16x182xf32>
    %329 = vector.extract_strided_slice %328 {offsets = [0, 0], sizes = [16, 128], strides = [1, 1]} : vector<16x182xf32> to vector<16x128xf32>
    %330 = vector.extract_strided_slice %328 {offsets = [0, 9], sizes = [16, 128], strides = [1, 1]} : vector<16x182xf32> to vector<16x128xf32>
    %331 = vector.extract_strided_slice %328 {offsets = [0, 18], sizes = [16, 128], strides = [1, 1]} : vector<16x182xf32> to vector<16x128xf32>
    %332 = vector.extract_strided_slice %328 {offsets = [0, 27], sizes = [16, 128], strides = [1, 1]} : vector<16x182xf32> to vector<16x128xf32>
    %333 = vector.extract_strided_slice %328 {offsets = [0, 36], sizes = [16, 128], strides = [1, 1]} : vector<16x182xf32> to vector<16x128xf32>
    %334 = vector.extract_strided_slice %328 {offsets = [0, 45], sizes = [16, 128], strides = [1, 1]} : vector<16x182xf32> to vector<16x128xf32>
    %335 = vector.extract_strided_slice %328 {offsets = [0, 54], sizes = [16, 128], strides = [1, 1]} : vector<16x182xf32> to vector<16x128xf32>
    %336 = tpu.concatenate %329, %330, %331, %332, %333, %334, %335 in 0 : vector<16x128xf32>, vector<16x128xf32>, vector<16x128xf32>, vector<16x128xf32>, vector<16x128xf32>, vector<16x128xf32>, vector<16x128xf32> -> vector<112x128xf32>
    %c0_152 = arith.constant 0 : index
    %c0_153 = arith.constant 0 : index
    %337 = vector.load %arg42[%c0_152, %c0_153] : memref<16x112xf32, #tpu.memory_space<vmem>>, vector<16x112xf32>
    %cst_154 = arith.constant dense<0.000000e+00> : vector<16x128xf32>
    %338 = tpu.matmul %337, %336, %cst_154 {dimension_numbers = #tpu.dot_dimension_numbers<[1], [0], [0], [1], [0, 0, 1, 1], [], []>} : vector<16x112xf32>, vector<112x128xf32>, vector<16x128xf32> -> vector<16x128xf32>
    %c0_155 = arith.constant 0 : index
    %c0_156 = arith.constant 0 : index
    %339 = vector.load %arg43[%c0_155, %c0_156] : memref<16x1xf32, #tpu.memory_space<vmem>>, vector<16x1xf32>
    %340 = vector.broadcast %339 : vector<16x1xf32> to vector<16x128xf32>
    %341 = arith.addf %338, %340 : vector<16x128xf32>
    %cst_157 = arith.constant 0.000000e+00 : f32
    %342 = vector.broadcast %cst_157 : f32 to vector<16x128xf32>
    %343 = arith.cmpf ogt, %341, %342 : vector<16x128xf32>
    %344 = math.exp %341 : vector<16x128xf32>
    %cst_158 = arith.constant 1.000000e+00 : f32
    %345 = vector.broadcast %cst_158 : f32 to vector<16x128xf32>
    %346 = arith.subf %344, %345 : vector<16x128xf32>
    %347 = arith.select %343, %341, %346 : vector<16x128xi1>, vector<16x128xf32>
    %c0_159 = arith.constant 0 : index
    %c0_160 = arith.constant 0 : index
    %348 = vector.load %arg44[%c0_159, %c0_160] : memref<16x16xf32, #tpu.memory_space<vmem>>, vector<16x16xf32>
    %cst_161 = arith.constant dense<0.000000e+00> : vector<16x128xf32>
    %349 = tpu.matmul %348, %347, %cst_161 {dimension_numbers = #tpu.dot_dimension_numbers<[1], [0], [0], [1], [0, 0, 1, 1], [], []>} : vector<16x16xf32>, vector<16x128xf32>, vector<16x128xf32> -> vector<16x128xf32>
    %c0_162 = arith.constant 0 : index
    %c0_163 = arith.constant 0 : index
    %350 = vector.load %arg45[%c0_162, %c0_163] : memref<16x1xf32, #tpu.memory_space<vmem>>, vector<16x1xf32>
    %351 = vector.broadcast %350 : vector<16x1xf32> to vector<16x128xf32>
    %352 = arith.addf %349, %351 : vector<16x128xf32>
    %353 = arith.addf %326, %352 : vector<16x128xf32>
    %cst_164 = arith.constant 0.000000e+00 : f32
    %354 = vector.broadcast %cst_164 : f32 to vector<16x128xf32>
    %355 = arith.cmpf ogt, %353, %354 : vector<16x128xf32>
    %356 = math.exp %353 : vector<16x128xf32>
    %cst_165 = arith.constant 1.000000e+00 : f32
    %357 = vector.broadcast %cst_165 : f32 to vector<16x128xf32>
    %358 = arith.subf %356, %357 : vector<16x128xf32>
    %359 = arith.select %355, %353, %358 : vector<16x128xi1>, vector<16x128xf32>
    %cst_166 = arith.constant 0.000000e+00 : f32
    %360 = vector.broadcast %cst_166 : f32 to vector<16x3xf32>
    %361 = tpu.concatenate %360, %359 in 1 : vector<16x3xf32>, vector<16x128xf32> -> vector<16x131xf32>
    %362 = vector.extract_strided_slice %361 {offsets = [0, 0], sizes = [16, 128], strides = [1, 1]} : vector<16x131xf32> to vector<16x128xf32>
    %363 = vector.extract_strided_slice %361 {offsets = [0, 1], sizes = [16, 128], strides = [1, 1]} : vector<16x131xf32> to vector<16x128xf32>
    %364 = vector.extract_strided_slice %361 {offsets = [0, 2], sizes = [16, 128], strides = [1, 1]} : vector<16x131xf32> to vector<16x128xf32>
    %365 = vector.extract_strided_slice %361 {offsets = [0, 3], sizes = [16, 128], strides = [1, 1]} : vector<16x131xf32> to vector<16x128xf32>
    %366 = tpu.concatenate %362, %363, %364, %365 in 0 : vector<16x128xf32>, vector<16x128xf32>, vector<16x128xf32>, vector<16x128xf32> -> vector<64x128xf32>
    %c0_167 = arith.constant 0 : index
    %c0_168 = arith.constant 0 : index
    %367 = vector.load %arg46[%c0_167, %c0_168] : memref<32x64xf32, #tpu.memory_space<vmem>>, vector<32x64xf32>
    %cst_169 = arith.constant dense<0.000000e+00> : vector<32x128xf32>
    %368 = tpu.matmul %367, %366, %cst_169 {dimension_numbers = #tpu.dot_dimension_numbers<[1], [0], [0], [1], [0, 0, 1, 1], [], []>} : vector<32x64xf32>, vector<64x128xf32>, vector<32x128xf32> -> vector<32x128xf32>
    %c0_170 = arith.constant 0 : index
    %c0_171 = arith.constant 0 : index
    %369 = vector.load %arg47[%c0_170, %c0_171] : memref<32x1xf32, #tpu.memory_space<vmem>>, vector<32x1xf32>
    %370 = vector.broadcast %369 : vector<32x1xf32> to vector<32x128xf32>
    %371 = arith.addf %368, %370 : vector<32x128xf32>
    %c0_172 = arith.constant 0 : index
    %c0_173 = arith.constant 0 : index
    %372 = vector.load %arg48[%c0_172, %c0_173] : memref<128x64xf32, #tpu.memory_space<vmem>>, vector<128x64xf32>
    %cst_174 = arith.constant dense<0.000000e+00> : vector<32x64xf32>
    %373 = tpu.matmul %371, %372, %cst_174 {dimension_numbers = #tpu.dot_dimension_numbers<[1], [0], [0], [1], [0, 0, 1, 1], [], []>} : vector<32x128xf32>, vector<128x64xf32>, vector<32x64xf32> -> vector<32x64xf32>
    %cst_175 = arith.constant 0.000000e+00 : f32
    %374 = vector.broadcast %cst_175 : f32 to vector<32x64xf32>
    %375 = arith.cmpf ogt, %373, %374 : vector<32x64xf32>
    %376 = math.exp %373 : vector<32x64xf32>
    %cst_176 = arith.constant 1.000000e+00 : f32
    %377 = vector.broadcast %cst_176 : f32 to vector<32x64xf32>
    %378 = arith.subf %376, %377 : vector<32x64xf32>
    %379 = arith.select %375, %373, %378 : vector<32x64xi1>, vector<32x64xf32>
    %cst_177 = arith.constant 0.000000e+00 : f32
    %380 = vector.broadcast %cst_177 : f32 to vector<32x6xf32>
    %381 = tpu.concatenate %380, %379 in 1 : vector<32x6xf32>, vector<32x64xf32> -> vector<32x70xf32>
    %382 = vector.extract_strided_slice %381 {offsets = [0, 0], sizes = [32, 64], strides = [1, 1]} : vector<32x70xf32> to vector<32x64xf32>
    %383 = vector.extract_strided_slice %381 {offsets = [0, 1], sizes = [32, 64], strides = [1, 1]} : vector<32x70xf32> to vector<32x64xf32>
    %384 = vector.extract_strided_slice %381 {offsets = [0, 2], sizes = [32, 64], strides = [1, 1]} : vector<32x70xf32> to vector<32x64xf32>
    %385 = vector.extract_strided_slice %381 {offsets = [0, 3], sizes = [32, 64], strides = [1, 1]} : vector<32x70xf32> to vector<32x64xf32>
    %386 = vector.extract_strided_slice %381 {offsets = [0, 4], sizes = [32, 64], strides = [1, 1]} : vector<32x70xf32> to vector<32x64xf32>
    %387 = vector.extract_strided_slice %381 {offsets = [0, 5], sizes = [32, 64], strides = [1, 1]} : vector<32x70xf32> to vector<32x64xf32>
    %388 = vector.extract_strided_slice %381 {offsets = [0, 6], sizes = [32, 64], strides = [1, 1]} : vector<32x70xf32> to vector<32x64xf32>
    %389 = tpu.concatenate %382, %383, %384, %385, %386, %387, %388 in 0 : vector<32x64xf32>, vector<32x64xf32>, vector<32x64xf32>, vector<32x64xf32>, vector<32x64xf32>, vector<32x64xf32>, vector<32x64xf32> -> vector<224x64xf32>
    %c0_178 = arith.constant 0 : index
    %c0_179 = arith.constant 0 : index
    %390 = vector.load %arg49[%c0_178, %c0_179] : memref<32x224xf32, #tpu.memory_space<vmem>>, vector<32x224xf32>
    %cst_180 = arith.constant dense<0.000000e+00> : vector<32x64xf32>
    %391 = tpu.matmul %390, %389, %cst_180 {dimension_numbers = #tpu.dot_dimension_numbers<[1], [0], [0], [1], [0, 0, 1, 1], [], []>} : vector<32x224xf32>, vector<224x64xf32>, vector<32x64xf32> -> vector<32x64xf32>
    %c0_181 = arith.constant 0 : index
    %c0_182 = arith.constant 0 : index
    %392 = vector.load %arg50[%c0_181, %c0_182] : memref<32x1xf32, #tpu.memory_space<vmem>>, vector<32x1xf32>
    %393 = vector.broadcast %392 : vector<32x1xf32> to vector<32x64xf32>
    %394 = arith.addf %391, %393 : vector<32x64xf32>
    %cst_183 = arith.constant 0.000000e+00 : f32
    %395 = vector.broadcast %cst_183 : f32 to vector<32x64xf32>
    %396 = arith.cmpf ogt, %394, %395 : vector<32x64xf32>
    %397 = math.exp %394 : vector<32x64xf32>
    %cst_184 = arith.constant 1.000000e+00 : f32
    %398 = vector.broadcast %cst_184 : f32 to vector<32x64xf32>
    %399 = arith.subf %397, %398 : vector<32x64xf32>
    %400 = arith.select %396, %394, %399 : vector<32x64xi1>, vector<32x64xf32>
    %c0_185 = arith.constant 0 : index
    %c0_186 = arith.constant 0 : index
    %401 = vector.load %arg51[%c0_185, %c0_186] : memref<32x32xf32, #tpu.memory_space<vmem>>, vector<32x32xf32>
    %cst_187 = arith.constant dense<0.000000e+00> : vector<32x64xf32>
    %402 = tpu.matmul %401, %400, %cst_187 {dimension_numbers = #tpu.dot_dimension_numbers<[1], [0], [0], [1], [0, 0, 1, 1], [], []>} : vector<32x32xf32>, vector<32x64xf32>, vector<32x64xf32> -> vector<32x64xf32>
    %c0_188 = arith.constant 0 : index
    %c0_189 = arith.constant 0 : index
    %403 = vector.load %arg52[%c0_188, %c0_189] : memref<32x1xf32, #tpu.memory_space<vmem>>, vector<32x1xf32>
    %404 = vector.broadcast %403 : vector<32x1xf32> to vector<32x64xf32>
    %405 = arith.addf %402, %404 : vector<32x64xf32>
    %406 = arith.addf %379, %405 : vector<32x64xf32>
    %cst_190 = arith.constant 0.000000e+00 : f32
    %407 = vector.broadcast %cst_190 : f32 to vector<32x64xf32>
    %408 = arith.cmpf ogt, %406, %407 : vector<32x64xf32>
    %409 = math.exp %406 : vector<32x64xf32>
    %cst_191 = arith.constant 1.000000e+00 : f32
    %410 = vector.broadcast %cst_191 : f32 to vector<32x64xf32>
    %411 = arith.subf %409, %410 : vector<32x64xf32>
    %412 = arith.select %408, %406, %411 : vector<32x64xi1>, vector<32x64xf32>
    %cst_192 = arith.constant 0.000000e+00 : f32
    %413 = vector.broadcast %cst_192 : f32 to vector<32x18xf32>
    %414 = tpu.concatenate %413, %412 in 1 : vector<32x18xf32>, vector<32x64xf32> -> vector<32x82xf32>
    %415 = vector.extract_strided_slice %414 {offsets = [0, 0], sizes = [32, 64], strides = [1, 1]} : vector<32x82xf32> to vector<32x64xf32>
    %416 = vector.extract_strided_slice %414 {offsets = [0, 3], sizes = [32, 64], strides = [1, 1]} : vector<32x82xf32> to vector<32x64xf32>
    %417 = vector.extract_strided_slice %414 {offsets = [0, 6], sizes = [32, 64], strides = [1, 1]} : vector<32x82xf32> to vector<32x64xf32>
    %418 = vector.extract_strided_slice %414 {offsets = [0, 9], sizes = [32, 64], strides = [1, 1]} : vector<32x82xf32> to vector<32x64xf32>
    %419 = vector.extract_strided_slice %414 {offsets = [0, 12], sizes = [32, 64], strides = [1, 1]} : vector<32x82xf32> to vector<32x64xf32>
    %420 = vector.extract_strided_slice %414 {offsets = [0, 15], sizes = [32, 64], strides = [1, 1]} : vector<32x82xf32> to vector<32x64xf32>
    %421 = vector.extract_strided_slice %414 {offsets = [0, 18], sizes = [32, 64], strides = [1, 1]} : vector<32x82xf32> to vector<32x64xf32>
    %422 = tpu.concatenate %415, %416, %417, %418, %419, %420, %421 in 0 : vector<32x64xf32>, vector<32x64xf32>, vector<32x64xf32>, vector<32x64xf32>, vector<32x64xf32>, vector<32x64xf32>, vector<32x64xf32> -> vector<224x64xf32>
    %c0_193 = arith.constant 0 : index
    %c0_194 = arith.constant 0 : index
    %423 = vector.load %arg53[%c0_193, %c0_194] : memref<32x224xf32, #tpu.memory_space<vmem>>, vector<32x224xf32>
    %cst_195 = arith.constant dense<0.000000e+00> : vector<32x64xf32>
    %424 = tpu.matmul %423, %422, %cst_195 {dimension_numbers = #tpu.dot_dimension_numbers<[1], [0], [0], [1], [0, 0, 1, 1], [], []>} : vector<32x224xf32>, vector<224x64xf32>, vector<32x64xf32> -> vector<32x64xf32>
    %c0_196 = arith.constant 0 : index
    %c0_197 = arith.constant 0 : index
    %425 = vector.load %arg54[%c0_196, %c0_197] : memref<32x1xf32, #tpu.memory_space<vmem>>, vector<32x1xf32>
    %426 = vector.broadcast %425 : vector<32x1xf32> to vector<32x64xf32>
    %427 = arith.addf %424, %426 : vector<32x64xf32>
    %cst_198 = arith.constant 0.000000e+00 : f32
    %428 = vector.broadcast %cst_198 : f32 to vector<32x64xf32>
    %429 = arith.cmpf ogt, %427, %428 : vector<32x64xf32>
    %430 = math.exp %427 : vector<32x64xf32>
    %cst_199 = arith.constant 1.000000e+00 : f32
    %431 = vector.broadcast %cst_199 : f32 to vector<32x64xf32>
    %432 = arith.subf %430, %431 : vector<32x64xf32>
    %433 = arith.select %429, %427, %432 : vector<32x64xi1>, vector<32x64xf32>
    %c0_200 = arith.constant 0 : index
    %c0_201 = arith.constant 0 : index
    %434 = vector.load %arg55[%c0_200, %c0_201] : memref<32x32xf32, #tpu.memory_space<vmem>>, vector<32x32xf32>
    %cst_202 = arith.constant dense<0.000000e+00> : vector<32x64xf32>
    %435 = tpu.matmul %434, %433, %cst_202 {dimension_numbers = #tpu.dot_dimension_numbers<[1], [0], [0], [1], [0, 0, 1, 1], [], []>} : vector<32x32xf32>, vector<32x64xf32>, vector<32x64xf32> -> vector<32x64xf32>
    %c0_203 = arith.constant 0 : index
    %c0_204 = arith.constant 0 : index
    %436 = vector.load %arg56[%c0_203, %c0_204] : memref<32x1xf32, #tpu.memory_space<vmem>>, vector<32x1xf32>
    %437 = vector.broadcast %436 : vector<32x1xf32> to vector<32x64xf32>
    %438 = arith.addf %435, %437 : vector<32x64xf32>
    %439 = arith.addf %412, %438 : vector<32x64xf32>
    %cst_205 = arith.constant 0.000000e+00 : f32
    %440 = vector.broadcast %cst_205 : f32 to vector<32x64xf32>
    %441 = arith.cmpf ogt, %439, %440 : vector<32x64xf32>
    %442 = math.exp %439 : vector<32x64xf32>
    %cst_206 = arith.constant 1.000000e+00 : f32
    %443 = vector.broadcast %cst_206 : f32 to vector<32x64xf32>
    %444 = arith.subf %442, %443 : vector<32x64xf32>
    %445 = arith.select %441, %439, %444 : vector<32x64xi1>, vector<32x64xf32>
    %cst_207 = arith.constant 0.000000e+00 : f32
    %446 = vector.broadcast %cst_207 : f32 to vector<32x54xf32>
    %447 = tpu.concatenate %446, %445 in 1 : vector<32x54xf32>, vector<32x64xf32> -> vector<32x118xf32>
    %448 = vector.extract_strided_slice %447 {offsets = [0, 0], sizes = [32, 64], strides = [1, 1]} : vector<32x118xf32> to vector<32x64xf32>
    %449 = vector.extract_strided_slice %447 {offsets = [0, 9], sizes = [32, 64], strides = [1, 1]} : vector<32x118xf32> to vector<32x64xf32>
    %450 = vector.extract_strided_slice %447 {offsets = [0, 18], sizes = [32, 64], strides = [1, 1]} : vector<32x118xf32> to vector<32x64xf32>
    %451 = vector.extract_strided_slice %447 {offsets = [0, 27], sizes = [32, 64], strides = [1, 1]} : vector<32x118xf32> to vector<32x64xf32>
    %452 = vector.extract_strided_slice %447 {offsets = [0, 36], sizes = [32, 64], strides = [1, 1]} : vector<32x118xf32> to vector<32x64xf32>
    %453 = vector.extract_strided_slice %447 {offsets = [0, 45], sizes = [32, 64], strides = [1, 1]} : vector<32x118xf32> to vector<32x64xf32>
    %454 = vector.extract_strided_slice %447 {offsets = [0, 54], sizes = [32, 64], strides = [1, 1]} : vector<32x118xf32> to vector<32x64xf32>
    %455 = tpu.concatenate %448, %449, %450, %451, %452, %453, %454 in 0 : vector<32x64xf32>, vector<32x64xf32>, vector<32x64xf32>, vector<32x64xf32>, vector<32x64xf32>, vector<32x64xf32>, vector<32x64xf32> -> vector<224x64xf32>
    %c0_208 = arith.constant 0 : index
    %c0_209 = arith.constant 0 : index
    %456 = vector.load %arg57[%c0_208, %c0_209] : memref<32x224xf32, #tpu.memory_space<vmem>>, vector<32x224xf32>
    %cst_210 = arith.constant dense<0.000000e+00> : vector<32x64xf32>
    %457 = tpu.matmul %456, %455, %cst_210 {dimension_numbers = #tpu.dot_dimension_numbers<[1], [0], [0], [1], [0, 0, 1, 1], [], []>} : vector<32x224xf32>, vector<224x64xf32>, vector<32x64xf32> -> vector<32x64xf32>
    %c0_211 = arith.constant 0 : index
    %c0_212 = arith.constant 0 : index
    %458 = vector.load %arg58[%c0_211, %c0_212] : memref<32x1xf32, #tpu.memory_space<vmem>>, vector<32x1xf32>
    %459 = vector.broadcast %458 : vector<32x1xf32> to vector<32x64xf32>
    %460 = arith.addf %457, %459 : vector<32x64xf32>
    %cst_213 = arith.constant 0.000000e+00 : f32
    %461 = vector.broadcast %cst_213 : f32 to vector<32x64xf32>
    %462 = arith.cmpf ogt, %460, %461 : vector<32x64xf32>
    %463 = math.exp %460 : vector<32x64xf32>
    %cst_214 = arith.constant 1.000000e+00 : f32
    %464 = vector.broadcast %cst_214 : f32 to vector<32x64xf32>
    %465 = arith.subf %463, %464 : vector<32x64xf32>
    %466 = arith.select %462, %460, %465 : vector<32x64xi1>, vector<32x64xf32>
    %c0_215 = arith.constant 0 : index
    %c0_216 = arith.constant 0 : index
    %467 = vector.load %arg59[%c0_215, %c0_216] : memref<32x32xf32, #tpu.memory_space<vmem>>, vector<32x32xf32>
    %cst_217 = arith.constant dense<0.000000e+00> : vector<32x64xf32>
    %468 = tpu.matmul %467, %466, %cst_217 {dimension_numbers = #tpu.dot_dimension_numbers<[1], [0], [0], [1], [0, 0, 1, 1], [], []>} : vector<32x32xf32>, vector<32x64xf32>, vector<32x64xf32> -> vector<32x64xf32>
    %c0_218 = arith.constant 0 : index
    %c0_219 = arith.constant 0 : index
    %469 = vector.load %arg60[%c0_218, %c0_219] : memref<32x1xf32, #tpu.memory_space<vmem>>, vector<32x1xf32>
    %470 = vector.broadcast %469 : vector<32x1xf32> to vector<32x64xf32>
    %471 = arith.addf %468, %470 : vector<32x64xf32>
    %472 = arith.addf %445, %471 : vector<32x64xf32>
    %cst_220 = arith.constant 0.000000e+00 : f32
    %473 = vector.broadcast %cst_220 : f32 to vector<32x64xf32>
    %474 = arith.cmpf ogt, %472, %473 : vector<32x64xf32>
    %475 = math.exp %472 : vector<32x64xf32>
    %cst_221 = arith.constant 1.000000e+00 : f32
    %476 = vector.broadcast %cst_221 : f32 to vector<32x64xf32>
    %477 = arith.subf %475, %476 : vector<32x64xf32>
    %478 = arith.select %474, %472, %477 : vector<32x64xi1>, vector<32x64xf32>
    %cst_222 = arith.constant 0.000000e+00 : f32
    %479 = vector.broadcast %cst_222 : f32 to vector<32x3xf32>
    %480 = tpu.concatenate %479, %478 in 1 : vector<32x3xf32>, vector<32x64xf32> -> vector<32x67xf32>
    %481 = vector.extract_strided_slice %480 {offsets = [0, 0], sizes = [32, 64], strides = [1, 1]} : vector<32x67xf32> to vector<32x64xf32>
    %482 = vector.extract_strided_slice %480 {offsets = [0, 1], sizes = [32, 64], strides = [1, 1]} : vector<32x67xf32> to vector<32x64xf32>
    %483 = vector.extract_strided_slice %480 {offsets = [0, 2], sizes = [32, 64], strides = [1, 1]} : vector<32x67xf32> to vector<32x64xf32>
    %484 = vector.extract_strided_slice %480 {offsets = [0, 3], sizes = [32, 64], strides = [1, 1]} : vector<32x67xf32> to vector<32x64xf32>
    %485 = tpu.concatenate %481, %482, %483, %484 in 0 : vector<32x64xf32>, vector<32x64xf32>, vector<32x64xf32>, vector<32x64xf32> -> vector<128x64xf32>
    %c0_223 = arith.constant 0 : index
    %c0_224 = arith.constant 0 : index
    %486 = vector.load %arg61[%c0_223, %c0_224] : memref<64x128xf32, #tpu.memory_space<vmem>>, vector<64x128xf32>
    %cst_225 = arith.constant dense<0.000000e+00> : vector<64x64xf32>
    %487 = tpu.matmul %486, %485, %cst_225 {dimension_numbers = #tpu.dot_dimension_numbers<[1], [0], [0], [1], [0, 0, 1, 1], [], []>} : vector<64x128xf32>, vector<128x64xf32>, vector<64x64xf32> -> vector<64x64xf32>
    %c0_226 = arith.constant 0 : index
    %c0_227 = arith.constant 0 : index
    %488 = vector.load %arg62[%c0_226, %c0_227] : memref<64x1xf32, #tpu.memory_space<vmem>>, vector<64x1xf32>
    %489 = vector.broadcast %488 : vector<64x1xf32> to vector<64x64xf32>
    %490 = arith.addf %487, %489 : vector<64x64xf32>
    %c0_228 = arith.constant 0 : index
    %c0_229 = arith.constant 0 : index
    %491 = vector.load %arg63[%c0_228, %c0_229] : memref<64x32xf32, #tpu.memory_space<vmem>>, vector<64x32xf32>
    %cst_230 = arith.constant dense<0.000000e+00> : vector<64x32xf32>
    %492 = tpu.matmul %490, %491, %cst_230 {dimension_numbers = #tpu.dot_dimension_numbers<[1], [0], [0], [1], [0, 0, 1, 1], [], []>} : vector<64x64xf32>, vector<64x32xf32>, vector<64x32xf32> -> vector<64x32xf32>
    %cst_231 = arith.constant 0.000000e+00 : f32
    %493 = vector.broadcast %cst_231 : f32 to vector<64x32xf32>
    %494 = arith.cmpf ogt, %492, %493 : vector<64x32xf32>
    %495 = math.exp %492 : vector<64x32xf32>
    %cst_232 = arith.constant 1.000000e+00 : f32
    %496 = vector.broadcast %cst_232 : f32 to vector<64x32xf32>
    %497 = arith.subf %495, %496 : vector<64x32xf32>
    %498 = arith.select %494, %492, %497 : vector<64x32xi1>, vector<64x32xf32>
    %cst_233 = arith.constant 0.000000e+00 : f32
    %499 = vector.broadcast %cst_233 : f32 to vector<64x2xf32>
    %500 = tpu.concatenate %499, %498 in 1 : vector<64x2xf32>, vector<64x32xf32> -> vector<64x34xf32>
    %501 = vector.extract_strided_slice %500 {offsets = [0, 0], sizes = [64, 32], strides = [1, 1]} : vector<64x34xf32> to vector<64x32xf32>
    %502 = vector.extract_strided_slice %500 {offsets = [0, 1], sizes = [64, 32], strides = [1, 1]} : vector<64x34xf32> to vector<64x32xf32>
    %503 = vector.extract_strided_slice %500 {offsets = [0, 2], sizes = [64, 32], strides = [1, 1]} : vector<64x34xf32> to vector<64x32xf32>
    %504 = tpu.concatenate %501, %502, %503 in 0 : vector<64x32xf32>, vector<64x32xf32>, vector<64x32xf32> -> vector<192x32xf32>
    %c0_234 = arith.constant 0 : index
    %c0_235 = arith.constant 0 : index
    %505 = vector.load %arg64[%c0_234, %c0_235] : memref<32x192xf32, #tpu.memory_space<vmem>>, vector<32x192xf32>
    %cst_236 = arith.constant dense<0.000000e+00> : vector<32x32xf32>
    %506 = tpu.matmul %505, %504, %cst_236 {dimension_numbers = #tpu.dot_dimension_numbers<[1], [0], [0], [1], [0, 0, 1, 1], [], []>} : vector<32x192xf32>, vector<192x32xf32>, vector<32x32xf32> -> vector<32x32xf32>
    %c0_237 = arith.constant 0 : index
    %c0_238 = arith.constant 0 : index
    %507 = vector.load %arg65[%c0_237, %c0_238] : memref<32x1xf32, #tpu.memory_space<vmem>>, vector<32x1xf32>
    %508 = vector.broadcast %507 : vector<32x1xf32> to vector<32x32xf32>
    %509 = arith.addf %506, %508 : vector<32x32xf32>
    %c0_239 = arith.constant 0 : index
    %c0_240 = arith.constant 0 : index
    %c0_241 = arith.constant 0 : index
    %510 = vector.load %arg66[%c0_239, %c0_240, %c0_241] : memref<1x32x32xf32, #tpu.memory_space<vmem>>, vector<1x32x32xf32>
    %511 = vector.shape_cast %510 : vector<1x32x32xf32> to vector<32x32xf32>
    %512 = vector.shape_cast %509 : vector<32x32xf32> to vector<1x32x32xf32>
    tpu.vector_store %arg66[%c0_239, %c0_240, %c0_241], %512 {strides = array<i32>} : memref<1x32x32xf32, #tpu.memory_space<vmem>>, vector<1x32x32xf32>,
    return
  }
  func.func @transform_0(%arg0: i32) -> (i32, i32, i32) {
    %c0_i32 = arith.constant 0 : i32
    %c0_i32_0 = arith.constant 0 : i32
    %c0_i32_1 = arith.constant 0 : i32
    return %arg0, %c0_i32, %c0_i32_0 : i32, i32, i32
  }
  func.func @transform_1(%arg0: i32) -> (i32, i32) {
    %c0_i32 = arith.constant 0 : i32
    %c0_i32_0 = arith.constant 0 : i32
    %c0_i32_1 = arith.constant 0 : i32
    return %c0_i32, %c0_i32_0 : i32, i32
  }
  func.func @transform_2(%arg0: i32) -> (i32, i32) {
    %c0_i32 = arith.constant 0 : i32
    %c0_i32_0 = arith.constant 0 : i32
    %c0_i32_1 = arith.constant 0 : i32
    return %c0_i32, %c0_i32_0 : i32, i32
  }
  func.func @transform_3(%arg0: i32) -> (i32, i32) {
    %c0_i32 = arith.constant 0 : i32
    %c0_i32_0 = arith.constant 0 : i32
    %c0_i32_1 = arith.constant 0 : i32
    return %c0_i32, %c0_i32_0 : i32, i32
  }
  func.func @transform_4(%arg0: i32) -> (i32, i32) {
    %c0_i32 = arith.constant 0 : i32
    %c0_i32_0 = arith.constant 0 : i32
    %c0_i32_1 = arith.constant 0 : i32
    return %c0_i32, %c0_i32_0 : i32, i32
  }
  func.func @transform_5(%arg0: i32) -> (i32, i32) {
    %c0_i32 = arith.constant 0 : i32
    %c0_i32_0 = arith.constant 0 : i32
    %c0_i32_1 = arith.constant 0 : i32
    return %c0_i32, %c0_i32_0 : i32, i32
  }
  func.func @transform_6(%arg0: i32) -> (i32, i32) {
    %c0_i32 = arith.constant 0 : i32
    %c0_i32_0 = arith.constant 0 : i32
    %c0_i32_1 = arith.constant 0 : i32
    return %c0_i32, %c0_i32_0 : i32, i32
  }
  func.func @transform_7(%arg0: i32) -> (i32, i32) {
    %c0_i32 = arith.constant 0 : i32
    %c0_i32_0 = arith.constant 0 : i32
    %c0_i32_1 = arith.constant 0 : i32
    return %c0_i32, %c0_i32_0 : i32, i32
  }
  func.func @transform_8(%arg0: i32) -> (i32, i32) {
    %c0_i32 = arith.constant 0 : i32
    %c0_i32_0 = arith.constant 0 : i32
    %c0_i32_1 = arith.constant 0 : i32
    return %c0_i32, %c0_i32_0 : i32, i32
  }
  func.func @transform_9(%arg0: i32) -> (i32, i32) {
    %c0_i32 = arith.constant 0 : i32
    %c0_i32_0 = arith.constant 0 : i32
    %c0_i32_1 = arith.constant 0 : i32
    return %c0_i32, %c0_i32_0 : i32, i32
  }
  func.func @transform_10(%arg0: i32) -> (i32, i32) {
    %c0_i32 = arith.constant 0 : i32
    %c0_i32_0 = arith.constant 0 : i32
    %c0_i32_1 = arith.constant 0 : i32
    return %c0_i32, %c0_i32_0 : i32, i32
  }
  func.func @transform_11(%arg0: i32) -> (i32, i32) {
    %c0_i32 = arith.constant 0 : i32
    %c0_i32_0 = arith.constant 0 : i32
    %c0_i32_1 = arith.constant 0 : i32
    return %c0_i32, %c0_i32_0 : i32, i32
  }
  func.func @transform_12(%arg0: i32) -> (i32, i32) {
    %c0_i32 = arith.constant 0 : i32
    %c0_i32_0 = arith.constant 0 : i32
    %c0_i32_1 = arith.constant 0 : i32
    return %c0_i32, %c0_i32_0 : i32, i32
  }
  func.func @transform_13(%arg0: i32) -> (i32, i32) {
    %c0_i32 = arith.constant 0 : i32
    %c0_i32_0 = arith.constant 0 : i32
    %c0_i32_1 = arith.constant 0 : i32
    return %c0_i32, %c0_i32_0 : i32, i32
  }
  func.func @transform_14(%arg0: i32) -> (i32, i32) {
    %c0_i32 = arith.constant 0 : i32
    %c0_i32_0 = arith.constant 0 : i32
    %c0_i32_1 = arith.constant 0 : i32
    return %c0_i32, %c0_i32_0 : i32, i32
  }
  func.func @transform_15(%arg0: i32) -> (i32, i32) {
    %c0_i32 = arith.constant 0 : i32
    %c0_i32_0 = arith.constant 0 : i32
    %c0_i32_1 = arith.constant 0 : i32
    return %c0_i32, %c0_i32_0 : i32, i32
  }
  func.func @transform_16(%arg0: i32) -> (i32, i32) {
    %c0_i32 = arith.constant 0 : i32
    %c0_i32_0 = arith.constant 0 : i32
    %c0_i32_1 = arith.constant 0 : i32
    return %c0_i32, %c0_i32_0 : i32, i32
  }
  func.func @transform_17(%arg0: i32) -> (i32, i32) {
    %c0_i32 = arith.constant 0 : i32
    %c0_i32_0 = arith.constant 0 : i32
    %c0_i32_1 = arith.constant 0 : i32
    return %c0_i32, %c0_i32_0 : i32, i32
  }
  func.func @transform_18(%arg0: i32) -> (i32, i32) {
    %c0_i32 = arith.constant 0 : i32
    %c0_i32_0 = arith.constant 0 : i32
    %c0_i32_1 = arith.constant 0 : i32
    return %c0_i32, %c0_i32_0 : i32, i32
  }
  func.func @transform_19(%arg0: i32) -> (i32, i32) {
    %c0_i32 = arith.constant 0 : i32
    %c0_i32_0 = arith.constant 0 : i32
    %c0_i32_1 = arith.constant 0 : i32
    return %c0_i32, %c0_i32_0 : i32, i32
  }
  func.func @transform_20(%arg0: i32) -> (i32, i32) {
    %c0_i32 = arith.constant 0 : i32
    %c0_i32_0 = arith.constant 0 : i32
    %c0_i32_1 = arith.constant 0 : i32
    return %c0_i32, %c0_i32_0 : i32, i32
  }
  func.func @transform_21(%arg0: i32) -> (i32, i32) {
    %c0_i32 = arith.constant 0 : i32
    %c0_i32_0 = arith.constant 0 : i32
    %c0_i32_1 = arith.constant 0 : i32
    return %c0_i32, %c0_i32_0 : i32, i32
  }
  func.func @transform_22(%arg0: i32) -> (i32, i32) {
    %c0_i32 = arith.constant 0 : i32
    %c0_i32_0 = arith.constant 0 : i32
    %c0_i32_1 = arith.constant 0 : i32
    return %c0_i32, %c0_i32_0 : i32, i32
  }
  func.func @transform_23(%arg0: i32) -> (i32, i32) {
    %c0_i32 = arith.constant 0 : i32
    %c0_i32_0 = arith.constant 0 : i32
    %c0_i32_1 = arith.constant 0 : i32
    return %c0_i32, %c0_i32_0 : i32, i32
  }
  func.func @transform_24(%arg0: i32) -> (i32, i32) {
    %c0_i32 = arith.constant 0 : i32
    %c0_i32_0 = arith.constant 0 : i32
    %c0_i32_1 = arith.constant 0 : i32
    return %c0_i32, %c0_i32_0 : i32, i32
  }
  func.func @transform_25(%arg0: i32) -> (i32, i32) {
    %c0_i32 = arith.constant 0 : i32
    %c0_i32_0 = arith.constant 0 : i32
    %c0_i32_1 = arith.constant 0 : i32
    return %c0_i32, %c0_i32_0 : i32, i32
  }
  func.func @transform_26(%arg0: i32) -> (i32, i32) {
    %c0_i32 = arith.constant 0 : i32
    %c0_i32_0 = arith.constant 0 : i32
    %c0_i32_1 = arith.constant 0 : i32
    return %c0_i32, %c0_i32_0 : i32, i32
  }
  func.func @transform_27(%arg0: i32) -> (i32, i32) {
    %c0_i32 = arith.constant 0 : i32
    %c0_i32_0 = arith.constant 0 : i32
    %c0_i32_1 = arith.constant 0 : i32
    return %c0_i32, %c0_i32_0 : i32, i32
  }
  func.func @transform_28(%arg0: i32) -> (i32, i32) {
    %c0_i32 = arith.constant 0 : i32
    %c0_i32_0 = arith.constant 0 : i32
    %c0_i32_1 = arith.constant 0 : i32
    return %c0_i32, %c0_i32_0 : i32, i32
  }
  func.func @transform_29(%arg0: i32) -> (i32, i32) {
    %c0_i32 = arith.constant 0 : i32
    %c0_i32_0 = arith.constant 0 : i32
    %c0_i32_1 = arith.constant 0 : i32
    return %c0_i32, %c0_i32_0 : i32, i32
  }
  func.func @transform_30(%arg0: i32) -> (i32, i32) {
    %c0_i32 = arith.constant 0 : i32
    %c0_i32_0 = arith.constant 0 : i32
    %c0_i32_1 = arith.constant 0 : i32
    return %c0_i32, %c0_i32_0 : i32, i32
  }
  func.func @transform_31(%arg0: i32) -> (i32, i32) {
    %c0_i32 = arith.constant 0 : i32
    %c0_i32_0 = arith.constant 0 : i32
    %c0_i32_1 = arith.constant 0 : i32
    return %c0_i32, %c0_i32_0 : i32, i32
  }
  func.func @transform_32(%arg0: i32) -> (i32, i32) {
    %c0_i32 = arith.constant 0 : i32
    %c0_i32_0 = arith.constant 0 : i32
    %c0_i32_1 = arith.constant 0 : i32
    return %c0_i32, %c0_i32_0 : i32, i32
  }
  func.func @transform_33(%arg0: i32) -> (i32, i32) {
    %c0_i32 = arith.constant 0 : i32
    %c0_i32_0 = arith.constant 0 : i32
    %c0_i32_1 = arith.constant 0 : i32
    return %c0_i32, %c0_i32_0 : i32, i32
  }
  func.func @transform_34(%arg0: i32) -> (i32, i32) {
    %c0_i32 = arith.constant 0 : i32
    %c0_i32_0 = arith.constant 0 : i32
    %c0_i32_1 = arith.constant 0 : i32
    return %c0_i32, %c0_i32_0 : i32, i32
  }
  func.func @transform_35(%arg0: i32) -> (i32, i32) {
    %c0_i32 = arith.constant 0 : i32
    %c0_i32_0 = arith.constant 0 : i32
    %c0_i32_1 = arith.constant 0 : i32
    return %c0_i32, %c0_i32_0 : i32, i32
  }
  func.func @transform_36(%arg0: i32) -> (i32, i32) {
    %c0_i32 = arith.constant 0 : i32
    %c0_i32_0 = arith.constant 0 : i32
    %c0_i32_1 = arith.constant 0 : i32
    return %c0_i32, %c0_i32_0 : i32, i32
  }
  func.func @transform_37(%arg0: i32) -> (i32, i32) {
    %c0_i32 = arith.constant 0 : i32
    %c0_i32_0 = arith.constant 0 : i32
    %c0_i32_1 = arith.constant 0 : i32
    return %c0_i32, %c0_i32_0 : i32, i32
  }
  func.func @transform_38(%arg0: i32) -> (i32, i32) {
    %c0_i32 = arith.constant 0 : i32
    %c0_i32_0 = arith.constant 0 : i32
    %c0_i32_1 = arith.constant 0 : i32
    return %c0_i32, %c0_i32_0 : i32, i32
  }
  func.func @transform_39(%arg0: i32) -> (i32, i32) {
    %c0_i32 = arith.constant 0 : i32
    %c0_i32_0 = arith.constant 0 : i32
    %c0_i32_1 = arith.constant 0 : i32
    return %c0_i32, %c0_i32_0 : i32, i32
  }
  func.func @transform_40(%arg0: i32) -> (i32, i32) {
    %c0_i32 = arith.constant 0 : i32
    %c0_i32_0 = arith.constant 0 : i32
    %c0_i32_1 = arith.constant 0 : i32
    return %c0_i32, %c0_i32_0 : i32, i32
  }
  func.func @transform_41(%arg0: i32) -> (i32, i32) {
    %c0_i32 = arith.constant 0 : i32
    %c0_i32_0 = arith.constant 0 : i32
    %c0_i32_1 = arith.constant 0 : i32
    return %c0_i32, %c0_i32_0 : i32, i32
  }
  func.func @transform_42(%arg0: i32) -> (i32, i32) {
    %c0_i32 = arith.constant 0 : i32
    %c0_i32_0 = arith.constant 0 : i32
    %c0_i32_1 = arith.constant 0 : i32
    return %c0_i32, %c0_i32_0 : i32, i32
  }
  func.func @transform_43(%arg0: i32) -> (i32, i32) {
    %c0_i32 = arith.constant 0 : i32
    %c0_i32_0 = arith.constant 0 : i32
    %c0_i32_1 = arith.constant 0 : i32
    return %c0_i32, %c0_i32_0 : i32, i32
  }
  func.func @transform_44(%arg0: i32) -> (i32, i32) {
    %c0_i32 = arith.constant 0 : i32
    %c0_i32_0 = arith.constant 0 : i32
    %c0_i32_1 = arith.constant 0 : i32
    return %c0_i32, %c0_i32_0 : i32, i32
  }
  func.func @transform_45(%arg0: i32) -> (i32, i32) {
    %c0_i32 = arith.constant 0 : i32
    %c0_i32_0 = arith.constant 0 : i32
    %c0_i32_1 = arith.constant 0 : i32
    return %c0_i32, %c0_i32_0 : i32, i32
  }
  func.func @transform_46(%arg0: i32) -> (i32, i32) {
    %c0_i32 = arith.constant 0 : i32
    %c0_i32_0 = arith.constant 0 : i32
    %c0_i32_1 = arith.constant 0 : i32
    return %c0_i32, %c0_i32_0 : i32, i32
  }
  func.func @transform_47(%arg0: i32) -> (i32, i32) {
    %c0_i32 = arith.constant 0 : i32
    %c0_i32_0 = arith.constant 0 : i32
    %c0_i32_1 = arith.constant 0 : i32
    return %c0_i32, %c0_i32_0 : i32, i32
  }
  func.func @transform_48(%arg0: i32) -> (i32, i32) {
    %c0_i32 = arith.constant 0 : i32
    %c0_i32_0 = arith.constant 0 : i32
    %c0_i32_1 = arith.constant 0 : i32
    return %c0_i32, %c0_i32_0 : i32, i32
  }
  func.func @transform_49(%arg0: i32) -> (i32, i32) {
    %c0_i32 = arith.constant 0 : i32
    %c0_i32_0 = arith.constant 0 : i32
    %c0_i32_1 = arith.constant 0 : i32
    return %c0_i32, %c0_i32_0 : i32, i32
  }
  func.func @transform_50(%arg0: i32) -> (i32, i32) {
    %c0_i32 = arith.constant 0 : i32
    %c0_i32_0 = arith.constant 0 : i32
    %c0_i32_1 = arith.constant 0 : i32
    return %c0_i32, %c0_i32_0 : i32, i32
  }
  func.func @transform_51(%arg0: i32) -> (i32, i32) {
    %c0_i32 = arith.constant 0 : i32
    %c0_i32_0 = arith.constant 0 : i32
    %c0_i32_1 = arith.constant 0 : i32
    return %c0_i32, %c0_i32_0 : i32, i32
  }
  func.func @transform_52(%arg0: i32) -> (i32, i32) {
    %c0_i32 = arith.constant 0 : i32
    %c0_i32_0 = arith.constant 0 : i32
    %c0_i32_1 = arith.constant 0 : i32
    return %c0_i32, %c0_i32_0 : i32, i32
  }
  func.func @transform_53(%arg0: i32) -> (i32, i32) {
    %c0_i32 = arith.constant 0 : i32
    %c0_i32_0 = arith.constant 0 : i32
    %c0_i32_1 = arith.constant 0 : i32
    return %c0_i32, %c0_i32_0 : i32, i32
  }
  func.func @transform_54(%arg0: i32) -> (i32, i32) {
    %c0_i32 = arith.constant 0 : i32
    %c0_i32_0 = arith.constant 0 : i32
    %c0_i32_1 = arith.constant 0 : i32
    return %c0_i32, %c0_i32_0 : i32, i32
  }
  func.func @transform_55(%arg0: i32) -> (i32, i32) {
    %c0_i32 = arith.constant 0 : i32
    %c0_i32_0 = arith.constant 0 : i32
    %c0_i32_1 = arith.constant 0 : i32
    return %c0_i32, %c0_i32_0 : i32, i32
  }
  func.func @transform_56(%arg0: i32) -> (i32, i32) {
    %c0_i32 = arith.constant 0 : i32
    %c0_i32_0 = arith.constant 0 : i32
    %c0_i32_1 = arith.constant 0 : i32
    return %c0_i32, %c0_i32_0 : i32, i32
  }
  func.func @transform_57(%arg0: i32) -> (i32, i32) {
    %c0_i32 = arith.constant 0 : i32
    %c0_i32_0 = arith.constant 0 : i32
    %c0_i32_1 = arith.constant 0 : i32
    return %c0_i32, %c0_i32_0 : i32, i32
  }
  func.func @transform_58(%arg0: i32) -> (i32, i32) {
    %c0_i32 = arith.constant 0 : i32
    %c0_i32_0 = arith.constant 0 : i32
    %c0_i32_1 = arith.constant 0 : i32
    return %c0_i32, %c0_i32_0 : i32, i32
  }
  func.func @transform_59(%arg0: i32) -> (i32, i32) {
    %c0_i32 = arith.constant 0 : i32
    %c0_i32_0 = arith.constant 0 : i32
    %c0_i32_1 = arith.constant 0 : i32
    return %c0_i32, %c0_i32_0 : i32, i32
  }
  func.func @transform_60(%arg0: i32) -> (i32, i32) {
    %c0_i32 = arith.constant 0 : i32
    %c0_i32_0 = arith.constant 0 : i32
    %c0_i32_1 = arith.constant 0 : i32
    return %c0_i32, %c0_i32_0 : i32, i32
  }
  func.func @transform_61(%arg0: i32) -> (i32, i32) {
    %c0_i32 = arith.constant 0 : i32
    %c0_i32_0 = arith.constant 0 : i32
    %c0_i32_1 = arith.constant 0 : i32
    return %c0_i32, %c0_i32_0 : i32, i32
  }
  func.func @transform_62(%arg0: i32) -> (i32, i32) {
    %c0_i32 = arith.constant 0 : i32
    %c0_i32_0 = arith.constant 0 : i32
    %c0_i32_1 = arith.constant 0 : i32
    return %c0_i32, %c0_i32_0 : i32, i32
  }
  func.func @transform_63(%arg0: i32) -> (i32, i32) {
    %c0_i32 = arith.constant 0 : i32
    %c0_i32_0 = arith.constant 0 : i32
    %c0_i32_1 = arith.constant 0 : i32
    return %c0_i32, %c0_i32_0 : i32, i32
  }
  func.func @transform_64(%arg0: i32) -> (i32, i32) {
    %c0_i32 = arith.constant 0 : i32
    %c0_i32_0 = arith.constant 0 : i32
    %c0_i32_1 = arith.constant 0 : i32
    return %c0_i32, %c0_i32_0 : i32, i32
  }
  func.func @transform_65(%arg0: i32) -> (i32, i32, i32) {
    %c0_i32 = arith.constant 0 : i32
    %c0_i32_0 = arith.constant 0 : i32
    %c0_i32_1 = arith.constant 0 : i32
    return %arg0, %c0_i32, %c0_i32_0 : i32, i32, i32
  }
}

</mosaic_0001>

<llo_original>
// kernel: encoder_forward.1
$region0: #{encoder_forward.1}
  #allocation0 [shape = 'u32[]', space=smem, size = 0x4, offset = 0x4, fixed_abs, tag = 'smem constant byte address 0x4 - core index']
  #allocation1 [shape = 'u32[72,128]{1,0:T(1,128)}', space=vmem, size = 0x9000, scoped, tag = 'internal scratch']
  %s0 = inlined_call_operand.smem [shape: u32[66], index: -1, kind: input, shape index: {}]
  %s1 = sld [smem:[%s0]]
  %s2 = scalar_lea.smem %s0, 1
  %s3 = sld [smem:[%s2]]
  %s4 = scalar_lea.smem %s0, 2
  %s5 = sld [smem:[%s4]]
  %s6 = scalar_lea.smem %s0, 3
  %s7 = sld [smem:[%s6]]
  %s8 = scalar_lea.smem %s0, 4
  %s9 = sld [smem:[%s8]]
  %s10 = scalar_lea.smem %s0, 5
  %s11 = sld [smem:[%s10]]
  %s12 = scalar_lea.smem %s0, 6
  %s13 = sld [smem:[%s12]]
  %s14 = scalar_lea.smem %s0, 7
  %s15 = sld [smem:[%s14]]
  %s16 = scalar_lea.smem %s0, 8
  %s17 = sld [smem:[%s16]]
  %s18 = scalar_lea.smem %s0, 9
  %s19 = sld [smem:[%s18]]
  %s20 = scalar_lea.smem %s0, 10
  %s21 = sld [smem:[%s20]]
  %s22 = scalar_lea.smem %s0, 11
  %s23 = sld [smem:[%s22]]
  %s24 = scalar_lea.smem %s0, 12
  %s25 = sld [smem:[%s24]]
  %s26 = scalar_lea.smem %s0, 13
  %s27 = sld [smem:[%s26]]
  %s28 = scalar_lea.smem %s0, 14
  %s29 = sld [smem:[%s28]]
  %s30 = scalar_lea.smem %s0, 15
  %s31 = sld [smem:[%s30]]
  %s32 = scalar_lea.smem %s0, 16
  %s33 = sld [smem:[%s32]]
  %s34 = scalar_lea.smem %s0, 17
  %s35 = sld [smem:[%s34]]
  %s36 = scalar_lea.smem %s0, 18
  %s37 = sld [smem:[%s36]]
  %s38 = scalar_lea.smem %s0, 19
  %s39 = sld [smem:[%s38]]
  %s40 = scalar_lea.smem %s0, 20
  %s41 = sld [smem:[%s40]]
  %s42 = scalar_lea.smem %s0, 21
  %s43 = sld [smem:[%s42]]
  %s44 = scalar_lea.smem %s0, 22
  %s45 = sld [smem:[%s44]]
  %s46 = scalar_lea.smem %s0, 23
  %s47 = sld [smem:[%s46]]
  %s48 = scalar_lea.smem %s0, 24
  %s49 = sld [smem:[%s48]]
  %s50 = scalar_lea.smem %s0, 25
  %s51 = sld [smem:[%s50]]
  %s52 = scalar_lea.smem %s0, 26
  %s53 = sld [smem:[%s52]]
  %s54 = scalar_lea.smem %s0, 27
  %s55 = sld [smem:[%s54]]
  %s56 = scalar_lea.smem %s0, 28
  %s57 = sld [smem:[%s56]]
  %s58 = scalar_lea.smem %s0, 29
  %s59 = sld [smem:[%s58]]
  %s60 = scalar_lea.smem %s0, 30
  %s61 = sld [smem:[%s60]]
  %s62 = scalar_lea.smem %s0, 31
  %s63 = sld [smem:[%s62]]
  %s64 = scalar_lea.smem %s0, 32
  %s65 = sld [smem:[%s64]]
  %s66 = scalar_lea.smem %s0, 33
  %s67 = sld [smem:[%s66]]
  %s68 = scalar_lea.smem %s0, 34
  %s69 = sld [smem:[%s68]]
  %s70 = scalar_lea.smem %s0, 35
  %s71 = sld [smem:[%s70]]
  %s72 = scalar_lea.smem %s0, 36
  %s73 = sld [smem:[%s72]]
  %s74 = scalar_lea.smem %s0, 37
  %s75 = sld [smem:[%s74]]
  %s76 = scalar_lea.smem %s0, 38
  %s77 = sld [smem:[%s76]]
  %s78 = scalar_lea.smem %s0, 39
  %s79 = sld [smem:[%s78]]
  %s80 = scalar_lea.smem %s0, 40
  %s81 = sld [smem:[%s80]]
  %s82 = scalar_lea.smem %s0, 41
  %s83 = sld [smem:[%s82]]
  %s84 = scalar_lea.smem %s0, 42
  %s85 = sld [smem:[%s84]]
  %s86 = scalar_lea.smem %s0, 43
  %s87 = sld [smem:[%s86]]
  %s88 = scalar_lea.smem %s0, 44
  %s89 = sld [smem:[%s88]]
  %s90 = scalar_lea.smem %s0, 45
  %s91 = sld [smem:[%s90]]
  %s92 = scalar_lea.smem %s0, 46
  %s93 = sld [smem:[%s92]]
  %s94 = scalar_lea.smem %s0, 47
  %s95 = sld [smem:[%s94]]
  %s96 = scalar_lea.smem %s0, 48
  %s97 = sld [smem:[%s96]]
  %s98 = scalar_lea.smem %s0, 49
  %s99 = sld [smem:[%s98]]
  %s100 = scalar_lea.smem %s0, 50
  %s101 = sld [smem:[%s100]]
  %s102 = scalar_lea.smem %s0, 51
  %s103 = sld [smem:[%s102]]
  %s104 = scalar_lea.smem %s0, 52
  %s105 = sld [smem:[%s104]]
  %s106 = scalar_lea.smem %s0, 53
  %s107 = sld [smem:[%s106]]
  %s108 = scalar_lea.smem %s0, 54
  %s109 = sld [smem:[%s108]]
  %s110 = scalar_lea.smem %s0, 55
  %s111 = sld [smem:[%s110]]
  %s112 = scalar_lea.smem %s0, 56
  %s113 = sld [smem:[%s112]]
  %s114 = scalar_lea.smem %s0, 57
  %s115 = sld [smem:[%s114]]
  %s116 = scalar_lea.smem %s0, 58
  %s117 = sld [smem:[%s116]]
  %s118 = scalar_lea.smem %s0, 59
  %s119 = sld [smem:[%s118]]
  %s120 = scalar_lea.smem %s0, 60
  %s121 = sld [smem:[%s120]]
  %s122 = scalar_lea.smem %s0, 61
  %s123 = sld [smem:[%s122]]
  %s124 = scalar_lea.smem %s0, 62
  %s125 = sld [smem:[%s124]]
  %s126 = scalar_lea.smem %s0, 63
  %s127 = sld [smem:[%s126]]
  %s128 = scalar_lea.smem %s0, 64
  %s129 = sld [smem:[%s128]]
  %s130 = scalar_lea.smem %s0, 65
  %s131 = sld [smem:[%s130]]
  %s132 = sld [smem:[#allocation0]]
  $region325: #{encoder_forward.1} parent=0
    _
  %s134 = ssub.s32 1, %s132
  %s135 = scalar_select 0, %s134, %s132
  $region1: #{encoder_forward.1} parent=0
    #allocation2 [shape = 'u8[524288]{0}', space=vmem, size = 0x80000, scoped, tag = 'input window, operand 17, single buffered']
    #allocation3 [shape = 's32[2]{0}', space=sflag, size = 0x8, scoped, tag = 'scoped memory for encoder_forward.1']
    #allocation4 [shape = 's32[2]{0}', space=sflag, size = 0x8, scoped, tag = 'scoped memory for encoder_forward.1']
    #allocation5 [shape = 'u8[4096]{0}', space=vmem, size = 0x1000, scoped, tag = 'input window, operand 18, single buffered']
    #allocation6 [shape = 's32[1]{0}', space=sflag, size = 0x4, scoped, tag = 'scoped memory for encoder_forward.1']
    #allocation7 [shape = 'u8[4096]{0}', space=vmem, size = 0x1000, scoped, tag = 'input window, operand 20, single buffered']
    #allocation8 [shape = 'u8[4096]{0}', space=vmem, size = 0x1000, scoped, tag = 'input window, operand 22, single buffered']
    #allocation9 [shape = 's32[1]{0}', space=sflag, size = 0x4, scoped, tag = 'scoped memory for encoder_forward.1']
    #allocation10 [shape = 'u8[4096]{0}', space=vmem, size = 0x1000, scoped, tag = 'input window, operand 24, single buffered']
    #allocation11 [shape = 'u8[4096]{0}', space=vmem, size = 0x1000, scoped, tag = 'input window, operand 26, single buffered']
    #allocation12 [shape = 's32[1]{0}', space=sflag, size = 0x4, scoped, tag = 'scoped memory for encoder_forward.1']
    #allocation13 [shape = 'u8[4096]{0}', space=vmem, size = 0x1000, scoped, tag = 'input window, operand 28, single buffered']
    #allocation14 [shape = 'u8[131072]{0}', space=vmem, size = 0x20000, scoped, tag = 'input window, operand 32, single buffered']
    #allocation15 [shape = 's32[1]{0}', space=sflag, size = 0x4, scoped, tag = 'scoped memory for encoder_forward.1']
    #allocation16 [shape = 'u8[32768]{0}', space=vmem, size = 0x8000, scoped, tag = 'output window, operand 0']
    %136 = vsyncpa [#allocation3], 0
    %137 = vsyncpa [#allocation6], 0
    %138 = vsyncpa [#allocation9], 0
    %139 = vsyncpa [#allocation12], 0
    %140 = vsyncpa [#allocation15], 0
    %141 = vsyncpa [#allocation4], 0
    %s142 = scalar_lea.sflag [#allocation4], 1
    %143 = vsyncpa %s142, 0
    loop: start=0, step=1, limit=4
    $region2: #{encoder_forward.1} parent=1 // loop_pre_header
      _
    $region3: #{encoder_forward.1} parent=1 // loop_header
      %s145 = sphi 0, %s149
      %p146 = scmp.ge.s32.totalorder %s145, 4
      %s155 = sphi 0, %s157
      %s158 = sphi 0, %s155
      %s159 = sphi 0, %s158
      %s175 = sphi 0, %s159
      %s179 = sphi 0, %s179
      %s181 = sphi 0, %s179
      %s182 = sphi 0, %s181
      %s196 = sphi 0, %s182
      %s200 = sphi 0, %s200
      %s202 = sphi 0, %s200
      %s203 = sphi 0, %s202
      %s217 = sphi 0, %s203
      %s221 = sphi 0, %s221
      %s223 = sphi 0, %s221
      %s224 = sphi 0, %s223
      %s238 = sphi 0, %s224
      %s242 = sphi 0, %s242
      %s244 = sphi 0, %s242
      %s245 = sphi 0, %s244
      %s259 = sphi 0, %s245
      %s263 = sphi 0, %s263
      %s265 = sphi 0, %s263
      %s266 = sphi 0, %s265
      %s280 = sphi 0, %s266
      %s284 = sphi 0, %s284
      %s286 = sphi 0, %s284
      %s287 = sphi 0, %s286
      %s301 = sphi 0, %s287
      %s305 = sphi 0, %s305
      %s307 = sphi 0, %s305
      %s308 = sphi 0, %s307
      %s322 = sphi 0, %s308
      %s326 = sphi 0, %s326
      %s328 = sphi 0, %s326
      %s329 = sphi 0, %s328
      %s343 = sphi 0, %s329
      %s347 = sphi 0, %s347
      %s349 = sphi 0, %s347
      %s350 = sphi 0, %s349
      %s364 = sphi 0, %s350
      %s368 = sphi 0, %s368
      %s370 = sphi 0, %s368
      %s371 = sphi 0, %s370
      %s385 = sphi 0, %s371
      %s389 = sphi 0, %s389
      %s391 = sphi 0, %s389
      %s392 = sphi 0, %s391
      %s406 = sphi 0, %s392
      %s410 = sphi 0, %s410
      %s412 = sphi 0, %s410
      %s413 = sphi 0, %s412
      %s427 = sphi 0, %s413
      %s431 = sphi 0, %s431
      %s433 = sphi 0, %s431
      %s434 = sphi 0, %s433
      %s448 = sphi 0, %s434
      %s452 = sphi 0, %s452
      %s454 = sphi 0, %s452
      %s455 = sphi 0, %s454
      %s469 = sphi 0, %s455
      %s473 = sphi 0, %s473
      %s475 = sphi 0, %s473
      %s476 = sphi 0, %s475
      %s490 = sphi 0, %s476
      %s494 = sphi 0, %s494
      %s496 = sphi 0, %s494
      %s497 = sphi 0, %s496
      %s511 = sphi 0, %s497
      %s515 = sphi 0, %s515
      %s517 = sphi 0, %s515
      %s518 = sphi 0, %s517
      %s532 = sphi 0, %s518
      %s536 = sphi 0, %s536
      %s538 = sphi 0, %s536
      %s539 = sphi 0, %s538
      %s553 = sphi 0, %s539
      %s557 = sphi 0, %s557
      %s559 = sphi 0, %s557
      %s560 = sphi 0, %s559
      %s574 = sphi 0, %s560
      %s578 = sphi 0, %s578
      %s580 = sphi 0, %s578
      %s581 = sphi 0, %s580
      %s595 = sphi 0, %s581
      %s599 = sphi 0, %s599
      %s601 = sphi 0, %s599
      %s602 = sphi 0, %s601
      %s616 = sphi 0, %s602
      %s620 = sphi 0, %s620
      %s622 = sphi 0, %s620
      %s623 = sphi 0, %s622
      %s637 = sphi 0, %s623
      %s641 = sphi 0, %s641
      %s643 = sphi 0, %s641
      %s644 = sphi 0, %s643
      %s658 = sphi 0, %s644
      %s662 = sphi 0, %s662
      %s664 = sphi 0, %s662
      %s665 = sphi 0, %s664
      %s679 = sphi 0, %s665
      %s683 = sphi 0, %s683
      %s685 = sphi 0, %s683
      %s686 = sphi 0, %s685
      %s700 = sphi 0, %s686
      %s704 = sphi 0, %s704
      %s706 = sphi 0, %s704
      %s707 = sphi 0, %s706
      %s721 = sphi 0, %s707
      %s725 = sphi 0, %s725
      %s727 = sphi 0, %s725
      %s728 = sphi 0, %s727
      %s742 = sphi 0, %s728
      %s746 = sphi 0, %s746
      %s748 = sphi 0, %s746
      %s749 = sphi 0, %s748
      %s763 = sphi 0, %s749
      %s767 = sphi 0, %s767
      %s769 = sphi 0, %s767
      %s770 = sphi 0, %s769
      %s784 = sphi 0, %s770
      %s788 = sphi 0, %s788
      %s790 = sphi 0, %s788
      %s791 = sphi 0, %s790
      %s805 = sphi 0, %s791
      %s809 = sphi 0, %s809
      %s811 = sphi 0, %s809
      %s812 = sphi 0, %s811
      %s826 = sphi 0, %s812
      %s830 = sphi 0, %s830
      %s832 = sphi 0, %s830
      %s833 = sphi 0, %s832
      %s847 = sphi 0, %s833
      %s851 = sphi 0, %s851
      %s853 = sphi 0, %s851
      %s854 = sphi 0, %s853
      %s868 = sphi 0, %s854
      %s872 = sphi 0, %s872
      %s874 = sphi 0, %s872
      %s875 = sphi 0, %s874
      %s889 = sphi 0, %s875
      %s893 = sphi 0, %s893
      %s895 = sphi 0, %s893
      %s896 = sphi 0, %s895
      %s910 = sphi 0, %s896
      %s914 = sphi 0, %s914
      %s916 = sphi 0, %s914
      %s917 = sphi 0, %s916
      %s931 = sphi 0, %s917
      %s935 = sphi 0, %s935
      %s937 = sphi 0, %s935
      %s938 = sphi 0, %s937
      %s952 = sphi 0, %s938
      %s956 = sphi 0, %s956
      %s958 = sphi 0, %s956
      %s959 = sphi 0, %s958
      %s973 = sphi 0, %s959
      %s977 = sphi 0, %s977
      %s979 = sphi 0, %s977
      %s980 = sphi 0, %s979
      %s994 = sphi 0, %s980
      %s998 = sphi 0, %s998
      %s1000 = sphi 0, %s998
      %s1001 = sphi 0, %s1000
      %s1015 = sphi 0, %s1001
      %s1019 = sphi 0, %s1019
      %s1021 = sphi 0, %s1019
      %s1022 = sphi 0, %s1021
      %s1036 = sphi 0, %s1022
      %s1040 = sphi 0, %s1040
      %s1042 = sphi 0, %s1040
      %s1043 = sphi 0, %s1042
      %s1057 = sphi 0, %s1043
      %s1061 = sphi 0, %s1061
      %s1063 = sphi 0, %s1061
      %s1064 = sphi 0, %s1063
      %s1078 = sphi 0, %s1064
      %s1082 = sphi 0, %s1082
      %s1084 = sphi 0, %s1082
      %s1085 = sphi 0, %s1084
      %s1099 = sphi 0, %s1085
      %s1103 = sphi 0, %s1103
      %s1105 = sphi 0, %s1103
      %s1106 = sphi 0, %s1105
      %s1120 = sphi 0, %s1106
      %s1124 = sphi 0, %s1124
      %s1126 = sphi 0, %s1124
      %s1127 = sphi 0, %s1126
      %s1141 = sphi 0, %s1127
      %s1145 = sphi 0, %s1145
      %s1147 = sphi 0, %s1145
      %s1148 = sphi 0, %s1147
      %s1162 = sphi 0, %s1148
      %s1166 = sphi 0, %s1166
      %s1168 = sphi 0, %s1166
      %s1169 = sphi 0, %s1168
      %s1183 = sphi 0, %s1169
      %s1187 = sphi 0, %s1187
      %s1189 = sphi 0, %s1187
      %s1190 = sphi 0, %s1189
      %s1204 = sphi 0, %s1190
      %s1208 = sphi 0, %s1208
      %s1210 = sphi 0, %s1208
      %s1211 = sphi 0, %s1210
      %s1225 = sphi 0, %s1211
      %s1229 = sphi 0, %s1229
      %s1231 = sphi 0, %s1229
      %s1232 = sphi 0, %s1231
      %s1246 = sphi 0, %s1232
      %s1250 = sphi 0, %s1250
      %s1252 = sphi 0, %s1250
      %s1253 = sphi 0, %s1252
      %s1267 = sphi 0, %s1253
      %s1271 = sphi 0, %s1271
      %s1273 = sphi 0, %s1271
      %s1274 = sphi 0, %s1273
      %s1288 = sphi 0, %s1274
      %s1292 = sphi 0, %s1292
      %s1294 = sphi 0, %s1292
      %s1295 = sphi 0, %s1294
      %s1309 = sphi 0, %s1295
      %s1313 = sphi 0, %s1313
      %s1315 = sphi 0, %s1313
      %s1316 = sphi 0, %s1315
      %s1330 = sphi 0, %s1316
      %s1334 = sphi 0, %s1334
      %s1336 = sphi 0, %s1334
      %s1337 = sphi 0, %s1336
      %s1351 = sphi 0, %s1337
      %s1355 = sphi 0, %s1355
      %s1357 = sphi 0, %s1355
      %s1358 = sphi 0, %s1357
      %s1372 = sphi 0, %s1358
      %s1376 = sphi 0, %s1376
      %s1378 = sphi 0, %s1376
      %s1379 = sphi 0, %s1378
      %s1393 = sphi 0, %s1379
      %s1397 = sphi 0, %s1397
      %s1399 = sphi 0, %s1397
      %s1400 = sphi 0, %s1399
      %s1414 = sphi 0, %s1400
      %s1418 = sphi 0, %s1418
      %s1420 = sphi 0, %s1418
      %s1421 = sphi 0, %s1420
      %s1435 = sphi 0, %s1421
      %s1439 = sphi 0, %s1439
      %s1441 = sphi 0, %s1439
      %s1442 = sphi 0, %s1441
      %s1456 = sphi 0, %s1442
      %s1460 = sphi 0, %s1460
      %s1462 = sphi 0, %s1460
      %s1463 = sphi 0, %s1462
      %s1477 = sphi 0, %s1463
      %s1481 = sphi 0, %s1481
      %s1483 = sphi 0, %s1481
      %s1484 = sphi 0, %s1483
      %s1498 = sphi 0, %s1484
      %s1502 = sphi 0, %s1502
      %s1504 = sphi 0, %s1502
      %s1505 = sphi 0, %s1504
      %s1519 = sphi 0, %s1505
      %s1525 = sphi 0, %s1527
      %s1528 = sphi 0, %s1525
      %s1529 = sphi 0, %s1528
      %s1545 = sphi 0, %s1529
    $region4: #{encoder_forward.1} parent=1 // loop_header_branch
      %148 = sbr.rel (%p146) target = $region8
    $region5: #{encoder_forward.1} parent=1 // loop_body
      %s150 = ssub.s32 %s145, 1
      %s151 = ssub.s32 %s145, 2
      %s152 = sadd.s32 %s145, 1
      %s153 = ssub.s32 %s145, %s152
      %p154 = scmp.eq.s32.totalorder %s153, 0
      %s156 = sadd.s32 %s155, 1
      %s157 = scalar_select %p154, %s155, %s156
      %p160 = pneg %p154
      %p161 = scmp.eq.s32.totalorder %s145, 1
      %p162 = por %p160, %p161
      %p163 = scmp.ne.s32.totalorder %s155, %s158
      %p164 = scmp.eq.s32.totalorder %s145, 0
      %p165 = por %p163, %p164
      %p166 = scmp.ne.s32.totalorder %s155, %s158
      %p167 = scmp.eq.s32.totalorder %s150, 1
      %p168 = por %p166, %p167
      %p169 = scmp.ne.s32.totalorder %s158, %s159
      %p170 = scmp.eq.s32.totalorder %s150, 0
      %p171 = por %p169, %p170
      %p172 = scmp.ne.s32.totalorder %s158, %s159
      %p173 = scmp.eq.s32.totalorder %s151, 1
      %p174 = por %p172, %p173
      %p176 = scmp.ne.s32.totalorder %s159, %s175
      %p177 = scmp.eq.s32.totalorder %s151, 0
      %p178 = por %p176, %p177
      %s180 = sadd.s32 %s179, 1
      %p183 = scmp.eq.s32.totalorder %s145, 1
      %p184 = scmp.ne.s32.totalorder %s179, %s181
      %p185 = scmp.eq.s32.totalorder %s145, 0
      %p186 = por %p184, %p185
      %p187 = scmp.ne.s32.totalorder %s179, %s181
      %p188 = scmp.eq.s32.totalorder %s150, 1
      %p189 = por %p187, %p188
      %p190 = scmp.ne.s32.totalorder %s181, %s182
      %p191 = scmp.eq.s32.totalorder %s150, 0
      %p192 = por %p190, %p191
      %p193 = scmp.ne.s32.totalorder %s181, %s182
      %p194 = scmp.eq.s32.totalorder %s151, 1
      %p195 = por %p193, %p194
      %p197 = scmp.ne.s32.totalorder %s182, %s196
      %p198 = scmp.eq.s32.totalorder %s151, 0
      %p199 = por %p197, %p198
      %s201 = sadd.s32 %s200, 1
      %p204 = scmp.eq.s32.totalorder %s145, 1
      %p205 = scmp.ne.s32.totalorder %s200, %s202
      %p206 = scmp.eq.s32.totalorder %s145, 0
      %p207 = por %p205, %p206
      %p208 = scmp.ne.s32.totalorder %s200, %s202
      %p209 = scmp.eq.s32.totalorder %s150, 1
      %p210 = por %p208, %p209
      %p211 = scmp.ne.s32.totalorder %s202, %s203
      %p212 = scmp.eq.s32.totalorder %s150, 0
      %p213 = por %p211, %p212
      %p214 = scmp.ne.s32.totalorder %s202, %s203
      %p215 = scmp.eq.s32.totalorder %s151, 1
      %p216 = por %p214, %p215
      %p218 = scmp.ne.s32.totalorder %s203, %s217
      %p219 = scmp.eq.s32.totalorder %s151, 0
      %p220 = por %p218, %p219
      %s222 = sadd.s32 %s221, 1
      %p225 = scmp.eq.s32.totalorder %s145, 1
      %p226 = scmp.ne.s32.totalorder %s221, %s223
      %p227 = scmp.eq.s32.totalorder %s145, 0
      %p228 = por %p226, %p227
      %p229 = scmp.ne.s32.totalorder %s221, %s223
      %p230 = scmp.eq.s32.totalorder %s150, 1
      %p231 = por %p229, %p230
      %p232 = scmp.ne.s32.totalorder %s223, %s224
      %p233 = scmp.eq.s32.totalorder %s150, 0
      %p234 = por %p232, %p233
      %p235 = scmp.ne.s32.totalorder %s223, %s224
      %p236 = scmp.eq.s32.totalorder %s151, 1
      %p237 = por %p235, %p236
      %p239 = scmp.ne.s32.totalorder %s224, %s238
      %p240 = scmp.eq.s32.totalorder %s151, 0
      %p241 = por %p239, %p240
      %s243 = sadd.s32 %s242, 1
      %p246 = scmp.eq.s32.totalorder %s145, 1
      %p247 = scmp.ne.s32.totalorder %s242, %s244
      %p248 = scmp.eq.s32.totalorder %s145, 0
      %p249 = por %p247, %p248
      %p250 = scmp.ne.s32.totalorder %s242, %s244
      %p251 = scmp.eq.s32.totalorder %s150, 1
      %p252 = por %p250, %p251
      %p253 = scmp.ne.s32.totalorder %s244, %s245
      %p254 = scmp.eq.s32.totalorder %s150, 0
      %p255 = por %p253, %p254
      %p256 = scmp.ne.s32.totalorder %s244, %s245
      %p257 = scmp.eq.s32.totalorder %s151, 1
      %p258 = por %p256, %p257
      %p260 = scmp.ne.s32.totalorder %s245, %s259
      %p261 = scmp.eq.s32.totalorder %s151, 0
      %p262 = por %p260, %p261
      %s264 = sadd.s32 %s263, 1
      %p267 = scmp.eq.s32.totalorder %s145, 1
      %p268 = scmp.ne.s32.totalorder %s263, %s265
      %p269 = scmp.eq.s32.totalorder %s145, 0
      %p270 = por %p268, %p269
      %p271 = scmp.ne.s32.totalorder %s263, %s265
      %p272 = scmp.eq.s32.totalorder %s150, 1
      %p273 = por %p271, %p272
      %p274 = scmp.ne.s32.totalorder %s265, %s266
      %p275 = scmp.eq.s32.totalorder %s150, 0
      %p276 = por %p274, %p275
      %p277 = scmp.ne.s32.totalorder %s265, %s266
      %p278 = scmp.eq.s32.totalorder %s151, 1
      %p279 = por %p277, %p278
      %p281 = scmp.ne.s32.totalorder %s266, %s280
      %p282 = scmp.eq.s32.totalorder %s151, 0
      %p283 = por %p281, %p282
      %s285 = sadd.s32 %s284, 1
      %p288 = scmp.eq.s32.totalorder %s145, 1
      %p289 = scmp.ne.s32.totalorder %s284, %s286
      %p290 = scmp.eq.s32.totalorder %s145, 0
      %p291 = por %p289, %p290
      %p292 = scmp.ne.s32.totalorder %s284, %s286
      %p293 = scmp.eq.s32.totalorder %s150, 1
      %p294 = por %p292, %p293
      %p295 = scmp.ne.s32.totalorder %s286, %s287
      %p296 = scmp.eq.s32.totalorder %s150, 0
      %p297 = por %p295, %p296
      %p298 = scmp.ne.s32.totalorder %s286, %s287
      %p299 = scmp.eq.s32.totalorder %s151, 1
      %p300 = por %p298, %p299
      %p302 = scmp.ne.s32.totalorder %s287, %s301
      %p303 = scmp.eq.s32.totalorder %s151, 0
      %p304 = por %p302, %p303
      %s306 = sadd.s32 %s305, 1
      %p309 = scmp.eq.s32.totalorder %s145, 1
      %p310 = scmp.ne.s32.totalorder %s305, %s307
      %p311 = scmp.eq.s32.totalorder %s145, 0
      %p312 = por %p310, %p311
      %p313 = scmp.ne.s32.totalorder %s305, %s307
      %p314 = scmp.eq.s32.totalorder %s150, 1
      %p315 = por %p313, %p314
      %p316 = scmp.ne.s32.totalorder %s307, %s308
      %p317 = scmp.eq.s32.totalorder %s150, 0
      %p318 = por %p316, %p317
      %p319 = scmp.ne.s32.totalorder %s307, %s308
      %p320 = scmp.eq.s32.totalorder %s151, 1
      %p321 = por %p319, %p320
      %p323 = scmp.ne.s32.totalorder %s308, %s322
      %p324 = scmp.eq.s32.totalorder %s151, 0
      %p325 = por %p323, %p324
      %s327 = sadd.s32 %s326, 1
      %p330 = scmp.eq.s32.totalorder %s145, 1
      %p331 = scmp.ne.s32.totalorder %s326, %s328
      %p332 = scmp.eq.s32.totalorder %s145, 0
      %p333 = por %p331, %p332
      %p334 = scmp.ne.s32.totalorder %s326, %s328
      %p335 = scmp.eq.s32.totalorder %s150, 1
      %p336 = por %p334, %p335
      %p337 = scmp.ne.s32.totalorder %s328, %s329
      %p338 = scmp.eq.s32.totalorder %s150, 0
      %p339 = por %p337, %p338
      %p340 = scmp.ne.s32.totalorder %s328, %s329
      %p341 = scmp.eq.s32.totalorder %s151, 1
      %p342 = por %p340, %p341
      %p344 = scmp.ne.s32.totalorder %s329, %s343
      %p345 = scmp.eq.s32.totalorder %s151, 0
      %p346 = por %p344, %p345
      %s348 = sadd.s32 %s347, 1
      %p351 = scmp.eq.s32.totalorder %s145, 1
      %p352 = scmp.ne.s32.totalorder %s347, %s349
      %p353 = scmp.eq.s32.totalorder %s145, 0
      %p354 = por %p352, %p353
      %p355 = scmp.ne.s32.totalorder %s347, %s349
      %p356 = scmp.eq.s32.totalorder %s150, 1
      %p357 = por %p355, %p356
      %p358 = scmp.ne.s32.totalorder %s349, %s350
      %p359 = scmp.eq.s32.totalorder %s150, 0
      %p360 = por %p358, %p359
      %p361 = scmp.ne.s32.totalorder %s349, %s350
      %p362 = scmp.eq.s32.totalorder %s151, 1
      %p363 = por %p361, %p362
      %p365 = scmp.ne.s32.totalorder %s350, %s364
      %p366 = scmp.eq.s32.totalorder %s151, 0
      %p367 = por %p365, %p366
      %s369 = sadd.s32 %s368, 1
      %p372 = scmp.eq.s32.totalorder %s145, 1
      %p373 = scmp.ne.s32.totalorder %s368, %s370
      %p374 = scmp.eq.s32.totalorder %s145, 0
      %p375 = por %p373, %p374
      %p376 = scmp.ne.s32.totalorder %s368, %s370
      %p377 = scmp.eq.s32.totalorder %s150, 1
      %p378 = por %p376, %p377
      %p379 = scmp.ne.s32.totalorder %s370, %s371
      %p380 = scmp.eq.s32.totalorder %s150, 0
      %p381 = por %p379, %p380
      %p382 = scmp.ne.s32.totalorder %s370, %s371
      %p383 = scmp.eq.s32.totalorder %s151, 1
      %p384 = por %p382, %p383
      %p386 = scmp.ne.s32.totalorder %s371, %s385
      %p387 = scmp.eq.s32.totalorder %s151, 0
      %p388 = por %p386, %p387
      %s390 = sadd.s32 %s389, 1
      %p393 = scmp.eq.s32.totalorder %s145, 1
      %p394 = scmp.ne.s32.totalorder %s389, %s391
      %p395 = scmp.eq.s32.totalorder %s145, 0
      %p396 = por %p394, %p395
      %p397 = scmp.ne.s32.totalorder %s389, %s391
      %p398 = scmp.eq.s32.totalorder %s150, 1
      %p399 = por %p397, %p398
      %p400 = scmp.ne.s32.totalorder %s391, %s392
      %p401 = scmp.eq.s32.totalorder %s150, 0
      %p402 = por %p400, %p401
      %p403 = scmp.ne.s32.totalorder %s391, %s392
      %p404 = scmp.eq.s32.totalorder %s151, 1
      %p405 = por %p403, %p404
      %p407 = scmp.ne.s32.totalorder %s392, %s406
      %p408 = scmp.eq.s32.totalorder %s151, 0
      %p409 = por %p407, %p408
      %s411 = sadd.s32 %s410, 1
      %p414 = scmp.eq.s32.totalorder %s145, 1
      %p415 = scmp.ne.s32.totalorder %s410, %s412
      %p416 = scmp.eq.s32.totalorder %s145, 0
      %p417 = por %p415, %p416
      %p418 = scmp.ne.s32.totalorder %s410, %s412
      %p419 = scmp.eq.s32.totalorder %s150, 1
      %p420 = por %p418, %p419
      %p421 = scmp.ne.s32.totalorder %s412, %s413
      %p422 = scmp.eq.s32.totalorder %s150, 0
      %p423 = por %p421, %p422
      %p424 = scmp.ne.s32.totalorder %s412, %s413
      %p425 = scmp.eq.s32.totalorder %s151, 1
      %p426 = por %p424, %p425
      %p428 = scmp.ne.s32.totalorder %s413, %s427
      %p429 = scmp.eq.s32.totalorder %s151, 0
      %p430 = por %p428, %p429
      %s432 = sadd.s32 %s431, 1
      %p435 = scmp.eq.s32.totalorder %s145, 1
      %p436 = scmp.ne.s32.totalorder %s431, %s433
      %p437 = scmp.eq.s32.totalorder %s145, 0
      %p438 = por %p436, %p437
      %p439 = scmp.ne.s32.totalorder %s431, %s433
      %p440 = scmp.eq.s32.totalorder %s150, 1
      %p441 = por %p439, %p440
      %p442 = scmp.ne.s32.totalorder %s433, %s434
      %p443 = scmp.eq.s32.totalorder %s150, 0
      %p444 = por %p442, %p443
      %p445 = scmp.ne.s32.totalorder %s433, %s434
      %p446 = scmp.eq.s32.totalorder %s151, 1
      %p447 = por %p445, %p446
      %p449 = scmp.ne.s32.totalorder %s434, %s448
      %p450 = scmp.eq.s32.totalorder %s151, 0
      %p451 = por %p449, %p450
      %s453 = sadd.s32 %s452, 1
      %p456 = scmp.eq.s32.totalorder %s145, 1
      %p457 = scmp.ne.s32.totalorder %s452, %s454
      %p458 = scmp.eq.s32.totalorder %s145, 0
      %p459 = por %p457, %p458
      %p460 = scmp.ne.s32.totalorder %s452, %s454
      %p461 = scmp.eq.s32.totalorder %s150, 1
      %p462 = por %p460, %p461
      %p463 = scmp.ne.s32.totalorder %s454, %s455
      %p464 = scmp.eq.s32.totalorder %s150, 0
      %p465 = por %p463, %p464
      %p466 = scmp.ne.s32.totalorder %s454, %s455
      %p467 = scmp.eq.s32.totalorder %s151, 1
      %p468 = por %p466, %p467
      %p470 = scmp.ne.s32.totalorder %s455, %s469
      %p471 = scmp.eq.s32.totalorder %s151, 0
      %p472 = por %p470, %p471
      %s474 = sadd.s32 %s473, 1
      %p477 = scmp.eq.s32.totalorder %s145, 1
      %p478 = scmp.ne.s32.totalorder %s473, %s475
      %p479 = scmp.eq.s32.totalorder %s145, 0
      %p480 = por %p478, %p479
      %p481 = scmp.ne.s32.totalorder %s473, %s475
      %p482 = scmp.eq.s32.totalorder %s150, 1
      %p483 = por %p481, %p482
      %p484 = scmp.ne.s32.totalorder %s475, %s476
      %p485 = scmp.eq.s32.totalorder %s150, 0
      %p486 = por %p484, %p485
      %p487 = scmp.ne.s32.totalorder %s475, %s476
      %p488 = scmp.eq.s32.totalorder %s151, 1
      %p489 = por %p487, %p488
      %p491 = scmp.ne.s32.totalorder %s476, %s490
      %p492 = scmp.eq.s32.totalorder %s151, 0
      %p493 = por %p491, %p492
      %s495 = sadd.s32 %s494, 1
      %p498 = scmp.eq.s32.totalorder %s145, 1
      %p499 = scmp.ne.s32.totalorder %s494, %s496
      %p500 = scmp.eq.s32.totalorder %s145, 0
      %p501 = por %p499, %p500
      %p502 = scmp.ne.s32.totalorder %s494, %s496
      %p503 = scmp.eq.s32.totalorder %s150, 1
      %p504 = por %p502, %p503
      %p505 = scmp.ne.s32.totalorder %s496, %s497
      %p506 = scmp.eq.s32.totalorder %s150, 0
      %p507 = por %p505, %p506
      %p508 = scmp.ne.s32.totalorder %s496, %s497
      %p509 = scmp.eq.s32.totalorder %s151, 1
      %p510 = por %p508, %p509
      %p512 = scmp.ne.s32.totalorder %s497, %s511
      %p513 = scmp.eq.s32.totalorder %s151, 0
      %p514 = por %p512, %p513
      %s516 = sadd.s32 %s515, 1
      %p519 = scmp.eq.s32.totalorder %s145, 1
      %p520 = scmp.ne.s32.totalorder %s515, %s517
      %p521 = scmp.eq.s32.totalorder %s145, 0
      %p522 = por %p520, %p521
      %p523 = scmp.ne.s32.totalorder %s515, %s517
      %p524 = scmp.eq.s32.totalorder %s150, 1
      %p525 = por %p523, %p524
      %p526 = scmp.ne.s32.totalorder %s517, %s518
      %p527 = scmp.eq.s32.totalorder %s150, 0
      %p528 = por %p526, %p527
      %p529 = scmp.ne.s32.totalorder %s517, %s518
      %p530 = scmp.eq.s32.totalorder %s151, 1
      %p531 = por %p529, %p530
      %p533 = scmp.ne.s32.totalorder %s518, %s532
      %p534 = scmp.eq.s32.totalorder %s151, 0
      %p535 = por %p533, %p534
      %s537 = sadd.s32 %s536, 1
      %p540 = scmp.eq.s32.totalorder %s145, 1
      %p541 = scmp.ne.s32.totalorder %s536, %s538
      %p542 = scmp.eq.s32.totalorder %s145, 0
      %p543 = por %p541, %p542
      %p544 = scmp.ne.s32.totalorder %s536, %s538
      %p545 = scmp.eq.s32.totalorder %s150, 1
      %p546 = por %p544, %p545
      %p547 = scmp.ne.s32.totalorder %s538, %s539
      %p548 = scmp.eq.s32.totalorder %s150, 0
      %p549 = por %p547, %p548
      %p550 = scmp.ne.s32.totalorder %s538, %s539
      %p551 = scmp.eq.s32.totalorder %s151, 1
      %p552 = por %p550, %p551
      %p554 = scmp.ne.s32.totalorder %s539, %s553
      %p555 = scmp.eq.s32.totalorder %s151, 0
      %p556 = por %p554, %p555
      %s558 = sadd.s32 %s557, 1
      %p561 = scmp.eq.s32.totalorder %s145, 1
      %p562 = scmp.ne.s32.totalorder %s557, %s559
      %p563 = scmp.eq.s32.totalorder %s145, 0
      %p564 = por %p562, %p563
      %p565 = scmp.ne.s32.totalorder %s557, %s559
      %p566 = scmp.eq.s32.totalorder %s150, 1
      %p567 = por %p565, %p566
      %p568 = scmp.ne.s32.totalorder %s559, %s560
      %p569 = scmp.eq.s32.totalorder %s150, 0
      %p570 = por %p568, %p569
      %p571 = scmp.ne.s32.totalorder %s559, %s560
      %p572 = scmp.eq.s32.totalorder %s151, 1
      %p573 = por %p571, %p572
      %p575 = scmp.ne.s32.totalorder %s560, %s574
      %p576 = scmp.eq.s32.totalorder %s151, 0
      %p577 = por %p575, %p576
      %s579 = sadd.s32 %s578, 1
      %p582 = scmp.eq.s32.totalorder %s145, 1
      %p583 = scmp.ne.s32.totalorder %s578, %s580
      %p584 = scmp.eq.s32.totalorder %s145, 0
      %p585 = por %p583, %p584
      %p586 = scmp.ne.s32.totalorder %s578, %s580
      %p587 = scmp.eq.s32.totalorder %s150, 1
      %p588 = por %p586, %p587
      %p589 = scmp.ne.s32.totalorder %s580, %s581
      %p590 = scmp.eq.s32.totalorder %s150, 0
      %p591 = por %p589, %p590
      %p592 = scmp.ne.s32.totalorder %s580, %s581
      %p593 = scmp.eq.s32.totalorder %s151, 1
      %p594 = por %p592, %p593
      %p596 = scmp.ne.s32.totalorder %s581, %s595
      %p597 = scmp.eq.s32.totalorder %s151, 0
      %p598 = por %p596, %p597
      %s600 = sadd.s32 %s599, 1
      %p603 = scmp.eq.s32.totalorder %s145, 1
      %p604 = scmp.ne.s32.totalorder %s599, %s601
      %p605 = scmp.eq.s32.totalorder %s145, 0
      %p606 = por %p604, %p605
      %p607 = scmp.ne.s32.totalorder %s599, %s601
      %p608 = scmp.eq.s32.totalorder %s150, 1
      %p609 = por %p607, %p608
      %p610 = scmp.ne.s32.totalorder %s601, %s602
      %p611 = scmp.eq.s32.totalorder %s150, 0
      %p612 = por %p610, %p611
      %p613 = scmp.ne.s32.totalorder %s601, %s602
      %p614 = scmp.eq.s32.totalorder %s151, 1
      %p615 = por %p613, %p614
      %p617 = scmp.ne.s32.totalorder %s602, %s616
      %p618 = scmp.eq.s32.totalorder %s151, 0
      %p619 = por %p617, %p618
      %s621 = sadd.s32 %s620, 1
      %p624 = scmp.eq.s32.totalorder %s145, 1
      %p625 = scmp.ne.s32.totalorder %s620, %s622
      %p626 = scmp.eq.s32.totalorder %s145, 0
      %p627 = por %p625, %p626
      %p628 = scmp.ne.s32.totalorder %s620, %s622
      %p629 = scmp.eq.s32.totalorder %s150, 1
      %p630 = por %p628, %p629
      %p631 = scmp.ne.s32.totalorder %s622, %s623
      %p632 = scmp.eq.s32.totalorder %s150, 0
      %p633 = por %p631, %p632
      %p634 = scmp.ne.s32.totalorder %s622, %s623
      %p635 = scmp.eq.s32.totalorder %s151, 1
      %p636 = por %p634, %p635
      %p638 = scmp.ne.s32.totalorder %s623, %s637
      %p639 = scmp.eq.s32.totalorder %s151, 0
      %p640 = por %p638, %p639
      %s642 = sadd.s32 %s641, 1
      %p645 = scmp.eq.s32.totalorder %s145, 1
      %p646 = scmp.ne.s32.totalorder %s641, %s643
      %p647 = scmp.eq.s32.totalorder %s145, 0
      %p648 = por %p646, %p647
      %p649 = scmp.ne.s32.totalorder %s641, %s643
      %p650 = scmp.eq.s32.totalorder %s150, 1
      %p651 = por %p649, %p650
      %p652 = scmp.ne.s32.totalorder %s643, %s644
      %p653 = scmp.eq.s32.totalorder %s150, 0
      %p654 = por %p652, %p653
      %p655 = scmp.ne.s32.totalorder %s643, %s644
      %p656 = scmp.eq.s32.totalorder %s151, 1
      %p657 = por %p655, %p656
      %p659 = scmp.ne.s32.totalorder %s644, %s658
      %p660 = scmp.eq.s32.totalorder %s151, 0
      %p661 = por %p659, %p660
      %s663 = sadd.s32 %s662, 1
      %p666 = scmp.eq.s32.totalorder %s145, 1
      %p667 = scmp.ne.s32.totalorder %s662, %s664
      %p668 = scmp.eq.s32.totalorder %s145, 0
      %p669 = por %p667, %p668
      %p670 = scmp.ne.s32.totalorder %s662, %s664
      %p671 = scmp.eq.s32.totalorder %s150, 1
      %p672 = por %p670, %p671
      %p673 = scmp.ne.s32.totalorder %s664, %s665
      %p674 = scmp.eq.s32.totalorder %s150, 0
      %p675 = por %p673, %p674
      %p676 = scmp.ne.s32.totalorder %s664, %s665
      %p677 = scmp.eq.s32.totalorder %s151, 1
      %p678 = por %p676, %p677
      %p680 = scmp.ne.s32.totalorder %s665, %s679
      %p681 = scmp.eq.s32.totalorder %s151, 0
      %p682 = por %p680, %p681
      %s684 = sadd.s32 %s683, 1
      %p687 = scmp.eq.s32.totalorder %s145, 1
      %p688 = scmp.ne.s32.totalorder %s683, %s685
      %p689 = scmp.eq.s32.totalorder %s145, 0
      %p690 = por %p688, %p689
      %p691 = scmp.ne.s32.totalorder %s683, %s685
      %p692 = scmp.eq.s32.totalorder %s150, 1
      %p693 = por %p691, %p692
      %p694 = scmp.ne.s32.totalorder %s685, %s686
      %p695 = scmp.eq.s32.totalorder %s150, 0
      %p696 = por %p694, %p695
      %p697 = scmp.ne.s32.totalorder %s685, %s686
      %p698 = scmp.eq.s32.totalorder %s151, 1
      %p699 = por %p697, %p698
      %p701 = scmp.ne.s32.totalorder %s686, %s700
      %p702 = scmp.eq.s32.totalorder %s151, 0
      %p703 = por %p701, %p702
      %s705 = sadd.s32 %s704, 1
      %p708 = scmp.eq.s32.totalorder %s145, 1
      %p709 = scmp.ne.s32.totalorder %s704, %s706
      %p710 = scmp.eq.s32.totalorder %s145, 0
      %p711 = por %p709, %p710
      %p712 = scmp.ne.s32.totalorder %s704, %s706
      %p713 = scmp.eq.s32.totalorder %s150, 1
      %p714 = por %p712, %p713
      %p715 = scmp.ne.s32.totalorder %s706, %s707
      %p716 = scmp.eq.s32.totalorder %s150, 0
      %p717 = por %p715, %p716
      %p718 = scmp.ne.s32.totalorder %s706, %s707
      %p719 = scmp.eq.s32.totalorder %s151, 1
      %p720 = por %p718, %p719
      %p722 = scmp.ne.s32.totalorder %s707, %s721
      %p723 = scmp.eq.s32.totalorder %s151, 0
      %p724 = por %p722, %p723
      %s726 = sadd.s32 %s725, 1
      %p729 = scmp.eq.s32.totalorder %s145, 1
      %p730 = scmp.ne.s32.totalorder %s725, %s727
      %p731 = scmp.eq.s32.totalorder %s145, 0
      %p732 = por %p730, %p731
      %p733 = scmp.ne.s32.totalorder %s725, %s727
      %p734 = scmp.eq.s32.totalorder %s150, 1
      %p735 = por %p733, %p734
      %p736 = scmp.ne.s32.totalorder %s727, %s728
      %p737 = scmp.eq.s32.totalorder %s150, 0
      %p738 = por %p736, %p737
      %p739 = scmp.ne.s32.totalorder %s727, %s728
      %p740 = scmp.eq.s32.totalorder %s151, 1
      %p741 = por %p739, %p740
      %p743 = scmp.ne.s32.totalorder %s728, %s742
      %p744 = scmp.eq.s32.totalorder %s151, 0
      %p745 = por %p743, %p744
      %s747 = sadd.s32 %s746, 1
      %p750 = scmp.eq.s32.totalorder %s145, 1
      %p751 = scmp.ne.s32.totalorder %s746, %s748
      %p752 = scmp.eq.s32.totalorder %s145, 0
      %p753 = por %p751, %p752
      %p754 = scmp.ne.s32.totalorder %s746, %s748
      %p755 = scmp.eq.s32.totalorder %s150, 1
      %p756 = por %p754, %p755
      %p757 = scmp.ne.s32.totalorder %s748, %s749
      %p758 = scmp.eq.s32.totalorder %s150, 0
      %p759 = por %p757, %p758
      %p760 = scmp.ne.s32.totalorder %s748, %s749
      %p761 = scmp.eq.s32.totalorder %s151, 1
      %p762 = por %p760, %p761
      %p764 = scmp.ne.s32.totalorder %s749, %s763
      %p765 = scmp.eq.s32.totalorder %s151, 0
      %p766 = por %p764, %p765
      %s768 = sadd.s32 %s767, 1
      %p771 = scmp.eq.s32.totalorder %s145, 1
      %p772 = scmp.ne.s32.totalorder %s767, %s769
      %p773 = scmp.eq.s32.totalorder %s145, 0
      %p774 = por %p772, %p773
      %p775 = scmp.ne.s32.totalorder %s767, %s769
      %p776 = scmp.eq.s32.totalorder %s150, 1
      %p777 = por %p775, %p776
      %p778 = scmp.ne.s32.totalorder %s769, %s770
      %p779 = scmp.eq.s32.totalorder %s150, 0
      %p780 = por %p778, %p779
      %p781 = scmp.ne.s32.totalorder %s769, %s770
      %p782 = scmp.eq.s32.totalorder %s151, 1
      %p783 = por %p781, %p782
      %p785 = scmp.ne.s32.totalorder %s770, %s784
      %p786 = scmp.eq.s32.totalorder %s151, 0
      %p787 = por %p785, %p786
      %s789 = sadd.s32 %s788, 1
      %p792 = scmp.eq.s32.totalorder %s145, 1
      %p793 = scmp.ne.s32.totalorder %s788, %s790
      %p794 = scmp.eq.s32.totalorder %s145, 0
      %p795 = por %p793, %p794
      %p796 = scmp.ne.s32.totalorder %s788, %s790
      %p797 = scmp.eq.s32.totalorder %s150, 1
      %p798 = por %p796, %p797
      %p799 = scmp.ne.s32.totalorder %s790, %s791
      %p800 = scmp.eq.s32.totalorder %s150, 0
      %p801 = por %p799, %p800
      %p802 = scmp.ne.s32.totalorder %s790, %s791
      %p803 = scmp.eq.s32.totalorder %s151, 1
      %p804 = por %p802, %p803
      %p806 = scmp.ne.s32.totalorder %s791, %s805
      %p807 = scmp.eq.s32.totalorder %s151, 0
      %p808 = por %p806, %p807
      %s810 = sadd.s32 %s809, 1
      %p813 = scmp.eq.s32.totalorder %s145, 1
      %p814 = scmp.ne.s32.totalorder %s809, %s811
      %p815 = scmp.eq.s32.totalorder %s145, 0
      %p816 = por %p814, %p815
      %p817 = scmp.ne.s32.totalorder %s809, %s811
      %p818 = scmp.eq.s32.totalorder %s150, 1
      %p819 = por %p817, %p818
      %p820 = scmp.ne.s32.totalorder %s811, %s812
      %p821 = scmp.eq.s32.totalorder %s150, 0
      %p822 = por %p820, %p821
      %p823 = scmp.ne.s32.totalorder %s811, %s812
      %p824 = scmp.eq.s32.totalorder %s151, 1
      %p825 = por %p823, %p824
      %p827 = scmp.ne.s32.totalorder %s812, %s826
      %p828 = scmp.eq.s32.totalorder %s151, 0
      %p829 = por %p827, %p828
      %s831 = sadd.s32 %s830, 1
      %p834 = scmp.eq.s32.totalorder %s145, 1
      %p835 = scmp.ne.s32.totalorder %s830, %s832
      %p836 = scmp.eq.s32.totalorder %s145, 0
      %p837 = por %p835, %p836
      %p838 = scmp.ne.s32.totalorder %s830, %s832
      %p839 = scmp.eq.s32.totalorder %s150, 1
      %p840 = por %p838, %p839
      %p841 = scmp.ne.s32.totalorder %s832, %s833
      %p842 = scmp.eq.s32.totalorder %s150, 0
      %p843 = por %p841, %p842
      %p844 = scmp.ne.s32.totalorder %s832, %s833
      %p845 = scmp.eq.s32.totalorder %s151, 1
      %p846 = por %p844, %p845
      %p848 = scmp.ne.s32.totalorder %s833, %s847
      %p849 = scmp.eq.s32.totalorder %s151, 0
      %p850 = por %p848, %p849
      %s852 = sadd.s32 %s851, 1
      %p855 = scmp.eq.s32.totalorder %s145, 1
      %p856 = scmp.ne.s32.totalorder %s851, %s853
      %p857 = scmp.eq.s32.totalorder %s145, 0
      %p858 = por %p856, %p857
      %p859 = scmp.ne.s32.totalorder %s851, %s853
      %p860 = scmp.eq.s32.totalorder %s150, 1
      %p861 = por %p859, %p860
      %p862 = scmp.ne.s32.totalorder %s853, %s854
      %p863 = scmp.eq.s32.totalorder %s150, 0
      %p864 = por %p862, %p863
      %p865 = scmp.ne.s32.totalorder %s853, %s854
      %p866 = scmp.eq.s32.totalorder %s151, 1
      %p867 = por %p865, %p866
      %p869 = scmp.ne.s32.totalorder %s854, %s868
      %p870 = scmp.eq.s32.totalorder %s151, 0
      %p871 = por %p869, %p870
      %s873 = sadd.s32 %s872, 1
      %p876 = scmp.eq.s32.totalorder %s145, 1
      %p877 = scmp.ne.s32.totalorder %s872, %s874
      %p878 = scmp.eq.s32.totalorder %s145, 0
      %p879 = por %p877, %p878
      %p880 = scmp.ne.s32.totalorder %s872, %s874
      %p881 = scmp.eq.s32.totalorder %s150, 1
      %p882 = por %p880, %p881
      %p883 = scmp.ne.s32.totalorder %s874, %s875
      %p884 = scmp.eq.s32.totalorder %s150, 0
      %p885 = por %p883, %p884
      %p886 = scmp.ne.s32.totalorder %s874, %s875
      %p887 = scmp.eq.s32.totalorder %s151, 1
      %p888 = por %p886, %p887
      %p890 = scmp.ne.s32.totalorder %s875, %s889
      %p891 = scmp.eq.s32.totalorder %s151, 0
      %p892 = por %p890, %p891
      %s894 = sadd.s32 %s893, 1
      %p897 = scmp.eq.s32.totalorder %s145, 1
      %p898 = scmp.ne.s32.totalorder %s893, %s895
      %p899 = scmp.eq.s32.totalorder %s145, 0
      %p900 = por %p898, %p899
      %p901 = scmp.ne.s32.totalorder %s893, %s895
      %p902 = scmp.eq.s32.totalorder %s150, 1
      %p903 = por %p901, %p902
      %p904 = scmp.ne.s32.totalorder %s895, %s896
      %p905 = scmp.eq.s32.totalorder %s150, 0
      %p906 = por %p904, %p905
      %p907 = scmp.ne.s32.totalorder %s895, %s896
      %p908 = scmp.eq.s32.totalorder %s151, 1
      %p909 = por %p907, %p908
      %p911 = scmp.ne.s32.totalorder %s896, %s910
      %p912 = scmp.eq.s32.totalorder %s151, 0
      %p913 = por %p911, %p912
      %s915 = sadd.s32 %s914, 1
      %p918 = scmp.eq.s32.totalorder %s145, 1
      %p919 = scmp.ne.s32.totalorder %s914, %s916
      %p920 = scmp.eq.s32.totalorder %s145, 0
      %p921 = por %p919, %p920
      %p922 = scmp.ne.s32.totalorder %s914, %s916
      %p923 = scmp.eq.s32.totalorder %s150, 1
      %p924 = por %p922, %p923
      %p925 = scmp.ne.s32.totalorder %s916, %s917
      %p926 = scmp.eq.s32.totalorder %s150, 0
      %p927 = por %p925, %p926
      %p928 = scmp.ne.s32.totalorder %s916, %s917
      %p929 = scmp.eq.s32.totalorder %s151, 1
      %p930 = por %p928, %p929
      %p932 = scmp.ne.s32.totalorder %s917, %s931
      %p933 = scmp.eq.s32.totalorder %s151, 0
      %p934 = por %p932, %p933
      %s936 = sadd.s32 %s935, 1
      %p939 = scmp.eq.s32.totalorder %s145, 1
      %p940 = scmp.ne.s32.totalorder %s935, %s937
      %p941 = scmp.eq.s32.totalorder %s145, 0
      %p942 = por %p940, %p941
      %p943 = scmp.ne.s32.totalorder %s935, %s937
      %p944 = scmp.eq.s32.totalorder %s150, 1
      %p945 = por %p943, %p944
      %p946 = scmp.ne.s32.totalorder %s937, %s938
      %p947 = scmp.eq.s32.totalorder %s150, 0
      %p948 = por %p946, %p947
      %p949 = scmp.ne.s32.totalorder %s937, %s938
      %p950 = scmp.eq.s32.totalorder %s151, 1
      %p951 = por %p949, %p950
      %p953 = scmp.ne.s32.totalorder %s938, %s952
      %p954 = scmp.eq.s32.totalorder %s151, 0
      %p955 = por %p953, %p954
      %s957 = sadd.s32 %s956, 1
      %p960 = scmp.eq.s32.totalorder %s145, 1
      %p961 = scmp.ne.s32.totalorder %s956, %s958
      %p962 = scmp.eq.s32.totalorder %s145, 0
      %p963 = por %p961, %p962
      %p964 = scmp.ne.s32.totalorder %s956, %s958
      %p965 = scmp.eq.s32.totalorder %s150, 1
      %p966 = por %p964, %p965
      %p967 = scmp.ne.s32.totalorder %s958, %s959
      %p968 = scmp.eq.s32.totalorder %s150, 0
      %p969 = por %p967, %p968
      %p970 = scmp.ne.s32.totalorder %s958, %s959
      %p971 = scmp.eq.s32.totalorder %s151, 1
      %p972 = por %p970, %p971
      %p974 = scmp.ne.s32.totalorder %s959, %s973
      %p975 = scmp.eq.s32.totalorder %s151, 0
      %p976 = por %p974, %p975
      %s978 = sadd.s32 %s977, 1
      %p981 = scmp.eq.s32.totalorder %s145, 1
      %p982 = scmp.ne.s32.totalorder %s977, %s979
      %p983 = scmp.eq.s32.totalorder %s145, 0
      %p984 = por %p982, %p983
      %p985 = scmp.ne.s32.totalorder %s977, %s979
      %p986 = scmp.eq.s32.totalorder %s150, 1
      %p987 = por %p985, %p986
      %p988 = scmp.ne.s32.totalorder %s979, %s980
      %p989 = scmp.eq.s32.totalorder %s150, 0
      %p990 = por %p988, %p989
      %p991 = scmp.ne.s32.totalorder %s979, %s980
      %p992 = scmp.eq.s32.totalorder %s151, 1
      %p993 = por %p991, %p992
      %p995 = scmp.ne.s32.totalorder %s980, %s994
      %p996 = scmp.eq.s32.totalorder %s151, 0
      %p997 = por %p995, %p996
      %s999 = sadd.s32 %s998, 1
      %p1002 = scmp.eq.s32.totalorder %s145, 1
      %p1003 = scmp.ne.s32.totalorder %s998, %s1000
      %p1004 = scmp.eq.s32.totalorder %s145, 0
      %p1005 = por %p1003, %p1004
      %p1006 = scmp.ne.s32.totalorder %s998, %s1000
      %p1007 = scmp.eq.s32.totalorder %s150, 1
      %p1008 = por %p1006, %p1007
      %p1009 = scmp.ne.s32.totalorder %s1000, %s1001
      %p1010 = scmp.eq.s32.totalorder %s150, 0
      %p1011 = por %p1009, %p1010
      %p1012 = scmp.ne.s32.totalorder %s1000, %s1001
      %p1013 = scmp.eq.s32.totalorder %s151, 1
      %p1014 = por %p1012, %p1013
      %p1016 = scmp.ne.s32.totalorder %s1001, %s1015
      %p1017 = scmp.eq.s32.totalorder %s151, 0
      %p1018 = por %p1016, %p1017
      %s1020 = sadd.s32 %s1019, 1
      %p1023 = scmp.eq.s32.totalorder %s145, 1
      %p1024 = scmp.ne.s32.totalorder %s1019, %s1021
      %p1025 = scmp.eq.s32.totalorder %s145, 0
      %p1026 = por %p1024, %p1025
      %p1027 = scmp.ne.s32.totalorder %s1019, %s1021
      %p1028 = scmp.eq.s32.totalorder %s150, 1
      %p1029 = por %p1027, %p1028
      %p1030 = scmp.ne.s32.totalorder %s1021, %s1022
      %p1031 = scmp.eq.s32.totalorder %s150, 0
      %p1032 = por %p1030, %p1031
      %p1033 = scmp.ne.s32.totalorder %s1021, %s1022
      %p1034 = scmp.eq.s32.totalorder %s151, 1
      %p1035 = por %p1033, %p1034
      %p1037 = scmp.ne.s32.totalorder %s1022, %s1036
      %p1038 = scmp.eq.s32.totalorder %s151, 0
      %p1039 = por %p1037, %p1038
      %s1041 = sadd.s32 %s1040, 1
      %p1044 = scmp.eq.s32.totalorder %s145, 1
      %p1045 = scmp.ne.s32.totalorder %s1040, %s1042
      %p1046 = scmp.eq.s32.totalorder %s145, 0
      %p1047 = por %p1045, %p1046
      %p1048 = scmp.ne.s32.totalorder %s1040, %s1042
      %p1049 = scmp.eq.s32.totalorder %s150, 1
      %p1050 = por %p1048, %p1049
      %p1051 = scmp.ne.s32.totalorder %s1042, %s1043
      %p1052 = scmp.eq.s32.totalorder %s150, 0
      %p1053 = por %p1051, %p1052
      %p1054 = scmp.ne.s32.totalorder %s1042, %s1043
      %p1055 = scmp.eq.s32.totalorder %s151, 1
      %p1056 = por %p1054, %p1055
      %p1058 = scmp.ne.s32.totalorder %s1043, %s1057
      %p1059 = scmp.eq.s32.totalorder %s151, 0
      %p1060 = por %p1058, %p1059
      %s1062 = sadd.s32 %s1061, 1
      %p1065 = scmp.eq.s32.totalorder %s145, 1
      %p1066 = scmp.ne.s32.totalorder %s1061, %s1063
      %p1067 = scmp.eq.s32.totalorder %s145, 0
      %p1068 = por %p1066, %p1067
      %p1069 = scmp.ne.s32.totalorder %s1061, %s1063
      %p1070 = scmp.eq.s32.totalorder %s150, 1
      %p1071 = por %p1069, %p1070
      %p1072 = scmp.ne.s32.totalorder %s1063, %s1064
      %p1073 = scmp.eq.s32.totalorder %s150, 0
      %p1074 = por %p1072, %p1073
      %p1075 = scmp.ne.s32.totalorder %s1063, %s1064
      %p1076 = scmp.eq.s32.totalorder %s151, 1
      %p1077 = por %p1075, %p1076
      %p1079 = scmp.ne.s32.totalorder %s1064, %s1078
      %p1080 = scmp.eq.s32.totalorder %s151, 0
      %p1081 = por %p1079, %p1080
      %s1083 = sadd.s32 %s1082, 1
      %p1086 = scmp.eq.s32.totalorder %s145, 1
      %p1087 = scmp.ne.s32.totalorder %s1082, %s1084
      %p1088 = scmp.eq.s32.totalorder %s145, 0
      %p1089 = por %p1087, %p1088
      %p1090 = scmp.ne.s32.totalorder %s1082, %s1084
      %p1091 = scmp.eq.s32.totalorder %s150, 1
      %p1092 = por %p1090, %p1091
      %p1093 = scmp.ne.s32.totalorder %s1084, %s1085
      %p1094 = scmp.eq.s32.totalorder %s150, 0
      %p1095 = por %p1093, %p1094
      %p1096 = scmp.ne.s32.totalorder %s1084, %s1085
      %p1097 = scmp.eq.s32.totalorder %s151, 1
      %p1098 = por %p1096, %p1097
      %p1100 = scmp.ne.s32.totalorder %s1085, %s1099
      %p1101 = scmp.eq.s32.totalorder %s151, 0
      %p1102 = por %p1100, %p1101
      %s1104 = sadd.s32 %s1103, 1
      %p1107 = scmp.eq.s32.totalorder %s145, 1
      %p1108 = scmp.ne.s32.totalorder %s1103, %s1105
      %p1109 = scmp.eq.s32.totalorder %s145, 0
      %p1110 = por %p1108, %p1109
      %p1111 = scmp.ne.s32.totalorder %s1103, %s1105
      %p1112 = scmp.eq.s32.totalorder %s150, 1
      %p1113 = por %p1111, %p1112
      %p1114 = scmp.ne.s32.totalorder %s1105, %s1106
      %p1115 = scmp.eq.s32.totalorder %s150, 0
      %p1116 = por %p1114, %p1115
      %p1117 = scmp.ne.s32.totalorder %s1105, %s1106
      %p1118 = scmp.eq.s32.totalorder %s151, 1
      %p1119 = por %p1117, %p1118
      %p1121 = scmp.ne.s32.totalorder %s1106, %s1120
      %p1122 = scmp.eq.s32.totalorder %s151, 0
      %p1123 = por %p1121, %p1122
      %s1125 = sadd.s32 %s1124, 1
      %p1128 = scmp.eq.s32.totalorder %s145, 1
      %p1129 = scmp.ne.s32.totalorder %s1124, %s1126
      %p1130 = scmp.eq.s32.totalorder %s145, 0
      %p1131 = por %p1129, %p1130
      %p1132 = scmp.ne.s32.totalorder %s1124, %s1126
      %p1133 = scmp.eq.s32.totalorder %s150, 1
      %p1134 = por %p1132, %p1133
      %p1135 = scmp.ne.s32.totalorder %s1126, %s1127
      %p1136 = scmp.eq.s32.totalorder %s150, 0
      %p1137 = por %p1135, %p1136
      %p1138 = scmp.ne.s32.totalorder %s1126, %s1127
      %p1139 = scmp.eq.s32.totalorder %s151, 1
      %p1140 = por %p1138, %p1139
      %p1142 = scmp.ne.s32.totalorder %s1127, %s1141
      %p1143 = scmp.eq.s32.totalorder %s151, 0
      %p1144 = por %p1142, %p1143
      %s1146 = sadd.s32 %s1145, 1
      %p1149 = scmp.eq.s32.totalorder %s145, 1
      %p1150 = scmp.ne.s32.totalorder %s1145, %s1147
      %p1151 = scmp.eq.s32.totalorder %s145, 0
      %p1152 = por %p1150, %p1151
      %p1153 = scmp.ne.s32.totalorder %s1145, %s1147
      %p1154 = scmp.eq.s32.totalorder %s150, 1
      %p1155 = por %p1153, %p1154
      %p1156 = scmp.ne.s32.totalorder %s1147, %s1148
      %p1157 = scmp.eq.s32.totalorder %s150, 0
      %p1158 = por %p1156, %p1157
      %p1159 = scmp.ne.s32.totalorder %s1147, %s1148
      %p1160 = scmp.eq.s32.totalorder %s151, 1
      %p1161 = por %p1159, %p1160
      %p1163 = scmp.ne.s32.totalorder %s1148, %s1162
      %p1164 = scmp.eq.s32.totalorder %s151, 0
      %p1165 = por %p1163, %p1164
      %s1167 = sadd.s32 %s1166, 1
      %p1170 = scmp.eq.s32.totalorder %s145, 1
      %p1171 = scmp.ne.s32.totalorder %s1166, %s1168
      %p1172 = scmp.eq.s32.totalorder %s145, 0
      %p1173 = por %p1171, %p1172
      %p1174 = scmp.ne.s32.totalorder %s1166, %s1168
      %p1175 = scmp.eq.s32.totalorder %s150, 1
      %p1176 = por %p1174, %p1175
      %p1177 = scmp.ne.s32.totalorder %s1168, %s1169
      %p1178 = scmp.eq.s32.totalorder %s150, 0
      %p1179 = por %p1177, %p1178
      %p1180 = scmp.ne.s32.totalorder %s1168, %s1169
      %p1181 = scmp.eq.s32.totalorder %s151, 1
      %p1182 = por %p1180, %p1181
      %p1184 = scmp.ne.s32.totalorder %s1169, %s1183
      %p1185 = scmp.eq.s32.totalorder %s151, 0
      %p1186 = por %p1184, %p1185
      %s1188 = sadd.s32 %s1187, 1
      %p1191 = scmp.eq.s32.totalorder %s145, 1
      %p1192 = scmp.ne.s32.totalorder %s1187, %s1189
      %p1193 = scmp.eq.s32.totalorder %s145, 0
      %p1194 = por %p1192, %p1193
      %p1195 = scmp.ne.s32.totalorder %s1187, %s1189
      %p1196 = scmp.eq.s32.totalorder %s150, 1
      %p1197 = por %p1195, %p1196
      %p1198 = scmp.ne.s32.totalorder %s1189, %s1190
      %p1199 = scmp.eq.s32.totalorder %s150, 0
      %p1200 = por %p1198, %p1199
      %p1201 = scmp.ne.s32.totalorder %s1189, %s1190
      %p1202 = scmp.eq.s32.totalorder %s151, 1
      %p1203 = por %p1201, %p1202
      %p1205 = scmp.ne.s32.totalorder %s1190, %s1204
      %p1206 = scmp.eq.s32.totalorder %s151, 0
      %p1207 = por %p1205, %p1206
      %s1209 = sadd.s32 %s1208, 1
      %p1212 = scmp.eq.s32.totalorder %s145, 1
      %p1213 = scmp.ne.s32.totalorder %s1208, %s1210
      %p1214 = scmp.eq.s32.totalorder %s145, 0
      %p1215 = por %p1213, %p1214
      %p1216 = scmp.ne.s32.totalorder %s1208, %s1210
      %p1217 = scmp.eq.s32.totalorder %s150, 1
      %p1218 = por %p1216, %p1217
      %p1219 = scmp.ne.s32.totalorder %s1210, %s1211
      %p1220 = scmp.eq.s32.totalorder %s150, 0
      %p1221 = por %p1219, %p1220
      %p1222 = scmp.ne.s32.totalorder %s1210, %s1211
      %p1223 = scmp.eq.s32.totalorder %s151, 1
      %p1224 = por %p1222, %p1223
      %p1226 = scmp.ne.s32.totalorder %s1211, %s1225
      %p1227 = scmp.eq.s32.totalorder %s151, 0
      %p1228 = por %p1226, %p1227
      %s1230 = sadd.s32 %s1229, 1
      %p1233 = scmp.eq.s32.totalorder %s145, 1
      %p1234 = scmp.ne.s32.totalorder %s1229, %s1231
      %p1235 = scmp.eq.s32.totalorder %s145, 0
      %p1236 = por %p1234, %p1235
      %p1237 = scmp.ne.s32.totalorder %s1229, %s1231
      %p1238 = scmp.eq.s32.totalorder %s150, 1
      %p1239 = por %p1237, %p1238
      %p1240 = scmp.ne.s32.totalorder %s1231, %s1232
      %p1241 = scmp.eq.s32.totalorder %s150, 0
      %p1242 = por %p1240, %p1241
      %p1243 = scmp.ne.s32.totalorder %s1231, %s1232
      %p1244 = scmp.eq.s32.totalorder %s151, 1
      %p1245 = por %p1243, %p1244
      %p1247 = scmp.ne.s32.totalorder %s1232, %s1246
      %p1248 = scmp.eq.s32.totalorder %s151, 0
      %p1249 = por %p1247, %p1248
      %s1251 = sadd.s32 %s1250, 1
      %p1254 = scmp.eq.s32.totalorder %s145, 1
      %p1255 = scmp.ne.s32.totalorder %s1250, %s1252
      %p1256 = scmp.eq.s32.totalorder %s145, 0
      %p1257 = por %p1255, %p1256
      %p1258 = scmp.ne.s32.totalorder %s1250, %s1252
      %p1259 = scmp.eq.s32.totalorder %s150, 1
      %p1260 = por %p1258, %p1259
      %p1261 = scmp.ne.s32.totalorder %s1252, %s1253
      %p1262 = scmp.eq.s32.totalorder %s150, 0
      %p1263 = por %p1261, %p1262
      %p1264 = scmp.ne.s32.totalorder %s1252, %s1253
      %p1265 = scmp.eq.s32.totalorder %s151, 1
      %p1266 = por %p1264, %p1265
      %p1268 = scmp.ne.s32.totalorder %s1253, %s1267
      %p1269 = scmp.eq.s32.totalorder %s151, 0
      %p1270 = por %p1268, %p1269
      %s1272 = sadd.s32 %s1271, 1
      %p1275 = scmp.eq.s32.totalorder %s145, 1
      %p1276 = scmp.ne.s32.totalorder %s1271, %s1273
      %p1277 = scmp.eq.s32.totalorder %s145, 0
      %p1278 = por %p1276, %p1277
      %p1279 = scmp.ne.s32.totalorder %s1271, %s1273
      %p1280 = scmp.eq.s32.totalorder %s150, 1
      %p1281 = por %p1279, %p1280
      %p1282 = scmp.ne.s32.totalorder %s1273, %s1274
      %p1283 = scmp.eq.s32.totalorder %s150, 0
      %p1284 = por %p1282, %p1283
      %p1285 = scmp.ne.s32.totalorder %s1273, %s1274
      %p1286 = scmp.eq.s32.totalorder %s151, 1
      %p1287 = por %p1285, %p1286
      %p1289 = scmp.ne.s32.totalorder %s1274, %s1288
      %p1290 = scmp.eq.s32.totalorder %s151, 0
      %p1291 = por %p1289, %p1290
      %s1293 = sadd.s32 %s1292, 1
      %p1296 = scmp.eq.s32.totalorder %s145, 1
      %p1297 = scmp.ne.s32.totalorder %s1292, %s1294
      %p1298 = scmp.eq.s32.totalorder %s145, 0
      %p1299 = por %p1297, %p1298
      %p1300 = scmp.ne.s32.totalorder %s1292, %s1294
      %p1301 = scmp.eq.s32.totalorder %s150, 1
      %p1302 = por %p1300, %p1301
      %p1303 = scmp.ne.s32.totalorder %s1294, %s1295
      %p1304 = scmp.eq.s32.totalorder %s150, 0
      %p1305 = por %p1303, %p1304
      %p1306 = scmp.ne.s32.totalorder %s1294, %s1295
      %p1307 = scmp.eq.s32.totalorder %s151, 1
      %p1308 = por %p1306, %p1307
      %p1310 = scmp.ne.s32.totalorder %s1295, %s1309
      %p1311 = scmp.eq.s32.totalorder %s151, 0
      %p1312 = por %p1310, %p1311
      %s1314 = sadd.s32 %s1313, 1
      %p1317 = scmp.eq.s32.totalorder %s145, 1
      %p1318 = scmp.ne.s32.totalorder %s1313, %s1315
      %p1319 = scmp.eq.s32.totalorder %s145, 0
      %p1320 = por %p1318, %p1319
      %p1321 = scmp.ne.s32.totalorder %s1313, %s1315
      %p1322 = scmp.eq.s32.totalorder %s150, 1
      %p1323 = por %p1321, %p1322
      %p1324 = scmp.ne.s32.totalorder %s1315, %s1316
      %p1325 = scmp.eq.s32.totalorder %s150, 0
      %p1326 = por %p1324, %p1325
      %p1327 = scmp.ne.s32.totalorder %s1315, %s1316
      %p1328 = scmp.eq.s32.totalorder %s151, 1
      %p1329 = por %p1327, %p1328
      %p1331 = scmp.ne.s32.totalorder %s1316, %s1330
      %p1332 = scmp.eq.s32.totalorder %s151, 0
      %p1333 = por %p1331, %p1332
      %s1335 = sadd.s32 %s1334, 1
      %p1338 = scmp.eq.s32.totalorder %s145, 1
      %p1339 = scmp.ne.s32.totalorder %s1334, %s1336
      %p1340 = scmp.eq.s32.totalorder %s145, 0
      %p1341 = por %p1339, %p1340
      %p1342 = scmp.ne.s32.totalorder %s1334, %s1336
      %p1343 = scmp.eq.s32.totalorder %s150, 1
      %p1344 = por %p1342, %p1343
      %p1345 = scmp.ne.s32.totalorder %s1336, %s1337
      %p1346 = scmp.eq.s32.totalorder %s150, 0
      %p1347 = por %p1345, %p1346
      %p1348 = scmp.ne.s32.totalorder %s1336, %s1337
      %p1349 = scmp.eq.s32.totalorder %s151, 1
      %p1350 = por %p1348, %p1349
      %p1352 = scmp.ne.s32.totalorder %s1337, %s1351
      %p1353 = scmp.eq.s32.totalorder %s151, 0
      %p1354 = por %p1352, %p1353
      %s1356 = sadd.s32 %s1355, 1
      %p1359 = scmp.eq.s32.totalorder %s145, 1
      %p1360 = scmp.ne.s32.totalorder %s1355, %s1357
      %p1361 = scmp.eq.s32.totalorder %s145, 0
      %p1362 = por %p1360, %p1361
      %p1363 = scmp.ne.s32.totalorder %s1355, %s1357
      %p1364 = scmp.eq.s32.totalorder %s150, 1
      %p1365 = por %p1363, %p1364
      %p1366 = scmp.ne.s32.totalorder %s1357, %s1358
      %p1367 = scmp.eq.s32.totalorder %s150, 0
      %p1368 = por %p1366, %p1367
      %p1369 = scmp.ne.s32.totalorder %s1357, %s1358
      %p1370 = scmp.eq.s32.totalorder %s151, 1
      %p1371 = por %p1369, %p1370
      %p1373 = scmp.ne.s32.totalorder %s1358, %s1372
      %p1374 = scmp.eq.s32.totalorder %s151, 0
      %p1375 = por %p1373, %p1374
      %s1377 = sadd.s32 %s1376, 1
      %p1380 = scmp.eq.s32.totalorder %s145, 1
      %p1381 = scmp.ne.s32.totalorder %s1376, %s1378
      %p1382 = scmp.eq.s32.totalorder %s145, 0
      %p1383 = por %p1381, %p1382
      %p1384 = scmp.ne.s32.totalorder %s1376, %s1378
      %p1385 = scmp.eq.s32.totalorder %s150, 1
      %p1386 = por %p1384, %p1385
      %p1387 = scmp.ne.s32.totalorder %s1378, %s1379
      %p1388 = scmp.eq.s32.totalorder %s150, 0
      %p1389 = por %p1387, %p1388
      %p1390 = scmp.ne.s32.totalorder %s1378, %s1379
      %p1391 = scmp.eq.s32.totalorder %s151, 1
      %p1392 = por %p1390, %p1391
      %p1394 = scmp.ne.s32.totalorder %s1379, %s1393
      %p1395 = scmp.eq.s32.totalorder %s151, 0
      %p1396 = por %p1394, %p1395
      %s1398 = sadd.s32 %s1397, 1
      %p1401 = scmp.eq.s32.totalorder %s145, 1
      %p1402 = scmp.ne.s32.totalorder %s1397, %s1399
      %p1403 = scmp.eq.s32.totalorder %s145, 0
      %p1404 = por %p1402, %p1403
      %p1405 = scmp.ne.s32.totalorder %s1397, %s1399
      %p1406 = scmp.eq.s32.totalorder %s150, 1
      %p1407 = por %p1405, %p1406
      %p1408 = scmp.ne.s32.totalorder %s1399, %s1400
      %p1409 = scmp.eq.s32.totalorder %s150, 0
      %p1410 = por %p1408, %p1409
      %p1411 = scmp.ne.s32.totalorder %s1399, %s1400
      %p1412 = scmp.eq.s32.totalorder %s151, 1
      %p1413 = por %p1411, %p1412
      %p1415 = scmp.ne.s32.totalorder %s1400, %s1414
      %p1416 = scmp.eq.s32.totalorder %s151, 0
      %p1417 = por %p1415, %p1416
      %s1419 = sadd.s32 %s1418, 1
      %p1422 = scmp.eq.s32.totalorder %s145, 1
      %p1423 = scmp.ne.s32.totalorder %s1418, %s1420
      %p1424 = scmp.eq.s32.totalorder %s145, 0
      %p1425 = por %p1423, %p1424
      %p1426 = scmp.ne.s32.totalorder %s1418, %s1420
      %p1427 = scmp.eq.s32.totalorder %s150, 1
      %p1428 = por %p1426, %p1427
      %p1429 = scmp.ne.s32.totalorder %s1420, %s1421
      %p1430 = scmp.eq.s32.totalorder %s150, 0
      %p1431 = por %p1429, %p1430
      %p1432 = scmp.ne.s32.totalorder %s1420, %s1421
      %p1433 = scmp.eq.s32.totalorder %s151, 1
      %p1434 = por %p1432, %p1433
      %p1436 = scmp.ne.s32.totalorder %s1421, %s1435
      %p1437 = scmp.eq.s32.totalorder %s151, 0
      %p1438 = por %p1436, %p1437
      %s1440 = sadd.s32 %s1439, 1
      %p1443 = scmp.eq.s32.totalorder %s145, 1
      %p1444 = scmp.ne.s32.totalorder %s1439, %s1441
      %p1445 = scmp.eq.s32.totalorder %s145, 0
      %p1446 = por %p1444, %p1445
      %p1447 = scmp.ne.s32.totalorder %s1439, %s1441
      %p1448 = scmp.eq.s32.totalorder %s150, 1
      %p1449 = por %p1447, %p1448
      %p1450 = scmp.ne.s32.totalorder %s1441, %s1442
      %p1451 = scmp.eq.s32.totalorder %s150, 0
      %p1452 = por %p1450, %p1451
      %p1453 = scmp.ne.s32.totalorder %s1441, %s1442
      %p1454 = scmp.eq.s32.totalorder %s151, 1
      %p1455 = por %p1453, %p1454
      %p1457 = scmp.ne.s32.totalorder %s1442, %s1456
      %p1458 = scmp.eq.s32.totalorder %s151, 0
      %p1459 = por %p1457, %p1458
      %s1461 = sadd.s32 %s1460, 1
      %p1464 = scmp.eq.s32.totalorder %s145, 1
      %p1465 = scmp.ne.s32.totalorder %s1460, %s1462
      %p1466 = scmp.eq.s32.totalorder %s145, 0
      %p1467 = por %p1465, %p1466
      %p1468 = scmp.ne.s32.totalorder %s1460, %s1462
      %p1469 = scmp.eq.s32.totalorder %s150, 1
      %p1470 = por %p1468, %p1469
      %p1471 = scmp.ne.s32.totalorder %s1462, %s1463
      %p1472 = scmp.eq.s32.totalorder %s150, 0
      %p1473 = por %p1471, %p1472
      %p1474 = scmp.ne.s32.totalorder %s1462, %s1463
      %p1475 = scmp.eq.s32.totalorder %s151, 1
      %p1476 = por %p1474, %p1475
      %p1478 = scmp.ne.s32.totalorder %s1463, %s1477
      %p1479 = scmp.eq.s32.totalorder %s151, 0
      %p1480 = por %p1478, %p1479
      %s1482 = sadd.s32 %s1481, 1
      %p1485 = scmp.eq.s32.totalorder %s145, 1
      %p1486 = scmp.ne.s32.totalorder %s1481, %s1483
      %p1487 = scmp.eq.s32.totalorder %s145, 0
      %p1488 = por %p1486, %p1487
      %p1489 = scmp.ne.s32.totalorder %s1481, %s1483
      %p1490 = scmp.eq.s32.totalorder %s150, 1
      %p1491 = por %p1489, %p1490
      %p1492 = scmp.ne.s32.totalorder %s1483, %s1484
      %p1493 = scmp.eq.s32.totalorder %s150, 0
      %p1494 = por %p1492, %p1493
      %p1495 = scmp.ne.s32.totalorder %s1483, %s1484
      %p1496 = scmp.eq.s32.totalorder %s151, 1
      %p1497 = por %p1495, %p1496
      %p1499 = scmp.ne.s32.totalorder %s1484, %s1498
      %p1500 = scmp.eq.s32.totalorder %s151, 0
      %p1501 = por %p1499, %p1500
      %s1503 = sadd.s32 %s1502, 1
      %p1506 = scmp.eq.s32.totalorder %s145, 1
      %p1507 = scmp.ne.s32.totalorder %s1502, %s1504
      %p1508 = scmp.eq.s32.totalorder %s145, 0
      %p1509 = por %p1507, %p1508
      %p1510 = scmp.ne.s32.totalorder %s1502, %s1504
      %p1511 = scmp.eq.s32.totalorder %s150, 1
      %p1512 = por %p1510, %p1511
      %p1513 = scmp.ne.s32.totalorder %s1504, %s1505
      %p1514 = scmp.eq.s32.totalorder %s150, 0
      %p1515 = por %p1513, %p1514
      %p1516 = scmp.ne.s32.totalorder %s1504, %s1505
      %p1517 = scmp.eq.s32.totalorder %s151, 1
      %p1518 = por %p1516, %p1517
      %p1520 = scmp.ne.s32.totalorder %s1505, %s1519
      %p1521 = scmp.eq.s32.totalorder %s151, 0
      %p1522 = por %p1520, %p1521
      %s1523 = ssub.s32 %s145, %s152
      %p1524 = scmp.eq.s32.totalorder %s1523, 0
      %s1526 = sadd.s32 %s1525, 1
      %s1527 = scalar_select %p1524, %s1525, %s1526
      %p1530 = pneg %p1524
      %p1531 = scmp.eq.s32.totalorder %s145, 1
      %p1532 = por %p1530, %p1531
      %p1533 = scmp.ne.s32.totalorder %s1525, %s1528
      %p1534 = scmp.eq.s32.totalorder %s145, 0
      %p1535 = por %p1533, %p1534
      %p1536 = scmp.ne.s32.totalorder %s1525, %s1528
      %p1537 = scmp.eq.s32.totalorder %s150, 1
      %p1538 = por %p1536, %p1537
      %p1539 = scmp.ne.s32.totalorder %s1528, %s1529
      %p1540 = scmp.eq.s32.totalorder %s150, 0
      %p1541 = por %p1539, %p1540
      %p1542 = scmp.ne.s32.totalorder %s1528, %s1529
      %p1543 = scmp.eq.s32.totalorder %s151, 1
      %p1544 = por %p1542, %p1543
      %p1546 = scmp.ne.s32.totalorder %s1529, %s1545
      %p1547 = scmp.eq.s32.totalorder %s151, 0
      %p1548 = por %p1546, %p1547
      %p1549 = scmp.le.s32.totalorder 1, %s145
      %p1550 = scmp.lt.s32.totalorder %s145, 3
      %p1551 = pnand %p1549, %p1550
      %p1552 = pneg %p1551
      // Predicated region
      $region9: #{encoder_forward.1} parent=5 // pred_check
        _
      $region10: #{encoder_forward.1} parent=5 // pred_check_branch
        %1554 = sbr.rel (%p1551) target = $region12
      $region11: #{encoder_forward.1} parent=5 // pred_region
        %s1555 = ssub.s32 %s145, 1
        // Predicated region
        $region13: #{encoder_forward.1} parent=11 // pred_check
          %p1556 = pneg %p192
        $region14: #{encoder_forward.1} parent=11 // pred_check_branch
          %1558 = sbr.rel (%p1556) target = $region16
        $region15: #{encoder_forward.1} parent=11 // pred_region
          _
        $region16: #{encoder_forward.1} parent=11 // pred_fallthru
          _
        // Predicated region
        $region17: #{encoder_forward.1} parent=11 // pred_check
          %p1559 = pneg %p213
        $region18: #{encoder_forward.1} parent=11 // pred_check_branch
          %1561 = sbr.rel (%p1559) target = $region20
        $region19: #{encoder_forward.1} parent=11 // pred_region
          _
        $region20: #{encoder_forward.1} parent=11 // pred_fallthru
          _
        // Predicated region
        $region21: #{encoder_forward.1} parent=11 // pred_check
          %p1562 = pneg %p234
        $region22: #{encoder_forward.1} parent=11 // pred_check_branch
          %1564 = sbr.rel (%p1562) target = $region24
        $region23: #{encoder_forward.1} parent=11 // pred_region
          _
        $region24: #{encoder_forward.1} parent=11 // pred_fallthru
          _
        // Predicated region
        $region25: #{encoder_forward.1} parent=11 // pred_check
          %p1565 = pneg %p255
        $region26: #{encoder_forward.1} parent=11 // pred_check_branch
          %1567 = sbr.rel (%p1565) target = $region28
        $region27: #{encoder_forward.1} parent=11 // pred_region
          _
        $region28: #{encoder_forward.1} parent=11 // pred_fallthru
          _
        // Predicated region
        $region29: #{encoder_forward.1} parent=11 // pred_check
          %p1568 = pneg %p276
        $region30: #{encoder_forward.1} parent=11 // pred_check_branch
          %1570 = sbr.rel (%p1568) target = $region32
        $region31: #{encoder_forward.1} parent=11 // pred_region
          _
        $region32: #{encoder_forward.1} parent=11 // pred_fallthru
          _
        // Predicated region
        $region33: #{encoder_forward.1} parent=11 // pred_check
          %p1571 = pneg %p297
        $region34: #{encoder_forward.1} parent=11 // pred_check_branch
          %1573 = sbr.rel (%p1571) target = $region36
        $region35: #{encoder_forward.1} parent=11 // pred_region
          _
        $region36: #{encoder_forward.1} parent=11 // pred_fallthru
          _
        // Predicated region
        $region37: #{encoder_forward.1} parent=11 // pred_check
          %p1574 = pneg %p318
        $region38: #{encoder_forward.1} parent=11 // pred_check_branch
          %1576 = sbr.rel (%p1574) target = $region40
        $region39: #{encoder_forward.1} parent=11 // pred_region
          _
        $region40: #{encoder_forward.1} parent=11 // pred_fallthru
          _
        // Predicated region
        $region41: #{encoder_forward.1} parent=11 // pred_check
          %p1577 = pneg %p339
        $region42: #{encoder_forward.1} parent=11 // pred_check_branch
          %1579 = sbr.rel (%p1577) target = $region44
        $region43: #{encoder_forward.1} parent=11 // pred_region
          _
        $region44: #{encoder_forward.1} parent=11 // pred_fallthru
          _
        // Predicated region
        $region45: #{encoder_forward.1} parent=11 // pred_check
          %p1580 = pneg %p360
        $region46: #{encoder_forward.1} parent=11 // pred_check_branch
          %1582 = sbr.rel (%p1580) target = $region48
        $region47: #{encoder_forward.1} parent=11 // pred_region
          _
        $region48: #{encoder_forward.1} parent=11 // pred_fallthru
          _
        // Predicated region
        $region49: #{encoder_forward.1} parent=11 // pred_check
          %p1583 = pneg %p381
        $region50: #{encoder_forward.1} parent=11 // pred_check_branch
          %1585 = sbr.rel (%p1583) target = $region52
        $region51: #{encoder_forward.1} parent=11 // pred_region
          _
        $region52: #{encoder_forward.1} parent=11 // pred_fallthru
          _
        // Predicated region
        $region53: #{encoder_forward.1} parent=11 // pred_check
          %p1586 = pneg %p402
        $region54: #{encoder_forward.1} parent=11 // pred_check_branch
          %1588 = sbr.rel (%p1586) target = $region56
        $region55: #{encoder_forward.1} parent=11 // pred_region
          _
        $region56: #{encoder_forward.1} parent=11 // pred_fallthru
          _
        // Predicated region
        $region57: #{encoder_forward.1} parent=11 // pred_check
          %p1589 = pneg %p423
        $region58: #{encoder_forward.1} parent=11 // pred_check_branch
          %1591 = sbr.rel (%p1589) target = $region60
        $region59: #{encoder_forward.1} parent=11 // pred_region
          _
        $region60: #{encoder_forward.1} parent=11 // pred_fallthru
          _
        // Predicated region
        $region61: #{encoder_forward.1} parent=11 // pred_check
          %p1592 = pneg %p444
        $region62: #{encoder_forward.1} parent=11 // pred_check_branch
          %1594 = sbr.rel (%p1592) target = $region64
        $region63: #{encoder_forward.1} parent=11 // pred_region
          _
        $region64: #{encoder_forward.1} parent=11 // pred_fallthru
          _
        // Predicated region
        $region65: #{encoder_forward.1} parent=11 // pred_check
          %p1595 = pneg %p465
        $region66: #{encoder_forward.1} parent=11 // pred_check_branch
          %1597 = sbr.rel (%p1595) target = $region68
        $region67: #{encoder_forward.1} parent=11 // pred_region
          _
        $region68: #{encoder_forward.1} parent=11 // pred_fallthru
          _
        // Predicated region
        $region69: #{encoder_forward.1} parent=11 // pred_check
          %p1598 = pneg %p486
        $region70: #{encoder_forward.1} parent=11 // pred_check_branch
          %1600 = sbr.rel (%p1598) target = $region72
        $region71: #{encoder_forward.1} parent=11 // pred_region
          _
        $region72: #{encoder_forward.1} parent=11 // pred_fallthru
          _
        // Predicated region
        $region73: #{encoder_forward.1} parent=11 // pred_check
          %p1601 = pneg %p507
        $region74: #{encoder_forward.1} parent=11 // pred_check_branch
          %1603 = sbr.rel (%p1601) target = $region76
        $region75: #{encoder_forward.1} parent=11 // pred_region
          _
        $region76: #{encoder_forward.1} parent=11 // pred_fallthru
          _
        // Predicated region
        $region77: #{encoder_forward.1} parent=11 // pred_check
          %p1604 = pneg %p528
        $region78: #{encoder_forward.1} parent=11 // pred_check_branch
          %1606 = sbr.rel (%p1604) target = $region80
        $region79: #{encoder_forward.1} parent=11 // pred_region
          %1608 = vsyncadd [#allocation3], 0
          %s1609 = sshll.u32 %s35, 4
          %s1610 = int_to_ptr.hbm [resolvable:$true] %s1609
          %s1611 = sshll.u32 [#allocation2], 4
          %s1612 = int_to_ptr.vmem [resolvable:$true] %s1611
          %1617 = dma.hbm_to_vmem [thread:$0]  %s1610, 16384, %s1612, [#allocation3], 256, 256, 16
        $region80: #{encoder_forward.1} parent=11 // pred_fallthru
          _
        // Predicated region
        $region81: #{encoder_forward.1} parent=11 // pred_check
          %p1618 = pneg %p549
        $region82: #{encoder_forward.1} parent=11 // pred_check_branch
          %1620 = sbr.rel (%p1618) target = $region84
        $region83: #{encoder_forward.1} parent=11 // pred_region
          %1622 = vsyncadd [#allocation6], 0
          %s1624 = sshll.u32 %s37, 4
          %s1625 = int_to_ptr.hbm [resolvable:$true] %s1624
          %s1626 = sshll.u32 [#allocation5], 4
          %s1627 = int_to_ptr.vmem [resolvable:$true] %s1626
          %1629 = dma.hbm_to_vmem [thread:$0]  %s1625, 128, %s1627, [#allocation6]
        $region84: #{encoder_forward.1} parent=11 // pred_fallthru
          _
        // Predicated region
        $region85: #{encoder_forward.1} parent=11 // pred_check
          %p1630 = pneg %p570
        $region86: #{encoder_forward.1} parent=11 // pred_check_branch
          %1632 = sbr.rel (%p1630) target = $region88
        $region87: #{encoder_forward.1} parent=11 // pred_region
          _
        $region88: #{encoder_forward.1} parent=11 // pred_fallthru
          _
        // Predicated region
        $region89: #{encoder_forward.1} parent=11 // pred_check
          %p1633 = pneg %p591
        $region90: #{encoder_forward.1} parent=11 // pred_check_branch
          %1635 = sbr.rel (%p1633) target = $region92
        $region91: #{encoder_forward.1} parent=11 // pred_region
          %1637 = vsyncadd [#allocation6], 0
          %s1639 = sshll.u32 %s41, 4
          %s1640 = int_to_ptr.hbm [resolvable:$true] %s1639
          %s1641 = sshll.u32 [#allocation7], 4
          %s1642 = int_to_ptr.vmem [resolvable:$true] %s1641
          %1644 = dma.hbm_to_vmem [thread:$0]  %s1640, 128, %s1642, [#allocation6]
        $region92: #{encoder_forward.1} parent=11 // pred_fallthru
          _
        // Predicated region
        $region93: #{encoder_forward.1} parent=11 // pred_check
          %p1645 = pneg %p612
        $region94: #{encoder_forward.1} parent=11 // pred_check_branch
          %1647 = sbr.rel (%p1645) target = $region96
        $region95: #{encoder_forward.1} parent=11 // pred_region
          _
        $region96: #{encoder_forward.1} parent=11 // pred_fallthru
          _
        // Predicated region
        $region97: #{encoder_forward.1} parent=11 // pred_check
          %p1648 = pneg %p633
        $region98: #{encoder_forward.1} parent=11 // pred_check_branch
          %1650 = sbr.rel (%p1648) target = $region100
        $region99: #{encoder_forward.1} parent=11 // pred_region
          %1652 = vsyncadd [#allocation9], 0
          %s1654 = sshll.u32 %s45, 4
          %s1655 = int_to_ptr.hbm [resolvable:$true] %s1654
          %s1656 = sshll.u32 [#allocation8], 4
          %s1657 = int_to_ptr.vmem [resolvable:$true] %s1656
          %1659 = dma.hbm_to_vmem [thread:$0]  %s1655, 128, %s1657, [#allocation9]
        $region100: #{encoder_forward.1} parent=11 // pred_fallthru
          _
        // Predicated region
        $region101: #{encoder_forward.1} parent=11 // pred_check
          %p1660 = pneg %p654
        $region102: #{encoder_forward.1} parent=11 // pred_check_branch
          %1662 = sbr.rel (%p1660) target = $region104
        $region103: #{encoder_forward.1} parent=11 // pred_region
          _
        $region104: #{encoder_forward.1} parent=11 // pred_fallthru
          _
        // Predicated region
        $region105: #{encoder_forward.1} parent=11 // pred_check
          %p1663 = pneg %p675
        $region106: #{encoder_forward.1} parent=11 // pred_check_branch
          %1665 = sbr.rel (%p1663) target = $region108
        $region107: #{encoder_forward.1} parent=11 // pred_region
          %1667 = vsyncadd [#allocation9], 0
          %s1669 = sshll.u32 %s49, 4
          %s1670 = int_to_ptr.hbm [resolvable:$true] %s1669
          %s1671 = sshll.u32 [#allocation10], 4
          %s1672 = int_to_ptr.vmem [resolvable:$true] %s1671
          %1674 = dma.hbm_to_vmem [thread:$0]  %s1670, 128, %s1672, [#allocation9]
        $region108: #{encoder_forward.1} parent=11 // pred_fallthru
          _
        // Predicated region
        $region109: #{encoder_forward.1} parent=11 // pred_check
          %p1675 = pneg %p696
        $region110: #{encoder_forward.1} parent=11 // pred_check_branch
          %1677 = sbr.rel (%p1675) target = $region112
        $region111: #{encoder_forward.1} parent=11 // pred_region
          _
        $region112: #{encoder_forward.1} parent=11 // pred_fallthru
          _
        // Predicated region
        $region113: #{encoder_forward.1} parent=11 // pred_check
          %p1678 = pneg %p717
        $region114: #{encoder_forward.1} parent=11 // pred_check_branch
          %1680 = sbr.rel (%p1678) target = $region116
        $region115: #{encoder_forward.1} parent=11 // pred_region
          %1682 = vsyncadd [#allocation12], 0
          %s1684 = sshll.u32 %s53, 4
          %s1685 = int_to_ptr.hbm [resolvable:$true] %s1684
          %s1686 = sshll.u32 [#allocation11], 4
          %s1687 = int_to_ptr.vmem [resolvable:$true] %s1686
          %1689 = dma.hbm_to_vmem [thread:$0]  %s1685, 128, %s1687, [#allocation12]
        $region116: #{encoder_forward.1} parent=11 // pred_fallthru
          _
        // Predicated region
        $region117: #{encoder_forward.1} parent=11 // pred_check
          %p1690 = pneg %p738
        $region118: #{encoder_forward.1} parent=11 // pred_check_branch
          %1692 = sbr.rel (%p1690) target = $region120
        $region119: #{encoder_forward.1} parent=11 // pred_region
          _
        $region120: #{encoder_forward.1} parent=11 // pred_fallthru
          _
        // Predicated region
        $region121: #{encoder_forward.1} parent=11 // pred_check
          %p1693 = pneg %p759
        $region122: #{encoder_forward.1} parent=11 // pred_check_branch
          %1695 = sbr.rel (%p1693) target = $region124
        $region123: #{encoder_forward.1} parent=11 // pred_region
          %1697 = vsyncadd [#allocation12], 0
          %s1699 = sshll.u32 %s57, 4
          %s1700 = int_to_ptr.hbm [resolvable:$true] %s1699
          %s1701 = sshll.u32 [#allocation13], 4
          %s1702 = int_to_ptr.vmem [resolvable:$true] %s1701
          %1704 = dma.hbm_to_vmem [thread:$0]  %s1700, 128, %s1702, [#allocation12]
        $region124: #{encoder_forward.1} parent=11 // pred_fallthru
          _
        // Predicated region
        $region125: #{encoder_forward.1} parent=11 // pred_check
          %p1705 = pneg %p780
        $region126: #{encoder_forward.1} parent=11 // pred_check_branch
          %1707 = sbr.rel (%p1705) target = $region128
        $region127: #{encoder_forward.1} parent=11 // pred_region
          _
        $region128: #{encoder_forward.1} parent=11 // pred_fallthru
          _
        // Predicated region
        $region129: #{encoder_forward.1} parent=11 // pred_check
          %p1708 = pneg %p801
        $region130: #{encoder_forward.1} parent=11 // pred_check_branch
          %1710 = sbr.rel (%p1708) target = $region132
        $region131: #{encoder_forward.1} parent=11 // pred_region
          _
        $region132: #{encoder_forward.1} parent=11 // pred_fallthru
          _
        // Predicated region
        $region133: #{encoder_forward.1} parent=11 // pred_check
          %p1711 = pneg %p822
        $region134: #{encoder_forward.1} parent=11 // pred_check_branch
          %1713 = sbr.rel (%p1711) target = $region136
        $region135: #{encoder_forward.1} parent=11 // pred_region
          _
        $region136: #{encoder_forward.1} parent=11 // pred_fallthru
          _
        // Predicated region
        $region137: #{encoder_forward.1} parent=11 // pred_check
          %p1714 = pneg %p843
        $region138: #{encoder_forward.1} parent=11 // pred_check_branch
          %1716 = sbr.rel (%p1714) target = $region140
        $region139: #{encoder_forward.1} parent=11 // pred_region
          %1718 = vsyncadd [#allocation15], 0
          %s1719 = sshll.u32 %s65, 4
          %s1720 = int_to_ptr.hbm [resolvable:$true] %s1719
          %s1721 = sshll.u32 [#allocation14], 4
          %s1722 = int_to_ptr.vmem [resolvable:$true] %s1721
          %1727 = dma.hbm_to_vmem [thread:$0]  %s1720, 4096, %s1722, [#allocation15], 128, 128, 8
        $region140: #{encoder_forward.1} parent=11 // pred_fallthru
          _
        // Predicated region
        $region141: #{encoder_forward.1} parent=11 // pred_check
          %p1728 = pneg %p864
        $region142: #{encoder_forward.1} parent=11 // pred_check_branch
          %1730 = sbr.rel (%p1728) target = $region144
        $region143: #{encoder_forward.1} parent=11 // pred_region
          _
        $region144: #{encoder_forward.1} parent=11 // pred_fallthru
          _
        // Predicated region
        $region145: #{encoder_forward.1} parent=11 // pred_check
          %p1731 = pneg %p885
        $region146: #{encoder_forward.1} parent=11 // pred_check_branch
          %1733 = sbr.rel (%p1731) target = $region148
        $region147: #{encoder_forward.1} parent=11 // pred_region
          _
        $region148: #{encoder_forward.1} parent=11 // pred_fallthru
          _
        // Predicated region
        $region149: #{encoder_forward.1} parent=11 // pred_check
          %p1734 = pneg %p906
        $region150: #{encoder_forward.1} parent=11 // pred_check_branch
          %1736 = sbr.rel (%p1734) target = $region152
        $region151: #{encoder_forward.1} parent=11 // pred_region
          _
        $region152: #{encoder_forward.1} parent=11 // pred_fallthru
          _
        // Predicated region
        $region153: #{encoder_forward.1} parent=11 // pred_check
          %p1737 = pneg %p927
        $region154: #{encoder_forward.1} parent=11 // pred_check_branch
          %1739 = sbr.rel (%p1737) target = $region156
        $region155: #{encoder_forward.1} parent=11 // pred_region
          _
        $region156: #{encoder_forward.1} parent=11 // pred_fallthru
          _
        // Predicated region
        $region157: #{encoder_forward.1} parent=11 // pred_check
          %p1740 = pneg %p948
        $region158: #{encoder_forward.1} parent=11 // pred_check_branch
          %1742 = sbr.rel (%p1740) target = $region160
        $region159: #{encoder_forward.1} parent=11 // pred_region
          _
        $region160: #{encoder_forward.1} parent=11 // pred_fallthru
          _
        // Predicated region
        $region161: #{encoder_forward.1} parent=11 // pred_check
          %p1743 = pneg %p969
        $region162: #{encoder_forward.1} parent=11 // pred_check_branch
          %1745 = sbr.rel (%p1743) target = $region164
        $region163: #{encoder_forward.1} parent=11 // pred_region
          _
        $region164: #{encoder_forward.1} parent=11 // pred_fallthru
          _
        // Predicated region
        $region165: #{encoder_forward.1} parent=11 // pred_check
          %p1746 = pneg %p990
        $region166: #{encoder_forward.1} parent=11 // pred_check_branch
          %1748 = sbr.rel (%p1746) target = $region168
        $region167: #{encoder_forward.1} parent=11 // pred_region
          _
        $region168: #{encoder_forward.1} parent=11 // pred_fallthru
          _
        // Predicated region
        $region169: #{encoder_forward.1} parent=11 // pred_check
          %p1749 = pneg %p1011
        $region170: #{encoder_forward.1} parent=11 // pred_check_branch
          %1751 = sbr.rel (%p1749) target = $region172
        $region171: #{encoder_forward.1} parent=11 // pred_region
          _
        $region172: #{encoder_forward.1} parent=11 // pred_fallthru
          _
        // Predicated region
        $region173: #{encoder_forward.1} parent=11 // pred_check
          %p1752 = pneg %p1032
        $region174: #{encoder_forward.1} parent=11 // pred_check_branch
          %1754 = sbr.rel (%p1752) target = $region176
        $region175: #{encoder_forward.1} parent=11 // pred_region
          _
        $region176: #{encoder_forward.1} parent=11 // pred_fallthru
          _
        // Predicated region
        $region177: #{encoder_forward.1} parent=11 // pred_check
          %p1755 = pneg %p1053
        $region178: #{encoder_forward.1} parent=11 // pred_check_branch
          %1757 = sbr.rel (%p1755) target = $region180
        $region179: #{encoder_forward.1} parent=11 // pred_region
          _
        $region180: #{encoder_forward.1} parent=11 // pred_fallthru
          _
        // Predicated region
        $region181: #{encoder_forward.1} parent=11 // pred_check
          %p1758 = pneg %p1074
        $region182: #{encoder_forward.1} parent=11 // pred_check_branch
          %1760 = sbr.rel (%p1758) target = $region184
        $region183: #{encoder_forward.1} parent=11 // pred_region
          _
        $region184: #{encoder_forward.1} parent=11 // pred_fallthru
          _
        // Predicated region
        $region185: #{encoder_forward.1} parent=11 // pred_check
          %p1761 = pneg %p1095
        $region186: #{encoder_forward.1} parent=11 // pred_check_branch
          %1763 = sbr.rel (%p1761) target = $region188
        $region187: #{encoder_forward.1} parent=11 // pred_region
          _
        $region188: #{encoder_forward.1} parent=11 // pred_fallthru
          _
        // Predicated region
        $region189: #{encoder_forward.1} parent=11 // pred_check
          %p1764 = pneg %p1116
        $region190: #{encoder_forward.1} parent=11 // pred_check_branch
          %1766 = sbr.rel (%p1764) target = $region192
        $region191: #{encoder_forward.1} parent=11 // pred_region
          _
        $region192: #{encoder_forward.1} parent=11 // pred_fallthru
          _
        // Predicated region
        $region193: #{encoder_forward.1} parent=11 // pred_check
          %p1767 = pneg %p1137
        $region194: #{encoder_forward.1} parent=11 // pred_check_branch
          %1769 = sbr.rel (%p1767) target = $region196
        $region195: #{encoder_forward.1} parent=11 // pred_region
          _
        $region196: #{encoder_forward.1} parent=11 // pred_fallthru
          _
        // Predicated region
        $region197: #{encoder_forward.1} parent=11 // pred_check
          %p1770 = pneg %p1158
        $region198: #{encoder_forward.1} parent=11 // pred_check_branch
          %1772 = sbr.rel (%p1770) target = $region200
        $region199: #{encoder_forward.1} parent=11 // pred_region
          _
        $region200: #{encoder_forward.1} parent=11 // pred_fallthru
          _
        // Predicated region
        $region201: #{encoder_forward.1} parent=11 // pred_check
          %p1773 = pneg %p1179
        $region202: #{encoder_forward.1} parent=11 // pred_check_branch
          %1775 = sbr.rel (%p1773) target = $region204
        $region203: #{encoder_forward.1} parent=11 // pred_region
          _
        $region204: #{encoder_forward.1} parent=11 // pred_fallthru
          _
        // Predicated region
        $region205: #{encoder_forward.1} parent=11 // pred_check
          %p1776 = pneg %p1200
        $region206: #{encoder_forward.1} parent=11 // pred_check_branch
          %1778 = sbr.rel (%p1776) target = $region208
        $region207: #{encoder_forward.1} parent=11 // pred_region
          _
        $region208: #{encoder_forward.1} parent=11 // pred_fallthru
          _
        // Predicated region
        $region209: #{encoder_forward.1} parent=11 // pred_check
          %p1779 = pneg %p1221
        $region210: #{encoder_forward.1} parent=11 // pred_check_branch
          %1781 = sbr.rel (%p1779) target = $region212
        $region211: #{encoder_forward.1} parent=11 // pred_region
          _
        $region212: #{encoder_forward.1} parent=11 // pred_fallthru
          _
        // Predicated region
        $region213: #{encoder_forward.1} parent=11 // pred_check
          %p1782 = pneg %p1242
        $region214: #{encoder_forward.1} parent=11 // pred_check_branch
          %1784 = sbr.rel (%p1782) target = $region216
        $region215: #{encoder_forward.1} parent=11 // pred_region
          _
        $region216: #{encoder_forward.1} parent=11 // pred_fallthru
          _
        // Predicated region
        $region217: #{encoder_forward.1} parent=11 // pred_check
          %p1785 = pneg %p1263
        $region218: #{encoder_forward.1} parent=11 // pred_check_branch
          %1787 = sbr.rel (%p1785) target = $region220
        $region219: #{encoder_forward.1} parent=11 // pred_region
          _
        $region220: #{encoder_forward.1} parent=11 // pred_fallthru
          _
        // Predicated region
        $region221: #{encoder_forward.1} parent=11 // pred_check
          %p1788 = pneg %p1284
        $region222: #{encoder_forward.1} parent=11 // pred_check_branch
          %1790 = sbr.rel (%p1788) target = $region224
        $region223: #{encoder_forward.1} parent=11 // pred_region
          _
        $region224: #{encoder_forward.1} parent=11 // pred_fallthru
          _
        // Predicated region
        $region225: #{encoder_forward.1} parent=11 // pred_check
          %p1791 = pneg %p1305
        $region226: #{encoder_forward.1} parent=11 // pred_check_branch
          %1793 = sbr.rel (%p1791) target = $region228
        $region227: #{encoder_forward.1} parent=11 // pred_region
          _
        $region228: #{encoder_forward.1} parent=11 // pred_fallthru
          _
        // Predicated region
        $region229: #{encoder_forward.1} parent=11 // pred_check
          %p1794 = pneg %p1326
        $region230: #{encoder_forward.1} parent=11 // pred_check_branch
          %1796 = sbr.rel (%p1794) target = $region232
        $region231: #{encoder_forward.1} parent=11 // pred_region
          _
        $region232: #{encoder_forward.1} parent=11 // pred_fallthru
          _
        // Predicated region
        $region233: #{encoder_forward.1} parent=11 // pred_check
          %p1797 = pneg %p1347
        $region234: #{encoder_forward.1} parent=11 // pred_check_branch
          %1799 = sbr.rel (%p1797) target = $region236
        $region235: #{encoder_forward.1} parent=11 // pred_region
          _
        $region236: #{encoder_forward.1} parent=11 // pred_fallthru
          _
        // Predicated region
        $region237: #{encoder_forward.1} parent=11 // pred_check
          %p1800 = pneg %p1368
        $region238: #{encoder_forward.1} parent=11 // pred_check_branch
          %1802 = sbr.rel (%p1800) target = $region240
        $region239: #{encoder_forward.1} parent=11 // pred_region
          _
        $region240: #{encoder_forward.1} parent=11 // pred_fallthru
          _
        // Predicated region
        $region241: #{encoder_forward.1} parent=11 // pred_check
          %p1803 = pneg %p1389
        $region242: #{encoder_forward.1} parent=11 // pred_check_branch
          %1805 = sbr.rel (%p1803) target = $region244
        $region243: #{encoder_forward.1} parent=11 // pred_region
          _
        $region244: #{encoder_forward.1} parent=11 // pred_fallthru
          _
        // Predicated region
        $region245: #{encoder_forward.1} parent=11 // pred_check
          %p1806 = pneg %p1410
        $region246: #{encoder_forward.1} parent=11 // pred_check_branch
          %1808 = sbr.rel (%p1806) target = $region248
        $region247: #{encoder_forward.1} parent=11 // pred_region
          _
        $region248: #{encoder_forward.1} parent=11 // pred_fallthru
          _
        // Predicated region
        $region249: #{encoder_forward.1} parent=11 // pred_check
          %p1809 = pneg %p1431
        $region250: #{encoder_forward.1} parent=11 // pred_check_branch
          %1811 = sbr.rel (%p1809) target = $region252
        $region251: #{encoder_forward.1} parent=11 // pred_region
          _
        $region252: #{encoder_forward.1} parent=11 // pred_fallthru
          _
        // Predicated region
        $region253: #{encoder_forward.1} parent=11 // pred_check
          %p1812 = pneg %p1452
        $region254: #{encoder_forward.1} parent=11 // pred_check_branch
          %1814 = sbr.rel (%p1812) target = $region256
        $region255: #{encoder_forward.1} parent=11 // pred_region
          _
        $region256: #{encoder_forward.1} parent=11 // pred_fallthru
          _
        // Predicated region
        $region257: #{encoder_forward.1} parent=11 // pred_check
          %p1815 = pneg %p1473
        $region258: #{encoder_forward.1} parent=11 // pred_check_branch
          %1817 = sbr.rel (%p1815) target = $region260
        $region259: #{encoder_forward.1} parent=11 // pred_region
          _
        $region260: #{encoder_forward.1} parent=11 // pred_fallthru
          _
        // Predicated region
        $region261: #{encoder_forward.1} parent=11 // pred_check
          %p1818 = pneg %p1494
        $region262: #{encoder_forward.1} parent=11 // pred_check_branch
          %1820 = sbr.rel (%p1818) target = $region264
        $region263: #{encoder_forward.1} parent=11 // pred_region
          _
        $region264: #{encoder_forward.1} parent=11 // pred_fallthru
          _
        // Predicated region
        $region265: #{encoder_forward.1} parent=11 // pred_check
          %p1821 = pneg %p1515
        $region266: #{encoder_forward.1} parent=11 // pred_check_branch
          %1823 = sbr.rel (%p1821) target = $region268
        $region267: #{encoder_forward.1} parent=11 // pred_region
          _
        $region268: #{encoder_forward.1} parent=11 // pred_fallthru
          _
      $region12: #{encoder_forward.1} parent=5 // pred_fallthru
        _
      %p1824 = scmp.lt.s32.totalorder %s145, 2
      // Predicated region
      $region269: #{encoder_forward.1} parent=5 // pred_check
        %p1825 = pneg %p1824
      $region270: #{encoder_forward.1} parent=5 // pred_check_branch
        %1827 = sbr.rel (%p1825) target = $region272
      $region271: #{encoder_forward.1} parent=5 // pred_region
        // Predicated region
        $region273: #{encoder_forward.1} parent=271 // pred_check
          %p1828 = pneg %p165
        $region274: #{encoder_forward.1} parent=271 // pred_check_branch
          %1830 = sbr.rel (%p1828) target = $region276
        $region275: #{encoder_forward.1} parent=271 // pred_region
          %p1831 = scmp.lt.s32.totalorder %s145, 1
          %s1832 = scalar_select %p1831, %s145, 1
          %s1833 = smul.addr %s1832, 4
          %s1834 = smul.addr %s1833, 8
          %s1835 = scalar_lea.vmem %s1, %s1834
        $region276: #{encoder_forward.1} parent=271 // pred_fallthru
          _
      $region272: #{encoder_forward.1} parent=5 // pred_fallthru
        _
      %p1836 = scmp.le.s32.totalorder 1, %s145
      %p1837 = scmp.lt.s32.totalorder %s145, 3
      %p1838 = pnand %p1836, %p1837
      %p1839 = pneg %p1838
      // Predicated region
      $region277: #{encoder_forward.1} parent=5 // pred_check
        _
      $region278: #{encoder_forward.1} parent=5 // pred_check_branch
        %1841 = sbr.rel (%p1838) target = $region280
      $region279: #{encoder_forward.1} parent=5 // pred_region
        %s1842 = ssub.s32 %s145, 1
        // Predicated region
        $region281: #{encoder_forward.1} parent=279 // pred_check
          %p1843 = pneg %p528
        $region282: #{encoder_forward.1} parent=279 // pred_check_branch
          %1845 = sbr.rel (%p1843) target = $region284
        $region283: #{encoder_forward.1} parent=279 // pred_region
          %1847 = dma.done [#allocation3], 16384
        $region284: #{encoder_forward.1} parent=279 // pred_fallthru
          _
        // Predicated region
        $region285: #{encoder_forward.1} parent=279 // pred_check
          %p1848 = pneg %p549
        $region286: #{encoder_forward.1} parent=279 // pred_check_branch
          %1850 = sbr.rel (%p1848) target = $region288
        $region287: #{encoder_forward.1} parent=279 // pred_region
          %1852 = dma.done [#allocation6], 128
        $region288: #{encoder_forward.1} parent=279 // pred_fallthru
          _
        // Predicated region
        $region289: #{encoder_forward.1} parent=279 // pred_check
          %p1853 = pneg %p591
        $region290: #{encoder_forward.1} parent=279 // pred_check_branch
          %1855 = sbr.rel (%p1853) target = $region292
        $region291: #{encoder_forward.1} parent=279 // pred_region
          %1857 = dma.done [#allocation6], 128
        $region292: #{encoder_forward.1} parent=279 // pred_fallthru
          _
        // Predicated region
        $region293: #{encoder_forward.1} parent=279 // pred_check
          %p1858 = pneg %p633
        $region294: #{encoder_forward.1} parent=279 // pred_check_branch
          %1860 = sbr.rel (%p1858) target = $region296
        $region295: #{encoder_forward.1} parent=279 // pred_region
          %1862 = dma.done [#allocation9], 128
        $region296: #{encoder_forward.1} parent=279 // pred_fallthru
          _
        // Predicated region
        $region297: #{encoder_forward.1} parent=279 // pred_check
          %p1863 = pneg %p675
        $region298: #{encoder_forward.1} parent=279 // pred_check_branch
          %1865 = sbr.rel (%p1863) target = $region300
        $region299: #{encoder_forward.1} parent=279 // pred_region
          %1867 = dma.done [#allocation9], 128
        $region300: #{encoder_forward.1} parent=279 // pred_fallthru
          _
        // Predicated region
        $region301: #{encoder_forward.1} parent=279 // pred_check
          %p1868 = pneg %p717
        $region302: #{encoder_forward.1} parent=279 // pred_check_branch
          %1870 = sbr.rel (%p1868) target = $region304
        $region303: #{encoder_forward.1} parent=279 // pred_region
          %1872 = dma.done [#allocation12], 128
        $region304: #{encoder_forward.1} parent=279 // pred_fallthru
          _
        // Predicated region
        $region305: #{encoder_forward.1} parent=279 // pred_check
          %p1873 = pneg %p759
        $region306: #{encoder_forward.1} parent=279 // pred_check_branch
          %1875 = sbr.rel (%p1873) target = $region308
        $region307: #{encoder_forward.1} parent=279 // pred_region
          %1877 = dma.done [#allocation12], 128
        $region308: #{encoder_forward.1} parent=279 // pred_fallthru
          _
        // Predicated region
        $region309: #{encoder_forward.1} parent=279 // pred_check
          %p1878 = pneg %p843
        $region310: #{encoder_forward.1} parent=279 // pred_check_branch
          %1880 = sbr.rel (%p1878) target = $region312
        $region311: #{encoder_forward.1} parent=279 // pred_region
          %1882 = dma.done [#allocation15], 4096
        $region312: #{encoder_forward.1} parent=279 // pred_fallthru
          _
        %p1883 = scmp.lt.s32.totalorder %s150, 1
        %s1884 = scalar_select %p1883, %s150, 1
        %s1885 = smul.addr %s1884, 4
        %s1886 = smul.addr %s1885, 8
        %s1887 = scalar_lea.vmem %s1, %s1886
        %p1888 = pneg %p171
        %p1889 = pneg %p168
        %p1890 = pneg %p192
        %p1891 = pneg %p189
        %p1892 = pneg %p213
        %p1893 = pneg %p210
        %p1894 = pneg %p234
        %p1895 = pneg %p231
        %p1896 = pneg %p255
        %p1897 = pneg %p252
        %p1898 = pneg %p276
        %p1899 = pneg %p273
        %p1900 = pneg %p297
        %p1901 = pneg %p294
        %p1902 = pneg %p318
        %p1903 = pneg %p315
        %p1904 = pneg %p339
        %p1905 = pneg %p336
        %p1906 = pneg %p360
        %p1907 = pneg %p357
        %p1908 = pneg %p381
        %p1909 = pneg %p378
        %p1910 = pneg %p402
        %p1911 = pneg %p399
        %p1912 = pneg %p423
        %p1913 = pneg %p420
        %p1914 = pneg %p444
        %p1915 = pneg %p441
        %p1916 = pneg %p465
        %p1917 = pneg %p462
        %p1918 = pneg %p486
        %p1919 = pneg %p483
        %p1920 = pneg %p507
        %p1921 = pneg %p504
        %p1922 = pneg %p528
        %p1923 = pneg %p525
        %p1924 = pneg %p549
        %p1925 = pneg %p546
        %p1926 = pneg %p570
        %p1927 = pneg %p567
        %p1928 = pneg %p591
        %p1929 = pneg %p588
        %p1930 = pneg %p612
        %p1931 = pneg %p609
        %p1932 = pneg %p633
        %p1933 = pneg %p630
        %p1934 = pneg %p654
        %p1935 = pneg %p651
        %p1936 = pneg %p675
        %p1937 = pneg %p672
        %p1938 = pneg %p696
        %p1939 = pneg %p693
        %p1940 = pneg %p717
        %p1941 = pneg %p714
        %p1942 = pneg %p738
        %p1943 = pneg %p735
        %p1944 = pneg %p759
        %p1945 = pneg %p756
        %p1946 = pneg %p780
        %p1947 = pneg %p777
        %p1948 = pneg %p801
        %p1949 = pneg %p798
        %p1950 = pneg %p822
        %p1951 = pneg %p819
        %p1952 = pneg %p843
        %p1953 = pneg %p840
        %p1954 = pneg %p864
        %p1955 = pneg %p861
        %p1956 = pneg %p885
        %p1957 = pneg %p882
        %p1958 = pneg %p906
        %p1959 = pneg %p903
        %p1960 = pneg %p927
        %p1961 = pneg %p924
        %p1962 = pneg %p948
        %p1963 = pneg %p945
        %p1964 = pneg %p969
        %p1965 = pneg %p966
        %p1966 = pneg %p990
        %p1967 = pneg %p987
        %p1968 = pneg %p1011
        %p1969 = pneg %p1008
        %p1970 = pneg %p1032
        %p1971 = pneg %p1029
        %p1972 = pneg %p1053
        %p1973 = pneg %p1050
        %p1974 = pneg %p1074
        %p1975 = pneg %p1071
        %p1976 = pneg %p1095
        %p1977 = pneg %p1092
        %p1978 = pneg %p1116
        %p1979 = pneg %p1113
        %p1980 = pneg %p1137
        %p1981 = pneg %p1134
        %p1982 = pneg %p1158
        %p1983 = pneg %p1155
        %p1984 = pneg %p1179
        %p1985 = pneg %p1176
        %p1986 = pneg %p1200
        %p1987 = pneg %p1197
        %p1988 = pneg %p1221
        %p1989 = pneg %p1218
        %p1990 = pneg %p1242
        %p1991 = pneg %p1239
        %p1992 = pneg %p1263
        %p1993 = pneg %p1260
        %p1994 = pneg %p1284
        %p1995 = pneg %p1281
        %p1996 = pneg %p1305
        %p1997 = pneg %p1302
        %p1998 = pneg %p1326
        %p1999 = pneg %p1323
        %p2000 = pneg %p1347
        %p2001 = pneg %p1344
        %p2002 = pneg %p1368
        %p2003 = pneg %p1365
        %p2004 = pneg %p1389
        %p2005 = pneg %p1386
        %p2006 = pneg %p1410
        %p2007 = pneg %p1407
        %p2008 = pneg %p1431
        %p2009 = pneg %p1428
        %p2010 = pneg %p1452
        %p2011 = pneg %p1449
        %p2012 = pneg %p1473
        %p2013 = pneg %p1470
        %p2014 = pneg %p1494
        %p2015 = pneg %p1491
        %p2016 = pneg %p1515
        %p2017 = pneg %p1512
        %p2018 = pneg %p1541
        %p2019 = pneg %p1538
        %s2020 = sand.u32 %s1528, 1
        %s2021 = scalar_lea.sflag [#allocation4], %s2020
        %s2022 = sand.u32 %s1528, 1
        %s2023 = smul.addr %s2022, 32
        %s2024 = scalar_lea.vmem [#allocation16], %s2023
        %p2025 = scmp.lt.s32.totalorder %s150, 1
        %s2026 = scalar_select %p2025, %s150, 1
        %s2027 = smul.addr %s2026, 4
        %s2028 = smul.addr %s2027, 8
        %s2029 = scalar_lea.vmem %s1, %s2028
        %v2030 = vld [vmem:[%s2029] sm:$0xff]
        %v2031 = vld [vmem:[%s2029 + $0x8] sm:$0xff]
        %v2032 = vld [vmem:[%s2029 + $0x10] sm:$0xff]
        %v2033 = vld [vmem:[%s2029 + $0x18] sm:$0xff]
        %2038 = vrot.lane.b32.xlu0 %v2030, 6
        %v2039 = vpop.permute.xlu0 %2038
        %2040 = vrot.lane.b32.xlu0 %v2031, 6
        %v2041 = vpop.permute.xlu0 %2040
        %2042 = vrot.lane.b32.xlu0 %v2032, 6
        %v2043 = vpop.permute.xlu0 %2042
        %2044 = vrot.lane.b32.xlu0 %v2033, 6
        %v2045 = vpop.permute.xlu0 %2044
        %vm2046 = vcmask 48128
        %v2047 = vsel %vm2046, %v2039, %v2041
        %v2048 = vsel %vm2046, %v2041, %v2043
        %v2049 = vsel %vm2046, %v2043, %v2045
        %v2054 = vsel %vm2046, 0.0, %v2039
        %2056 = vrot.lane.b32.xlu0 %v2054, 127
        %v2057 = vpop.permute.xlu0 %2056
        %2058 = vrot.lane.b32.xlu0 %v2047, 127
        %v2059 = vpop.permute.xlu0 %2058
        %2060 = vrot.lane.b32.xlu0 %v2048, 127
        %v2061 = vpop.permute.xlu0 %2060
        %2062 = vrot.lane.b32.xlu0 %v2049, 127
        %v2063 = vpop.permute.xlu0 %2062
        %2064 = vrot.lane.b32.xlu0 %v2045, 127
        %v2065 = vpop.permute.xlu0 %2064
        %vm2066 = vcmask 1039360
        %v2067 = vsel %vm2066, %v2057, %v2059
        %v2068 = vsel %vm2066, %v2059, %v2061
        %v2069 = vsel %vm2066, %v2061, %v2063
        %v2070 = vsel %vm2066, %v2063, %v2065
        %2075 = vrot.lane.b32.xlu0 %v2054, 126
        %v2076 = vpop.permute.xlu0 %2075
        %2077 = vrot.lane.b32.xlu0 %v2047, 126
        %v2078 = vpop.permute.xlu0 %2077
        %2079 = vrot.lane.b32.xlu0 %v2048, 126
        %v2080 = vpop.permute.xlu0 %2079
        %2081 = vrot.lane.b32.xlu0 %v2049, 126
        %v2082 = vpop.permute.xlu0 %2081
        %2083 = vrot.lane.b32.xlu0 %v2045, 126
        %v2084 = vpop.permute.xlu0 %2083
        %vm2085 = vcmask 1031168
        %v2086 = vsel %vm2085, %v2076, %v2078
        %v2087 = vsel %vm2085, %v2078, %v2080
        %v2088 = vsel %vm2085, %v2080, %v2082
        %v2089 = vsel %vm2085, %v2082, %v2084
        %2094 = vrot.lane.b32.xlu0 %v2054, 125
        %v2095 = vpop.permute.xlu0 %2094
        %2096 = vrot.lane.b32.xlu0 %v2047, 125
        %v2097 = vpop.permute.xlu0 %2096
        %2098 = vrot.lane.b32.xlu0 %v2048, 125
        %v2099 = vpop.permute.xlu0 %2098
        %2100 = vrot.lane.b32.xlu0 %v2049, 125
        %v2101 = vpop.permute.xlu0 %2100
        %2102 = vrot.lane.b32.xlu0 %v2045, 125
        %v2103 = vpop.permute.xlu0 %2102
        %vm2104 = vcmask 1022976
        %v2105 = vsel %vm2104, %v2095, %v2097
        %v2106 = vsel %vm2104, %v2097, %v2099
        %v2107 = vsel %vm2104, %v2099, %v2101
        %v2108 = vsel %vm2104, %v2101, %v2103
        %2113 = vrot.lane.b32.xlu0 %v2054, 124
        %v2114 = vpop.permute.xlu0 %2113
        %2115 = vrot.lane.b32.xlu0 %v2047, 124
        %v2116 = vpop.permute.xlu0 %2115
        %2117 = vrot.lane.b32.xlu0 %v2048, 124
        %v2118 = vpop.permute.xlu0 %2117
        %2119 = vrot.lane.b32.xlu0 %v2049, 124
        %v2120 = vpop.permute.xlu0 %2119
        %2121 = vrot.lane.b32.xlu0 %v2045, 124
        %v2122 = vpop.permute.xlu0 %2121
        %vm2123 = vcmask 1014784
        %v2124 = vsel %vm2123, %v2114, %v2116
        %v2125 = vsel %vm2123, %v2116, %v2118
        %v2126 = vsel %vm2123, %v2118, %v2120
        %v2127 = vsel %vm2123, %v2120, %v2122
        %2132 = vrot.lane.b32.xlu0 %v2054, 123
        %v2133 = vpop.permute.xlu0 %2132
        %2134 = vrot.lane.b32.xlu0 %v2047, 123
        %v2135 = vpop.permute.xlu0 %2134
        %2136 = vrot.lane.b32.xlu0 %v2048, 123
        %v2137 = vpop.permute.xlu0 %2136
        %2138 = vrot.lane.b32.xlu0 %v2049, 123
        %v2139 = vpop.permute.xlu0 %2138
        %2140 = vrot.lane.b32.xlu0 %v2045, 123
        %v2141 = vpop.permute.xlu0 %2140
        %vm2142 = vcmask 1006592
        %v2143 = vsel %vm2142, %v2133, %v2135
        %v2144 = vsel %vm2142, %v2135, %v2137
        %v2145 = vsel %vm2142, %v2137, %v2139
        %v2146 = vsel %vm2142, %v2139, %v2141
        %2151 = vrot.lane.b32.xlu0 %v2054, 122
        %v2152 = vpop.permute.xlu0 %2151
        %2153 = vrot.lane.b32.xlu0 %v2047, 122
        %v2154 = vpop.permute.xlu0 %2153
        %2155 = vrot.lane.b32.xlu0 %v2048, 122
        %v2156 = vpop.permute.xlu0 %2155
        %2157 = vrot.lane.b32.xlu0 %v2049, 122
        %v2158 = vpop.permute.xlu0 %2157
        %2159 = vrot.lane.b32.xlu0 %v2045, 122
        %v2160 = vpop.permute.xlu0 %2159
        %vm2161 = vcmask 998400
        %v2162 = vsel %vm2161, %v2152, %v2154
        %v2163 = vsel %vm2161, %v2154, %v2156
        %v2164 = vsel %vm2161, %v2156, %v2158
        %v2165 = vsel %vm2161, %v2158, %v2160
        %v2170 = vld [vmem:[%s3] sm:$0xff]
        %v2171 = vld [vmem:[%s5] sm:$0xff]
        %2173 = vset.pattern.permute.xlu0 0
        %2174 = vperm.xlu0 %2173, %v2171
        %v2175 = vpop.permute.xlu0 %2174
        %vm2177 = vcmask 457728
        %v2179 = vsel %vm2177, %v2170, 0
        %2181 = vmatpush.msra.mxu0 0.0
        %2182 = vmatpush.msra.mxu0 0.0
        %2183 = vmatpush.msra.mxu0 0.0
        %2184 = vmatpush.msra.mxu0 0.0
        %2185 = vmatpush.msra.mxu0 0.0
        %2186 = vmatpush.msra.mxu0 0.0
        %2187 = vmatpush.msra.mxu0 0.0
        %2188 = vmatpush.msra.mxu0 0.0
        %2189 = vmatpush.msra.mxu0 0.0
        %2190 = vmatpush.msra.mxu0 %v2162
        %2191 = vmatpush.msra.mxu0 %v2143
        %2192 = vmatpush.msra.mxu0 %v2124
        %2193 = vmatpush.msra.mxu0 %v2105
        %2194 = vmatpush.msra.mxu0 %v2086
        %2195 = vmatpush.msra.mxu0 %v2067
        %2196 = vmatpush.msra.mxu0 %v2054
        %2197 = vmatmul.f32.gmra.mxu0 %v2179
        %v2198 = vpop.f32.mrf.mxu0
        %v2199 = vadd.f32 %v2175, %v2198
        %2200 = vdwg.mxu0
        %2201 = vmatpush.msra.mxu0 0.0
        %2202 = vmatpush.msra.mxu0 0.0
        %2203 = vmatpush.msra.mxu0 0.0
        %2204 = vmatpush.msra.mxu0 0.0
        %2205 = vmatpush.msra.mxu0 0.0
        %2206 = vmatpush.msra.mxu0 0.0
        %2207 = vmatpush.msra.mxu0 0.0
        %2208 = vmatpush.msra.mxu0 0.0
        %2209 = vmatpush.msra.mxu0 0.0
        %2210 = vmatpush.msra.mxu0 %v2163
        %2211 = vmatpush.msra.mxu0 %v2144
        %2212 = vmatpush.msra.mxu0 %v2125
        %2213 = vmatpush.msra.mxu0 %v2106
        %2214 = vmatpush.msra.mxu0 %v2087
        %2215 = vmatpush.msra.mxu0 %v2068
        %2216 = vmatpush.msra.mxu0 %v2047
        %2217 = vmatmul.f32.gmra.mxu0 %v2179
        %v2218 = vpop.f32.mrf.mxu0
        %v2219 = vadd.f32 %v2175, %v2218
        %2220 = vdwg.mxu0
        %2221 = vmatpush.msra.mxu0 0.0
        %2222 = vmatpush.msra.mxu0 0.0
        %2223 = vmatpush.msra.mxu0 0.0
        %2224 = vmatpush.msra.mxu0 0.0
        %2225 = vmatpush.msra.mxu0 0.0
        %2226 = vmatpush.msra.mxu0 0.0
        %2227 = vmatpush.msra.mxu0 0.0
        %2228 = vmatpush.msra.mxu0 0.0
        %2229 = vmatpush.msra.mxu0 0.0
        %2230 = vmatpush.msra.mxu0 %v2164
        %2231 = vmatpush.msra.mxu0 %v2145
        %2232 = vmatpush.msra.mxu0 %v2126
        %2233 = vmatpush.msra.mxu0 %v2107
        %2234 = vmatpush.msra.mxu0 %v2088
        %2235 = vmatpush.msra.mxu0 %v2069
        %2236 = vmatpush.msra.mxu0 %v2048
        %2237 = vmatmul.f32.gmra.mxu0 %v2179
        %v2238 = vpop.f32.mrf.mxu0
        %v2239 = vadd.f32 %v2175, %v2238
        %2240 = vdwg.mxu0
        %2241 = vmatpush.msra.mxu0 0.0
        %2242 = vmatpush.msra.mxu0 0.0
        %2243 = vmatpush.msra.mxu0 0.0
        %2244 = vmatpush.msra.mxu0 0.0
        %2245 = vmatpush.msra.mxu0 0.0
        %2246 = vmatpush.msra.mxu0 0.0
        %2247 = vmatpush.msra.mxu0 0.0
        %2248 = vmatpush.msra.mxu0 0.0
        %2249 = vmatpush.msra.mxu0 0.0
        %2250 = vmatpush.msra.mxu0 %v2165
        %2251 = vmatpush.msra.mxu0 %v2146
        %2252 = vmatpush.msra.mxu0 %v2127
        %2253 = vmatpush.msra.mxu0 %v2108
        %2254 = vmatpush.msra.mxu0 %v2089
        %2255 = vmatpush.msra.mxu0 %v2070
        %2256 = vmatpush.msra.mxu0 %v2049
        %2257 = vmatmul.f32.gmra.mxu0 %v2179
        %v2258 = vpop.f32.mrf.mxu0
        %v2259 = vadd.f32 %v2175, %v2258
        %2260 = vdwg.mxu0
        %vm2261 = vcmp.gt.f32.partialorder %v2199, 0.0
        %vm2262 = vcmp.gt.f32.partialorder %v2219, 0.0
        %vm2263 = vcmp.gt.f32.partialorder %v2239, 0.0
        %vm2264 = vcmp.gt.f32.partialorder %v2259, 0.0
        %v2265 = vmul.f32 %v2199, 1.442695
        %v2266 = vpow.pop %v2265
        %v2267 = vmul.f32 %v2219, 1.442695
        %v2268 = vpow.pop %v2267
        %v2269 = vmul.f32 %v2239, 1.442695
        %v2270 = vpow.pop %v2269
        %v2271 = vmul.f32 %v2259, 1.442695
        %v2272 = vpow.pop %v2271
        %v2273 = vsub.f32 %v2266, 1.0
        %v2274 = vsub.f32 %v2268, 1.0
        %v2275 = vsub.f32 %v2270, 1.0
        %v2276 = vsub.f32 %v2272, 1.0
        %v2277 = vsel %vm2261, %v2199, %v2273
        %v2278 = vsel %vm2262, %v2219, %v2274
        %v2279 = vsel %vm2263, %v2239, %v2275
        %v2280 = vsel %vm2264, %v2259, %v2276
        %2285 = vrot.lane.b32.xlu0 %v2277, 6
        %v2286 = vpop.permute.xlu0 %2285
        %2287 = vrot.lane.b32.xlu0 %v2278, 6
        %v2288 = vpop.permute.xlu0 %2287
        %2289 = vrot.lane.b32.xlu0 %v2279, 6
        %v2290 = vpop.permute.xlu0 %2289
        %2291 = vrot.lane.b32.xlu0 %v2280, 6
        %v2292 = vpop.permute.xlu0 %2291
        %v2293 = vsel %vm2046, %v2286, %v2288
        %v2294 = vsel %vm2046, %v2288, %v2290
        %v2295 = vsel %vm2046, %v2290, %v2292
        %v2300 = vsel %vm2046, 0.0, %v2286
        %2302 = vrot.lane.b32.xlu0 %v2300, 127
        %v2303 = vpop.permute.xlu0 %2302
        %2304 = vrot.lane.b32.xlu0 %v2293, 127
        %v2305 = vpop.permute.xlu0 %2304
        %2306 = vrot.lane.b32.xlu0 %v2294, 127
        %v2307 = vpop.permute.xlu0 %2306
        %2308 = vrot.lane.b32.xlu0 %v2295, 127
        %v2309 = vpop.permute.xlu0 %2308
        %2310 = vrot.lane.b32.xlu0 %v2292, 127
        %v2311 = vpop.permute.xlu0 %2310
        %v2312 = vsel %vm2066, %v2303, %v2305
        %v2313 = vsel %vm2066, %v2305, %v2307
        %v2314 = vsel %vm2066, %v2307, %v2309
        %v2315 = vsel %vm2066, %v2309, %v2311
        %2320 = vrot.lane.b32.xlu0 %v2300, 126
        %v2321 = vpop.permute.xlu0 %2320
        %2322 = vrot.lane.b32.xlu0 %v2293, 126
        %v2323 = vpop.permute.xlu0 %2322
        %2324 = vrot.lane.b32.xlu0 %v2294, 126
        %v2325 = vpop.permute.xlu0 %2324
        %2326 = vrot.lane.b32.xlu0 %v2295, 126
        %v2327 = vpop.permute.xlu0 %2326
        %2328 = vrot.lane.b32.xlu0 %v2292, 126
        %v2329 = vpop.permute.xlu0 %2328
        %v2330 = vsel %vm2085, %v2321, %v2323
        %v2331 = vsel %vm2085, %v2323, %v2325
        %v2332 = vsel %vm2085, %v2325, %v2327
        %v2333 = vsel %vm2085, %v2327, %v2329
        %2338 = vrot.lane.b32.xlu0 %v2300, 125
        %v2339 = vpop.permute.xlu0 %2338
        %2340 = vrot.lane.b32.xlu0 %v2293, 125
        %v2341 = vpop.permute.xlu0 %2340
        %2342 = vrot.lane.b32.xlu0 %v2294, 125
        %v2343 = vpop.permute.xlu0 %2342
        %2344 = vrot.lane.b32.xlu0 %v2295, 125
        %v2345 = vpop.permute.xlu0 %2344
        %2346 = vrot.lane.b32.xlu0 %v2292, 125
        %v2347 = vpop.permute.xlu0 %2346
        %v2348 = vsel %vm2104, %v2339, %v2341
        %v2349 = vsel %vm2104, %v2341, %v2343
        %v2350 = vsel %vm2104, %v2343, %v2345
        %v2351 = vsel %vm2104, %v2345, %v2347
        %2356 = vrot.lane.b32.xlu0 %v2300, 124
        %v2357 = vpop.permute.xlu0 %2356
        %2358 = vrot.lane.b32.xlu0 %v2293, 124
        %v2359 = vpop.permute.xlu0 %2358
        %2360 = vrot.lane.b32.xlu0 %v2294, 124
        %v2361 = vpop.permute.xlu0 %2360
        %2362 = vrot.lane.b32.xlu0 %v2295, 124
        %v2363 = vpop.permute.xlu0 %2362
        %2364 = vrot.lane.b32.xlu0 %v2292, 124
        %v2365 = vpop.permute.xlu0 %2364
        %v2366 = vsel %vm2123, %v2357, %v2359
        %v2367 = vsel %vm2123, %v2359, %v2361
        %v2368 = vsel %vm2123, %v2361, %v2363
        %v2369 = vsel %vm2123, %v2363, %v2365
        %2374 = vrot.lane.b32.xlu0 %v2300, 123
        %v2375 = vpop.permute.xlu0 %2374
        %2376 = vrot.lane.b32.xlu0 %v2293, 123
        %v2377 = vpop.permute.xlu0 %2376
        %2378 = vrot.lane.b32.xlu0 %v2294, 123
        %v2379 = vpop.permute.xlu0 %2378
        %2380 = vrot.lane.b32.xlu0 %v2295, 123
        %v2381 = vpop.permute.xlu0 %2380
        %2382 = vrot.lane.b32.xlu0 %v2292, 123
        %v2383 = vpop.permute.xlu0 %2382
        %v2384 = vsel %vm2142, %v2375, %v2377
        %v2385 = vsel %vm2142, %v2377, %v2379
        %v2386 = vsel %vm2142, %v2379, %v2381
        %v2387 = vsel %vm2142, %v2381, %v2383
        %2392 = vrot.lane.b32.xlu0 %v2300, 122
        %v2393 = vpop.permute.xlu0 %2392
        %2394 = vrot.lane.b32.xlu0 %v2293, 122
        %v2395 = vpop.permute.xlu0 %2394
        %2396 = vrot.lane.b32.xlu0 %v2294, 122
        %v2397 = vpop.permute.xlu0 %2396
        %2398 = vrot.lane.b32.xlu0 %v2295, 122
        %v2399 = vpop.permute.xlu0 %2398
        %2400 = vrot.lane.b32.xlu0 %v2292, 122
        %v2401 = vpop.permute.xlu0 %2400
        %v2402 = vsel %vm2161, %v2393, %v2395
        %v2403 = vsel %vm2161, %v2395, %v2397
        %v2404 = vsel %vm2161, %v2397, %v2399
        %v2405 = vsel %vm2161, %v2399, %v2401
        %v2410 = vld [vmem:[%s7] sm:$0xff]
        %v2411 = vld [vmem:[%s9] sm:$0xff]
        %2413 = vset.pattern.permute.xlu0 0
        %2414 = vperm.xlu0 %2413, %v2411
        %v2415 = vpop.permute.xlu0 %2414
        %v2418 = vsel %vm2177, %v2410, 0
        %2420 = vmatpush.msra.mxu0 0.0
        %2421 = vmatpush.msra.mxu0 0.0
        %2422 = vmatpush.msra.mxu0 0.0
        %2423 = vmatpush.msra.mxu0 0.0
        %2424 = vmatpush.msra.mxu0 0.0
        %2425 = vmatpush.msra.mxu0 0.0
        %2426 = vmatpush.msra.mxu0 0.0
        %2427 = vmatpush.msra.mxu0 0.0
        %2428 = vmatpush.msra.mxu0 0.0
        %2429 = vmatpush.msra.mxu0 %v2402
        %2430 = vmatpush.msra.mxu0 %v2384
        %2431 = vmatpush.msra.mxu0 %v2366
        %2432 = vmatpush.msra.mxu0 %v2348
        %2433 = vmatpush.msra.mxu0 %v2330
        %2434 = vmatpush.msra.mxu0 %v2312
        %2435 = vmatpush.msra.mxu0 %v2300
        %2436 = vmatmul.f32.gmra.mxu0 %v2418
        %v2437 = vpop.f32.mrf.mxu0
        %v2438 = vadd.f32 %v2415, %v2437
        %2439 = vdwg.mxu0
        %2440 = vmatpush.msra.mxu0 0.0
        %2441 = vmatpush.msra.mxu0 0.0
        %2442 = vmatpush.msra.mxu0 0.0
        %2443 = vmatpush.msra.mxu0 0.0
        %2444 = vmatpush.msra.mxu0 0.0
        %2445 = vmatpush.msra.mxu0 0.0
        %2446 = vmatpush.msra.mxu0 0.0
        %2447 = vmatpush.msra.mxu0 0.0
        %2448 = vmatpush.msra.mxu0 0.0
        %2449 = vmatpush.msra.mxu0 %v2403
        %2450 = vmatpush.msra.mxu0 %v2385
        %2451 = vmatpush.msra.mxu0 %v2367
        %2452 = vmatpush.msra.mxu0 %v2349
        %2453 = vmatpush.msra.mxu0 %v2331
        %2454 = vmatpush.msra.mxu0 %v2313
        %2455 = vmatpush.msra.mxu0 %v2293
        %2456 = vmatmul.f32.gmra.mxu0 %v2418
        %v2457 = vpop.f32.mrf.mxu0
        %v2458 = vadd.f32 %v2415, %v2457
        %2459 = vdwg.mxu0
        %2460 = vmatpush.msra.mxu0 0.0
        %2461 = vmatpush.msra.mxu0 0.0
        %2462 = vmatpush.msra.mxu0 0.0
        %2463 = vmatpush.msra.mxu0 0.0
        %2464 = vmatpush.msra.mxu0 0.0
        %2465 = vmatpush.msra.mxu0 0.0
        %2466 = vmatpush.msra.mxu0 0.0
        %2467 = vmatpush.msra.mxu0 0.0
        %2468 = vmatpush.msra.mxu0 0.0
        %2469 = vmatpush.msra.mxu0 %v2404
        %2470 = vmatpush.msra.mxu0 %v2386
        %2471 = vmatpush.msra.mxu0 %v2368
        %2472 = vmatpush.msra.mxu0 %v2350
        %2473 = vmatpush.msra.mxu0 %v2332
        %2474 = vmatpush.msra.mxu0 %v2314
        %2475 = vmatpush.msra.mxu0 %v2294
        %2476 = vmatmul.f32.gmra.mxu0 %v2418
        %v2477 = vpop.f32.mrf.mxu0
        %v2478 = vadd.f32 %v2415, %v2477
        %2479 = vdwg.mxu0
        %2480 = vmatpush.msra.mxu0 0.0
        %2481 = vmatpush.msra.mxu0 0.0
        %2482 = vmatpush.msra.mxu0 0.0
        %2483 = vmatpush.msra.mxu0 0.0
        %2484 = vmatpush.msra.mxu0 0.0
        %2485 = vmatpush.msra.mxu0 0.0
        %2486 = vmatpush.msra.mxu0 0.0
        %2487 = vmatpush.msra.mxu0 0.0
        %2488 = vmatpush.msra.mxu0 0.0
        %2489 = vmatpush.msra.mxu0 %v2405
        %2490 = vmatpush.msra.mxu0 %v2387
        %2491 = vmatpush.msra.mxu0 %v2369
        %2492 = vmatpush.msra.mxu0 %v2351
        %2493 = vmatpush.msra.mxu0 %v2333
        %2494 = vmatpush.msra.mxu0 %v2315
        %2495 = vmatpush.msra.mxu0 %v2295
        %2496 = vmatmul.f32.gmra.mxu0 %v2418
        %v2497 = vpop.f32.mrf.mxu0
        %v2498 = vadd.f32 %v2415, %v2497
        %2499 = vdwg.mxu0
        %vm2500 = vcmp.gt.f32.partialorder %v2438, 0.0
        %vm2501 = vcmp.gt.f32.partialorder %v2458, 0.0
        %vm2502 = vcmp.gt.f32.partialorder %v2478, 0.0
        %vm2503 = vcmp.gt.f32.partialorder %v2498, 0.0
        %v2504 = vmul.f32 %v2438, 1.442695
        %v2505 = vpow.pop %v2504
        %v2506 = vmul.f32 %v2458, 1.442695
        %v2507 = vpow.pop %v2506
        %v2508 = vmul.f32 %v2478, 1.442695
        %v2509 = vpow.pop %v2508
        %v2510 = vmul.f32 %v2498, 1.442695
        %v2511 = vpow.pop %v2510
        %v2512 = vsub.f32 %v2505, 1.0
        %v2513 = vsub.f32 %v2507, 1.0
        %v2514 = vsub.f32 %v2509, 1.0
        %v2515 = vsub.f32 %v2511, 1.0
        %v2516 = vsel %vm2500, %v2438, %v2512
        %v2517 = vsel %vm2501, %v2458, %v2513
        %v2518 = vsel %vm2502, %v2478, %v2514
        %v2519 = vsel %vm2503, %v2498, %v2515
        %v2520 = vld [vmem:[%s11] sm:$0xff]
        %v2521 = vld [vmem:[%s13] sm:$0xff]
        %2523 = vset.pattern.permute.xlu0 0
        %2524 = vperm.xlu0 %2523, %v2521
        %v2525 = vpop.permute.xlu0 %2524
        %vm2527 = vcmask 64512
        %v2529 = vsel %vm2527, %v2520, 0
        %2531 = vmatpush.msra.mxu0 0.0
        %2532 = vmatpush.msra.mxu0 0.0
        %2533 = vmatpush.msra.mxu0 0.0
        %2534 = vmatpush.msra.mxu0 0.0
        %2535 = vmatpush.msra.mxu0 0.0
        %2536 = vmatpush.msra.mxu0 0.0
        %2537 = vmatpush.msra.mxu0 0.0
        %2538 = vmatpush.msra.mxu0 0.0
        %2539 = vmatpush.msra.mxu0 0.0
        %2540 = vmatpush.msra.mxu0 0.0
        %2541 = vmatpush.msra.mxu0 0.0
        %2542 = vmatpush.msra.mxu0 0.0
        %2543 = vmatpush.msra.mxu0 0.0
        %2544 = vmatpush.msra.mxu0 0.0
        %2545 = vmatpush.msra.mxu0 0.0
        %2546 = vmatpush.msra.mxu0 %v2516
        %2547 = vmatmul.f32.gmra.mxu0 %v2529
        %v2548 = vpop.f32.mrf.mxu0
        %v2549 = vadd.f32 %v2525, %v2548
        %2550 = vdwg.mxu0
        %2551 = vmatpush.msra.mxu0 0.0
        %2552 = vmatpush.msra.mxu0 0.0
        %2553 = vmatpush.msra.mxu0 0.0
        %2554 = vmatpush.msra.mxu0 0.0
        %2555 = vmatpush.msra.mxu0 0.0
        %2556 = vmatpush.msra.mxu0 0.0
        %2557 = vmatpush.msra.mxu0 0.0
        %2558 = vmatpush.msra.mxu0 0.0
        %2559 = vmatpush.msra.mxu0 0.0
        %2560 = vmatpush.msra.mxu0 0.0
        %2561 = vmatpush.msra.mxu0 0.0
        %2562 = vmatpush.msra.mxu0 0.0
        %2563 = vmatpush.msra.mxu0 0.0
        %2564 = vmatpush.msra.mxu0 0.0
        %2565 = vmatpush.msra.mxu0 0.0
        %2566 = vmatpush.msra.mxu0 %v2517
        %2567 = vmatmul.f32.gmra.mxu0 %v2529
        %v2568 = vpop.f32.mrf.mxu0
        %v2569 = vadd.f32 %v2525, %v2568
        %2570 = vdwg.mxu0
        %2571 = vmatpush.msra.mxu0 0.0
        %2572 = vmatpush.msra.mxu0 0.0
        %2573 = vmatpush.msra.mxu0 0.0
        %2574 = vmatpush.msra.mxu0 0.0
        %2575 = vmatpush.msra.mxu0 0.0
        %2576 = vmatpush.msra.mxu0 0.0
        %2577 = vmatpush.msra.mxu0 0.0
        %2578 = vmatpush.msra.mxu0 0.0
        %2579 = vmatpush.msra.mxu0 0.0
        %2580 = vmatpush.msra.mxu0 0.0
        %2581 = vmatpush.msra.mxu0 0.0
        %2582 = vmatpush.msra.mxu0 0.0
        %2583 = vmatpush.msra.mxu0 0.0
        %2584 = vmatpush.msra.mxu0 0.0
        %2585 = vmatpush.msra.mxu0 0.0
        %2586 = vmatpush.msra.mxu0 %v2518
        %2587 = vmatmul.f32.gmra.mxu0 %v2529
        %v2588 = vpop.f32.mrf.mxu0
        %v2589 = vadd.f32 %v2525, %v2588
        %2590 = vdwg.mxu0
        %2591 = vmatpush.msra.mxu0 0.0
        %2592 = vmatpush.msra.mxu0 0.0
        %2593 = vmatpush.msra.mxu0 0.0
        %2594 = vmatpush.msra.mxu0 0.0
        %2595 = vmatpush.msra.mxu0 0.0
        %2596 = vmatpush.msra.mxu0 0.0
        %2597 = vmatpush.msra.mxu0 0.0
        %2598 = vmatpush.msra.mxu0 0.0
        %2599 = vmatpush.msra.mxu0 0.0
        %2600 = vmatpush.msra.mxu0 0.0
        %2601 = vmatpush.msra.mxu0 0.0
        %2602 = vmatpush.msra.mxu0 0.0
        %2603 = vmatpush.msra.mxu0 0.0
        %2604 = vmatpush.msra.mxu0 0.0
        %2605 = vmatpush.msra.mxu0 0.0
        %2606 = vmatpush.msra.mxu0 %v2519
        %2607 = vmatmul.f32.gmra.mxu0 %v2529
        %v2608 = vpop.f32.mrf.mxu0
        %v2609 = vadd.f32 %v2525, %v2608
        %2610 = vdwg.mxu0
        %v2611 = vadd.f32 %v2277, %v2549
        %v2612 = vadd.f32 %v2278, %v2569
        %v2613 = vadd.f32 %v2279, %v2589
        %v2614 = vadd.f32 %v2280, %v2609
        %vm2615 = vcmp.gt.f32.partialorder %v2611, 0.0
        %vm2616 = vcmp.gt.f32.partialorder %v2612, 0.0
        %vm2617 = vcmp.gt.f32.partialorder %v2613, 0.0
        %vm2618 = vcmp.gt.f32.partialorder %v2614, 0.0
        %v2619 = vmul.f32 %v2611, 1.442695
        %v2620 = vpow.pop %v2619
        %v2621 = vmul.f32 %v2612, 1.442695
        %v2622 = vpow.pop %v2621
        %v2623 = vmul.f32 %v2613, 1.442695
        %v2624 = vpow.pop %v2623
        %v2625 = vmul.f32 %v2614, 1.442695
        %v2626 = vpow.pop %v2625
        %v2627 = vsub.f32 %v2620, 1.0
        %v2628 = vsub.f32 %v2622, 1.0
        %v2629 = vsub.f32 %v2624, 1.0
        %v2630 = vsub.f32 %v2626, 1.0
        %v2631 = vsel %vm2615, %v2611, %v2627
        %v2632 = vsel %vm2616, %v2612, %v2628
        %v2633 = vsel %vm2617, %v2613, %v2629
        %v2634 = vsel %vm2618, %v2614, %v2630
        %2639 = vrot.lane.b32.xlu0 %v2631, 18
        %v2640 = vpop.permute.xlu0 %2639
        %2641 = vrot.lane.b32.xlu0 %v2632, 18
        %v2642 = vpop.permute.xlu0 %2641
        %2643 = vrot.lane.b32.xlu0 %v2633, 18
        %v2644 = vpop.permute.xlu0 %2643
        %2645 = vrot.lane.b32.xlu0 %v2634, 18
        %v2646 = vpop.permute.xlu0 %2645
        %vm2647 = vcmask 146432
        %v2648 = vsel %vm2647, %v2640, %v2642
        %v2649 = vsel %vm2647, %v2642, %v2644
        %v2650 = vsel %vm2647, %v2644, %v2646
        %v2655 = vsel %vm2647, 0.0, %v2640
        %2657 = vrot.lane.b32.xlu0 %v2655, 125
        %v2658 = vpop.permute.xlu0 %2657
        %2659 = vrot.lane.b32.xlu0 %v2648, 125
        %v2660 = vpop.permute.xlu0 %2659
        %2661 = vrot.lane.b32.xlu0 %v2649, 125
        %v2662 = vpop.permute.xlu0 %2661
        %2663 = vrot.lane.b32.xlu0 %v2650, 125
        %v2664 = vpop.permute.xlu0 %2663
        %2665 = vrot.lane.b32.xlu0 %v2646, 125
        %v2666 = vpop.permute.xlu0 %2665
        %v2667 = vsel %vm2104, %v2658, %v2660
        %v2668 = vsel %vm2104, %v2660, %v2662
        %v2669 = vsel %vm2104, %v2662, %v2664
        %v2670 = vsel %vm2104, %v2664, %v2666
        %2675 = vrot.lane.b32.xlu0 %v2655, 122
        %v2676 = vpop.permute.xlu0 %2675
        %2677 = vrot.lane.b32.xlu0 %v2648, 122
        %v2678 = vpop.permute.xlu0 %2677
        %2679 = vrot.lane.b32.xlu0 %v2649, 122
        %v2680 = vpop.permute.xlu0 %2679
        %2681 = vrot.lane.b32.xlu0 %v2650, 122
        %v2682 = vpop.permute.xlu0 %2681
        %2683 = vrot.lane.b32.xlu0 %v2646, 122
        %v2684 = vpop.permute.xlu0 %2683
        %v2685 = vsel %vm2161, %v2676, %v2678
        %v2686 = vsel %vm2161, %v2678, %v2680
        %v2687 = vsel %vm2161, %v2680, %v2682
        %v2688 = vsel %vm2161, %v2682, %v2684
        %2693 = vrot.lane.b32.xlu0 %v2655, 119
        %v2694 = vpop.permute.xlu0 %2693
        %2695 = vrot.lane.b32.xlu0 %v2648, 119
        %v2696 = vpop.permute.xlu0 %2695
        %2697 = vrot.lane.b32.xlu0 %v2649, 119
        %v2698 = vpop.permute.xlu0 %2697
        %2699 = vrot.lane.b32.xlu0 %v2650, 119
        %v2700 = vpop.permute.xlu0 %2699
        %2701 = vrot.lane.b32.xlu0 %v2646, 119
        %v2702 = vpop.permute.xlu0 %2701
        %vm2703 = vcmask 973824
        %v2704 = vsel %vm2703, %v2694, %v2696
        %v2705 = vsel %vm2703, %v2696, %v2698
        %v2706 = vsel %vm2703, %v2698, %v2700
        %v2707 = vsel %vm2703, %v2700, %v2702
        %2712 = vrot.lane.b32.xlu0 %v2655, 116
        %v2713 = vpop.permute.xlu0 %2712
        %2714 = vrot.lane.b32.xlu0 %v2648, 116
        %v2715 = vpop.permute.xlu0 %2714
        %2716 = vrot.lane.b32.xlu0 %v2649, 116
        %v2717 = vpop.permute.xlu0 %2716
        %2718 = vrot.lane.b32.xlu0 %v2650, 116
        %v2719 = vpop.permute.xlu0 %2718
        %2720 = vrot.lane.b32.xlu0 %v2646, 116
        %v2721 = vpop.permute.xlu0 %2720
        %vm2722 = vcmask 949248
        %v2723 = vsel %vm2722, %v2713, %v2715
        %v2724 = vsel %vm2722, %v2715, %v2717
        %v2725 = vsel %vm2722, %v2717, %v2719
        %v2726 = vsel %vm2722, %v2719, %v2721
        %2731 = vrot.lane.b32.xlu0 %v2655, 113
        %v2732 = vpop.permute.xlu0 %2731
        %2733 = vrot.lane.b32.xlu0 %v2648, 113
        %v2734 = vpop.permute.xlu0 %2733
        %2735 = vrot.lane.b32.xlu0 %v2649, 113
        %v2736 = vpop.permute.xlu0 %2735
        %2737 = vrot.lane.b32.xlu0 %v2650, 113
        %v2738 = vpop.permute.xlu0 %2737
        %2739 = vrot.lane.b32.xlu0 %v2646, 113
        %v2740 = vpop.permute.xlu0 %2739
        %vm2741 = vcmask 924672
        %v2742 = vsel %vm2741, %v2732, %v2734
        %v2743 = vsel %vm2741, %v2734, %v2736
        %v2744 = vsel %vm2741, %v2736, %v2738
        %v2745 = vsel %vm2741, %v2738, %v2740
        %2750 = vrot.lane.b32.xlu0 %v2655, 110
        %v2751 = vpop.permute.xlu0 %2750
        %2752 = vrot.lane.b32.xlu0 %v2648, 110
        %v2753 = vpop.permute.xlu0 %2752
        %2754 = vrot.lane.b32.xlu0 %v2649, 110
        %v2755 = vpop.permute.xlu0 %2754
        %2756 = vrot.lane.b32.xlu0 %v2650, 110
        %v2757 = vpop.permute.xlu0 %2756
        %2758 = vrot.lane.b32.xlu0 %v2646, 110
        %v2759 = vpop.permute.xlu0 %2758
        %vm2760 = vcmask 900096
        %v2761 = vsel %vm2760, %v2751, %v2753
        %v2762 = vsel %vm2760, %v2753, %v2755
        %v2763 = vsel %vm2760, %v2755, %v2757
        %v2764 = vsel %vm2760, %v2757, %v2759
        %v2769 = vld [vmem:[%s15] sm:$0xff]
        %v2770 = vld [vmem:[%s17] sm:$0xff]
        %2772 = vset.pattern.permute.xlu0 0
        %2773 = vperm.xlu0 %2772, %v2770
        %v2774 = vpop.permute.xlu0 %2773
        %v2777 = vsel %vm2177, %v2769, 0
        %2779 = vmatpush.msra.mxu0 0.0
        %2780 = vmatpush.msra.mxu0 0.0
        %2781 = vmatpush.msra.mxu0 0.0
        %2782 = vmatpush.msra.mxu0 0.0
        %2783 = vmatpush.msra.mxu0 0.0
        %2784 = vmatpush.msra.mxu0 0.0
        %2785 = vmatpush.msra.mxu0 0.0
        %2786 = vmatpush.msra.mxu0 0.0
        %2787 = vmatpush.msra.mxu0 0.0
        %2788 = vmatpush.msra.mxu0 %v2761
        %2789 = vmatpush.msra.mxu0 %v2742
        %2790 = vmatpush.msra.mxu0 %v2723
        %2791 = vmatpush.msra.mxu0 %v2704
        %2792 = vmatpush.msra.mxu0 %v2685
        %2793 = vmatpush.msra.mxu0 %v2667
        %2794 = vmatpush.msra.mxu0 %v2655
        %2795 = vmatmul.f32.gmra.mxu0 %v2777
        %v2796 = vpop.f32.mrf.mxu0
        %v2797 = vadd.f32 %v2774, %v2796
        %2798 = vdwg.mxu0
        %2799 = vmatpush.msra.mxu0 0.0
        %2800 = vmatpush.msra.mxu0 0.0
        %2801 = vmatpush.msra.mxu0 0.0
        %2802 = vmatpush.msra.mxu0 0.0
        %2803 = vmatpush.msra.mxu0 0.0
        %2804 = vmatpush.msra.mxu0 0.0
        %2805 = vmatpush.msra.mxu0 0.0
        %2806 = vmatpush.msra.mxu0 0.0
        %2807 = vmatpush.msra.mxu0 0.0
        %2808 = vmatpush.msra.mxu0 %v2762
        %2809 = vmatpush.msra.mxu0 %v2743
        %2810 = vmatpush.msra.mxu0 %v2724
        %2811 = vmatpush.msra.mxu0 %v2705
        %2812 = vmatpush.msra.mxu0 %v2686
        %2813 = vmatpush.msra.mxu0 %v2668
        %2814 = vmatpush.msra.mxu0 %v2648
        %2815 = vmatmul.f32.gmra.mxu0 %v2777
        %v2816 = vpop.f32.mrf.mxu0
        %v2817 = vadd.f32 %v2774, %v2816
        %2818 = vdwg.mxu0
        %2819 = vmatpush.msra.mxu0 0.0
        %2820 = vmatpush.msra.mxu0 0.0
        %2821 = vmatpush.msra.mxu0 0.0
        %2822 = vmatpush.msra.mxu0 0.0
        %2823 = vmatpush.msra.mxu0 0.0
        %2824 = vmatpush.msra.mxu0 0.0
        %2825 = vmatpush.msra.mxu0 0.0
        %2826 = vmatpush.msra.mxu0 0.0
        %2827 = vmatpush.msra.mxu0 0.0
        %2828 = vmatpush.msra.mxu0 %v2763
        %2829 = vmatpush.msra.mxu0 %v2744
        %2830 = vmatpush.msra.mxu0 %v2725
        %2831 = vmatpush.msra.mxu0 %v2706
        %2832 = vmatpush.msra.mxu0 %v2687
        %2833 = vmatpush.msra.mxu0 %v2669
        %2834 = vmatpush.msra.mxu0 %v2649
        %2835 = vmatmul.f32.gmra.mxu0 %v2777
        %v2836 = vpop.f32.mrf.mxu0
        %v2837 = vadd.f32 %v2774, %v2836
        %2838 = vdwg.mxu0
        %2839 = vmatpush.msra.mxu0 0.0
        %2840 = vmatpush.msra.mxu0 0.0
        %2841 = vmatpush.msra.mxu0 0.0
        %2842 = vmatpush.msra.mxu0 0.0
        %2843 = vmatpush.msra.mxu0 0.0
        %2844 = vmatpush.msra.mxu0 0.0
        %2845 = vmatpush.msra.mxu0 0.0
        %2846 = vmatpush.msra.mxu0 0.0
        %2847 = vmatpush.msra.mxu0 0.0
        %2848 = vmatpush.msra.mxu0 %v2764
        %2849 = vmatpush.msra.mxu0 %v2745
        %2850 = vmatpush.msra.mxu0 %v2726
        %2851 = vmatpush.msra.mxu0 %v2707
        %2852 = vmatpush.msra.mxu0 %v2688
        %2853 = vmatpush.msra.mxu0 %v2670
        %2854 = vmatpush.msra.mxu0 %v2650
        %2855 = vmatmul.f32.gmra.mxu0 %v2777
        %v2856 = vpop.f32.mrf.mxu0
        %v2857 = vadd.f32 %v2774, %v2856
        %2858 = vdwg.mxu0
        %vm2859 = vcmp.gt.f32.partialorder %v2797, 0.0
        %vm2860 = vcmp.gt.f32.partialorder %v2817, 0.0
        %vm2861 = vcmp.gt.f32.partialorder %v2837, 0.0
        %vm2862 = vcmp.gt.f32.partialorder %v2857, 0.0
        %v2863 = vmul.f32 %v2797, 1.442695
        %v2864 = vpow.pop %v2863
        %v2865 = vmul.f32 %v2817, 1.442695
        %v2866 = vpow.pop %v2865
        %v2867 = vmul.f32 %v2837, 1.442695
        %v2868 = vpow.pop %v2867
        %v2869 = vmul.f32 %v2857, 1.442695
        %v2870 = vpow.pop %v2869
        %v2871 = vsub.f32 %v2864, 1.0
        %v2872 = vsub.f32 %v2866, 1.0
        %v2873 = vsub.f32 %v2868, 1.0
        %v2874 = vsub.f32 %v2870, 1.0
        %v2875 = vsel %vm2859, %v2797, %v2871
        %v2876 = vsel %vm2860, %v2817, %v2872
        %v2877 = vsel %vm2861, %v2837, %v2873
        %v2878 = vsel %vm2862, %v2857, %v2874
        %v2879 = vld [vmem:[%s19] sm:$0xff]
        %v2880 = vld [vmem:[%s21] sm:$0xff]
        %2882 = vset.pattern.permute.xlu0 0
        %2883 = vperm.xlu0 %2882, %v2880
        %v2884 = vpop.permute.xlu0 %2883
        %v2887 = vsel %vm2527, %v2879, 0
        %2889 = vmatpush.msra.mxu0 0.0
        %2890 = vmatpush.msra.mxu0 0.0
        %2891 = vmatpush.msra.mxu0 0.0
        %2892 = vmatpush.msra.mxu0 0.0
        %2893 = vmatpush.msra.mxu0 0.0
        %2894 = vmatpush.msra.mxu0 0.0
        %2895 = vmatpush.msra.mxu0 0.0
        %2896 = vmatpush.msra.mxu0 0.0
        %2897 = vmatpush.msra.mxu0 0.0
        %2898 = vmatpush.msra.mxu0 0.0
        %2899 = vmatpush.msra.mxu0 0.0
        %2900 = vmatpush.msra.mxu0 0.0
        %2901 = vmatpush.msra.mxu0 0.0
        %2902 = vmatpush.msra.mxu0 0.0
        %2903 = vmatpush.msra.mxu0 0.0
        %2904 = vmatpush.msra.mxu0 %v2875
        %2905 = vmatmul.f32.gmra.mxu0 %v2887
        %v2906 = vpop.f32.mrf.mxu0
        %v2907 = vadd.f32 %v2884, %v2906
        %2908 = vdwg.mxu0
        %2909 = vmatpush.msra.mxu0 0.0
        %2910 = vmatpush.msra.mxu0 0.0
        %2911 = vmatpush.msra.mxu0 0.0
        %2912 = vmatpush.msra.mxu0 0.0
        %2913 = vmatpush.msra.mxu0 0.0
        %2914 = vmatpush.msra.mxu0 0.0
        %2915 = vmatpush.msra.mxu0 0.0
        %2916 = vmatpush.msra.mxu0 0.0
        %2917 = vmatpush.msra.mxu0 0.0
        %2918 = vmatpush.msra.mxu0 0.0
        %2919 = vmatpush.msra.mxu0 0.0
        %2920 = vmatpush.msra.mxu0 0.0
        %2921 = vmatpush.msra.mxu0 0.0
        %2922 = vmatpush.msra.mxu0 0.0
        %2923 = vmatpush.msra.mxu0 0.0
        %2924 = vmatpush.msra.mxu0 %v2876
        %2925 = vmatmul.f32.gmra.mxu0 %v2887
        %v2926 = vpop.f32.mrf.mxu0
        %v2927 = vadd.f32 %v2884, %v2926
        %2928 = vdwg.mxu0
        %2929 = vmatpush.msra.mxu0 0.0
        %2930 = vmatpush.msra.mxu0 0.0
        %2931 = vmatpush.msra.mxu0 0.0
        %2932 = vmatpush.msra.mxu0 0.0
        %2933 = vmatpush.msra.mxu0 0.0
        %2934 = vmatpush.msra.mxu0 0.0
        %2935 = vmatpush.msra.mxu0 0.0
        %2936 = vmatpush.msra.mxu0 0.0
        %2937 = vmatpush.msra.mxu0 0.0
        %2938 = vmatpush.msra.mxu0 0.0
        %2939 = vmatpush.msra.mxu0 0.0
        %2940 = vmatpush.msra.mxu0 0.0
        %2941 = vmatpush.msra.mxu0 0.0
        %2942 = vmatpush.msra.mxu0 0.0
        %2943 = vmatpush.msra.mxu0 0.0
        %2944 = vmatpush.msra.mxu0 %v2877
        %2945 = vmatmul.f32.gmra.mxu0 %v2887
        %v2946 = vpop.f32.mrf.mxu0
        %v2947 = vadd.f32 %v2884, %v2946
        %2948 = vdwg.mxu0
        %2949 = vmatpush.msra.mxu0 0.0
        %2950 = vmatpush.msra.mxu0 0.0
        %2951 = vmatpush.msra.mxu0 0.0
        %2952 = vmatpush.msra.mxu0 0.0
        %2953 = vmatpush.msra.mxu0 0.0
        %2954 = vmatpush.msra.mxu0 0.0
        %2955 = vmatpush.msra.mxu0 0.0
        %2956 = vmatpush.msra.mxu0 0.0
        %2957 = vmatpush.msra.mxu0 0.0
        %2958 = vmatpush.msra.mxu0 0.0
        %2959 = vmatpush.msra.mxu0 0.0
        %2960 = vmatpush.msra.mxu0 0.0
        %2961 = vmatpush.msra.mxu0 0.0
        %2962 = vmatpush.msra.mxu0 0.0
        %2963 = vmatpush.msra.mxu0 0.0
        %2964 = vmatpush.msra.mxu0 %v2878
        %2965 = vmatmul.f32.gmra.mxu0 %v2887
        %v2966 = vpop.f32.mrf.mxu0
        %v2967 = vadd.f32 %v2884, %v2966
        %2968 = vdwg.mxu0
        %v2969 = vadd.f32 %v2631, %v2907
        %v2970 = vadd.f32 %v2632, %v2927
        %v2971 = vadd.f32 %v2633, %v2947
        %v2972 = vadd.f32 %v2634, %v2967
        %vm2973 = vcmp.gt.f32.partialorder %v2969, 0.0
        %vm2974 = vcmp.gt.f32.partialorder %v2970, 0.0
        %vm2975 = vcmp.gt.f32.partialorder %v2971, 0.0
        %vm2976 = vcmp.gt.f32.partialorder %v2972, 0.0
        %v2977 = vmul.f32 %v2969, 1.442695
        %v2978 = vpow.pop %v2977
        %v2979 = vmul.f32 %v2970, 1.442695
        %v2980 = vpow.pop %v2979
        %v2981 = vmul.f32 %v2971, 1.442695
        %v2982 = vpow.pop %v2981
        %v2983 = vmul.f32 %v2972, 1.442695
        %v2984 = vpow.pop %v2983
        %v2985 = vsub.f32 %v2978, 1.0
        %v2986 = vsub.f32 %v2980, 1.0
        %v2987 = vsub.f32 %v2982, 1.0
        %v2988 = vsub.f32 %v2984, 1.0
        %v2989 = vsel %vm2973, %v2969, %v2985
        %v2990 = vsel %vm2974, %v2970, %v2986
        %v2991 = vsel %vm2975, %v2971, %v2987
        %v2992 = vsel %vm2976, %v2972, %v2988
        %2997 = vrot.lane.b32.xlu0 %v2989, 54
        %v2998 = vpop.permute.xlu0 %2997
        %2999 = vrot.lane.b32.xlu0 %v2990, 54
        %v3000 = vpop.permute.xlu0 %2999
        %3001 = vrot.lane.b32.xlu0 %v2991, 54
        %v3002 = vpop.permute.xlu0 %3001
        %3003 = vrot.lane.b32.xlu0 %v2992, 54
        %v3004 = vpop.permute.xlu0 %3003
        %vm3005 = vcmask 441344
        %v3006 = vsel %vm3005, %v2998, %v3000
        %v3007 = vsel %vm3005, %v3000, %v3002
        %v3008 = vsel %vm3005, %v3002, %v3004
        %v3013 = vsel %vm3005, 0.0, %v2998
        %3015 = vrot.lane.b32.xlu0 %v3013, 119
        %v3016 = vpop.permute.xlu0 %3015
        %3017 = vrot.lane.b32.xlu0 %v3006, 119
        %v3018 = vpop.permute.xlu0 %3017
        %3019 = vrot.lane.b32.xlu0 %v3007, 119
        %v3020 = vpop.permute.xlu0 %3019
        %3021 = vrot.lane.b32.xlu0 %v3008, 119
        %v3022 = vpop.permute.xlu0 %3021
        %3023 = vrot.lane.b32.xlu0 %v3004, 119
        %v3024 = vpop.permute.xlu0 %3023
        %v3025 = vsel %vm2703, %v3016, %v3018
        %v3026 = vsel %vm2703, %v3018, %v3020
        %v3027 = vsel %vm2703, %v3020, %v3022
        %v3028 = vsel %vm2703, %v3022, %v3024
        %3033 = vrot.lane.b32.xlu0 %v3013, 110
        %v3034 = vpop.permute.xlu0 %3033
        %3035 = vrot.lane.b32.xlu0 %v3006, 110
        %v3036 = vpop.permute.xlu0 %3035
        %3037 = vrot.lane.b32.xlu0 %v3007, 110
        %v3038 = vpop.permute.xlu0 %3037
        %3039 = vrot.lane.b32.xlu0 %v3008, 110
        %v3040 = vpop.permute.xlu0 %3039
        %3041 = vrot.lane.b32.xlu0 %v3004, 110
        %v3042 = vpop.permute.xlu0 %3041
        %v3043 = vsel %vm2760, %v3034, %v3036
        %v3044 = vsel %vm2760, %v3036, %v3038
        %v3045 = vsel %vm2760, %v3038, %v3040
        %v3046 = vsel %vm2760, %v3040, %v3042
        %3051 = vrot.lane.b32.xlu0 %v3013, 101
        %v3052 = vpop.permute.xlu0 %3051
        %3053 = vrot.lane.b32.xlu0 %v3006, 101
        %v3054 = vpop.permute.xlu0 %3053
        %3055 = vrot.lane.b32.xlu0 %v3007, 101
        %v3056 = vpop.permute.xlu0 %3055
        %3057 = vrot.lane.b32.xlu0 %v3008, 101
        %v3058 = vpop.permute.xlu0 %3057
        %3059 = vrot.lane.b32.xlu0 %v3004, 101
        %v3060 = vpop.permute.xlu0 %3059
        %vm3061 = vcmask 826368
        %v3062 = vsel %vm3061, %v3052, %v3054
        %v3063 = vsel %vm3061, %v3054, %v3056
        %v3064 = vsel %vm3061, %v3056, %v3058
        %v3065 = vsel %vm3061, %v3058, %v3060
        %3070 = vrot.lane.b32.xlu0 %v3013, 92
        %v3071 = vpop.permute.xlu0 %3070
        %3072 = vrot.lane.b32.xlu0 %v3006, 92
        %v3073 = vpop.permute.xlu0 %3072
        %3074 = vrot.lane.b32.xlu0 %v3007, 92
        %v3075 = vpop.permute.xlu0 %3074
        %3076 = vrot.lane.b32.xlu0 %v3008, 92
        %v3077 = vpop.permute.xlu0 %3076
        %3078 = vrot.lane.b32.xlu0 %v3004, 92
        %v3079 = vpop.permute.xlu0 %3078
        %vm3080 = vcmask 752640
        %v3081 = vsel %vm3080, %v3071, %v3073
        %v3082 = vsel %vm3080, %v3073, %v3075
        %v3083 = vsel %vm3080, %v3075, %v3077
        %v3084 = vsel %vm3080, %v3077, %v3079
        %3089 = vrot.lane.b32.xlu0 %v3013, 83
        %v3090 = vpop.permute.xlu0 %3089
        %3091 = vrot.lane.b32.xlu0 %v3006, 83
        %v3092 = vpop.permute.xlu0 %3091
        %3093 = vrot.lane.b32.xlu0 %v3007, 83
        %v3094 = vpop.permute.xlu0 %3093
        %3095 = vrot.lane.b32.xlu0 %v3008, 83
        %v3096 = vpop.permute.xlu0 %3095
        %3097 = vrot.lane.b32.xlu0 %v3004, 83
        %v3098 = vpop.permute.xlu0 %3097
        %vm3099 = vcmask 678912
        %v3100 = vsel %vm3099, %v3090, %v3092
        %v3101 = vsel %vm3099, %v3092, %v3094
        %v3102 = vsel %vm3099, %v3094, %v3096
        %v3103 = vsel %vm3099, %v3096, %v3098
        %3108 = vrot.lane.b32.xlu0 %v3013, 74
        %v3109 = vpop.permute.xlu0 %3108
        %3110 = vrot.lane.b32.xlu0 %v3006, 74
        %v3111 = vpop.permute.xlu0 %3110
        %3112 = vrot.lane.b32.xlu0 %v3007, 74
        %v3113 = vpop.permute.xlu0 %3112
        %3114 = vrot.lane.b32.xlu0 %v3008, 74
        %v3115 = vpop.permute.xlu0 %3114
        %3116 = vrot.lane.b32.xlu0 %v3004, 74
        %v3117 = vpop.permute.xlu0 %3116
        %vm3118 = vcmask 605184
        %v3119 = vsel %vm3118, %v3109, %v3111
        %v3120 = vsel %vm3118, %v3111, %v3113
        %v3121 = vsel %vm3118, %v3113, %v3115
        %v3122 = vsel %vm3118, %v3115, %v3117
        %v3127 = vld [vmem:[%s23] sm:$0xff]
        %v3128 = vld [vmem:[%s25] sm:$0xff]
        %3130 = vset.pattern.permute.xlu0 0
        %3131 = vperm.xlu0 %3130, %v3128
        %v3132 = vpop.permute.xlu0 %3131
        %v3135 = vsel %vm2177, %v3127, 0
        %3137 = vmatpush.msra.mxu0 0.0
        %3138 = vmatpush.msra.mxu0 0.0
        %3139 = vmatpush.msra.mxu0 0.0
        %3140 = vmatpush.msra.mxu0 0.0
        %3141 = vmatpush.msra.mxu0 0.0
        %3142 = vmatpush.msra.mxu0 0.0
        %3143 = vmatpush.msra.mxu0 0.0
        %3144 = vmatpush.msra.mxu0 0.0
        %3145 = vmatpush.msra.mxu0 0.0
        %3146 = vmatpush.msra.mxu0 %v3119
        %3147 = vmatpush.msra.mxu0 %v3100
        %3148 = vmatpush.msra.mxu0 %v3081
        %3149 = vmatpush.msra.mxu0 %v3062
        %3150 = vmatpush.msra.mxu0 %v3043
        %3151 = vmatpush.msra.mxu0 %v3025
        %3152 = vmatpush.msra.mxu0 %v3013
        %3153 = vmatmul.f32.gmra.mxu0 %v3135
        %v3154 = vpop.f32.mrf.mxu0
        %v3155 = vadd.f32 %v3132, %v3154
        %3156 = vdwg.mxu0
        %3157 = vmatpush.msra.mxu0 0.0
        %3158 = vmatpush.msra.mxu0 0.0
        %3159 = vmatpush.msra.mxu0 0.0
        %3160 = vmatpush.msra.mxu0 0.0
        %3161 = vmatpush.msra.mxu0 0.0
        %3162 = vmatpush.msra.mxu0 0.0
        %3163 = vmatpush.msra.mxu0 0.0
        %3164 = vmatpush.msra.mxu0 0.0
        %3165 = vmatpush.msra.mxu0 0.0
        %3166 = vmatpush.msra.mxu0 %v3120
        %3167 = vmatpush.msra.mxu0 %v3101
        %3168 = vmatpush.msra.mxu0 %v3082
        %3169 = vmatpush.msra.mxu0 %v3063
        %3170 = vmatpush.msra.mxu0 %v3044
        %3171 = vmatpush.msra.mxu0 %v3026
        %3172 = vmatpush.msra.mxu0 %v3006
        %3173 = vmatmul.f32.gmra.mxu0 %v3135
        %v3174 = vpop.f32.mrf.mxu0
        %v3175 = vadd.f32 %v3132, %v3174
        %3176 = vdwg.mxu0
        %3177 = vmatpush.msra.mxu0 0.0
        %3178 = vmatpush.msra.mxu0 0.0
        %3179 = vmatpush.msra.mxu0 0.0
        %3180 = vmatpush.msra.mxu0 0.0
        %3181 = vmatpush.msra.mxu0 0.0
        %3182 = vmatpush.msra.mxu0 0.0
        %3183 = vmatpush.msra.mxu0 0.0
        %3184 = vmatpush.msra.mxu0 0.0
        %3185 = vmatpush.msra.mxu0 0.0
        %3186 = vmatpush.msra.mxu0 %v3121
        %3187 = vmatpush.msra.mxu0 %v3102
        %3188 = vmatpush.msra.mxu0 %v3083
        %3189 = vmatpush.msra.mxu0 %v3064
        %3190 = vmatpush.msra.mxu0 %v3045
        %3191 = vmatpush.msra.mxu0 %v3027
        %3192 = vmatpush.msra.mxu0 %v3007
        %3193 = vmatmul.f32.gmra.mxu0 %v3135
        %v3194 = vpop.f32.mrf.mxu0
        %v3195 = vadd.f32 %v3132, %v3194
        %3196 = vdwg.mxu0
        %3197 = vmatpush.msra.mxu0 0.0
        %3198 = vmatpush.msra.mxu0 0.0
        %3199 = vmatpush.msra.mxu0 0.0
        %3200 = vmatpush.msra.mxu0 0.0
        %3201 = vmatpush.msra.mxu0 0.0
        %3202 = vmatpush.msra.mxu0 0.0
        %3203 = vmatpush.msra.mxu0 0.0
        %3204 = vmatpush.msra.mxu0 0.0
        %3205 = vmatpush.msra.mxu0 0.0
        %3206 = vmatpush.msra.mxu0 %v3122
        %3207 = vmatpush.msra.mxu0 %v3103
        %3208 = vmatpush.msra.mxu0 %v3084
        %3209 = vmatpush.msra.mxu0 %v3065
        %3210 = vmatpush.msra.mxu0 %v3046
        %3211 = vmatpush.msra.mxu0 %v3028
        %3212 = vmatpush.msra.mxu0 %v3008
        %3213 = vmatmul.f32.gmra.mxu0 %v3135
        %v3214 = vpop.f32.mrf.mxu0
        %v3215 = vadd.f32 %v3132, %v3214
        %3216 = vdwg.mxu0
        %vm3217 = vcmp.gt.f32.partialorder %v3155, 0.0
        %vm3218 = vcmp.gt.f32.partialorder %v3175, 0.0
        %vm3219 = vcmp.gt.f32.partialorder %v3195, 0.0
        %vm3220 = vcmp.gt.f32.partialorder %v3215, 0.0
        %v3221 = vmul.f32 %v3155, 1.442695
        %v3222 = vpow.pop %v3221
        %v3223 = vmul.f32 %v3175, 1.442695
        %v3224 = vpow.pop %v3223
        %v3225 = vmul.f32 %v3195, 1.442695
        %v3226 = vpow.pop %v3225
        %v3227 = vmul.f32 %v3215, 1.442695
        %v3228 = vpow.pop %v3227
        %v3229 = vsub.f32 %v3222, 1.0
        %v3230 = vsub.f32 %v3224, 1.0
        %v3231 = vsub.f32 %v3226, 1.0
        %v3232 = vsub.f32 %v3228, 1.0
        %v3233 = vsel %vm3217, %v3155, %v3229
        %v3234 = vsel %vm3218, %v3175, %v3230
        %v3235 = vsel %vm3219, %v3195, %v3231
        %v3236 = vsel %vm3220, %v3215, %v3232
        %v3237 = vld [vmem:[%s27] sm:$0xff]
        %v3238 = vld [vmem:[%s29] sm:$0xff]
        %3240 = vset.pattern.permute.xlu0 0
        %3241 = vperm.xlu0 %3240, %v3238
        %v3242 = vpop.permute.xlu0 %3241
        %v3245 = vsel %vm2527, %v3237, 0
        %3247 = vmatpush.msra.mxu0 0.0
        %3248 = vmatpush.msra.mxu0 0.0
        %3249 = vmatpush.msra.mxu0 0.0
        %3250 = vmatpush.msra.mxu0 0.0
        %3251 = vmatpush.msra.mxu0 0.0
        %3252 = vmatpush.msra.mxu0 0.0
        %3253 = vmatpush.msra.mxu0 0.0
        %3254 = vmatpush.msra.mxu0 0.0
        %3255 = vmatpush.msra.mxu0 0.0
        %3256 = vmatpush.msra.mxu0 0.0
        %3257 = vmatpush.msra.mxu0 0.0
        %3258 = vmatpush.msra.mxu0 0.0
        %3259 = vmatpush.msra.mxu0 0.0
        %3260 = vmatpush.msra.mxu0 0.0
        %3261 = vmatpush.msra.mxu0 0.0
        %3262 = vmatpush.msra.mxu0 %v3233
        %3263 = vmatmul.f32.gmra.mxu0 %v3245
        %v3264 = vpop.f32.mrf.mxu0
        %v3265 = vadd.f32 %v3242, %v3264
        %3266 = vdwg.mxu0
        %3267 = vmatpush.msra.mxu0 0.0
        %3268 = vmatpush.msra.mxu0 0.0
        %3269 = vmatpush.msra.mxu0 0.0
        %3270 = vmatpush.msra.mxu0 0.0
        %3271 = vmatpush.msra.mxu0 0.0
        %3272 = vmatpush.msra.mxu0 0.0
        %3273 = vmatpush.msra.mxu0 0.0
        %3274 = vmatpush.msra.mxu0 0.0
        %3275 = vmatpush.msra.mxu0 0.0
        %3276 = vmatpush.msra.mxu0 0.0
        %3277 = vmatpush.msra.mxu0 0.0
        %3278 = vmatpush.msra.mxu0 0.0
        %3279 = vmatpush.msra.mxu0 0.0
        %3280 = vmatpush.msra.mxu0 0.0
        %3281 = vmatpush.msra.mxu0 0.0
        %3282 = vmatpush.msra.mxu0 %v3234
        %3283 = vmatmul.f32.gmra.mxu0 %v3245
        %v3284 = vpop.f32.mrf.mxu0
        %v3285 = vadd.f32 %v3242, %v3284
        %3286 = vdwg.mxu0
        %3287 = vmatpush.msra.mxu0 0.0
        %3288 = vmatpush.msra.mxu0 0.0
        %3289 = vmatpush.msra.mxu0 0.0
        %3290 = vmatpush.msra.mxu0 0.0
        %3291 = vmatpush.msra.mxu0 0.0
        %3292 = vmatpush.msra.mxu0 0.0
        %3293 = vmatpush.msra.mxu0 0.0
        %3294 = vmatpush.msra.mxu0 0.0
        %3295 = vmatpush.msra.mxu0 0.0
        %3296 = vmatpush.msra.mxu0 0.0
        %3297 = vmatpush.msra.mxu0 0.0
        %3298 = vmatpush.msra.mxu0 0.0
        %3299 = vmatpush.msra.mxu0 0.0
        %3300 = vmatpush.msra.mxu0 0.0
        %3301 = vmatpush.msra.mxu0 0.0
        %3302 = vmatpush.msra.mxu0 %v3235
        %3303 = vmatmul.f32.gmra.mxu0 %v3245
        %v3304 = vpop.f32.mrf.mxu0
        %v3305 = vadd.f32 %v3242, %v3304
        %3306 = vdwg.mxu0
        %3307 = vmatpush.msra.mxu0 0.0
        %3308 = vmatpush.msra.mxu0 0.0
        %3309 = vmatpush.msra.mxu0 0.0
        %3310 = vmatpush.msra.mxu0 0.0
        %3311 = vmatpush.msra.mxu0 0.0
        %3312 = vmatpush.msra.mxu0 0.0
        %3313 = vmatpush.msra.mxu0 0.0
        %3314 = vmatpush.msra.mxu0 0.0
        %3315 = vmatpush.msra.mxu0 0.0
        %3316 = vmatpush.msra.mxu0 0.0
        %3317 = vmatpush.msra.mxu0 0.0
        %3318 = vmatpush.msra.mxu0 0.0
        %3319 = vmatpush.msra.mxu0 0.0
        %3320 = vmatpush.msra.mxu0 0.0
        %3321 = vmatpush.msra.mxu0 0.0
        %3322 = vmatpush.msra.mxu0 %v3236
        %3323 = vmatmul.f32.gmra.mxu0 %v3245
        %v3324 = vpop.f32.mrf.mxu0
        %v3325 = vadd.f32 %v3242, %v3324
        %3326 = vdwg.mxu0
        %v3327 = vadd.f32 %v2989, %v3265
        %v3328 = vadd.f32 %v2990, %v3285
        %v3329 = vadd.f32 %v2991, %v3305
        %v3330 = vadd.f32 %v2992, %v3325
        %vm3331 = vcmp.gt.f32.partialorder %v3327, 0.0
        %vm3332 = vcmp.gt.f32.partialorder %v3328, 0.0
        %vm3333 = vcmp.gt.f32.partialorder %v3329, 0.0
        %vm3334 = vcmp.gt.f32.partialorder %v3330, 0.0
        %v3335 = vmul.f32 %v3327, 1.442695
        %v3336 = vpow.pop %v3335
        %v3337 = vmul.f32 %v3328, 1.442695
        %v3338 = vpow.pop %v3337
        %v3339 = vmul.f32 %v3329, 1.442695
        %v3340 = vpow.pop %v3339
        %v3341 = vmul.f32 %v3330, 1.442695
        %v3342 = vpow.pop %v3341
        %v3343 = vsub.f32 %v3336, 1.0
        %v3344 = vsub.f32 %v3338, 1.0
        %v3345 = vsub.f32 %v3340, 1.0
        %v3346 = vsub.f32 %v3342, 1.0
        %v3347 = vsel %vm3331, %v3327, %v3343
        %v3348 = vsel %vm3332, %v3328, %v3344
        %v3349 = vsel %vm3333, %v3329, %v3345
        %v3350 = vsel %vm3334, %v3330, %v3346
        %3355 = vrot.lane.b32.xlu0 %v3347, 3
        %v3356 = vpop.permute.xlu0 %3355
        %3357 = vrot.lane.b32.xlu0 %v3348, 3
        %v3358 = vpop.permute.xlu0 %3357
        %3359 = vrot.lane.b32.xlu0 %v3349, 3
        %v3360 = vpop.permute.xlu0 %3359
        %3361 = vrot.lane.b32.xlu0 %v3350, 3
        %v3362 = vpop.permute.xlu0 %3361
        %vm3363 = vcmask 23552
        %v3364 = vsel %vm3363, %v3356, %v3358
        %v3365 = vsel %vm3363, %v3358, %v3360
        %v3366 = vsel %vm3363, %v3360, %v3362
        %v3371 = vsel %vm3363, 0.0, %v3356
        %3373 = vrot.lane.b32.xlu0 %v3371, 127
        %v3374 = vpop.permute.xlu0 %3373
        %3375 = vrot.lane.b32.xlu0 %v3364, 127
        %v3376 = vpop.permute.xlu0 %3375
        %3377 = vrot.lane.b32.xlu0 %v3365, 127
        %v3378 = vpop.permute.xlu0 %3377
        %3379 = vrot.lane.b32.xlu0 %v3366, 127
        %v3380 = vpop.permute.xlu0 %3379
        %3381 = vrot.lane.b32.xlu0 %v3362, 127
        %v3382 = vpop.permute.xlu0 %3381
        %v3383 = vsel %vm2066, %v3374, %v3376
        %v3384 = vsel %vm2066, %v3376, %v3378
        %v3385 = vsel %vm2066, %v3378, %v3380
        %v3386 = vsel %vm2066, %v3380, %v3382
        %3391 = vrot.lane.b32.xlu0 %v3371, 126
        %v3392 = vpop.permute.xlu0 %3391
        %3393 = vrot.lane.b32.xlu0 %v3364, 126
        %v3394 = vpop.permute.xlu0 %3393
        %3395 = vrot.lane.b32.xlu0 %v3365, 126
        %v3396 = vpop.permute.xlu0 %3395
        %3397 = vrot.lane.b32.xlu0 %v3366, 126
        %v3398 = vpop.permute.xlu0 %3397
        %3399 = vrot.lane.b32.xlu0 %v3362, 126
        %v3400 = vpop.permute.xlu0 %3399
        %v3401 = vsel %vm2085, %v3392, %v3394
        %v3402 = vsel %vm2085, %v3394, %v3396
        %v3403 = vsel %vm2085, %v3396, %v3398
        %v3404 = vsel %vm2085, %v3398, %v3400
        %3409 = vrot.lane.b32.xlu0 %v3371, 125
        %v3410 = vpop.permute.xlu0 %3409
        %3411 = vrot.lane.b32.xlu0 %v3364, 125
        %v3412 = vpop.permute.xlu0 %3411
        %3413 = vrot.lane.b32.xlu0 %v3365, 125
        %v3414 = vpop.permute.xlu0 %3413
        %3415 = vrot.lane.b32.xlu0 %v3366, 125
        %v3416 = vpop.permute.xlu0 %3415
        %3417 = vrot.lane.b32.xlu0 %v3362, 125
        %v3418 = vpop.permute.xlu0 %3417
        %v3419 = vsel %vm2104, %v3410, %v3412
        %v3420 = vsel %vm2104, %v3412, %v3414
        %v3421 = vsel %vm2104, %v3414, %v3416
        %v3422 = vsel %vm2104, %v3416, %v3418
        %v3427 = vld [vmem:[%s31] sm:$0xff]
        %v3428 = vld [vmem:[%s33] sm:$0xff]
        %3430 = vset.pattern.permute.xlu0 0
        %3431 = vperm.xlu0 %3430, %v3428
        %v3432 = vpop.permute.xlu0 %3431
        %vm3434 = vcmask 261120
        %v3436 = vsel %vm3434, %v3427, 0
        %3438 = vmatpush.msra.mxu0 0.0
        %3439 = vmatpush.msra.mxu0 0.0
        %3440 = vmatpush.msra.mxu0 0.0
        %3441 = vmatpush.msra.mxu0 0.0
        %3442 = vmatpush.msra.mxu0 0.0
        %3443 = vmatpush.msra.mxu0 0.0
        %3444 = vmatpush.msra.mxu0 0.0
        %3445 = vmatpush.msra.mxu0 0.0
        %3446 = vmatpush.msra.mxu0 0.0
        %3447 = vmatpush.msra.mxu0 0.0
        %3448 = vmatpush.msra.mxu0 0.0
        %3449 = vmatpush.msra.mxu0 0.0
        %3450 = vmatpush.msra.mxu0 %v3419
        %3451 = vmatpush.msra.mxu0 %v3401
        %3452 = vmatpush.msra.mxu0 %v3383
        %3453 = vmatpush.msra.mxu0 %v3371
        %3454 = vmatmul.f32.gmra.mxu0 %v3436
        %v3455 = vpop.f32.mrf.mxu0
        %v3456 = vadd.f32 %v3432, %v3455
        %3457 = vdwg.mxu0
        %3458 = vmatpush.msra.mxu0 0.0
        %3459 = vmatpush.msra.mxu0 0.0
        %3460 = vmatpush.msra.mxu0 0.0
        %3461 = vmatpush.msra.mxu0 0.0
        %3462 = vmatpush.msra.mxu0 0.0
        %3463 = vmatpush.msra.mxu0 0.0
        %3464 = vmatpush.msra.mxu0 0.0
        %3465 = vmatpush.msra.mxu0 0.0
        %3466 = vmatpush.msra.mxu0 0.0
        %3467 = vmatpush.msra.mxu0 0.0
        %3468 = vmatpush.msra.mxu0 0.0
        %3469 = vmatpush.msra.mxu0 0.0
        %3470 = vmatpush.msra.mxu0 %v3420
        %3471 = vmatpush.msra.mxu0 %v3402
        %3472 = vmatpush.msra.mxu0 %v3384
        %3473 = vmatpush.msra.mxu0 %v3364
        %3474 = vmatmul.f32.gmra.mxu0 %v3436
        %v3475 = vpop.f32.mrf.mxu0
        %v3476 = vadd.f32 %v3432, %v3475
        %3477 = vdwg.mxu0
        %3478 = vmatpush.msra.mxu0 0.0
        %3479 = vmatpush.msra.mxu0 0.0
        %3480 = vmatpush.msra.mxu0 0.0
        %3481 = vmatpush.msra.mxu0 0.0
        %3482 = vmatpush.msra.mxu0 0.0
        %3483 = vmatpush.msra.mxu0 0.0
        %3484 = vmatpush.msra.mxu0 0.0
        %3485 = vmatpush.msra.mxu0 0.0
        %3486 = vmatpush.msra.mxu0 0.0
        %3487 = vmatpush.msra.mxu0 0.0
        %3488 = vmatpush.msra.mxu0 0.0
        %3489 = vmatpush.msra.mxu0 0.0
        %3490 = vmatpush.msra.mxu0 %v3421
        %3491 = vmatpush.msra.mxu0 %v3403
        %3492 = vmatpush.msra.mxu0 %v3385
        %3493 = vmatpush.msra.mxu0 %v3365
        %3494 = vmatmul.f32.gmra.mxu0 %v3436
        %v3495 = vpop.f32.mrf.mxu0
        %v3496 = vadd.f32 %v3432, %v3495
        %3497 = vdwg.mxu0
        %3498 = vmatpush.msra.mxu0 0.0
        %3499 = vmatpush.msra.mxu0 0.0
        %3500 = vmatpush.msra.mxu0 0.0
        %3501 = vmatpush.msra.mxu0 0.0
        %3502 = vmatpush.msra.mxu0 0.0
        %3503 = vmatpush.msra.mxu0 0.0
        %3504 = vmatpush.msra.mxu0 0.0
        %3505 = vmatpush.msra.mxu0 0.0
        %3506 = vmatpush.msra.mxu0 0.0
        %3507 = vmatpush.msra.mxu0 0.0
        %3508 = vmatpush.msra.mxu0 0.0
        %3509 = vmatpush.msra.mxu0 0.0
        %3510 = vmatpush.msra.mxu0 %v3422
        %3511 = vmatpush.msra.mxu0 %v3404
        %3512 = vmatpush.msra.mxu0 %v3386
        %3513 = vmatpush.msra.mxu0 %v3366
        %3514 = vmatmul.f32.gmra.mxu0 %v3436
        %v3515 = vpop.f32.mrf.mxu0
        %v3516 = vadd.f32 %v3432, %v3515
        %3517 = vdwg.mxu0
        %v3518 = vld [vmem:[#allocation2] sm:$0xff]
        %v3519 = vld [vmem:[#allocation2 + $0x8] sm:$0xff]
        %v3520 = vld [vmem:[#allocation2 + $0x10] sm:$0xff]
        %v3521 = vld [vmem:[#allocation2 + $0x18] sm:$0xff]
        %v3522 = vld [vmem:[#allocation2 + $0x20] sm:$0xff]
        %v3523 = vld [vmem:[#allocation2 + $0x28] sm:$0xff]
        %v3524 = vld [vmem:[#allocation2 + $0x30] sm:$0xff]
        %v3525 = vld [vmem:[#allocation2 + $0x38] sm:$0xff]
        %v3526 = vld [vmem:[#allocation2 + $0x40] sm:$0xff]
        %v3527 = vld [vmem:[#allocation2 + $0x48] sm:$0xff]
        %v3528 = vld [vmem:[#allocation2 + $0x50] sm:$0xff]
        %v3529 = vld [vmem:[#allocation2 + $0x58] sm:$0xff]
        %v3530 = vld [vmem:[#allocation2 + $0x60] sm:$0xff]
        %v3531 = vld [vmem:[#allocation2 + $0x68] sm:$0xff]
        %v3532 = vld [vmem:[#allocation2 + $0x70] sm:$0xff]
        %v3533 = vld [vmem:[#allocation2 + $0x78] sm:$0xff]
        %v3534 = vld [vmem:[#allocation2 + $0x80] sm:$0xff]
        %v3535 = vld [vmem:[#allocation2 + $0x88] sm:$0xff]
        %v3536 = vld [vmem:[#allocation2 + $0x90] sm:$0xff]
        %v3537 = vld [vmem:[#allocation2 + $0x98] sm:$0xff]
        %v3538 = vld [vmem:[#allocation2 + $0xa0] sm:$0xff]
        %v3539 = vld [vmem:[#allocation2 + $0xa8] sm:$0xff]
        %v3540 = vld [vmem:[#allocation2 + $0xb0] sm:$0xff]
        %v3541 = vld [vmem:[#allocation2 + $0xb8] sm:$0xff]
        %v3542 = vld [vmem:[#allocation2 + $0xc0] sm:$0xff]
        %v3543 = vld [vmem:[#allocation2 + $0xc8] sm:$0xff]
        %v3544 = vld [vmem:[#allocation2 + $0xd0] sm:$0xff]
        %v3545 = vld [vmem:[#allocation2 + $0xd8] sm:$0xff]
        %v3546 = vld [vmem:[#allocation2 + $0xe0] sm:$0xff]
        %v3547 = vld [vmem:[#allocation2 + $0xe8] sm:$0xff]
        %v3548 = vld [vmem:[#allocation2 + $0xf0] sm:$0xff]
        %v3549 = vld [vmem:[#allocation2 + $0xf8] sm:$0xff]
        %v3550 = vld [vmem:[#allocation2 + $0x100] sm:$0xff]
        %v3551 = vld [vmem:[#allocation2 + $0x108] sm:$0xff]
        %v3552 = vld [vmem:[#allocation2 + $0x110] sm:$0xff]
        %v3553 = vld [vmem:[#allocation2 + $0x118] sm:$0xff]
        %v3554 = vld [vmem:[#allocation2 + $0x120] sm:$0xff]
        %v3555 = vld [vmem:[#allocation2 + $0x128] sm:$0xff]
        %v3556 = vld [vmem:[#allocation2 + $0x130] sm:$0xff]
        %v3557 = vld [vmem:[#allocation2 + $0x138] sm:$0xff]
        %v3558 = vld [vmem:[#allocation2 + $0x140] sm:$0xff]
        %v3559 = vld [vmem:[#allocation2 + $0x148] sm:$0xff]
        %v3560 = vld [vmem:[#allocation2 + $0x150] sm:$0xff]
        %v3561 = vld [vmem:[#allocation2 + $0x158] sm:$0xff]
        %v3562 = vld [vmem:[#allocation2 + $0x160] sm:$0xff]
        %v3563 = vld [vmem:[#allocation2 + $0x168] sm:$0xff]
        %v3564 = vld [vmem:[#allocation2 + $0x170] sm:$0xff]
        %v3565 = vld [vmem:[#allocation2 + $0x178] sm:$0xff]
        %v3566 = vld [vmem:[#allocation2 + $0x180] sm:$0xff]
        %v3567 = vld [vmem:[#allocation2 + $0x188] sm:$0xff]
        %v3568 = vld [vmem:[#allocation2 + $0x190] sm:$0xff]
        %v3569 = vld [vmem:[#allocation2 + $0x198] sm:$0xff]
        %v3570 = vld [vmem:[#allocation2 + $0x1a0] sm:$0xff]
        %v3571 = vld [vmem:[#allocation2 + $0x1a8] sm:$0xff]
        %v3572 = vld [vmem:[#allocation2 + $0x1b0] sm:$0xff]
        %v3573 = vld [vmem:[#allocation2 + $0x1b8] sm:$0xff]
        %v3574 = vld [vmem:[#allocation2 + $0x1c0] sm:$0xff]
        %v3575 = vld [vmem:[#allocation2 + $0x1c8] sm:$0xff]
        %v3576 = vld [vmem:[#allocation2 + $0x1d0] sm:$0xff]
        %v3577 = vld [vmem:[#allocation2 + $0x1d8] sm:$0xff]
        %v3578 = vld [vmem:[#allocation2 + $0x1e0] sm:$0xff]
        %v3579 = vld [vmem:[#allocation2 + $0x1e8] sm:$0xff]
        %v3580 = vld [vmem:[#allocation2 + $0x1f0] sm:$0xff]
        %v3581 = vld [vmem:[#allocation2 + $0x1f8] sm:$0xff]
        %v3582 = vld [vmem:[#allocation2 + $0x200] sm:$0xff]
        %v3583 = vld [vmem:[#allocation2 + $0x208] sm:$0xff]
        %v3584 = vld [vmem:[#allocation2 + $0x210] sm:$0xff]
        %v3585 = vld [vmem:[#allocation2 + $0x218] sm:$0xff]
        %v3586 = vld [vmem:[#allocation2 + $0x220] sm:$0xff]
        %v3587 = vld [vmem:[#allocation2 + $0x228] sm:$0xff]
        %v3588 = vld [vmem:[#allocation2 + $0x230] sm:$0xff]
        %v3589 = vld [vmem:[#allocation2 + $0x238] sm:$0xff]
        %v3590 = vld [vmem:[#allocation2 + $0x240] sm:$0xff]
        %v3591 = vld [vmem:[#allocation2 + $0x248] sm:$0xff]
        %v3592 = vld [vmem:[#allocation2 + $0x250] sm:$0xff]
        %v3593 = vld [vmem:[#allocation2 + $0x258] sm:$0xff]
        %v3594 = vld [vmem:[#allocation2 + $0x260] sm:$0xff]
        %v3595 = vld [vmem:[#allocation2 + $0x268] sm:$0xff]
        %v3596 = vld [vmem:[#allocation2 + $0x270] sm:$0xff]
        %v3597 = vld [vmem:[#allocation2 + $0x278] sm:$0xff]
        %v3598 = vld [vmem:[#allocation2 + $0x280] sm:$0xff]
        %v3599 = vld [vmem:[#allocation2 + $0x288] sm:$0xff]
        %v3600 = vld [vmem:[#allocation2 + $0x290] sm:$0xff]
        %v3601 = vld [vmem:[#allocation2 + $0x298] sm:$0xff]
        %v3602 = vld [vmem:[#allocation2 + $0x2a0] sm:$0xff]
        %v3603 = vld [vmem:[#allocation2 + $0x2a8] sm:$0xff]
        %v3604 = vld [vmem:[#allocation2 + $0x2b0] sm:$0xff]
        %v3605 = vld [vmem:[#allocation2 + $0x2b8] sm:$0xff]
        %v3606 = vld [vmem:[#allocation2 + $0x2c0] sm:$0xff]
        %v3607 = vld [vmem:[#allocation2 + $0x2c8] sm:$0xff]
        %v3608 = vld [vmem:[#allocation2 + $0x2d0] sm:$0xff]
        %v3609 = vld [vmem:[#allocation2 + $0x2d8] sm:$0xff]
        %v3610 = vld [vmem:[#allocation2 + $0x2e0] sm:$0xff]
        %v3611 = vld [vmem:[#allocation2 + $0x2e8] sm:$0xff]
        %v3612 = vld [vmem:[#allocation2 + $0x2f0] sm:$0xff]
        %v3613 = vld [vmem:[#allocation2 + $0x2f8] sm:$0xff]
        %v3614 = vld [vmem:[#allocation2 + $0x300] sm:$0xff]
        %v3615 = vld [vmem:[#allocation2 + $0x308] sm:$0xff]
        %v3616 = vld [vmem:[#allocation2 + $0x310] sm:$0xff]
        %v3617 = vld [vmem:[#allocation2 + $0x318] sm:$0xff]
        %v3618 = vld [vmem:[#allocation2 + $0x320] sm:$0xff]
        %v3619 = vld [vmem:[#allocation2 + $0x328] sm:$0xff]
        %v3620 = vld [vmem:[#allocation2 + $0x330] sm:$0xff]
        %v3621 = vld [vmem:[#allocation2 + $0x338] sm:$0xff]
        %v3622 = vld [vmem:[#allocation2 + $0x340] sm:$0xff]
        %v3623 = vld [vmem:[#allocation2 + $0x348] sm:$0xff]
        %v3624 = vld [vmem:[#allocation2 + $0x350] sm:$0xff]
        %v3625 = vld [vmem:[#allocation2 + $0x358] sm:$0xff]
        %v3626 = vld [vmem:[#allocation2 + $0x360] sm:$0xff]
        %v3627 = vld [vmem:[#allocation2 + $0x368] sm:$0xff]
        %v3628 = vld [vmem:[#allocation2 + $0x370] sm:$0xff]
        %v3629 = vld [vmem:[#allocation2 + $0x378] sm:$0xff]
        %v3630 = vld [vmem:[#allocation2 + $0x380] sm:$0xff]
        %v3631 = vld [vmem:[#allocation2 + $0x388] sm:$0xff]
        %v3632 = vld [vmem:[#allocation2 + $0x390] sm:$0xff]
        %v3633 = vld [vmem:[#allocation2 + $0x398] sm:$0xff]
        %v3634 = vld [vmem:[#allocation2 + $0x3a0] sm:$0xff]
        %v3635 = vld [vmem:[#allocation2 + $0x3a8] sm:$0xff]
        %v3636 = vld [vmem:[#allocation2 + $0x3b0] sm:$0xff]
        %v3637 = vld [vmem:[#allocation2 + $0x3b8] sm:$0xff]
        %v3638 = vld [vmem:[#allocation2 + $0x3c0] sm:$0xff]
        %v3639 = vld [vmem:[#allocation2 + $0x3c8] sm:$0xff]
        %v3640 = vld [vmem:[#allocation2 + $0x3d0] sm:$0xff]
        %v3641 = vld [vmem:[#allocation2 + $0x3d8] sm:$0xff]
        %v3642 = vld [vmem:[#allocation2 + $0x3e0] sm:$0xff]
        %v3643 = vld [vmem:[#allocation2 + $0x3e8] sm:$0xff]
        %v3644 = vld [vmem:[#allocation2 + $0x3f0] sm:$0xff]
        %v3645 = vld [vmem:[#allocation2 + $0x3f8] sm:$0xff]
        %3646 = vmatpush.msra.mxu0 %v3548
        %3647 = vmatpush.msra.mxu0 %v3546
        %3648 = vmatpush.msra.mxu0 %v3544
        %3649 = vmatpush.msra.mxu0 %v3542
        %3650 = vmatpush.msra.mxu0 %v3540
        %3651 = vmatpush.msra.mxu0 %v3538
        %3652 = vmatpush.msra.mxu0 %v3536
        %3653 = vmatpush.msra.mxu0 %v3534
        %3654 = vmatpush.msra.mxu0 %v3532
        %3655 = vmatpush.msra.mxu0 %v3530
        %3656 = vmatpush.msra.mxu0 %v3528
        %3657 = vmatpush.msra.mxu0 %v3526
        %3658 = vmatpush.msra.mxu0 %v3524
        %3659 = vmatpush.msra.mxu0 %v3522
        %3660 = vmatpush.msra.mxu0 %v3520
        %3661 = vmatpush.msra.mxu0 %v3518
        %3662 = vmatmul.f32.gmra.mxu0 %v3456
        %v3663 = vpop.f32.mrf.mxu0
        %v3664 = vadd.f32 0.0, %v3663
        %3665 = vdwg.mxu0
        %3666 = vmatpush.msra.mxu0 %v3580
        %3667 = vmatpush.msra.mxu0 %v3578
        %3668 = vmatpush.msra.mxu0 %v3576
        %3669 = vmatpush.msra.mxu0 %v3574
        %3670 = vmatpush.msra.mxu0 %v3572
        %3671 = vmatpush.msra.mxu0 %v3570
        %3672 = vmatpush.msra.mxu0 %v3568
        %3673 = vmatpush.msra.mxu0 %v3566
        %3674 = vmatpush.msra.mxu0 %v3564
        %3675 = vmatpush.msra.mxu0 %v3562
        %3676 = vmatpush.msra.mxu0 %v3560
        %3677 = vmatpush.msra.mxu0 %v3558
        %3678 = vmatpush.msra.mxu0 %v3556
        %3679 = vmatpush.msra.mxu0 %v3554
        %3680 = vmatpush.msra.mxu0 %v3552
        %3681 = vmatpush.msra.mxu0 %v3550
        %3682 = vmatmul.f32.gmra.mxu0 %v3476
        %v3683 = vpop.f32.mrf.mxu0
        %v3684 = vadd.f32 %v3664, %v3683
        %3685 = vdwg.mxu0
        %3686 = vmatpush.msra.mxu0 %v3612
        %3687 = vmatpush.msra.mxu0 %v3610
        %3688 = vmatpush.msra.mxu0 %v3608
        %3689 = vmatpush.msra.mxu0 %v3606
        %3690 = vmatpush.msra.mxu0 %v3604
        %3691 = vmatpush.msra.mxu0 %v3602
        %3692 = vmatpush.msra.mxu0 %v3600
        %3693 = vmatpush.msra.mxu0 %v3598
        %3694 = vmatpush.msra.mxu0 %v3596
        %3695 = vmatpush.msra.mxu0 %v3594
        %3696 = vmatpush.msra.mxu0 %v3592
        %3697 = vmatpush.msra.mxu0 %v3590
        %3698 = vmatpush.msra.mxu0 %v3588
        %3699 = vmatpush.msra.mxu0 %v3586
        %3700 = vmatpush.msra.mxu0 %v3584
        %3701 = vmatpush.msra.mxu0 %v3582
        %3702 = vmatmul.f32.gmra.mxu0 %v3496
        %v3703 = vpop.f32.mrf.mxu0
        %v3704 = vadd.f32 %v3684, %v3703
        %3705 = vdwg.mxu0
        %3706 = vmatpush.msra.mxu0 %v3644
        %3707 = vmatpush.msra.mxu0 %v3642
        %3708 = vmatpush.msra.mxu0 %v3640
        %3709 = vmatpush.msra.mxu0 %v3638
        %3710 = vmatpush.msra.mxu0 %v3636
        %3711 = vmatpush.msra.mxu0 %v3634
        %3712 = vmatpush.msra.mxu0 %v3632
        %3713 = vmatpush.msra.mxu0 %v3630
        %3714 = vmatpush.msra.mxu0 %v3628
        %3715 = vmatpush.msra.mxu0 %v3626
        %3716 = vmatpush.msra.mxu0 %v3624
        %3717 = vmatpush.msra.mxu0 %v3622
        %3718 = vmatpush.msra.mxu0 %v3620
        %3719 = vmatpush.msra.mxu0 %v3618
        %3720 = vmatpush.msra.mxu0 %v3616
        %3721 = vmatpush.msra.mxu0 %v3614
        %3722 = vmatmul.f32.gmra.mxu0 %v3516
        %v3723 = vpop.f32.mrf.mxu0
        %v3724 = vadd.f32 %v3704, %v3723
        %3725 = vdwg.mxu0
        %3726 = vmatpush.msra.mxu0 %v3549
        %3727 = vmatpush.msra.mxu0 %v3547
        %3728 = vmatpush.msra.mxu0 %v3545
        %3729 = vmatpush.msra.mxu0 %v3543
        %3730 = vmatpush.msra.mxu0 %v3541
        %3731 = vmatpush.msra.mxu0 %v3539
        %3732 = vmatpush.msra.mxu0 %v3537
        %3733 = vmatpush.msra.mxu0 %v3535
        %3734 = vmatpush.msra.mxu0 %v3533
        %3735 = vmatpush.msra.mxu0 %v3531
        %3736 = vmatpush.msra.mxu0 %v3529
        %3737 = vmatpush.msra.mxu0 %v3527
        %3738 = vmatpush.msra.mxu0 %v3525
        %3739 = vmatpush.msra.mxu0 %v3523
        %3740 = vmatpush.msra.mxu0 %v3521
        %3741 = vmatpush.msra.mxu0 %v3519
        %3742 = vmatmul.f32.gmra.mxu0 %v3456
        %v3743 = vpop.f32.mrf.mxu0
        %v3744 = vadd.f32 0.0, %v3743
        %3745 = vdwg.mxu0
        %3746 = vmatpush.msra.mxu0 %v3581
        %3747 = vmatpush.msra.mxu0 %v3579
        %3748 = vmatpush.msra.mxu0 %v3577
        %3749 = vmatpush.msra.mxu0 %v3575
        %3750 = vmatpush.msra.mxu0 %v3573
        %3751 = vmatpush.msra.mxu0 %v3571
        %3752 = vmatpush.msra.mxu0 %v3569
        %3753 = vmatpush.msra.mxu0 %v3567
        %3754 = vmatpush.msra.mxu0 %v3565
        %3755 = vmatpush.msra.mxu0 %v3563
        %3756 = vmatpush.msra.mxu0 %v3561
        %3757 = vmatpush.msra.mxu0 %v3559
        %3758 = vmatpush.msra.mxu0 %v3557
        %3759 = vmatpush.msra.mxu0 %v3555
        %3760 = vmatpush.msra.mxu0 %v3553
        %3761 = vmatpush.msra.mxu0 %v3551
        %3762 = vmatmul.f32.gmra.mxu0 %v3476
        %v3763 = vpop.f32.mrf.mxu0
        %v3764 = vadd.f32 %v3744, %v3763
        %3765 = vdwg.mxu0
        %3766 = vmatpush.msra.mxu0 %v3613
        %3767 = vmatpush.msra.mxu0 %v3611
        %3768 = vmatpush.msra.mxu0 %v3609
        %3769 = vmatpush.msra.mxu0 %v3607
        %3770 = vmatpush.msra.mxu0 %v3605
        %3771 = vmatpush.msra.mxu0 %v3603
        %3772 = vmatpush.msra.mxu0 %v3601
        %3773 = vmatpush.msra.mxu0 %v3599
        %3774 = vmatpush.msra.mxu0 %v3597
        %3775 = vmatpush.msra.mxu0 %v3595
        %3776 = vmatpush.msra.mxu0 %v3593
        %3777 = vmatpush.msra.mxu0 %v3591
        %3778 = vmatpush.msra.mxu0 %v3589
        %3779 = vmatpush.msra.mxu0 %v3587
        %3780 = vmatpush.msra.mxu0 %v3585
        %3781 = vmatpush.msra.mxu0 %v3583
        %3782 = vmatmul.f32.gmra.mxu0 %v3496
        %v3783 = vpop.f32.mrf.mxu0
        %v3784 = vadd.f32 %v3764, %v3783
        %3785 = vdwg.mxu0
        %3786 = vmatpush.msra.mxu0 %v3645
        %3787 = vmatpush.msra.mxu0 %v3643
        %3788 = vmatpush.msra.mxu0 %v3641
        %3789 = vmatpush.msra.mxu0 %v3639
        %3790 = vmatpush.msra.mxu0 %v3637
        %3791 = vmatpush.msra.mxu0 %v3635
        %3792 = vmatpush.msra.mxu0 %v3633
        %3793 = vmatpush.msra.mxu0 %v3631
        %3794 = vmatpush.msra.mxu0 %v3629
        %3795 = vmatpush.msra.mxu0 %v3627
        %3796 = vmatpush.msra.mxu0 %v3625
        %3797 = vmatpush.msra.mxu0 %v3623
        %3798 = vmatpush.msra.mxu0 %v3621
        %3799 = vmatpush.msra.mxu0 %v3619
        %3800 = vmatpush.msra.mxu0 %v3617
        %3801 = vmatpush.msra.mxu0 %v3615
        %3802 = vmatmul.f32.gmra.mxu0 %v3516
        %v3803 = vpop.f32.mrf.mxu0
        %v3804 = vadd.f32 %v3784, %v3803
        %3805 = vdwg.mxu0
        %vm3806 = vcmp.gt.f32.partialorder %v3724, 0.0
        %vm3807 = vcmp.gt.f32.partialorder %v3804, 0.0
        %v3808 = vmul.f32 %v3724, 1.442695
        %v3809 = vpow.pop %v3808
        %v3810 = vmul.f32 %v3804, 1.442695
        %v3811 = vpow.pop %v3810
        %v3812 = vsub.f32 %v3809, 1.0
        %v3813 = vsub.f32 %v3811, 1.0
        %v3814 = vsel %vm3806, %v3724, %v3812
        %v3815 = vsel %vm3807, %v3804, %v3813
        %3818 = vrot.lane.b32.xlu0 %v3814, 6
        %v3819 = vpop.permute.xlu0 %3818
        %3820 = vrot.lane.b32.xlu0 %v3815, 6
        %v3821 = vpop.permute.xlu0 %3820
        %v3822 = vsel %vm2046, %v3819, %v3821
        %v3825 = vsel %vm2046, 0.0, %v3819
        %3827 = vrot.lane.b32.xlu0 %v3825, 127
        %v3828 = vpop.permute.xlu0 %3827
        %3829 = vrot.lane.b32.xlu0 %v3822, 127
        %v3830 = vpop.permute.xlu0 %3829
        %3831 = vrot.lane.b32.xlu0 %v3821, 127
        %v3832 = vpop.permute.xlu0 %3831
        %v3833 = vsel %vm2066, %v3828, %v3830
        %v3834 = vsel %vm2066, %v3830, %v3832
        %3837 = vrot.lane.b32.xlu0 %v3825, 126
        %v3838 = vpop.permute.xlu0 %3837
        %3839 = vrot.lane.b32.xlu0 %v3822, 126
        %v3840 = vpop.permute.xlu0 %3839
        %3841 = vrot.lane.b32.xlu0 %v3821, 126
        %v3842 = vpop.permute.xlu0 %3841
        %v3843 = vsel %vm2085, %v3838, %v3840
        %v3844 = vsel %vm2085, %v3840, %v3842
        %3847 = vrot.lane.b32.xlu0 %v3825, 125
        %v3848 = vpop.permute.xlu0 %3847
        %3849 = vrot.lane.b32.xlu0 %v3822, 125
        %v3850 = vpop.permute.xlu0 %3849
        %3851 = vrot.lane.b32.xlu0 %v3821, 125
        %v3852 = vpop.permute.xlu0 %3851
        %v3853 = vsel %vm2104, %v3848, %v3850
        %v3854 = vsel %vm2104, %v3850, %v3852
        %3857 = vrot.lane.b32.xlu0 %v3825, 124
        %v3858 = vpop.permute.xlu0 %3857
        %3859 = vrot.lane.b32.xlu0 %v3822, 124
        %v3860 = vpop.permute.xlu0 %3859
        %3861 = vrot.lane.b32.xlu0 %v3821, 124
        %v3862 = vpop.permute.xlu0 %3861
        %v3863 = vsel %vm2123, %v3858, %v3860
        %v3864 = vsel %vm2123, %v3860, %v3862
        %3867 = vrot.lane.b32.xlu0 %v3825, 123
        %v3868 = vpop.permute.xlu0 %3867
        %3869 = vrot.lane.b32.xlu0 %v3822, 123
        %v3870 = vpop.permute.xlu0 %3869
        %3871 = vrot.lane.b32.xlu0 %v3821, 123
        %v3872 = vpop.permute.xlu0 %3871
        %v3873 = vsel %vm2142, %v3868, %v3870
        %v3874 = vsel %vm2142, %v3870, %v3872
        %3877 = vrot.lane.b32.xlu0 %v3825, 122
        %v3878 = vpop.permute.xlu0 %3877
        %3879 = vrot.lane.b32.xlu0 %v3822, 122
        %v3880 = vpop.permute.xlu0 %3879
        %3881 = vrot.lane.b32.xlu0 %v3821, 122
        %v3882 = vpop.permute.xlu0 %3881
        %v3883 = vsel %vm2161, %v3878, %v3880
        %v3884 = vsel %vm2161, %v3880, %v3882
        %v3887 = vld [vmem:[#allocation5] sm:$0xff]
        %v3888 = vld [vmem:[%s39] sm:$0xff]
        %3890 = vset.pattern.permute.xlu0 0
        %3891 = vperm.xlu0 %3890, %v3888
        %v3892 = vpop.permute.xlu0 %3891
        %v3895 = vsel %vm2177, %v3887, 0
        %3897 = vmatpush.msra.mxu0 0.0
        %3898 = vmatpush.msra.mxu0 0.0
        %3899 = vmatpush.msra.mxu0 0.0
        %3900 = vmatpush.msra.mxu0 0.0
        %3901 = vmatpush.msra.mxu0 0.0
        %3902 = vmatpush.msra.mxu0 0.0
        %3903 = vmatpush.msra.mxu0 0.0
        %3904 = vmatpush.msra.mxu0 0.0
        %3905 = vmatpush.msra.mxu0 0.0
        %3906 = vmatpush.msra.mxu0 %v3883
        %3907 = vmatpush.msra.mxu0 %v3873
        %3908 = vmatpush.msra.mxu0 %v3863
        %3909 = vmatpush.msra.mxu0 %v3853
        %3910 = vmatpush.msra.mxu0 %v3843
        %3911 = vmatpush.msra.mxu0 %v3833
        %3912 = vmatpush.msra.mxu0 %v3825
        %3913 = vmatmul.f32.gmra.mxu0 %v3895
        %v3914 = vpop.f32.mrf.mxu0
        %v3915 = vadd.f32 %v3892, %v3914
        %3916 = vdwg.mxu0
        %3917 = vmatpush.msra.mxu0 0.0
        %3918 = vmatpush.msra.mxu0 0.0
        %3919 = vmatpush.msra.mxu0 0.0
        %3920 = vmatpush.msra.mxu0 0.0
        %3921 = vmatpush.msra.mxu0 0.0
        %3922 = vmatpush.msra.mxu0 0.0
        %3923 = vmatpush.msra.mxu0 0.0
        %3924 = vmatpush.msra.mxu0 0.0
        %3925 = vmatpush.msra.mxu0 0.0
        %3926 = vmatpush.msra.mxu0 %v3884
        %3927 = vmatpush.msra.mxu0 %v3874
        %3928 = vmatpush.msra.mxu0 %v3864
        %3929 = vmatpush.msra.mxu0 %v3854
        %3930 = vmatpush.msra.mxu0 %v3844
        %3931 = vmatpush.msra.mxu0 %v3834
        %3932 = vmatpush.msra.mxu0 %v3822
        %3933 = vmatmul.f32.gmra.mxu0 %v3895
        %v3934 = vpop.f32.mrf.mxu0
        %v3935 = vadd.f32 %v3892, %v3934
        %3936 = vdwg.mxu0
        %vm3937 = vcmp.gt.f32.partialorder %v3915, 0.0
        %vm3938 = vcmp.gt.f32.partialorder %v3935, 0.0
        %v3939 = vmul.f32 %v3915, 1.442695
        %v3940 = vpow.pop %v3939
        %v3941 = vmul.f32 %v3935, 1.442695
        %v3942 = vpow.pop %v3941
        %v3943 = vsub.f32 %v3940, 1.0
        %v3944 = vsub.f32 %v3942, 1.0
        %v3945 = vsel %vm3937, %v3915, %v3943
        %v3946 = vsel %vm3938, %v3935, %v3944
        %v3947 = vld [vmem:[#allocation7] sm:$0xff]
        %v3948 = vld [vmem:[%s43] sm:$0xff]
        %3950 = vset.pattern.permute.xlu0 0
        %3951 = vperm.xlu0 %3950, %v3948
        %v3952 = vpop.permute.xlu0 %3951
        %v3955 = vsel %vm2527, %v3947, 0
        %3957 = vmatpush.msra.mxu0 0.0
        %3958 = vmatpush.msra.mxu0 0.0
        %3959 = vmatpush.msra.mxu0 0.0
        %3960 = vmatpush.msra.mxu0 0.0
        %3961 = vmatpush.msra.mxu0 0.0
        %3962 = vmatpush.msra.mxu0 0.0
        %3963 = vmatpush.msra.mxu0 0.0
        %3964 = vmatpush.msra.mxu0 0.0
        %3965 = vmatpush.msra.mxu0 0.0
        %3966 = vmatpush.msra.mxu0 0.0
        %3967 = vmatpush.msra.mxu0 0.0
        %3968 = vmatpush.msra.mxu0 0.0
        %3969 = vmatpush.msra.mxu0 0.0
        %3970 = vmatpush.msra.mxu0 0.0
        %3971 = vmatpush.msra.mxu0 0.0
        %3972 = vmatpush.msra.mxu0 %v3945
        %3973 = vmatmul.f32.gmra.mxu0 %v3955
        %v3974 = vpop.f32.mrf.mxu0
        %v3975 = vadd.f32 %v3952, %v3974
        %3976 = vdwg.mxu0
        %3977 = vmatpush.msra.mxu0 0.0
        %3978 = vmatpush.msra.mxu0 0.0
        %3979 = vmatpush.msra.mxu0 0.0
        %3980 = vmatpush.msra.mxu0 0.0
        %3981 = vmatpush.msra.mxu0 0.0
        %3982 = vmatpush.msra.mxu0 0.0
        %3983 = vmatpush.msra.mxu0 0.0
        %3984 = vmatpush.msra.mxu0 0.0
        %3985 = vmatpush.msra.mxu0 0.0
        %3986 = vmatpush.msra.mxu0 0.0
        %3987 = vmatpush.msra.mxu0 0.0
        %3988 = vmatpush.msra.mxu0 0.0
        %3989 = vmatpush.msra.mxu0 0.0
        %3990 = vmatpush.msra.mxu0 0.0
        %3991 = vmatpush.msra.mxu0 0.0
        %3992 = vmatpush.msra.mxu0 %v3946
        %3993 = vmatmul.f32.gmra.mxu0 %v3955
        %v3994 = vpop.f32.mrf.mxu0
        %v3995 = vadd.f32 %v3952, %v3994
        %3996 = vdwg.mxu0
        %v3997 = vadd.f32 %v3814, %v3975
        %v3998 = vadd.f32 %v3815, %v3995
        %vm3999 = vcmp.gt.f32.partialorder %v3997, 0.0
        %vm4000 = vcmp.gt.f32.partialorder %v3998, 0.0
        %v4001 = vmul.f32 %v3997, 1.442695
        %v4002 = vpow.pop %v4001
        %v4003 = vmul.f32 %v3998, 1.442695
        %v4004 = vpow.pop %v4003
        %v4005 = vsub.f32 %v4002, 1.0
        %v4006 = vsub.f32 %v4004, 1.0
        %v4007 = vsel %vm3999, %v3997, %v4005
        %v4008 = vsel %vm4000, %v3998, %v4006
        %4011 = vrot.lane.b32.xlu0 %v4007, 18
        %v4012 = vpop.permute.xlu0 %4011
        %4013 = vrot.lane.b32.xlu0 %v4008, 18
        %v4014 = vpop.permute.xlu0 %4013
        %v4015 = vsel %vm2647, %v4012, %v4014
        %v4018 = vsel %vm2647, 0.0, %v4012
        %4020 = vrot.lane.b32.xlu0 %v4018, 125
        %v4021 = vpop.permute.xlu0 %4020
        %4022 = vrot.lane.b32.xlu0 %v4015, 125
        %v4023 = vpop.permute.xlu0 %4022
        %4024 = vrot.lane.b32.xlu0 %v4014, 125
        %v4025 = vpop.permute.xlu0 %4024
        %v4026 = vsel %vm2104, %v4021, %v4023
        %v4027 = vsel %vm2104, %v4023, %v4025
        %4030 = vrot.lane.b32.xlu0 %v4018, 122
        %v4031 = vpop.permute.xlu0 %4030
        %4032 = vrot.lane.b32.xlu0 %v4015, 122
        %v4033 = vpop.permute.xlu0 %4032
        %4034 = vrot.lane.b32.xlu0 %v4014, 122
        %v4035 = vpop.permute.xlu0 %4034
        %v4036 = vsel %vm2161, %v4031, %v4033
        %v4037 = vsel %vm2161, %v4033, %v4035
        %4040 = vrot.lane.b32.xlu0 %v4018, 119
        %v4041 = vpop.permute.xlu0 %4040
        %4042 = vrot.lane.b32.xlu0 %v4015, 119
        %v4043 = vpop.permute.xlu0 %4042
        %4044 = vrot.lane.b32.xlu0 %v4014, 119
        %v4045 = vpop.permute.xlu0 %4044
        %v4046 = vsel %vm2703, %v4041, %v4043
        %v4047 = vsel %vm2703, %v4043, %v4045
        %4050 = vrot.lane.b32.xlu0 %v4018, 116
        %v4051 = vpop.permute.xlu0 %4050
        %4052 = vrot.lane.b32.xlu0 %v4015, 116
        %v4053 = vpop.permute.xlu0 %4052
        %4054 = vrot.lane.b32.xlu0 %v4014, 116
        %v4055 = vpop.permute.xlu0 %4054
        %v4056 = vsel %vm2722, %v4051, %v4053
        %v4057 = vsel %vm2722, %v4053, %v4055
        %4060 = vrot.lane.b32.xlu0 %v4018, 113
        %v4061 = vpop.permute.xlu0 %4060
        %4062 = vrot.lane.b32.xlu0 %v4015, 113
        %v4063 = vpop.permute.xlu0 %4062
        %4064 = vrot.lane.b32.xlu0 %v4014, 113
        %v4065 = vpop.permute.xlu0 %4064
        %v4066 = vsel %vm2741, %v4061, %v4063
        %v4067 = vsel %vm2741, %v4063, %v4065
        %4070 = vrot.lane.b32.xlu0 %v4018, 110
        %v4071 = vpop.permute.xlu0 %4070
        %4072 = vrot.lane.b32.xlu0 %v4015, 110
        %v4073 = vpop.permute.xlu0 %4072
        %4074 = vrot.lane.b32.xlu0 %v4014, 110
        %v4075 = vpop.permute.xlu0 %4074
        %v4076 = vsel %vm2760, %v4071, %v4073
        %v4077 = vsel %vm2760, %v4073, %v4075
        %v4080 = vld [vmem:[#allocation8] sm:$0xff]
        %v4081 = vld [vmem:[%s47] sm:$0xff]
        %4083 = vset.pattern.permute.xlu0 0
        %4084 = vperm.xlu0 %4083, %v4081
        %v4085 = vpop.permute.xlu0 %4084
        %v4088 = vsel %vm2177, %v4080, 0
        %4090 = vmatpush.msra.mxu0 0.0
        %4091 = vmatpush.msra.mxu0 0.0
        %4092 = vmatpush.msra.mxu0 0.0
        %4093 = vmatpush.msra.mxu0 0.0
        %4094 = vmatpush.msra.mxu0 0.0
        %4095 = vmatpush.msra.mxu0 0.0
        %4096 = vmatpush.msra.mxu0 0.0
        %4097 = vmatpush.msra.mxu0 0.0
        %4098 = vmatpush.msra.mxu0 0.0
        %4099 = vmatpush.msra.mxu0 %v4076
        %4100 = vmatpush.msra.mxu0 %v4066
        %4101 = vmatpush.msra.mxu0 %v4056
        %4102 = vmatpush.msra.mxu0 %v4046
        %4103 = vmatpush.msra.mxu0 %v4036
        %4104 = vmatpush.msra.mxu0 %v4026
        %4105 = vmatpush.msra.mxu0 %v4018
        %4106 = vmatmul.f32.gmra.mxu0 %v4088
        %v4107 = vpop.f32.mrf.mxu0
        %v4108 = vadd.f32 %v4085, %v4107
        %4109 = vdwg.mxu0
        %4110 = vmatpush.msra.mxu0 0.0
        %4111 = vmatpush.msra.mxu0 0.0
        %4112 = vmatpush.msra.mxu0 0.0
        %4113 = vmatpush.msra.mxu0 0.0
        %4114 = vmatpush.msra.mxu0 0.0
        %4115 = vmatpush.msra.mxu0 0.0
        %4116 = vmatpush.msra.mxu0 0.0
        %4117 = vmatpush.msra.mxu0 0.0
        %4118 = vmatpush.msra.mxu0 0.0
        %4119 = vmatpush.msra.mxu0 %v4077
        %4120 = vmatpush.msra.mxu0 %v4067
        %4121 = vmatpush.msra.mxu0 %v4057
        %4122 = vmatpush.msra.mxu0 %v4047
        %4123 = vmatpush.msra.mxu0 %v4037
        %4124 = vmatpush.msra.mxu0 %v4027
        %4125 = vmatpush.msra.mxu0 %v4015
        %4126 = vmatmul.f32.gmra.mxu0 %v4088
        %v4127 = vpop.f32.mrf.mxu0
        %v4128 = vadd.f32 %v4085, %v4127
        %4129 = vdwg.mxu0
        %vm4130 = vcmp.gt.f32.partialorder %v4108, 0.0
        %vm4131 = vcmp.gt.f32.partialorder %v4128, 0.0
        %v4132 = vmul.f32 %v4108, 1.442695
        %v4133 = vpow.pop %v4132
        %v4134 = vmul.f32 %v4128, 1.442695
        %v4135 = vpow.pop %v4134
        %v4136 = vsub.f32 %v4133, 1.0
        %v4137 = vsub.f32 %v4135, 1.0
        %v4138 = vsel %vm4130, %v4108, %v4136
        %v4139 = vsel %vm4131, %v4128, %v4137
        %v4140 = vld [vmem:[#allocation10] sm:$0xff]
        %v4141 = vld [vmem:[%s51] sm:$0xff]
        %4143 = vset.pattern.permute.xlu0 0
        %4144 = vperm.xlu0 %4143, %v4141
        %v4145 = vpop.permute.xlu0 %4144
        %v4148 = vsel %vm2527, %v4140, 0
        %4150 = vmatpush.msra.mxu0 0.0
        %4151 = vmatpush.msra.mxu0 0.0
        %4152 = vmatpush.msra.mxu0 0.0
        %4153 = vmatpush.msra.mxu0 0.0
        %4154 = vmatpush.msra.mxu0 0.0
        %4155 = vmatpush.msra.mxu0 0.0
        %4156 = vmatpush.msra.mxu0 0.0
        %4157 = vmatpush.msra.mxu0 0.0
        %4158 = vmatpush.msra.mxu0 0.0
        %4159 = vmatpush.msra.mxu0 0.0
        %4160 = vmatpush.msra.mxu0 0.0
        %4161 = vmatpush.msra.mxu0 0.0
        %4162 = vmatpush.msra.mxu0 0.0
        %4163 = vmatpush.msra.mxu0 0.0
        %4164 = vmatpush.msra.mxu0 0.0
        %4165 = vmatpush.msra.mxu0 %v4138
        %4166 = vmatmul.f32.gmra.mxu0 %v4148
        %v4167 = vpop.f32.mrf.mxu0
        %v4168 = vadd.f32 %v4145, %v4167
        %4169 = vdwg.mxu0
        %4170 = vmatpush.msra.mxu0 0.0
        %4171 = vmatpush.msra.mxu0 0.0
        %4172 = vmatpush.msra.mxu0 0.0
        %4173 = vmatpush.msra.mxu0 0.0
        %4174 = vmatpush.msra.mxu0 0.0
        %4175 = vmatpush.msra.mxu0 0.0
        %4176 = vmatpush.msra.mxu0 0.0
        %4177 = vmatpush.msra.mxu0 0.0
        %4178 = vmatpush.msra.mxu0 0.0
        %4179 = vmatpush.msra.mxu0 0.0
        %4180 = vmatpush.msra.mxu0 0.0
        %4181 = vmatpush.msra.mxu0 0.0
        %4182 = vmatpush.msra.mxu0 0.0
        %4183 = vmatpush.msra.mxu0 0.0
        %4184 = vmatpush.msra.mxu0 0.0
        %4185 = vmatpush.msra.mxu0 %v4139
        %4186 = vmatmul.f32.gmra.mxu0 %v4148
        %v4187 = vpop.f32.mrf.mxu0
        %v4188 = vadd.f32 %v4145, %v4187
        %4189 = vdwg.mxu0
        %v4190 = vadd.f32 %v4007, %v4168
        %v4191 = vadd.f32 %v4008, %v4188
        %vm4192 = vcmp.gt.f32.partialorder %v4190, 0.0
        %vm4193 = vcmp.gt.f32.partialorder %v4191, 0.0
        %v4194 = vmul.f32 %v4190, 1.442695
        %v4195 = vpow.pop %v4194
        %v4196 = vmul.f32 %v4191, 1.442695
        %v4197 = vpow.pop %v4196
        %v4198 = vsub.f32 %v4195, 1.0
        %v4199 = vsub.f32 %v4197, 1.0
        %v4200 = vsel %vm4192, %v4190, %v4198
        %v4201 = vsel %vm4193, %v4191, %v4199
        %4204 = vrot.lane.b32.xlu0 %v4200, 54
        %v4205 = vpop.permute.xlu0 %4204
        %4206 = vrot.lane.b32.xlu0 %v4201, 54
        %v4207 = vpop.permute.xlu0 %4206
        %v4208 = vsel %vm3005, %v4205, %v4207
        %v4211 = vsel %vm3005, 0.0, %v4205
        %4213 = vrot.lane.b32.xlu0 %v4211, 119
        %v4214 = vpop.permute.xlu0 %4213
        %4215 = vrot.lane.b32.xlu0 %v4208, 119
        %v4216 = vpop.permute.xlu0 %4215
        %4217 = vrot.lane.b32.xlu0 %v4207, 119
        %v4218 = vpop.permute.xlu0 %4217
        %v4219 = vsel %vm2703, %v4214, %v4216
        %v4220 = vsel %vm2703, %v4216, %v4218
        %4223 = vrot.lane.b32.xlu0 %v4211, 110
        %v4224 = vpop.permute.xlu0 %4223
        %4225 = vrot.lane.b32.xlu0 %v4208, 110
        %v4226 = vpop.permute.xlu0 %4225
        %4227 = vrot.lane.b32.xlu0 %v4207, 110
        %v4228 = vpop.permute.xlu0 %4227
        %v4229 = vsel %vm2760, %v4224, %v4226
        %v4230 = vsel %vm2760, %v4226, %v4228
        %4233 = vrot.lane.b32.xlu0 %v4211, 101
        %v4234 = vpop.permute.xlu0 %4233
        %4235 = vrot.lane.b32.xlu0 %v4208, 101
        %v4236 = vpop.permute.xlu0 %4235
        %4237 = vrot.lane.b32.xlu0 %v4207, 101
        %v4238 = vpop.permute.xlu0 %4237
        %v4239 = vsel %vm3061, %v4234, %v4236
        %v4240 = vsel %vm3061, %v4236, %v4238
        %4243 = vrot.lane.b32.xlu0 %v4211, 92
        %v4244 = vpop.permute.xlu0 %4243
        %4245 = vrot.lane.b32.xlu0 %v4208, 92
        %v4246 = vpop.permute.xlu0 %4245
        %4247 = vrot.lane.b32.xlu0 %v4207, 92
        %v4248 = vpop.permute.xlu0 %4247
        %v4249 = vsel %vm3080, %v4244, %v4246
        %v4250 = vsel %vm3080, %v4246, %v4248
        %4253 = vrot.lane.b32.xlu0 %v4211, 83
        %v4254 = vpop.permute.xlu0 %4253
        %4255 = vrot.lane.b32.xlu0 %v4208, 83
        %v4256 = vpop.permute.xlu0 %4255
        %4257 = vrot.lane.b32.xlu0 %v4207, 83
        %v4258 = vpop.permute.xlu0 %4257
        %v4259 = vsel %vm3099, %v4254, %v4256
        %v4260 = vsel %vm3099, %v4256, %v4258
        %4263 = vrot.lane.b32.xlu0 %v4211, 74
        %v4264 = vpop.permute.xlu0 %4263
        %4265 = vrot.lane.b32.xlu0 %v4208, 74
        %v4266 = vpop.permute.xlu0 %4265
        %4267 = vrot.lane.b32.xlu0 %v4207, 74
        %v4268 = vpop.permute.xlu0 %4267
        %v4269 = vsel %vm3118, %v4264, %v4266
        %v4270 = vsel %vm3118, %v4266, %v4268
        %v4273 = vld [vmem:[#allocation11] sm:$0xff]
        %v4274 = vld [vmem:[%s55] sm:$0xff]
        %4276 = vset.pattern.permute.xlu0 0
        %4277 = vperm.xlu0 %4276, %v4274
        %v4278 = vpop.permute.xlu0 %4277
        %v4281 = vsel %vm2177, %v4273, 0
        %4283 = vmatpush.msra.mxu0 0.0
        %4284 = vmatpush.msra.mxu0 0.0
        %4285 = vmatpush.msra.mxu0 0.0
        %4286 = vmatpush.msra.mxu0 0.0
        %4287 = vmatpush.msra.mxu0 0.0
        %4288 = vmatpush.msra.mxu0 0.0
        %4289 = vmatpush.msra.mxu0 0.0
        %4290 = vmatpush.msra.mxu0 0.0
        %4291 = vmatpush.msra.mxu0 0.0
        %4292 = vmatpush.msra.mxu0 %v4269
        %4293 = vmatpush.msra.mxu0 %v4259
        %4294 = vmatpush.msra.mxu0 %v4249
        %4295 = vmatpush.msra.mxu0 %v4239
        %4296 = vmatpush.msra.mxu0 %v4229
        %4297 = vmatpush.msra.mxu0 %v4219
        %4298 = vmatpush.msra.mxu0 %v4211
        %4299 = vmatmul.f32.gmra.mxu0 %v4281
        %v4300 = vpop.f32.mrf.mxu0
        %v4301 = vadd.f32 %v4278, %v4300
        %4302 = vdwg.mxu0
        %4303 = vmatpush.msra.mxu0 0.0
        %4304 = vmatpush.msra.mxu0 0.0
        %4305 = vmatpush.msra.mxu0 0.0
        %4306 = vmatpush.msra.mxu0 0.0
        %4307 = vmatpush.msra.mxu0 0.0
        %4308 = vmatpush.msra.mxu0 0.0
        %4309 = vmatpush.msra.mxu0 0.0
        %4310 = vmatpush.msra.mxu0 0.0
        %4311 = vmatpush.msra.mxu0 0.0
        %4312 = vmatpush.msra.mxu0 %v4270
        %4313 = vmatpush.msra.mxu0 %v4260
        %4314 = vmatpush.msra.mxu0 %v4250
        %4315 = vmatpush.msra.mxu0 %v4240
        %4316 = vmatpush.msra.mxu0 %v4230
        %4317 = vmatpush.msra.mxu0 %v4220
        %4318 = vmatpush.msra.mxu0 %v4208
        %4319 = vmatmul.f32.gmra.mxu0 %v4281
        %v4320 = vpop.f32.mrf.mxu0
        %v4321 = vadd.f32 %v4278, %v4320
        %4322 = vdwg.mxu0
        %vm4323 = vcmp.gt.f32.partialorder %v4301, 0.0
        %vm4324 = vcmp.gt.f32.partialorder %v4321, 0.0
        %v4325 = vmul.f32 %v4301, 1.442695
        %v4326 = vpow.pop %v4325
        %v4327 = vmul.f32 %v4321, 1.442695
        %v4328 = vpow.pop %v4327
        %v4329 = vsub.f32 %v4326, 1.0
        %v4330 = vsub.f32 %v4328, 1.0
        %v4331 = vsel %vm4323, %v4301, %v4329
        %v4332 = vsel %vm4324, %v4321, %v4330
        %v4333 = vld [vmem:[#allocation13] sm:$0xff]
        %v4334 = vld [vmem:[%s59] sm:$0xff]
        %4336 = vset.pattern.permute.xlu0 0
        %4337 = vperm.xlu0 %4336, %v4334
        %v4338 = vpop.permute.xlu0 %4337
        %v4341 = vsel %vm2527, %v4333, 0
        %4343 = vmatpush.msra.mxu0 0.0
        %4344 = vmatpush.msra.mxu0 0.0
        %4345 = vmatpush.msra.mxu0 0.0
        %4346 = vmatpush.msra.mxu0 0.0
        %4347 = vmatpush.msra.mxu0 0.0
        %4348 = vmatpush.msra.mxu0 0.0
        %4349 = vmatpush.msra.mxu0 0.0
        %4350 = vmatpush.msra.mxu0 0.0
        %4351 = vmatpush.msra.mxu0 0.0
        %4352 = vmatpush.msra.mxu0 0.0
        %4353 = vmatpush.msra.mxu0 0.0
        %4354 = vmatpush.msra.mxu0 0.0
        %4355 = vmatpush.msra.mxu0 0.0
        %4356 = vmatpush.msra.mxu0 0.0
        %4357 = vmatpush.msra.mxu0 0.0
        %4358 = vmatpush.msra.mxu0 %v4331
        %4359 = vmatmul.f32.gmra.mxu0 %v4341
        %v4360 = vpop.f32.mrf.mxu0
        %v4361 = vadd.f32 %v4338, %v4360
        %4362 = vdwg.mxu0
        %4363 = vmatpush.msra.mxu0 0.0
        %4364 = vmatpush.msra.mxu0 0.0
        %4365 = vmatpush.msra.mxu0 0.0
        %4366 = vmatpush.msra.mxu0 0.0
        %4367 = vmatpush.msra.mxu0 0.0
        %4368 = vmatpush.msra.mxu0 0.0
        %4369 = vmatpush.msra.mxu0 0.0
        %4370 = vmatpush.msra.mxu0 0.0
        %4371 = vmatpush.msra.mxu0 0.0
        %4372 = vmatpush.msra.mxu0 0.0
        %4373 = vmatpush.msra.mxu0 0.0
        %4374 = vmatpush.msra.mxu0 0.0
        %4375 = vmatpush.msra.mxu0 0.0
        %4376 = vmatpush.msra.mxu0 0.0
        %4377 = vmatpush.msra.mxu0 0.0
        %4378 = vmatpush.msra.mxu0 %v4332
        %4379 = vmatmul.f32.gmra.mxu0 %v4341
        %v4380 = vpop.f32.mrf.mxu0
        %v4381 = vadd.f32 %v4338, %v4380
        %4382 = vdwg.mxu0
        %v4383 = vadd.f32 %v4200, %v4361
        %v4384 = vadd.f32 %v4201, %v4381
        %vm4385 = vcmp.gt.f32.partialorder %v4383, 0.0
        %vm4386 = vcmp.gt.f32.partialorder %v4384, 0.0
        %v4387 = vmul.f32 %v4383, 1.442695
        %v4388 = vpow.pop %v4387
        %v4389 = vmul.f32 %v4384, 1.442695
        %v4390 = vpow.pop %v4389
        %v4391 = vsub.f32 %v4388, 1.0
        %v4392 = vsub.f32 %v4390, 1.0
        %v4393 = vsel %vm4385, %v4383, %v4391
        %v4394 = vsel %vm4386, %v4384, %v4392
        %4397 = vrot.lane.b32.xlu0 %v4393, 3
        %v4398 = vpop.permute.xlu0 %4397
        %4399 = vrot.lane.b32.xlu0 %v4394, 3
        %v4400 = vpop.permute.xlu0 %4399
        %v4401 = vsel %vm3363, %v4398, %v4400
        %v4404 = vsel %vm3363, 0.0, %v4398
        %4406 = vrot.lane.b32.xlu0 %v4404, 127
        %v4407 = vpop.permute.xlu0 %4406
        %4408 = vrot.lane.b32.xlu0 %v4401, 127
        %v4409 = vpop.permute.xlu0 %4408
        %4410 = vrot.lane.b32.xlu0 %v4400, 127
        %v4411 = vpop.permute.xlu0 %4410
        %v4412 = vsel %vm2066, %v4407, %v4409
        %v4413 = vsel %vm2066, %v4409, %v4411
        %4416 = vrot.lane.b32.xlu0 %v4404, 126
        %v4417 = vpop.permute.xlu0 %4416
        %4418 = vrot.lane.b32.xlu0 %v4401, 126
        %v4419 = vpop.permute.xlu0 %4418
        %4420 = vrot.lane.b32.xlu0 %v4400, 126
        %v4421 = vpop.permute.xlu0 %4420
        %v4422 = vsel %vm2085, %v4417, %v4419
        %v4423 = vsel %vm2085, %v4419, %v4421
        %4426 = vrot.lane.b32.xlu0 %v4404, 125
        %v4427 = vpop.permute.xlu0 %4426
        %4428 = vrot.lane.b32.xlu0 %v4401, 125
        %v4429 = vpop.permute.xlu0 %4428
        %4430 = vrot.lane.b32.xlu0 %v4400, 125
        %v4431 = vpop.permute.xlu0 %4430
        %v4432 = vsel %vm2104, %v4427, %v4429
        %v4433 = vsel %vm2104, %v4429, %v4431
        %v4436 = vld [vmem:[%s61] sm:$0xff]
        %v4437 = vld [vmem:[%s61 + $0x8] sm:$0xff]
        %v4438 = vld [vmem:[%s63] sm:$0xff]
        %v4439 = vld [vmem:[%s63 + $0x8] sm:$0xff]
        %4441 = vset.pattern.permute.xlu0 0
        %4442 = vperm.xlu0 %4441, %v4438
        %v4443 = vpop.permute.xlu0 %4442
        %4446 = vset.pattern.permute.xlu0 0
        %4447 = vperm.xlu0 %4446, %v4439
        %v4448 = vpop.permute.xlu0 %4447
        %v4451 = vsel %vm3434, %v4436, 0
        %v4454 = vsel %vm3434, %v4437, 0
        %4456 = vmatpush.msra.mxu0 0.0
        %4457 = vmatpush.msra.mxu0 0.0
        %4458 = vmatpush.msra.mxu0 0.0
        %4459 = vmatpush.msra.mxu0 0.0
        %4460 = vmatpush.msra.mxu0 0.0
        %4461 = vmatpush.msra.mxu0 0.0
        %4462 = vmatpush.msra.mxu0 0.0
        %4463 = vmatpush.msra.mxu0 0.0
        %4464 = vmatpush.msra.mxu0 0.0
        %4465 = vmatpush.msra.mxu0 0.0
        %4466 = vmatpush.msra.mxu0 0.0
        %4467 = vmatpush.msra.mxu0 0.0
        %4468 = vmatpush.msra.mxu0 %v4432
        %4469 = vmatpush.msra.mxu0 %v4422
        %4470 = vmatpush.msra.mxu0 %v4412
        %4471 = vmatpush.msra.mxu0 %v4404
        %4472 = vmatmul.f32.gmra.mxu0 %v4451
        %v4473 = vpop.f32.mrf.mxu0
        %v4474 = vadd.f32 %v4443, %v4473
        %4475 = vmatmul.f32.gmra.mxu0 %v4454
        %v4476 = vpop.f32.mrf.mxu0
        %v4477 = vadd.f32 %v4448, %v4476
        %4478 = vdwg.mxu0
        %4479 = vmatpush.msra.mxu0 0.0
        %4480 = vmatpush.msra.mxu0 0.0
        %4481 = vmatpush.msra.mxu0 0.0
        %4482 = vmatpush.msra.mxu0 0.0
        %4483 = vmatpush.msra.mxu0 0.0
        %4484 = vmatpush.msra.mxu0 0.0
        %4485 = vmatpush.msra.mxu0 0.0
        %4486 = vmatpush.msra.mxu0 0.0
        %4487 = vmatpush.msra.mxu0 0.0
        %4488 = vmatpush.msra.mxu0 0.0
        %4489 = vmatpush.msra.mxu0 0.0
        %4490 = vmatpush.msra.mxu0 0.0
        %4491 = vmatpush.msra.mxu0 %v4433
        %4492 = vmatpush.msra.mxu0 %v4423
        %4493 = vmatpush.msra.mxu0 %v4413
        %4494 = vmatpush.msra.mxu0 %v4401
        %4495 = vmatmul.f32.gmra.mxu0 %v4451
        %v4496 = vpop.f32.mrf.mxu0
        %v4497 = vadd.f32 %v4443, %v4496
        %4498 = vmatmul.f32.gmra.mxu0 %v4454
        %v4499 = vpop.f32.mrf.mxu0
        %v4500 = vadd.f32 %v4448, %v4499
        %4501 = vdwg.mxu0
        %v4502 = vld [vmem:[#allocation14] sm:$0xff]
        %v4503 = vld [vmem:[#allocation14 + $0x8] sm:$0xff]
        %v4504 = vld [vmem:[#allocation14 + $0x10] sm:$0xff]
        %v4505 = vld [vmem:[#allocation14 + $0x18] sm:$0xff]
        %v4506 = vld [vmem:[#allocation14 + $0x20] sm:$0xff]
        %v4507 = vld [vmem:[#allocation14 + $0x28] sm:$0xff]
        %v4508 = vld [vmem:[#allocation14 + $0x30] sm:$0xff]
        %v4509 = vld [vmem:[#allocation14 + $0x38] sm:$0xff]
        %v4510 = vld [vmem:[#allocation14 + $0x40] sm:$0xff]
        %v4511 = vld [vmem:[#allocation14 + $0x48] sm:$0xff]
        %v4512 = vld [vmem:[#allocation14 + $0x50] sm:$0xff]
        %v4513 = vld [vmem:[#allocation14 + $0x58] sm:$0xff]
        %v4514 = vld [vmem:[#allocation14 + $0x60] sm:$0xff]
        %v4515 = vld [vmem:[#allocation14 + $0x68] sm:$0xff]
        %v4516 = vld [vmem:[#allocation14 + $0x70] sm:$0xff]
        %v4517 = vld [vmem:[#allocation14 + $0x78] sm:$0xff]
        %v4518 = vld [vmem:[#allocation14 + $0x80] sm:$0xff]
        %v4519 = vld [vmem:[#allocation14 + $0x88] sm:$0xff]
        %v4520 = vld [vmem:[#allocation14 + $0x90] sm:$0xff]
        %v4521 = vld [vmem:[#allocation14 + $0x98] sm:$0xff]
        %v4522 = vld [vmem:[#allocation14 + $0xa0] sm:$0xff]
        %v4523 = vld [vmem:[#allocation14 + $0xa8] sm:$0xff]
        %v4524 = vld [vmem:[#allocation14 + $0xb0] sm:$0xff]
        %v4525 = vld [vmem:[#allocation14 + $0xb8] sm:$0xff]
        %v4526 = vld [vmem:[#allocation14 + $0xc0] sm:$0xff]
        %v4527 = vld [vmem:[#allocation14 + $0xc8] sm:$0xff]
        %v4528 = vld [vmem:[#allocation14 + $0xd0] sm:$0xff]
        %v4529 = vld [vmem:[#allocation14 + $0xd8] sm:$0xff]
        %v4530 = vld [vmem:[#allocation14 + $0xe0] sm:$0xff]
        %v4531 = vld [vmem:[#allocation14 + $0xe8] sm:$0xff]
        %v4532 = vld [vmem:[#allocation14 + $0xf0] sm:$0xff]
        %v4533 = vld [vmem:[#allocation14 + $0xf8] sm:$0xff]
        %4534 = vmatpush.msra.mxu0 %v4517
        %4535 = vmatpush.msra.mxu0 %v4516
        %4536 = vmatpush.msra.mxu0 %v4515
        %4537 = vmatpush.msra.mxu0 %v4514
        %4538 = vmatpush.msra.mxu0 %v4513
        %4539 = vmatpush.msra.mxu0 %v4512
        %4540 = vmatpush.msra.mxu0 %v4511
        %4541 = vmatpush.msra.mxu0 %v4510
        %4542 = vmatpush.msra.mxu0 %v4509
        %4543 = vmatpush.msra.mxu0 %v4508
        %4544 = vmatpush.msra.mxu0 %v4507
        %4545 = vmatpush.msra.mxu0 %v4506
        %4546 = vmatpush.msra.mxu0 %v4505
        %4547 = vmatpush.msra.mxu0 %v4504
        %4548 = vmatpush.msra.mxu0 %v4503
        %4549 = vmatpush.msra.mxu0 %v4502
        %4550 = vmatmul.f32.gmra.mxu0 %v4474
        %v4551 = vpop.f32.mrf.mxu0
        %v4552 = vadd.f32 0.0, %v4551
        %4553 = vmatmul.f32.gmra.mxu0 %v4477
        %v4554 = vpop.f32.mrf.mxu0
        %v4555 = vadd.f32 0.0, %v4554
        %4556 = vdwg.mxu0
        %4557 = vmatpush.msra.mxu0 %v4533
        %4558 = vmatpush.msra.mxu0 %v4532
        %4559 = vmatpush.msra.mxu0 %v4531
        %4560 = vmatpush.msra.mxu0 %v4530
        %4561 = vmatpush.msra.mxu0 %v4529
        %4562 = vmatpush.msra.mxu0 %v4528
        %4563 = vmatpush.msra.mxu0 %v4527
        %4564 = vmatpush.msra.mxu0 %v4526
        %4565 = vmatpush.msra.mxu0 %v4525
        %4566 = vmatpush.msra.mxu0 %v4524
        %4567 = vmatpush.msra.mxu0 %v4523
        %4568 = vmatpush.msra.mxu0 %v4522
        %4569 = vmatpush.msra.mxu0 %v4521
        %4570 = vmatpush.msra.mxu0 %v4520
        %4571 = vmatpush.msra.mxu0 %v4519
        %4572 = vmatpush.msra.mxu0 %v4518
        %4573 = vmatmul.f32.gmra.mxu0 %v4497
        %v4574 = vpop.f32.mrf.mxu0
        %v4575 = vadd.f32 %v4552, %v4574
        %4576 = vmatmul.f32.gmra.mxu0 %v4500
        %v4577 = vpop.f32.mrf.mxu0
        %v4578 = vadd.f32 %v4555, %v4577
        %4579 = vdwg.mxu0
        %vm4580 = vcmp.gt.f32.partialorder %v4575, 0.0
        %vm4581 = vcmp.gt.f32.partialorder %v4578, 0.0
        %v4582 = vmul.f32 %v4575, 1.442695
        %v4583 = vpow.pop %v4582
        %v4584 = vmul.f32 %v4578, 1.442695
        %v4585 = vpow.pop %v4584
        %v4586 = vsub.f32 %v4583, 1.0
        %v4587 = vsub.f32 %v4585, 1.0
        %v4588 = vsel %vm4580, %v4575, %v4586
        %v4589 = vsel %vm4581, %v4578, %v4587
        %4592 = vrot.lane.b32.xlu0 %v4588, 6
        %v4593 = vpop.permute.xlu0 %4592
        %4594 = vrot.lane.b32.xlu0 %v4589, 6
        %v4595 = vpop.permute.xlu0 %4594
        %v4598 = vsel %vm2046, 0.0, %v4593
        %v4599 = vsel %vm2046, 0.0, %v4595
        %4602 = vrot.lane.b32.xlu0 %v4598, 127
        %v4603 = vpop.permute.xlu0 %4602
        %4604 = vrot.lane.b32.xlu0 %v4593, 127
        %v4605 = vpop.permute.xlu0 %4604
        %4606 = vrot.lane.b32.xlu0 %v4599, 127
        %v4607 = vpop.permute.xlu0 %4606
        %4608 = vrot.lane.b32.xlu0 %v4595, 127
        %v4609 = vpop.permute.xlu0 %4608
        %v4610 = vsel %vm2066, %v4603, %v4605
        %v4611 = vsel %vm2066, %v4607, %v4609
        %4614 = vrot.lane.b32.xlu0 %v4598, 126
        %v4615 = vpop.permute.xlu0 %4614
        %4616 = vrot.lane.b32.xlu0 %v4593, 126
        %v4617 = vpop.permute.xlu0 %4616
        %4618 = vrot.lane.b32.xlu0 %v4599, 126
        %v4619 = vpop.permute.xlu0 %4618
        %4620 = vrot.lane.b32.xlu0 %v4595, 126
        %v4621 = vpop.permute.xlu0 %4620
        %v4622 = vsel %vm2085, %v4615, %v4617
        %v4623 = vsel %vm2085, %v4619, %v4621
        %4626 = vrot.lane.b32.xlu0 %v4598, 125
        %v4627 = vpop.permute.xlu0 %4626
        %4628 = vrot.lane.b32.xlu0 %v4593, 125
        %v4629 = vpop.permute.xlu0 %4628
        %4630 = vrot.lane.b32.xlu0 %v4599, 125
        %v4631 = vpop.permute.xlu0 %4630
        %4632 = vrot.lane.b32.xlu0 %v4595, 125
        %v4633 = vpop.permute.xlu0 %4632
        %v4634 = vsel %vm2104, %v4627, %v4629
        %v4635 = vsel %vm2104, %v4631, %v4633
        %4638 = vrot.lane.b32.xlu0 %v4598, 124
        %v4639 = vpop.permute.xlu0 %4638
        %4640 = vrot.lane.b32.xlu0 %v4593, 124
        %v4641 = vpop.permute.xlu0 %4640
        %4642 = vrot.lane.b32.xlu0 %v4599, 124
        %v4643 = vpop.permute.xlu0 %4642
        %4644 = vrot.lane.b32.xlu0 %v4595, 124
        %v4645 = vpop.permute.xlu0 %4644
        %v4646 = vsel %vm2123, %v4639, %v4641
        %v4647 = vsel %vm2123, %v4643, %v4645
        %4650 = vrot.lane.b32.xlu0 %v4598, 123
        %v4651 = vpop.permute.xlu0 %4650
        %4652 = vrot.lane.b32.xlu0 %v4593, 123
        %v4653 = vpop.permute.xlu0 %4652
        %4654 = vrot.lane.b32.xlu0 %v4599, 123
        %v4655 = vpop.permute.xlu0 %4654
        %4656 = vrot.lane.b32.xlu0 %v4595, 123
        %v4657 = vpop.permute.xlu0 %4656
        %v4658 = vsel %vm2142, %v4651, %v4653
        %v4659 = vsel %vm2142, %v4655, %v4657
        %4662 = vrot.lane.b32.xlu0 %v4598, 122
        %v4663 = vpop.permute.xlu0 %4662
        %4664 = vrot.lane.b32.xlu0 %v4593, 122
        %v4665 = vpop.permute.xlu0 %4664
        %4666 = vrot.lane.b32.xlu0 %v4599, 122
        %v4667 = vpop.permute.xlu0 %4666
        %4668 = vrot.lane.b32.xlu0 %v4595, 122
        %v4669 = vpop.permute.xlu0 %4668
        %v4670 = vsel %vm2161, %v4663, %v4665
        %v4671 = vsel %vm2161, %v4667, %v4669
        %v4674 = vld [vmem:[%s67] sm:$0xff]
        %v4675 = vld [vmem:[%s67 + $0x8] sm:$0xff]
        %v4676 = vld [vmem:[%s69] sm:$0xff]
        %v4677 = vld [vmem:[%s69 + $0x8] sm:$0xff]
        %4679 = vset.pattern.permute.xlu0 0
        %4680 = vperm.xlu0 %4679, %v4676
        %v4681 = vpop.permute.xlu0 %4680
        %4684 = vset.pattern.permute.xlu0 0
        %4685 = vperm.xlu0 %4684, %v4677
        %v4686 = vpop.permute.xlu0 %4685
        %vm4688 = vcmask 916480
        %v4690 = vsel %vm4688, %v4674, 0
        %v4693 = vsel %vm4688, %v4675, 0
        %4695 = vmatpush.msra.mxu0 0.0
        %4696 = vmatpush.msra.mxu0 0.0
        %4697 = vmatpush.msra.mxu0 %v4671
        %4698 = vmatpush.msra.mxu0 %v4670
        %4699 = vmatpush.msra.mxu0 %v4659
        %4700 = vmatpush.msra.mxu0 %v4658
        %4701 = vmatpush.msra.mxu0 %v4647
        %4702 = vmatpush.msra.mxu0 %v4646
        %4703 = vmatpush.msra.mxu0 %v4635
        %4704 = vmatpush.msra.mxu0 %v4634
        %4705 = vmatpush.msra.mxu0 %v4623
        %4706 = vmatpush.msra.mxu0 %v4622
        %4707 = vmatpush.msra.mxu0 %v4611
        %4708 = vmatpush.msra.mxu0 %v4610
        %4709 = vmatpush.msra.mxu0 %v4599
        %4710 = vmatpush.msra.mxu0 %v4598
        %4711 = vmatmul.f32.gmra.mxu0 %v4690
        %v4712 = vpop.f32.mrf.mxu0
        %v4713 = vadd.f32 %v4681, %v4712
        %4714 = vmatmul.f32.gmra.mxu0 %v4693
        %v4715 = vpop.f32.mrf.mxu0
        %v4716 = vadd.f32 %v4686, %v4715
        %4717 = vdwg.mxu0
        %vm4718 = vcmp.gt.f32.partialorder %v4713, 0.0
        %vm4719 = vcmp.gt.f32.partialorder %v4716, 0.0
        %v4720 = vmul.f32 %v4713, 1.442695
        %v4721 = vpow.pop %v4720
        %v4722 = vmul.f32 %v4716, 1.442695
        %v4723 = vpow.pop %v4722
        %v4724 = vsub.f32 %v4721, 1.0
        %v4725 = vsub.f32 %v4723, 1.0
        %v4726 = vsel %vm4718, %v4713, %v4724
        %v4727 = vsel %vm4719, %v4716, %v4725
        %v4728 = vld [vmem:[%s71] sm:$0xff]
        %v4729 = vld [vmem:[%s71 + $0x8] sm:$0xff]
        %v4730 = vld [vmem:[%s73] sm:$0xff]
        %v4731 = vld [vmem:[%s73 + $0x8] sm:$0xff]
        %4733 = vset.pattern.permute.xlu0 0
        %4734 = vperm.xlu0 %4733, %v4730
        %v4735 = vpop.permute.xlu0 %4734
        %4738 = vset.pattern.permute.xlu0 0
        %4739 = vperm.xlu0 %4738, %v4731
        %v4740 = vpop.permute.xlu0 %4739
        %vm4742 = vcmask 130048
        %v4744 = vsel %vm4742, %v4728, 0
        %v4747 = vsel %vm4742, %v4729, 0
        %4749 = vmatpush.msra.mxu0 0.0
        %4750 = vmatpush.msra.mxu0 0.0
        %4751 = vmatpush.msra.mxu0 0.0
        %4752 = vmatpush.msra.mxu0 0.0
        %4753 = vmatpush.msra.mxu0 0.0
        %4754 = vmatpush.msra.mxu0 0.0
        %4755 = vmatpush.msra.mxu0 0.0
        %4756 = vmatpush.msra.mxu0 0.0
        %4757 = vmatpush.msra.mxu0 0.0
        %4758 = vmatpush.msra.mxu0 0.0
        %4759 = vmatpush.msra.mxu0 0.0
        %4760 = vmatpush.msra.mxu0 0.0
        %4761 = vmatpush.msra.mxu0 0.0
        %4762 = vmatpush.msra.mxu0 0.0
        %4763 = vmatpush.msra.mxu0 %v4727
        %4764 = vmatpush.msra.mxu0 %v4726
        %4765 = vmatmul.f32.gmra.mxu0 %v4744
        %v4766 = vpop.f32.mrf.mxu0
        %v4767 = vadd.f32 %v4735, %v4766
        %4768 = vmatmul.f32.gmra.mxu0 %v4747
        %v4769 = vpop.f32.mrf.mxu0
        %v4770 = vadd.f32 %v4740, %v4769
        %4771 = vdwg.mxu0
        %v4772 = vadd.f32 %v4588, %v4767
        %v4773 = vadd.f32 %v4589, %v4770
        %vm4774 = vcmp.gt.f32.partialorder %v4772, 0.0
        %vm4775 = vcmp.gt.f32.partialorder %v4773, 0.0
        %v4776 = vmul.f32 %v4772, 1.442695
        %v4777 = vpow.pop %v4776
        %v4778 = vmul.f32 %v4773, 1.442695
        %v4779 = vpow.pop %v4778
        %v4780 = vsub.f32 %v4777, 1.0
        %v4781 = vsub.f32 %v4779, 1.0
        %v4782 = vsel %vm4774, %v4772, %v4780
        %v4783 = vsel %vm4775, %v4773, %v4781
        %4786 = vrot.lane.b32.xlu0 %v4782, 18
        %v4787 = vpop.permute.xlu0 %4786
        %4788 = vrot.lane.b32.xlu0 %v4783, 18
        %v4789 = vpop.permute.xlu0 %4788
        %v4792 = vsel %vm2647, 0.0, %v4787
        %v4793 = vsel %vm2647, 0.0, %v4789
        %4796 = vrot.lane.b32.xlu0 %v4792, 125
        %v4797 = vpop.permute.xlu0 %4796
        %4798 = vrot.lane.b32.xlu0 %v4787, 125
        %v4799 = vpop.permute.xlu0 %4798
        %4800 = vrot.lane.b32.xlu0 %v4793, 125
        %v4801 = vpop.permute.xlu0 %4800
        %4802 = vrot.lane.b32.xlu0 %v4789, 125
        %v4803 = vpop.permute.xlu0 %4802
        %v4804 = vsel %vm2104, %v4797, %v4799
        %v4805 = vsel %vm2104, %v4801, %v4803
        %4808 = vrot.lane.b32.xlu0 %v4792, 122
        %v4809 = vpop.permute.xlu0 %4808
        %4810 = vrot.lane.b32.xlu0 %v4787, 122
        %v4811 = vpop.permute.xlu0 %4810
        %4812 = vrot.lane.b32.xlu0 %v4793, 122
        %v4813 = vpop.permute.xlu0 %4812
        %4814 = vrot.lane.b32.xlu0 %v4789, 122
        %v4815 = vpop.permute.xlu0 %4814
        %v4816 = vsel %vm2161, %v4809, %v4811
        %v4817 = vsel %vm2161, %v4813, %v4815
        %4820 = vrot.lane.b32.xlu0 %v4792, 119
        %v4821 = vpop.permute.xlu0 %4820
        %4822 = vrot.lane.b32.xlu0 %v4787, 119
        %v4823 = vpop.permute.xlu0 %4822
        %4824 = vrot.lane.b32.xlu0 %v4793, 119
        %v4825 = vpop.permute.xlu0 %4824
        %4826 = vrot.lane.b32.xlu0 %v4789, 119
        %v4827 = vpop.permute.xlu0 %4826
        %v4828 = vsel %vm2703, %v4821, %v4823
        %v4829 = vsel %vm2703, %v4825, %v4827
        %4832 = vrot.lane.b32.xlu0 %v4792, 116
        %v4833 = vpop.permute.xlu0 %4832
        %4834 = vrot.lane.b32.xlu0 %v4787, 116
        %v4835 = vpop.permute.xlu0 %4834
        %4836 = vrot.lane.b32.xlu0 %v4793, 116
        %v4837 = vpop.permute.xlu0 %4836
        %4838 = vrot.lane.b32.xlu0 %v4789, 116
        %v4839 = vpop.permute.xlu0 %4838
        %v4840 = vsel %vm2722, %v4833, %v4835
        %v4841 = vsel %vm2722, %v4837, %v4839
        %4844 = vrot.lane.b32.xlu0 %v4792, 113
        %v4845 = vpop.permute.xlu0 %4844
        %4846 = vrot.lane.b32.xlu0 %v4787, 113
        %v4847 = vpop.permute.xlu0 %4846
        %4848 = vrot.lane.b32.xlu0 %v4793, 113
        %v4849 = vpop.permute.xlu0 %4848
        %4850 = vrot.lane.b32.xlu0 %v4789, 113
        %v4851 = vpop.permute.xlu0 %4850
        %v4852 = vsel %vm2741, %v4845, %v4847
        %v4853 = vsel %vm2741, %v4849, %v4851
        %4856 = vrot.lane.b32.xlu0 %v4792, 110
        %v4857 = vpop.permute.xlu0 %4856
        %4858 = vrot.lane.b32.xlu0 %v4787, 110
        %v4859 = vpop.permute.xlu0 %4858
        %4860 = vrot.lane.b32.xlu0 %v4793, 110
        %v4861 = vpop.permute.xlu0 %4860
        %4862 = vrot.lane.b32.xlu0 %v4789, 110
        %v4863 = vpop.permute.xlu0 %4862
        %v4864 = vsel %vm2760, %v4857, %v4859
        %v4865 = vsel %vm2760, %v4861, %v4863
        %v4868 = vld [vmem:[%s75] sm:$0xff]
        %v4869 = vld [vmem:[%s75 + $0x8] sm:$0xff]
        %v4870 = vld [vmem:[%s77] sm:$0xff]
        %v4871 = vld [vmem:[%s77 + $0x8] sm:$0xff]
        %4873 = vset.pattern.permute.xlu0 0
        %4874 = vperm.xlu0 %4873, %v4870
        %v4875 = vpop.permute.xlu0 %4874
        %4878 = vset.pattern.permute.xlu0 0
        %4879 = vperm.xlu0 %4878, %v4871
        %v4880 = vpop.permute.xlu0 %4879
        %v4883 = vsel %vm4688, %v4868, 0
        %v4886 = vsel %vm4688, %v4869, 0
        %4888 = vmatpush.msra.mxu0 0.0
        %4889 = vmatpush.msra.mxu0 0.0
        %4890 = vmatpush.msra.mxu0 %v4865
        %4891 = vmatpush.msra.mxu0 %v4864
        %4892 = vmatpush.msra.mxu0 %v4853
        %4893 = vmatpush.msra.mxu0 %v4852
        %4894 = vmatpush.msra.mxu0 %v4841
        %4895 = vmatpush.msra.mxu0 %v4840
        %4896 = vmatpush.msra.mxu0 %v4829
        %4897 = vmatpush.msra.mxu0 %v4828
        %4898 = vmatpush.msra.mxu0 %v4817
        %4899 = vmatpush.msra.mxu0 %v4816
        %4900 = vmatpush.msra.mxu0 %v4805
        %4901 = vmatpush.msra.mxu0 %v4804
        %4902 = vmatpush.msra.mxu0 %v4793
        %4903 = vmatpush.msra.mxu0 %v4792
        %4904 = vmatmul.f32.gmra.mxu0 %v4883
        %v4905 = vpop.f32.mrf.mxu0
        %v4906 = vadd.f32 %v4875, %v4905
        %4907 = vmatmul.f32.gmra.mxu0 %v4886
        %v4908 = vpop.f32.mrf.mxu0
        %v4909 = vadd.f32 %v4880, %v4908
        %4910 = vdwg.mxu0
        %vm4911 = vcmp.gt.f32.partialorder %v4906, 0.0
        %vm4912 = vcmp.gt.f32.partialorder %v4909, 0.0
        %v4913 = vmul.f32 %v4906, 1.442695
        %v4914 = vpow.pop %v4913
        %v4915 = vmul.f32 %v4909, 1.442695
        %v4916 = vpow.pop %v4915
        %v4917 = vsub.f32 %v4914, 1.0
        %v4918 = vsub.f32 %v4916, 1.0
        %v4919 = vsel %vm4911, %v4906, %v4917
        %v4920 = vsel %vm4912, %v4909, %v4918
        %v4921 = vld [vmem:[%s79] sm:$0xff]
        %v4922 = vld [vmem:[%s79 + $0x8] sm:$0xff]
        %v4923 = vld [vmem:[%s81] sm:$0xff]
        %v4924 = vld [vmem:[%s81 + $0x8] sm:$0xff]
        %4926 = vset.pattern.permute.xlu0 0
        %4927 = vperm.xlu0 %4926, %v4923
        %v4928 = vpop.permute.xlu0 %4927
        %4931 = vset.pattern.permute.xlu0 0
        %4932 = vperm.xlu0 %4931, %v4924
        %v4933 = vpop.permute.xlu0 %4932
        %v4936 = vsel %vm4742, %v4921, 0
        %v4939 = vsel %vm4742, %v4922, 0
        %4941 = vmatpush.msra.mxu0 0.0
        %4942 = vmatpush.msra.mxu0 0.0
        %4943 = vmatpush.msra.mxu0 0.0
        %4944 = vmatpush.msra.mxu0 0.0
        %4945 = vmatpush.msra.mxu0 0.0
        %4946 = vmatpush.msra.mxu0 0.0
        %4947 = vmatpush.msra.mxu0 0.0
        %4948 = vmatpush.msra.mxu0 0.0
        %4949 = vmatpush.msra.mxu0 0.0
        %4950 = vmatpush.msra.mxu0 0.0
        %4951 = vmatpush.msra.mxu0 0.0
        %4952 = vmatpush.msra.mxu0 0.0
        %4953 = vmatpush.msra.mxu0 0.0
        %4954 = vmatpush.msra.mxu0 0.0
        %4955 = vmatpush.msra.mxu0 %v4920
        %4956 = vmatpush.msra.mxu0 %v4919
        %4957 = vmatmul.f32.gmra.mxu0 %v4936
        %v4958 = vpop.f32.mrf.mxu0
        %v4959 = vadd.f32 %v4928, %v4958
        %4960 = vmatmul.f32.gmra.mxu0 %v4939
        %v4961 = vpop.f32.mrf.mxu0
        %v4962 = vadd.f32 %v4933, %v4961
        %4963 = vdwg.mxu0
        %v4964 = vadd.f32 %v4782, %v4959
        %v4965 = vadd.f32 %v4783, %v4962
        %vm4966 = vcmp.gt.f32.partialorder %v4964, 0.0
        %vm4967 = vcmp.gt.f32.partialorder %v4965, 0.0
        %v4968 = vmul.f32 %v4964, 1.442695
        %v4969 = vpow.pop %v4968
        %v4970 = vmul.f32 %v4965, 1.442695
        %v4971 = vpow.pop %v4970
        %v4972 = vsub.f32 %v4969, 1.0
        %v4973 = vsub.f32 %v4971, 1.0
        %v4974 = vsel %vm4966, %v4964, %v4972
        %v4975 = vsel %vm4967, %v4965, %v4973
        %4978 = vrot.lane.b32.xlu0 %v4974, 54
        %v4979 = vpop.permute.xlu0 %4978
        %4980 = vrot.lane.b32.xlu0 %v4975, 54
        %v4981 = vpop.permute.xlu0 %4980
        %v4984 = vsel %vm3005, 0.0, %v4979
        %v4985 = vsel %vm3005, 0.0, %v4981
        %4988 = vrot.lane.b32.xlu0 %v4984, 119
        %v4989 = vpop.permute.xlu0 %4988
        %4990 = vrot.lane.b32.xlu0 %v4979, 119
        %v4991 = vpop.permute.xlu0 %4990
        %4992 = vrot.lane.b32.xlu0 %v4985, 119
        %v4993 = vpop.permute.xlu0 %4992
        %4994 = vrot.lane.b32.xlu0 %v4981, 119
        %v4995 = vpop.permute.xlu0 %4994
        %v4996 = vsel %vm2703, %v4989, %v4991
        %v4997 = vsel %vm2703, %v4993, %v4995
        %5000 = vrot.lane.b32.xlu0 %v4984, 110
        %v5001 = vpop.permute.xlu0 %5000
        %5002 = vrot.lane.b32.xlu0 %v4979, 110
        %v5003 = vpop.permute.xlu0 %5002
        %5004 = vrot.lane.b32.xlu0 %v4985, 110
        %v5005 = vpop.permute.xlu0 %5004
        %5006 = vrot.lane.b32.xlu0 %v4981, 110
        %v5007 = vpop.permute.xlu0 %5006
        %v5008 = vsel %vm2760, %v5001, %v5003
        %v5009 = vsel %vm2760, %v5005, %v5007
        %5012 = vrot.lane.b32.xlu0 %v4984, 101
        %v5013 = vpop.permute.xlu0 %5012
        %5014 = vrot.lane.b32.xlu0 %v4979, 101
        %v5015 = vpop.permute.xlu0 %5014
        %5016 = vrot.lane.b32.xlu0 %v4985, 101
        %v5017 = vpop.permute.xlu0 %5016
        %5018 = vrot.lane.b32.xlu0 %v4981, 101
        %v5019 = vpop.permute.xlu0 %5018
        %v5020 = vsel %vm3061, %v5013, %v5015
        %v5021 = vsel %vm3061, %v5017, %v5019
        %5024 = vrot.lane.b32.xlu0 %v4984, 92
        %v5025 = vpop.permute.xlu0 %5024
        %5026 = vrot.lane.b32.xlu0 %v4979, 92
        %v5027 = vpop.permute.xlu0 %5026
        %5028 = vrot.lane.b32.xlu0 %v4985, 92
        %v5029 = vpop.permute.xlu0 %5028
        %5030 = vrot.lane.b32.xlu0 %v4981, 92
        %v5031 = vpop.permute.xlu0 %5030
        %v5032 = vsel %vm3080, %v5025, %v5027
        %v5033 = vsel %vm3080, %v5029, %v5031
        %5036 = vrot.lane.b32.xlu0 %v4984, 83
        %v5037 = vpop.permute.xlu0 %5036
        %5038 = vrot.lane.b32.xlu0 %v4979, 83
        %v5039 = vpop.permute.xlu0 %5038
        %5040 = vrot.lane.b32.xlu0 %v4985, 83
        %v5041 = vpop.permute.xlu0 %5040
        %5042 = vrot.lane.b32.xlu0 %v4981, 83
        %v5043 = vpop.permute.xlu0 %5042
        %v5044 = vsel %vm3099, %v5037, %v5039
        %v5045 = vsel %vm3099, %v5041, %v5043
        %5048 = vrot.lane.b32.xlu0 %v4984, 74
        %v5049 = vpop.permute.xlu0 %5048
        %5050 = vrot.lane.b32.xlu0 %v4979, 74
        %v5051 = vpop.permute.xlu0 %5050
        %5052 = vrot.lane.b32.xlu0 %v4985, 74
        %v5053 = vpop.permute.xlu0 %5052
        %5054 = vrot.lane.b32.xlu0 %v4981, 74
        %v5055 = vpop.permute.xlu0 %5054
        %v5056 = vsel %vm3118, %v5049, %v5051
        %v5057 = vsel %vm3118, %v5053, %v5055
        %v5060 = vld [vmem:[%s83] sm:$0xff]
        %v5061 = vld [vmem:[%s83 + $0x8] sm:$0xff]
        %v5062 = vld [vmem:[%s85] sm:$0xff]
        %v5063 = vld [vmem:[%s85 + $0x8] sm:$0xff]
        %5065 = vset.pattern.permute.xlu0 0
        %5066 = vperm.xlu0 %5065, %v5062
        %v5067 = vpop.permute.xlu0 %5066
        %5070 = vset.pattern.permute.xlu0 0
        %5071 = vperm.xlu0 %5070, %v5063
        %v5072 = vpop.permute.xlu0 %5071
        %v5075 = vsel %vm4688, %v5060, 0
        %v5078 = vsel %vm4688, %v5061, 0
        %5080 = vmatpush.msra.mxu0 0.0
        %5081 = vmatpush.msra.mxu0 0.0
        %5082 = vmatpush.msra.mxu0 %v5057
        %5083 = vmatpush.msra.mxu0 %v5056
        %5084 = vmatpush.msra.mxu0 %v5045
        %5085 = vmatpush.msra.mxu0 %v5044
        %5086 = vmatpush.msra.mxu0 %v5033
        %5087 = vmatpush.msra.mxu0 %v5032
        %5088 = vmatpush.msra.mxu0 %v5021
        %5089 = vmatpush.msra.mxu0 %v5020
        %5090 = vmatpush.msra.mxu0 %v5009
        %5091 = vmatpush.msra.mxu0 %v5008
        %5092 = vmatpush.msra.mxu0 %v4997
        %5093 = vmatpush.msra.mxu0 %v4996
        %5094 = vmatpush.msra.mxu0 %v4985
        %5095 = vmatpush.msra.mxu0 %v4984
        %5096 = vmatmul.f32.gmra.mxu0 %v5075
        %v5097 = vpop.f32.mrf.mxu0
        %v5098 = vadd.f32 %v5067, %v5097
        %5099 = vmatmul.f32.gmra.mxu0 %v5078
        %v5100 = vpop.f32.mrf.mxu0
        %v5101 = vadd.f32 %v5072, %v5100
        %5102 = vdwg.mxu0
        %vm5103 = vcmp.gt.f32.partialorder %v5098, 0.0
        %vm5104 = vcmp.gt.f32.partialorder %v5101, 0.0
        %v5105 = vmul.f32 %v5098, 1.442695
        %v5106 = vpow.pop %v5105
        %v5107 = vmul.f32 %v5101, 1.442695
        %v5108 = vpow.pop %v5107
        %v5109 = vsub.f32 %v5106, 1.0
        %v5110 = vsub.f32 %v5108, 1.0
        %v5111 = vsel %vm5103, %v5098, %v5109
        %v5112 = vsel %vm5104, %v5101, %v5110
        %v5113 = vld [vmem:[%s87] sm:$0xff]
        %v5114 = vld [vmem:[%s87 + $0x8] sm:$0xff]
        %v5115 = vld [vmem:[%s89] sm:$0xff]
        %v5116 = vld [vmem:[%s89 + $0x8] sm:$0xff]
        %5118 = vset.pattern.permute.xlu0 0
        %5119 = vperm.xlu0 %5118, %v5115
        %v5120 = vpop.permute.xlu0 %5119
        %5123 = vset.pattern.permute.xlu0 0
        %5124 = vperm.xlu0 %5123, %v5116
        %v5125 = vpop.permute.xlu0 %5124
        %v5128 = vsel %vm4742, %v5113, 0
        %v5131 = vsel %vm4742, %v5114, 0
        %5133 = vmatpush.msra.mxu0 0.0
        %5134 = vmatpush.msra.mxu0 0.0
        %5135 = vmatpush.msra.mxu0 0.0
        %5136 = vmatpush.msra.mxu0 0.0
        %5137 = vmatpush.msra.mxu0 0.0
        %5138 = vmatpush.msra.mxu0 0.0
        %5139 = vmatpush.msra.mxu0 0.0
        %5140 = vmatpush.msra.mxu0 0.0
        %5141 = vmatpush.msra.mxu0 0.0
        %5142 = vmatpush.msra.mxu0 0.0
        %5143 = vmatpush.msra.mxu0 0.0
        %5144 = vmatpush.msra.mxu0 0.0
        %5145 = vmatpush.msra.mxu0 0.0
        %5146 = vmatpush.msra.mxu0 0.0
        %5147 = vmatpush.msra.mxu0 %v5112
        %5148 = vmatpush.msra.mxu0 %v5111
        %5149 = vmatmul.f32.gmra.mxu0 %v5128
        %v5150 = vpop.f32.mrf.mxu0
        %v5151 = vadd.f32 %v5120, %v5150
        %5152 = vmatmul.f32.gmra.mxu0 %v5131
        %v5153 = vpop.f32.mrf.mxu0
        %v5154 = vadd.f32 %v5125, %v5153
        %5155 = vdwg.mxu0
        %v5156 = vadd.f32 %v4974, %v5151
        %v5157 = vadd.f32 %v4975, %v5154
        %vm5158 = vcmp.gt.f32.partialorder %v5156, 0.0
        %vm5159 = vcmp.gt.f32.partialorder %v5157, 0.0
        %v5160 = vmul.f32 %v5156, 1.442695
        %v5161 = vpow.pop %v5160
        %v5162 = vmul.f32 %v5157, 1.442695
        %v5163 = vpow.pop %v5162
        %v5164 = vsub.f32 %v5161, 1.0
        %v5165 = vsub.f32 %v5163, 1.0
        %v5166 = vsel %vm5158, %v5156, %v5164
        %v5167 = vsel %vm5159, %v5157, %v5165
        %5170 = vrot.lane.b32.xlu0 %v5166, 3
        %v5171 = vpop.permute.xlu0 %5170
        %5172 = vrot.lane.b32.xlu0 %v5167, 3
        %v5173 = vpop.permute.xlu0 %5172
        %v5176 = vsel %vm3363, 0.0, %v5171
        %v5177 = vsel %vm3363, 0.0, %v5173
        %5180 = vrot.lane.b32.xlu0 %v5176, 127
        %v5181 = vpop.permute.xlu0 %5180
        %5182 = vrot.lane.b32.xlu0 %v5171, 127
        %v5183 = vpop.permute.xlu0 %5182
        %5184 = vrot.lane.b32.xlu0 %v5177, 127
        %v5185 = vpop.permute.xlu0 %5184
        %5186 = vrot.lane.b32.xlu0 %v5173, 127
        %v5187 = vpop.permute.xlu0 %5186
        %v5188 = vsel %vm2066, %v5181, %v5183
        %v5189 = vsel %vm2066, %v5185, %v5187
        %5192 = vrot.lane.b32.xlu0 %v5176, 126
        %v5193 = vpop.permute.xlu0 %5192
        %5194 = vrot.lane.b32.xlu0 %v5171, 126
        %v5195 = vpop.permute.xlu0 %5194
        %5196 = vrot.lane.b32.xlu0 %v5177, 126
        %v5197 = vpop.permute.xlu0 %5196
        %5198 = vrot.lane.b32.xlu0 %v5173, 126
        %v5199 = vpop.permute.xlu0 %5198
        %v5200 = vsel %vm2085, %v5193, %v5195
        %v5201 = vsel %vm2085, %v5197, %v5199
        %5204 = vrot.lane.b32.xlu0 %v5176, 125
        %v5205 = vpop.permute.xlu0 %5204
        %5206 = vrot.lane.b32.xlu0 %v5171, 125
        %v5207 = vpop.permute.xlu0 %5206
        %5208 = vrot.lane.b32.xlu0 %v5177, 125
        %v5209 = vpop.permute.xlu0 %5208
        %5210 = vrot.lane.b32.xlu0 %v5173, 125
        %v5211 = vpop.permute.xlu0 %5210
        %v5212 = vsel %vm2104, %v5205, %v5207
        %v5213 = vsel %vm2104, %v5209, %v5211
        %v5216 = vld [vmem:[%s91] sm:$0xff]
        %v5217 = vld [vmem:[%s91 + $0x8] sm:$0xff]
        %v5218 = vld [vmem:[%s91 + $0x10] sm:$0xff]
        %v5219 = vld [vmem:[%s91 + $0x18] sm:$0xff]
        %v5220 = vld [vmem:[%s93] sm:$0xff]
        %v5221 = vld [vmem:[%s93 + $0x8] sm:$0xff]
        %v5222 = vld [vmem:[%s93 + $0x10] sm:$0xff]
        %v5223 = vld [vmem:[%s93 + $0x18] sm:$0xff]
        %5225 = vset.pattern.permute.xlu0 0
        %5226 = vperm.xlu0 %5225, %v5220
        %v5227 = vpop.permute.xlu0 %5226
        %5230 = vset.pattern.permute.xlu0 0
        %5231 = vperm.xlu0 %5230, %v5221
        %v5232 = vpop.permute.xlu0 %5231
        %5235 = vset.pattern.permute.xlu0 0
        %5236 = vperm.xlu0 %5235, %v5222
        %v5237 = vpop.permute.xlu0 %5236
        %5240 = vset.pattern.permute.xlu0 0
        %5241 = vperm.xlu0 %5240, %v5223
        %v5242 = vpop.permute.xlu0 %5241
        %vm5244 = vcmask 523264
        %v5246 = vsel %vm5244, %v5216, 0
        %v5249 = vsel %vm5244, %v5217, 0
        %v5252 = vsel %vm5244, %v5218, 0
        %v5255 = vsel %vm5244, %v5219, 0
        %5257 = vmatpush.msra.mxu0 0.0
        %5258 = vmatpush.msra.mxu0 0.0
        %5259 = vmatpush.msra.mxu0 0.0
        %5260 = vmatpush.msra.mxu0 0.0
        %5261 = vmatpush.msra.mxu0 0.0
        %5262 = vmatpush.msra.mxu0 0.0
        %5263 = vmatpush.msra.mxu0 0.0
        %5264 = vmatpush.msra.mxu0 0.0
        %5265 = vmatpush.msra.mxu0 %v5213
        %5266 = vmatpush.msra.mxu0 %v5212
        %5267 = vmatpush.msra.mxu0 %v5201
        %5268 = vmatpush.msra.mxu0 %v5200
        %5269 = vmatpush.msra.mxu0 %v5189
        %5270 = vmatpush.msra.mxu0 %v5188
        %5271 = vmatpush.msra.mxu0 %v5177
        %5272 = vmatpush.msra.mxu0 %v5176
        %5273 = vmatmul.f32.gmra.mxu0 %v5246
        %v5274 = vpop.f32.mrf.mxu0
        %v5275 = vadd.f32 %v5227, %v5274
        %5276 = vmatmul.f32.gmra.mxu0 %v5249
        %v5277 = vpop.f32.mrf.mxu0
        %v5278 = vadd.f32 %v5232, %v5277
        %5279 = vmatmul.f32.gmra.mxu0 %v5252
        %v5280 = vpop.f32.mrf.mxu0
        %v5281 = vadd.f32 %v5237, %v5280
        %5282 = vmatmul.f32.gmra.mxu0 %v5255
        %v5283 = vpop.f32.mrf.mxu0
        %v5284 = vadd.f32 %v5242, %v5283
        %5285 = vdwg.mxu0
        %v5286 = vld [vmem:[%s95] sm:$0xff]
        %v5287 = vld [vmem:[%s95 + $0x8] sm:$0xff]
        %v5288 = vld [vmem:[%s95 + $0x10] sm:$0xff]
        %v5289 = vld [vmem:[%s95 + $0x18] sm:$0xff]
        %v5290 = vld [vmem:[%s95 + $0x20] sm:$0xff]
        %v5291 = vld [vmem:[%s95 + $0x28] sm:$0xff]
        %v5292 = vld [vmem:[%s95 + $0x30] sm:$0xff]
        %v5293 = vld [vmem:[%s95 + $0x38] sm:$0xff]
        %v5294 = vld [vmem:[%s95 + $0x40] sm:$0xff]
        %v5295 = vld [vmem:[%s95 + $0x48] sm:$0xff]
        %v5296 = vld [vmem:[%s95 + $0x50] sm:$0xff]
        %v5297 = vld [vmem:[%s95 + $0x58] sm:$0xff]
        %v5298 = vld [vmem:[%s95 + $0x60] sm:$0xff]
        %v5299 = vld [vmem:[%s95 + $0x68] sm:$0xff]
        %v5300 = vld [vmem:[%s95 + $0x70] sm:$0xff]
        %v5301 = vld [vmem:[%s95 + $0x78] sm:$0xff]
        %5302 = vmatpush.msra.mxu0 %v5301
        %5303 = vmatpush.msra.mxu0 %v5300
        %5304 = vmatpush.msra.mxu0 %v5299
        %5305 = vmatpush.msra.mxu0 %v5298
        %5306 = vmatpush.msra.mxu0 %v5297
        %5307 = vmatpush.msra.mxu0 %v5296
        %5308 = vmatpush.msra.mxu0 %v5295
        %5309 = vmatpush.msra.mxu0 %v5294
        %5310 = vmatpush.msra.mxu0 %v5293
        %5311 = vmatpush.msra.mxu0 %v5292
        %5312 = vmatpush.msra.mxu0 %v5291
        %5313 = vmatpush.msra.mxu0 %v5290
        %5314 = vmatpush.msra.mxu0 %v5289
        %5315 = vmatpush.msra.mxu0 %v5288
        %5316 = vmatpush.msra.mxu0 %v5287
        %5317 = vmatpush.msra.mxu0 %v5286
        %5318 = vmatmul.f32.gmra.mxu0 %v5275
        %v5319 = vpop.f32.mrf.mxu0
        %v5320 = vadd.f32 0.0, %v5319
        %5321 = vmatmul.f32.gmra.mxu0 %v5278
        %v5322 = vpop.f32.mrf.mxu0
        %v5323 = vadd.f32 0.0, %v5322
        %5324 = vmatmul.f32.gmra.mxu0 %v5281
        %v5325 = vpop.f32.mrf.mxu0
        %v5326 = vadd.f32 0.0, %v5325
        %5327 = vmatmul.f32.gmra.mxu0 %v5284
        %v5328 = vpop.f32.mrf.mxu0
        %v5329 = vadd.f32 0.0, %v5328
        %5330 = vdwg.mxu0
        %vm5331 = vcmp.gt.f32.partialorder %v5320, 0.0
        %vm5332 = vcmp.gt.f32.partialorder %v5323, 0.0
        %vm5333 = vcmp.gt.f32.partialorder %v5326, 0.0
        %vm5334 = vcmp.gt.f32.partialorder %v5329, 0.0
        %v5335 = vmul.f32 %v5320, 1.442695
        %v5336 = vpow.pop %v5335
        %v5337 = vmul.f32 %v5323, 1.442695
        %v5338 = vpow.pop %v5337
        %v5339 = vmul.f32 %v5326, 1.442695
        %v5340 = vpow.pop %v5339
        %v5341 = vmul.f32 %v5329, 1.442695
        %v5342 = vpow.pop %v5341
        %v5343 = vsub.f32 %v5336, 1.0
        %v5344 = vsub.f32 %v5338, 1.0
        %v5345 = vsub.f32 %v5340, 1.0
        %v5346 = vsub.f32 %v5342, 1.0
        %v5347 = vsel %vm5331, %v5320, %v5343
        %v5348 = vsel %vm5332, %v5323, %v5344
        %v5349 = vsel %vm5333, %v5326, %v5345
        %v5350 = vsel %vm5334, %v5329, %v5346
        %5355 = vrot.lane.b32.xlu0 %v5347, 6
        %v5356 = vpop.permute.xlu0 %5355
        %5357 = vrot.lane.b32.xlu0 %v5348, 6
        %v5358 = vpop.permute.xlu0 %5357
        %5359 = vrot.lane.b32.xlu0 %v5349, 6
        %v5360 = vpop.permute.xlu0 %5359
        %5361 = vrot.lane.b32.xlu0 %v5350, 6
        %v5362 = vpop.permute.xlu0 %5361
        %v5367 = vsel %vm2046, 0.0, %v5356
        %v5368 = vsel %vm2046, 0.0, %v5358
        %v5369 = vsel %vm2046, 0.0, %v5360
        %v5370 = vsel %vm2046, 0.0, %v5362
        %5375 = vrot.lane.b32.xlu0 %v5367, 127
        %v5376 = vpop.permute.xlu0 %5375
        %5377 = vrot.lane.b32.xlu0 %v5368, 127
        %v5378 = vpop.permute.xlu0 %5377
        %5379 = vrot.lane.b32.xlu0 %v5369, 127
        %v5380 = vpop.permute.xlu0 %5379
        %5381 = vrot.lane.b32.xlu0 %v5370, 127
        %v5382 = vpop.permute.xlu0 %5381
        %5387 = vrot.lane.b32.xlu0 %v5367, 126
        %v5388 = vpop.permute.xlu0 %5387
        %5389 = vrot.lane.b32.xlu0 %v5368, 126
        %v5390 = vpop.permute.xlu0 %5389
        %5391 = vrot.lane.b32.xlu0 %v5369, 126
        %v5392 = vpop.permute.xlu0 %5391
        %5393 = vrot.lane.b32.xlu0 %v5370, 126
        %v5394 = vpop.permute.xlu0 %5393
        %5399 = vrot.lane.b32.xlu0 %v5367, 125
        %v5400 = vpop.permute.xlu0 %5399
        %5401 = vrot.lane.b32.xlu0 %v5368, 125
        %v5402 = vpop.permute.xlu0 %5401
        %5403 = vrot.lane.b32.xlu0 %v5369, 125
        %v5404 = vpop.permute.xlu0 %5403
        %5405 = vrot.lane.b32.xlu0 %v5370, 125
        %v5406 = vpop.permute.xlu0 %5405
        %5411 = vrot.lane.b32.xlu0 %v5367, 124
        %v5412 = vpop.permute.xlu0 %5411
        %5413 = vrot.lane.b32.xlu0 %v5368, 124
        %v5414 = vpop.permute.xlu0 %5413
        %5415 = vrot.lane.b32.xlu0 %v5369, 124
        %v5416 = vpop.permute.xlu0 %5415
        %5417 = vrot.lane.b32.xlu0 %v5370, 124
        %v5418 = vpop.permute.xlu0 %5417
        %5423 = vrot.lane.b32.xlu0 %v5367, 123
        %v5424 = vpop.permute.xlu0 %5423
        %5425 = vrot.lane.b32.xlu0 %v5368, 123
        %v5426 = vpop.permute.xlu0 %5425
        %5427 = vrot.lane.b32.xlu0 %v5369, 123
        %v5428 = vpop.permute.xlu0 %5427
        %5429 = vrot.lane.b32.xlu0 %v5370, 123
        %v5430 = vpop.permute.xlu0 %5429
        %5435 = vrot.lane.b32.xlu0 %v5367, 122
        %v5436 = vpop.permute.xlu0 %5435
        %5437 = vrot.lane.b32.xlu0 %v5368, 122
        %v5438 = vpop.permute.xlu0 %5437
        %5439 = vrot.lane.b32.xlu0 %v5369, 122
        %v5440 = vpop.permute.xlu0 %5439
        %5441 = vrot.lane.b32.xlu0 %v5370, 122
        %v5442 = vpop.permute.xlu0 %5441
        %v5447 = vld [vmem:[%s97] sm:$0xff]
        %v5448 = vld [vmem:[%s97 + $0x8] sm:$0xff]
        %v5449 = vld [vmem:[%s97 + $0x10] sm:$0xff]
        %v5450 = vld [vmem:[%s97 + $0x18] sm:$0xff]
        %v5451 = vld [vmem:[%s97 + $0x20] sm:$0xff]
        %v5452 = vld [vmem:[%s97 + $0x28] sm:$0xff]
        %v5453 = vld [vmem:[%s97 + $0x30] sm:$0xff]
        %v5454 = vld [vmem:[%s97 + $0x38] sm:$0xff]
        %v5455 = vld [vmem:[%s99] sm:$0xff]
        %v5456 = vld [vmem:[%s99 + $0x8] sm:$0xff]
        %v5457 = vld [vmem:[%s99 + $0x10] sm:$0xff]
        %v5458 = vld [vmem:[%s99 + $0x18] sm:$0xff]
        %5460 = vset.pattern.permute.xlu0 0
        %5461 = vperm.xlu0 %5460, %v5455
        %v5462 = vpop.permute.xlu0 %5461
        %5465 = vset.pattern.permute.xlu0 0
        %5466 = vperm.xlu0 %5465, %v5456
        %v5467 = vpop.permute.xlu0 %5466
        %5470 = vset.pattern.permute.xlu0 0
        %5471 = vperm.xlu0 %5470, %v5457
        %v5472 = vpop.permute.xlu0 %5471
        %5475 = vset.pattern.permute.xlu0 0
        %5476 = vperm.xlu0 %5475, %v5458
        %v5477 = vpop.permute.xlu0 %5476
        %vm5479 = vcmask 785408
        %v5481 = vsel %vm5479, %v5448, 0
        %v5484 = vsel %vm5479, %v5450, 0
        %v5487 = vsel %vm5479, %v5452, 0
        %v5490 = vsel %vm5479, %v5454, 0
        %5492 = vmatpush.msra.mxu0 %v5406
        %5493 = vmatpush.msra.mxu0 %v5404
        %5494 = vmatpush.msra.mxu0 %v5402
        %5495 = vmatpush.msra.mxu0 %v5400
        %5496 = vmatpush.msra.mxu0 %v5394
        %5497 = vmatpush.msra.mxu0 %v5392
        %5498 = vmatpush.msra.mxu0 %v5390
        %5499 = vmatpush.msra.mxu0 %v5388
        %5500 = vmatpush.msra.mxu0 %v5382
        %5501 = vmatpush.msra.mxu0 %v5380
        %5502 = vmatpush.msra.mxu0 %v5378
        %5503 = vmatpush.msra.mxu0 %v5376
        %5504 = vmatpush.msra.mxu0 %v5370
        %5505 = vmatpush.msra.mxu0 %v5369
        %5506 = vmatpush.msra.mxu0 %v5368
        %5507 = vmatpush.msra.mxu0 %v5367
        %5508 = vmatmul.f32.gmra.mxu0 %v5447
        %v5509 = vpop.f32.mrf.mxu0
        %v5510 = vadd.f32 %v5462, %v5509
        %5511 = vmatmul.f32.gmra.mxu0 %v5449
        %v5512 = vpop.f32.mrf.mxu0
        %v5513 = vadd.f32 %v5467, %v5512
        %5514 = vmatmul.f32.gmra.mxu0 %v5451
        %v5515 = vpop.f32.mrf.mxu0
        %v5516 = vadd.f32 %v5472, %v5515
        %5517 = vmatmul.f32.gmra.mxu0 %v5453
        %v5518 = vpop.f32.mrf.mxu0
        %v5519 = vadd.f32 %v5477, %v5518
        %5520 = vdwg.mxu0
        %5521 = vmatpush.msra.mxu0 0.0
        %5522 = vmatpush.msra.mxu0 0.0
        %5523 = vmatpush.msra.mxu0 0.0
        %5524 = vmatpush.msra.mxu0 0.0
        %5525 = vmatpush.msra.mxu0 %v5442
        %5526 = vmatpush.msra.mxu0 %v5440
        %5527 = vmatpush.msra.mxu0 %v5438
        %5528 = vmatpush.msra.mxu0 %v5436
        %5529 = vmatpush.msra.mxu0 %v5430
        %5530 = vmatpush.msra.mxu0 %v5428
        %5531 = vmatpush.msra.mxu0 %v5426
        %5532 = vmatpush.msra.mxu0 %v5424
        %5533 = vmatpush.msra.mxu0 %v5418
        %5534 = vmatpush.msra.mxu0 %v5416
        %5535 = vmatpush.msra.mxu0 %v5414
        %5536 = vmatpush.msra.mxu0 %v5412
        %5537 = vmatmul.f32.gmra.mxu0 %v5481
        %v5538 = vpop.f32.mrf.mxu0
        %v5539 = vadd.f32 %v5510, %v5538
        %5540 = vmatmul.f32.gmra.mxu0 %v5484
        %v5541 = vpop.f32.mrf.mxu0
        %v5542 = vadd.f32 %v5513, %v5541
        %5543 = vmatmul.f32.gmra.mxu0 %v5487
        %v5544 = vpop.f32.mrf.mxu0
        %v5545 = vadd.f32 %v5516, %v5544
        %5546 = vmatmul.f32.gmra.mxu0 %v5490
        %v5547 = vpop.f32.mrf.mxu0
        %v5548 = vadd.f32 %v5519, %v5547
        %5549 = vdwg.mxu0
        %vm5550 = vcmp.gt.f32.partialorder %v5539, 0.0
        %vm5551 = vcmp.gt.f32.partialorder %v5542, 0.0
        %vm5552 = vcmp.gt.f32.partialorder %v5545, 0.0
        %vm5553 = vcmp.gt.f32.partialorder %v5548, 0.0
        %v5554 = vmul.f32 %v5539, 1.442695
        %v5555 = vpow.pop %v5554
        %v5556 = vmul.f32 %v5542, 1.442695
        %v5557 = vpow.pop %v5556
        %v5558 = vmul.f32 %v5545, 1.442695
        %v5559 = vpow.pop %v5558
        %v5560 = vmul.f32 %v5548, 1.442695
        %v5561 = vpow.pop %v5560
        %v5562 = vsub.f32 %v5555, 1.0
        %v5563 = vsub.f32 %v5557, 1.0
        %v5564 = vsub.f32 %v5559, 1.0
        %v5565 = vsub.f32 %v5561, 1.0
        %v5566 = vsel %vm5550, %v5539, %v5562
        %v5567 = vsel %vm5551, %v5542, %v5563
        %v5568 = vsel %vm5552, %v5545, %v5564
        %v5569 = vsel %vm5553, %v5548, %v5565
        %v5570 = vld [vmem:[%s101] sm:$0xff]
        %v5571 = vld [vmem:[%s101 + $0x8] sm:$0xff]
        %v5572 = vld [vmem:[%s101 + $0x10] sm:$0xff]
        %v5573 = vld [vmem:[%s101 + $0x18] sm:$0xff]
        %v5574 = vld [vmem:[%s103] sm:$0xff]
        %v5575 = vld [vmem:[%s103 + $0x8] sm:$0xff]
        %v5576 = vld [vmem:[%s103 + $0x10] sm:$0xff]
        %v5577 = vld [vmem:[%s103 + $0x18] sm:$0xff]
        %5579 = vset.pattern.permute.xlu0 0
        %5580 = vperm.xlu0 %5579, %v5574
        %v5581 = vpop.permute.xlu0 %5580
        %5584 = vset.pattern.permute.xlu0 0
        %5585 = vperm.xlu0 %5584, %v5575
        %v5586 = vpop.permute.xlu0 %5585
        %5589 = vset.pattern.permute.xlu0 0
        %5590 = vperm.xlu0 %5589, %v5576
        %v5591 = vpop.permute.xlu0 %5590
        %5594 = vset.pattern.permute.xlu0 0
        %5595 = vperm.xlu0 %5594, %v5577
        %v5596 = vpop.permute.xlu0 %5595
        %v5599 = vsel %vm3434, %v5570, 0
        %v5602 = vsel %vm3434, %v5571, 0
        %v5605 = vsel %vm3434, %v5572, 0
        %v5608 = vsel %vm3434, %v5573, 0
        %5610 = vmatpush.msra.mxu0 0.0
        %5611 = vmatpush.msra.mxu0 0.0
        %5612 = vmatpush.msra.mxu0 0.0
        %5613 = vmatpush.msra.mxu0 0.0
        %5614 = vmatpush.msra.mxu0 0.0
        %5615 = vmatpush.msra.mxu0 0.0
        %5616 = vmatpush.msra.mxu0 0.0
        %5617 = vmatpush.msra.mxu0 0.0
        %5618 = vmatpush.msra.mxu0 0.0
        %5619 = vmatpush.msra.mxu0 0.0
        %5620 = vmatpush.msra.mxu0 0.0
        %5621 = vmatpush.msra.mxu0 0.0
        %5622 = vmatpush.msra.mxu0 %v5569
        %5623 = vmatpush.msra.mxu0 %v5568
        %5624 = vmatpush.msra.mxu0 %v5567
        %5625 = vmatpush.msra.mxu0 %v5566
        %5626 = vmatmul.f32.gmra.mxu0 %v5599
        %v5627 = vpop.f32.mrf.mxu0
        %v5628 = vadd.f32 %v5581, %v5627
        %5629 = vmatmul.f32.gmra.mxu0 %v5602
        %v5630 = vpop.f32.mrf.mxu0
        %v5631 = vadd.f32 %v5586, %v5630
        %5632 = vmatmul.f32.gmra.mxu0 %v5605
        %v5633 = vpop.f32.mrf.mxu0
        %v5634 = vadd.f32 %v5591, %v5633
        %5635 = vmatmul.f32.gmra.mxu0 %v5608
        %v5636 = vpop.f32.mrf.mxu0
        %v5637 = vadd.f32 %v5596, %v5636
        %5638 = vdwg.mxu0
        %v5639 = vadd.f32 %v5347, %v5628
        %v5640 = vadd.f32 %v5348, %v5631
        %v5641 = vadd.f32 %v5349, %v5634
        %v5642 = vadd.f32 %v5350, %v5637
        %vm5643 = vcmp.gt.f32.partialorder %v5639, 0.0
        %vm5644 = vcmp.gt.f32.partialorder %v5640, 0.0
        %vm5645 = vcmp.gt.f32.partialorder %v5641, 0.0
        %vm5646 = vcmp.gt.f32.partialorder %v5642, 0.0
        %v5647 = vmul.f32 %v5639, 1.442695
        %v5648 = vpow.pop %v5647
        %v5649 = vmul.f32 %v5640, 1.442695
        %v5650 = vpow.pop %v5649
        %v5651 = vmul.f32 %v5641, 1.442695
        %v5652 = vpow.pop %v5651
        %v5653 = vmul.f32 %v5642, 1.442695
        %v5654 = vpow.pop %v5653
        %v5655 = vsub.f32 %v5648, 1.0
        %v5656 = vsub.f32 %v5650, 1.0
        %v5657 = vsub.f32 %v5652, 1.0
        %v5658 = vsub.f32 %v5654, 1.0
        %v5659 = vsel %vm5643, %v5639, %v5655
        %v5660 = vsel %vm5644, %v5640, %v5656
        %v5661 = vsel %vm5645, %v5641, %v5657
        %v5662 = vsel %vm5646, %v5642, %v5658
        %5667 = vrot.lane.b32.xlu0 %v5659, 18
        %v5668 = vpop.permute.xlu0 %5667
        %5669 = vrot.lane.b32.xlu0 %v5660, 18
        %v5670 = vpop.permute.xlu0 %5669
        %5671 = vrot.lane.b32.xlu0 %v5661, 18
        %v5672 = vpop.permute.xlu0 %5671
        %5673 = vrot.lane.b32.xlu0 %v5662, 18
        %v5674 = vpop.permute.xlu0 %5673
        %v5679 = vsel %vm2647, 0.0, %v5668
        %v5680 = vsel %vm2647, 0.0, %v5670
        %v5681 = vsel %vm2647, 0.0, %v5672
        %v5682 = vsel %vm2647, 0.0, %v5674
        %5687 = vrot.lane.b32.xlu0 %v5679, 125
        %v5688 = vpop.permute.xlu0 %5687
        %5689 = vrot.lane.b32.xlu0 %v5680, 125
        %v5690 = vpop.permute.xlu0 %5689
        %5691 = vrot.lane.b32.xlu0 %v5681, 125
        %v5692 = vpop.permute.xlu0 %5691
        %5693 = vrot.lane.b32.xlu0 %v5682, 125
        %v5694 = vpop.permute.xlu0 %5693
        %5699 = vrot.lane.b32.xlu0 %v5679, 122
        %v5700 = vpop.permute.xlu0 %5699
        %5701 = vrot.lane.b32.xlu0 %v5680, 122
        %v5702 = vpop.permute.xlu0 %5701
        %5703 = vrot.lane.b32.xlu0 %v5681, 122
        %v5704 = vpop.permute.xlu0 %5703
        %5705 = vrot.lane.b32.xlu0 %v5682, 122
        %v5706 = vpop.permute.xlu0 %5705
        %5711 = vrot.lane.b32.xlu0 %v5679, 119
        %v5712 = vpop.permute.xlu0 %5711
        %5713 = vrot.lane.b32.xlu0 %v5680, 119
        %v5714 = vpop.permute.xlu0 %5713
        %5715 = vrot.lane.b32.xlu0 %v5681, 119
        %v5716 = vpop.permute.xlu0 %5715
        %5717 = vrot.lane.b32.xlu0 %v5682, 119
        %v5718 = vpop.permute.xlu0 %5717
        %5723 = vrot.lane.b32.xlu0 %v5679, 116
        %v5724 = vpop.permute.xlu0 %5723
        %5725 = vrot.lane.b32.xlu0 %v5680, 116
        %v5726 = vpop.permute.xlu0 %5725
        %5727 = vrot.lane.b32.xlu0 %v5681, 116
        %v5728 = vpop.permute.xlu0 %5727
        %5729 = vrot.lane.b32.xlu0 %v5682, 116
        %v5730 = vpop.permute.xlu0 %5729
        %5735 = vrot.lane.b32.xlu0 %v5679, 113
        %v5736 = vpop.permute.xlu0 %5735
        %5737 = vrot.lane.b32.xlu0 %v5680, 113
        %v5738 = vpop.permute.xlu0 %5737
        %5739 = vrot.lane.b32.xlu0 %v5681, 113
        %v5740 = vpop.permute.xlu0 %5739
        %5741 = vrot.lane.b32.xlu0 %v5682, 113
        %v5742 = vpop.permute.xlu0 %5741
        %5747 = vrot.lane.b32.xlu0 %v5679, 110
        %v5748 = vpop.permute.xlu0 %5747
        %5749 = vrot.lane.b32.xlu0 %v5680, 110
        %v5750 = vpop.permute.xlu0 %5749
        %5751 = vrot.lane.b32.xlu0 %v5681, 110
        %v5752 = vpop.permute.xlu0 %5751
        %5753 = vrot.lane.b32.xlu0 %v5682, 110
        %v5754 = vpop.permute.xlu0 %5753
        %v5759 = vld [vmem:[%s105] sm:$0xff]
        %v5760 = vld [vmem:[%s105 + $0x8] sm:$0xff]
        %v5761 = vld [vmem:[%s105 + $0x10] sm:$0xff]
        %v5762 = vld [vmem:[%s105 + $0x18] sm:$0xff]
        %v5763 = vld [vmem:[%s105 + $0x20] sm:$0xff]
        %v5764 = vld [vmem:[%s105 + $0x28] sm:$0xff]
        %v5765 = vld [vmem:[%s105 + $0x30] sm:$0xff]
        %v5766 = vld [vmem:[%s105 + $0x38] sm:$0xff]
        %v5767 = vld [vmem:[%s107] sm:$0xff]
        %v5768 = vld [vmem:[%s107 + $0x8] sm:$0xff]
        %v5769 = vld [vmem:[%s107 + $0x10] sm:$0xff]
        %v5770 = vld [vmem:[%s107 + $0x18] sm:$0xff]
        %5772 = vset.pattern.permute.xlu0 0
        %5773 = vperm.xlu0 %5772, %v5767
        %v5774 = vpop.permute.xlu0 %5773
        %5777 = vset.pattern.permute.xlu0 0
        %5778 = vperm.xlu0 %5777, %v5768
        %v5779 = vpop.permute.xlu0 %5778
        %5782 = vset.pattern.permute.xlu0 0
        %5783 = vperm.xlu0 %5782, %v5769
        %v5784 = vpop.permute.xlu0 %5783
        %5787 = vset.pattern.permute.xlu0 0
        %5788 = vperm.xlu0 %5787, %v5770
        %v5789 = vpop.permute.xlu0 %5788
        %v5792 = vsel %vm5479, %v5760, 0
        %v5795 = vsel %vm5479, %v5762, 0
        %v5798 = vsel %vm5479, %v5764, 0
        %v5801 = vsel %vm5479, %v5766, 0
        %5803 = vmatpush.msra.mxu0 %v5718
        %5804 = vmatpush.msra.mxu0 %v5716
        %5805 = vmatpush.msra.mxu0 %v5714
        %5806 = vmatpush.msra.mxu0 %v5712
        %5807 = vmatpush.msra.mxu0 %v5706
        %5808 = vmatpush.msra.mxu0 %v5704
        %5809 = vmatpush.msra.mxu0 %v5702
        %5810 = vmatpush.msra.mxu0 %v5700
        %5811 = vmatpush.msra.mxu0 %v5694
        %5812 = vmatpush.msra.mxu0 %v5692
        %5813 = vmatpush.msra.mxu0 %v5690
        %5814 = vmatpush.msra.mxu0 %v5688
        %5815 = vmatpush.msra.mxu0 %v5682
        %5816 = vmatpush.msra.mxu0 %v5681
        %5817 = vmatpush.msra.mxu0 %v5680
        %5818 = vmatpush.msra.mxu0 %v5679
        %5819 = vmatmul.f32.gmra.mxu0 %v5759
        %v5820 = vpop.f32.mrf.mxu0
        %v5821 = vadd.f32 %v5774, %v5820
        %5822 = vmatmul.f32.gmra.mxu0 %v5761
        %v5823 = vpop.f32.mrf.mxu0
        %v5824 = vadd.f32 %v5779, %v5823
        %5825 = vmatmul.f32.gmra.mxu0 %v5763
        %v5826 = vpop.f32.mrf.mxu0
        %v5827 = vadd.f32 %v5784, %v5826
        %5828 = vmatmul.f32.gmra.mxu0 %v5765
        %v5829 = vpop.f32.mrf.mxu0
        %v5830 = vadd.f32 %v5789, %v5829
        %5831 = vdwg.mxu0
        %5832 = vmatpush.msra.mxu0 0.0
        %5833 = vmatpush.msra.mxu0 0.0
        %5834 = vmatpush.msra.mxu0 0.0
        %5835 = vmatpush.msra.mxu0 0.0
        %5836 = vmatpush.msra.mxu0 %v5754
        %5837 = vmatpush.msra.mxu0 %v5752
        %5838 = vmatpush.msra.mxu0 %v5750
        %5839 = vmatpush.msra.mxu0 %v5748
        %5840 = vmatpush.msra.mxu0 %v5742
        %5841 = vmatpush.msra.mxu0 %v5740
        %5842 = vmatpush.msra.mxu0 %v5738
        %5843 = vmatpush.msra.mxu0 %v5736
        %5844 = vmatpush.msra.mxu0 %v5730
        %5845 = vmatpush.msra.mxu0 %v5728
        %5846 = vmatpush.msra.mxu0 %v5726
        %5847 = vmatpush.msra.mxu0 %v5724
        %5848 = vmatmul.f32.gmra.mxu0 %v5792
        %v5849 = vpop.f32.mrf.mxu0
        %v5850 = vadd.f32 %v5821, %v5849
        %5851 = vmatmul.f32.gmra.mxu0 %v5795
        %v5852 = vpop.f32.mrf.mxu0
        %v5853 = vadd.f32 %v5824, %v5852
        %5854 = vmatmul.f32.gmra.mxu0 %v5798
        %v5855 = vpop.f32.mrf.mxu0
        %v5856 = vadd.f32 %v5827, %v5855
        %5857 = vmatmul.f32.gmra.mxu0 %v5801
        %v5858 = vpop.f32.mrf.mxu0
        %v5859 = vadd.f32 %v5830, %v5858
        %5860 = vdwg.mxu0
        %vm5861 = vcmp.gt.f32.partialorder %v5850, 0.0
        %vm5862 = vcmp.gt.f32.partialorder %v5853, 0.0
        %vm5863 = vcmp.gt.f32.partialorder %v5856, 0.0
        %vm5864 = vcmp.gt.f32.partialorder %v5859, 0.0
        %v5865 = vmul.f32 %v5850, 1.442695
        %v5866 = vpow.pop %v5865
        %v5867 = vmul.f32 %v5853, 1.442695
        %v5868 = vpow.pop %v5867
        %v5869 = vmul.f32 %v5856, 1.442695
        %v5870 = vpow.pop %v5869
        %v5871 = vmul.f32 %v5859, 1.442695
        %v5872 = vpow.pop %v5871
        %v5873 = vsub.f32 %v5866, 1.0
        %v5874 = vsub.f32 %v5868, 1.0
        %v5875 = vsub.f32 %v5870, 1.0
        %v5876 = vsub.f32 %v5872, 1.0
        %v5877 = vsel %vm5861, %v5850, %v5873
        %v5878 = vsel %vm5862, %v5853, %v5874
        %v5879 = vsel %vm5863, %v5856, %v5875
        %v5880 = vsel %vm5864, %v5859, %v5876
        %v5881 = vld [vmem:[%s109] sm:$0xff]
        %v5882 = vld [vmem:[%s109 + $0x8] sm:$0xff]
        %v5883 = vld [vmem:[%s109 + $0x10] sm:$0xff]
        %v5884 = vld [vmem:[%s109 + $0x18] sm:$0xff]
        %v5885 = vld [vmem:[%s111] sm:$0xff]
        %v5886 = vld [vmem:[%s111 + $0x8] sm:$0xff]
        %v5887 = vld [vmem:[%s111 + $0x10] sm:$0xff]
        %v5888 = vld [vmem:[%s111 + $0x18] sm:$0xff]
        %5890 = vset.pattern.permute.xlu0 0
        %5891 = vperm.xlu0 %5890, %v5885
        %v5892 = vpop.permute.xlu0 %5891
        %5895 = vset.pattern.permute.xlu0 0
        %5896 = vperm.xlu0 %5895, %v5886
        %v5897 = vpop.permute.xlu0 %5896
        %5900 = vset.pattern.permute.xlu0 0
        %5901 = vperm.xlu0 %5900, %v5887
        %v5902 = vpop.permute.xlu0 %5901
        %5905 = vset.pattern.permute.xlu0 0
        %5906 = vperm.xlu0 %5905, %v5888
        %v5907 = vpop.permute.xlu0 %5906
        %v5910 = vsel %vm3434, %v5881, 0
        %v5913 = vsel %vm3434, %v5882, 0
        %v5916 = vsel %vm3434, %v5883, 0
        %v5919 = vsel %vm3434, %v5884, 0
        %5921 = vmatpush.msra.mxu0 0.0
        %5922 = vmatpush.msra.mxu0 0.0
        %5923 = vmatpush.msra.mxu0 0.0
        %5924 = vmatpush.msra.mxu0 0.0
        %5925 = vmatpush.msra.mxu0 0.0
        %5926 = vmatpush.msra.mxu0 0.0
        %5927 = vmatpush.msra.mxu0 0.0
        %5928 = vmatpush.msra.mxu0 0.0
        %5929 = vmatpush.msra.mxu0 0.0
        %5930 = vmatpush.msra.mxu0 0.0
        %5931 = vmatpush.msra.mxu0 0.0
        %5932 = vmatpush.msra.mxu0 0.0
        %5933 = vmatpush.msra.mxu0 %v5880
        %5934 = vmatpush.msra.mxu0 %v5879
        %5935 = vmatpush.msra.mxu0 %v5878
        %5936 = vmatpush.msra.mxu0 %v5877
        %5937 = vmatmul.f32.gmra.mxu0 %v5910
        %v5938 = vpop.f32.mrf.mxu0
        %v5939 = vadd.f32 %v5892, %v5938
        %5940 = vmatmul.f32.gmra.mxu0 %v5913
        %v5941 = vpop.f32.mrf.mxu0
        %v5942 = vadd.f32 %v5897, %v5941
        %5943 = vmatmul.f32.gmra.mxu0 %v5916
        %v5944 = vpop.f32.mrf.mxu0
        %v5945 = vadd.f32 %v5902, %v5944
        %5946 = vmatmul.f32.gmra.mxu0 %v5919
        %v5947 = vpop.f32.mrf.mxu0
        %v5948 = vadd.f32 %v5907, %v5947
        %5949 = vdwg.mxu0
        %v5950 = vadd.f32 %v5659, %v5939
        %v5951 = vadd.f32 %v5660, %v5942
        %v5952 = vadd.f32 %v5661, %v5945
        %v5953 = vadd.f32 %v5662, %v5948
        %vm5954 = vcmp.gt.f32.partialorder %v5950, 0.0
        %vm5955 = vcmp.gt.f32.partialorder %v5951, 0.0
        %vm5956 = vcmp.gt.f32.partialorder %v5952, 0.0
        %vm5957 = vcmp.gt.f32.partialorder %v5953, 0.0
        %v5958 = vmul.f32 %v5950, 1.442695
        %v5959 = vpow.pop %v5958
        %v5960 = vmul.f32 %v5951, 1.442695
        %v5961 = vpow.pop %v5960
        %v5962 = vmul.f32 %v5952, 1.442695
        %v5963 = vpow.pop %v5962
        %v5964 = vmul.f32 %v5953, 1.442695
        %v5965 = vpow.pop %v5964
        %v5966 = vsub.f32 %v5959, 1.0
        %v5967 = vsub.f32 %v5961, 1.0
        %v5968 = vsub.f32 %v5963, 1.0
        %v5969 = vsub.f32 %v5965, 1.0
        %v5970 = vsel %vm5954, %v5950, %v5966
        %v5971 = vsel %vm5955, %v5951, %v5967
        %v5972 = vsel %vm5956, %v5952, %v5968
        %v5973 = vsel %vm5957, %v5953, %v5969
        %5978 = vrot.lane.b32.xlu0 %v5970, 54
        %v5979 = vpop.permute.xlu0 %5978
        %5980 = vrot.lane.b32.xlu0 %v5971, 54
        %v5981 = vpop.permute.xlu0 %5980
        %5982 = vrot.lane.b32.xlu0 %v5972, 54
        %v5983 = vpop.permute.xlu0 %5982
        %5984 = vrot.lane.b32.xlu0 %v5973, 54
        %v5985 = vpop.permute.xlu0 %5984
        %v5990 = vsel %vm3005, 0.0, %v5979
        %v5991 = vsel %vm3005, 0.0, %v5981
        %v5992 = vsel %vm3005, 0.0, %v5983
        %v5993 = vsel %vm3005, 0.0, %v5985
        %5998 = vrot.lane.b32.xlu0 %v5990, 119
        %v5999 = vpop.permute.xlu0 %5998
        %6000 = vrot.lane.b32.xlu0 %v5991, 119
        %v6001 = vpop.permute.xlu0 %6000
        %6002 = vrot.lane.b32.xlu0 %v5992, 119
        %v6003 = vpop.permute.xlu0 %6002
        %6004 = vrot.lane.b32.xlu0 %v5993, 119
        %v6005 = vpop.permute.xlu0 %6004
        %6010 = vrot.lane.b32.xlu0 %v5990, 110
        %v6011 = vpop.permute.xlu0 %6010
        %6012 = vrot.lane.b32.xlu0 %v5991, 110
        %v6013 = vpop.permute.xlu0 %6012
        %6014 = vrot.lane.b32.xlu0 %v5992, 110
        %v6015 = vpop.permute.xlu0 %6014
        %6016 = vrot.lane.b32.xlu0 %v5993, 110
        %v6017 = vpop.permute.xlu0 %6016
        %6022 = vrot.lane.b32.xlu0 %v5990, 101
        %v6023 = vpop.permute.xlu0 %6022
        %6024 = vrot.lane.b32.xlu0 %v5991, 101
        %v6025 = vpop.permute.xlu0 %6024
        %6026 = vrot.lane.b32.xlu0 %v5992, 101
        %v6027 = vpop.permute.xlu0 %6026
        %6028 = vrot.lane.b32.xlu0 %v5993, 101
        %v6029 = vpop.permute.xlu0 %6028
        %6034 = vrot.lane.b32.xlu0 %v5990, 92
        %v6035 = vpop.permute.xlu0 %6034
        %6036 = vrot.lane.b32.xlu0 %v5991, 92
        %v6037 = vpop.permute.xlu0 %6036
        %6038 = vrot.lane.b32.xlu0 %v5992, 92
        %v6039 = vpop.permute.xlu0 %6038
        %6040 = vrot.lane.b32.xlu0 %v5993, 92
        %v6041 = vpop.permute.xlu0 %6040
        %6046 = vrot.lane.b32.xlu0 %v5990, 83
        %v6047 = vpop.permute.xlu0 %6046
        %6048 = vrot.lane.b32.xlu0 %v5991, 83
        %v6049 = vpop.permute.xlu0 %6048
        %6050 = vrot.lane.b32.xlu0 %v5992, 83
        %v6051 = vpop.permute.xlu0 %6050
        %6052 = vrot.lane.b32.xlu0 %v5993, 83
        %v6053 = vpop.permute.xlu0 %6052
        %6058 = vrot.lane.b32.xlu0 %v5990, 74
        %v6059 = vpop.permute.xlu0 %6058
        %6060 = vrot.lane.b32.xlu0 %v5991, 74
        %v6061 = vpop.permute.xlu0 %6060
        %6062 = vrot.lane.b32.xlu0 %v5992, 74
        %v6063 = vpop.permute.xlu0 %6062
        %6064 = vrot.lane.b32.xlu0 %v5993, 74
        %v6065 = vpop.permute.xlu0 %6064
        %v6070 = vld [vmem:[%s113] sm:$0xff]
        %v6071 = vld [vmem:[%s113 + $0x8] sm:$0xff]
        %v6072 = vld [vmem:[%s113 + $0x10] sm:$0xff]
        %v6073 = vld [vmem:[%s113 + $0x18] sm:$0xff]
        %v6074 = vld [vmem:[%s113 + $0x20] sm:$0xff]
        %v6075 = vld [vmem:[%s113 + $0x28] sm:$0xff]
        %v6076 = vld [vmem:[%s113 + $0x30] sm:$0xff]
        %v6077 = vld [vmem:[%s113 + $0x38] sm:$0xff]
        %v6078 = vld [vmem:[%s115] sm:$0xff]
        %v6079 = vld [vmem:[%s115 + $0x8] sm:$0xff]
        %v6080 = vld [vmem:[%s115 + $0x10] sm:$0xff]
        %v6081 = vld [vmem:[%s115 + $0x18] sm:$0xff]
        %6083 = vset.pattern.permute.xlu0 0
        %6084 = vperm.xlu0 %6083, %v6078
        %v6085 = vpop.permute.xlu0 %6084
        %6088 = vset.pattern.permute.xlu0 0
        %6089 = vperm.xlu0 %6088, %v6079
        %v6090 = vpop.permute.xlu0 %6089
        %6093 = vset.pattern.permute.xlu0 0
        %6094 = vperm.xlu0 %6093, %v6080
        %v6095 = vpop.permute.xlu0 %6094
        %6098 = vset.pattern.permute.xlu0 0
        %6099 = vperm.xlu0 %6098, %v6081
        %v6100 = vpop.permute.xlu0 %6099
        %v6103 = vsel %vm5479, %v6071, 0
        %v6106 = vsel %vm5479, %v6073, 0
        %v6109 = vsel %vm5479, %v6075, 0
        %v6112 = vsel %vm5479, %v6077, 0
        %6114 = vmatpush.msra.mxu0 %v6029
        %6115 = vmatpush.msra.mxu0 %v6027
        %6116 = vmatpush.msra.mxu0 %v6025
        %6117 = vmatpush.msra.mxu0 %v6023
        %6118 = vmatpush.msra.mxu0 %v6017
        %6119 = vmatpush.msra.mxu0 %v6015
        %6120 = vmatpush.msra.mxu0 %v6013
        %6121 = vmatpush.msra.mxu0 %v6011
        %6122 = vmatpush.msra.mxu0 %v6005
        %6123 = vmatpush.msra.mxu0 %v6003
        %6124 = vmatpush.msra.mxu0 %v6001
        %6125 = vmatpush.msra.mxu0 %v5999
        %6126 = vmatpush.msra.mxu0 %v5993
        %6127 = vmatpush.msra.mxu0 %v5992
        %6128 = vmatpush.msra.mxu0 %v5991
        %6129 = vmatpush.msra.mxu0 %v5990
        %6130 = vmatmul.f32.gmra.mxu0 %v6070
        %v6131 = vpop.f32.mrf.mxu0
        %v6132 = vadd.f32 %v6085, %v6131
        %6133 = vmatmul.f32.gmra.mxu0 %v6072
        %v6134 = vpop.f32.mrf.mxu0
        %v6135 = vadd.f32 %v6090, %v6134
        %6136 = vmatmul.f32.gmra.mxu0 %v6074
        %v6137 = vpop.f32.mrf.mxu0
        %v6138 = vadd.f32 %v6095, %v6137
        %6139 = vmatmul.f32.gmra.mxu0 %v6076
        %v6140 = vpop.f32.mrf.mxu0
        %v6141 = vadd.f32 %v6100, %v6140
        %6142 = vdwg.mxu0
        %6143 = vmatpush.msra.mxu0 0.0
        %6144 = vmatpush.msra.mxu0 0.0
        %6145 = vmatpush.msra.mxu0 0.0
        %6146 = vmatpush.msra.mxu0 0.0
        %6147 = vmatpush.msra.mxu0 %v6065
        %6148 = vmatpush.msra.mxu0 %v6063
        %6149 = vmatpush.msra.mxu0 %v6061
        %6150 = vmatpush.msra.mxu0 %v6059
        %6151 = vmatpush.msra.mxu0 %v6053
        %6152 = vmatpush.msra.mxu0 %v6051
        %6153 = vmatpush.msra.mxu0 %v6049
        %6154 = vmatpush.msra.mxu0 %v6047
        %6155 = vmatpush.msra.mxu0 %v6041
        %6156 = vmatpush.msra.mxu0 %v6039
        %6157 = vmatpush.msra.mxu0 %v6037
        %6158 = vmatpush.msra.mxu0 %v6035
        %6159 = vmatmul.f32.gmra.mxu0 %v6103
        %v6160 = vpop.f32.mrf.mxu0
        %v6161 = vadd.f32 %v6132, %v6160
        %6162 = vmatmul.f32.gmra.mxu0 %v6106
        %v6163 = vpop.f32.mrf.mxu0
        %v6164 = vadd.f32 %v6135, %v6163
        %6165 = vmatmul.f32.gmra.mxu0 %v6109
        %v6166 = vpop.f32.mrf.mxu0
        %v6167 = vadd.f32 %v6138, %v6166
        %6168 = vmatmul.f32.gmra.mxu0 %v6112
        %v6169 = vpop.f32.mrf.mxu0
        %v6170 = vadd.f32 %v6141, %v6169
        %6171 = vdwg.mxu0
        %vm6172 = vcmp.gt.f32.partialorder %v6161, 0.0
        %vm6173 = vcmp.gt.f32.partialorder %v6164, 0.0
        %vm6174 = vcmp.gt.f32.partialorder %v6167, 0.0
        %vm6175 = vcmp.gt.f32.partialorder %v6170, 0.0
        %v6176 = vmul.f32 %v6161, 1.442695
        %v6177 = vpow.pop %v6176
        %v6178 = vmul.f32 %v6164, 1.442695
        %v6179 = vpow.pop %v6178
        %v6180 = vmul.f32 %v6167, 1.442695
        %v6181 = vpow.pop %v6180
        %v6182 = vmul.f32 %v6170, 1.442695
        %v6183 = vpow.pop %v6182
        %v6184 = vsub.f32 %v6177, 1.0
        %v6185 = vsub.f32 %v6179, 1.0
        %v6186 = vsub.f32 %v6181, 1.0
        %v6187 = vsub.f32 %v6183, 1.0
        %v6188 = vsel %vm6172, %v6161, %v6184
        %v6189 = vsel %vm6173, %v6164, %v6185
        %v6190 = vsel %vm6174, %v6167, %v6186
        %v6191 = vsel %vm6175, %v6170, %v6187
        %v6192 = vld [vmem:[%s117] sm:$0xff]
        %v6193 = vld [vmem:[%s117 + $0x8] sm:$0xff]
        %v6194 = vld [vmem:[%s117 + $0x10] sm:$0xff]
        %v6195 = vld [vmem:[%s117 + $0x18] sm:$0xff]
        %v6196 = vld [vmem:[%s119] sm:$0xff]
        %v6197 = vld [vmem:[%s119 + $0x8] sm:$0xff]
        %v6198 = vld [vmem:[%s119 + $0x10] sm:$0xff]
        %v6199 = vld [vmem:[%s119 + $0x18] sm:$0xff]
        %6201 = vset.pattern.permute.xlu0 0
        %6202 = vperm.xlu0 %6201, %v6196
        %v6203 = vpop.permute.xlu0 %6202
        %6206 = vset.pattern.permute.xlu0 0
        %6207 = vperm.xlu0 %6206, %v6197
        %v6208 = vpop.permute.xlu0 %6207
        %6211 = vset.pattern.permute.xlu0 0
        %6212 = vperm.xlu0 %6211, %v6198
        %v6213 = vpop.permute.xlu0 %6212
        %6216 = vset.pattern.permute.xlu0 0
        %6217 = vperm.xlu0 %6216, %v6199
        %v6218 = vpop.permute.xlu0 %6217
        %v6221 = vsel %vm3434, %v6192, 0
        %v6224 = vsel %vm3434, %v6193, 0
        %v6227 = vsel %vm3434, %v6194, 0
        %v6230 = vsel %vm3434, %v6195, 0
        %6232 = vmatpush.msra.mxu0 0.0
        %6233 = vmatpush.msra.mxu0 0.0
        %6234 = vmatpush.msra.mxu0 0.0
        %6235 = vmatpush.msra.mxu0 0.0
        %6236 = vmatpush.msra.mxu0 0.0
        %6237 = vmatpush.msra.mxu0 0.0
        %6238 = vmatpush.msra.mxu0 0.0
        %6239 = vmatpush.msra.mxu0 0.0
        %6240 = vmatpush.msra.mxu0 0.0
        %6241 = vmatpush.msra.mxu0 0.0
        %6242 = vmatpush.msra.mxu0 0.0
        %6243 = vmatpush.msra.mxu0 0.0
        %6244 = vmatpush.msra.mxu0 %v6191
        %6245 = vmatpush.msra.mxu0 %v6190
        %6246 = vmatpush.msra.mxu0 %v6189
        %6247 = vmatpush.msra.mxu0 %v6188
        %6248 = vmatmul.f32.gmra.mxu0 %v6221
        %v6249 = vpop.f32.mrf.mxu0
        %v6250 = vadd.f32 %v6203, %v6249
        %6251 = vmatmul.f32.gmra.mxu0 %v6224
        %v6252 = vpop.f32.mrf.mxu0
        %v6253 = vadd.f32 %v6208, %v6252
        %6254 = vmatmul.f32.gmra.mxu0 %v6227
        %v6255 = vpop.f32.mrf.mxu0
        %v6256 = vadd.f32 %v6213, %v6255
        %6257 = vmatmul.f32.gmra.mxu0 %v6230
        %v6258 = vpop.f32.mrf.mxu0
        %v6259 = vadd.f32 %v6218, %v6258
        %6260 = vdwg.mxu0
        %v6261 = vadd.f32 %v5970, %v6250
        %v6262 = vadd.f32 %v5971, %v6253
        %v6263 = vadd.f32 %v5972, %v6256
        %v6264 = vadd.f32 %v5973, %v6259
        %vm6265 = vcmp.gt.f32.partialorder %v6261, 0.0
        %vm6266 = vcmp.gt.f32.partialorder %v6262, 0.0
        %vm6267 = vcmp.gt.f32.partialorder %v6263, 0.0
        %vm6268 = vcmp.gt.f32.partialorder %v6264, 0.0
        %v6269 = vmul.f32 %v6261, 1.442695
        %v6270 = vpow.pop %v6269
        %v6271 = vmul.f32 %v6262, 1.442695
        %v6272 = vpow.pop %v6271
        %v6273 = vmul.f32 %v6263, 1.442695
        %v6274 = vpow.pop %v6273
        %v6275 = vmul.f32 %v6264, 1.442695
        %v6276 = vpow.pop %v6275
        %v6277 = vsub.f32 %v6270, 1.0
        %v6278 = vsub.f32 %v6272, 1.0
        %v6279 = vsub.f32 %v6274, 1.0
        %v6280 = vsub.f32 %v6276, 1.0
        %v6281 = vsel %vm6265, %v6261, %v6277
        %v6282 = vsel %vm6266, %v6262, %v6278
        %v6283 = vsel %vm6267, %v6263, %v6279
        %v6284 = vsel %vm6268, %v6264, %v6280
        %6289 = vrot.lane.b32.xlu0 %v6281, 3
        %v6290 = vpop.permute.xlu0 %6289
        %6291 = vrot.lane.b32.xlu0 %v6282, 3
        %v6292 = vpop.permute.xlu0 %6291
        %6293 = vrot.lane.b32.xlu0 %v6283, 3
        %v6294 = vpop.permute.xlu0 %6293
        %6295 = vrot.lane.b32.xlu0 %v6284, 3
        %v6296 = vpop.permute.xlu0 %6295
        %v6301 = vsel %vm3363, 0.0, %v6290
        %v6302 = vsel %vm3363, 0.0, %v6292
        %v6303 = vsel %vm3363, 0.0, %v6294
        %v6304 = vsel %vm3363, 0.0, %v6296
        %6309 = vrot.lane.b32.xlu0 %v6301, 127
        %v6310 = vpop.permute.xlu0 %6309
        %6311 = vrot.lane.b32.xlu0 %v6302, 127
        %v6312 = vpop.permute.xlu0 %6311
        %6313 = vrot.lane.b32.xlu0 %v6303, 127
        %v6314 = vpop.permute.xlu0 %6313
        %6315 = vrot.lane.b32.xlu0 %v6304, 127
        %v6316 = vpop.permute.xlu0 %6315
        %6321 = vrot.lane.b32.xlu0 %v6301, 126
        %v6322 = vpop.permute.xlu0 %6321
        %6323 = vrot.lane.b32.xlu0 %v6302, 126
        %v6324 = vpop.permute.xlu0 %6323
        %6325 = vrot.lane.b32.xlu0 %v6303, 126
        %v6326 = vpop.permute.xlu0 %6325
        %6327 = vrot.lane.b32.xlu0 %v6304, 126
        %v6328 = vpop.permute.xlu0 %6327
        %6333 = vrot.lane.b32.xlu0 %v6301, 125
        %v6334 = vpop.permute.xlu0 %6333
        %6335 = vrot.lane.b32.xlu0 %v6302, 125
        %v6336 = vpop.permute.xlu0 %6335
        %6337 = vrot.lane.b32.xlu0 %v6303, 125
        %v6338 = vpop.permute.xlu0 %6337
        %6339 = vrot.lane.b32.xlu0 %v6304, 125
        %v6340 = vpop.permute.xlu0 %6339
        %v6345 = vld [vmem:[%s121] sm:$0xff]
        %v6346 = vld [vmem:[%s121 + $0x8] sm:$0xff]
        %v6347 = vld [vmem:[%s121 + $0x10] sm:$0xff]
        %v6348 = vld [vmem:[%s121 + $0x18] sm:$0xff]
        %v6349 = vld [vmem:[%s121 + $0x20] sm:$0xff]
        %v6350 = vld [vmem:[%s121 + $0x28] sm:$0xff]
        %v6351 = vld [vmem:[%s121 + $0x30] sm:$0xff]
        %v6352 = vld [vmem:[%s121 + $0x38] sm:$0xff]
        %v6353 = vld [vmem:[%s123] sm:$0xff]
        %v6354 = vld [vmem:[%s123 + $0x8] sm:$0xff]
        %v6355 = vld [vmem:[%s123 + $0x10] sm:$0xff]
        %v6356 = vld [vmem:[%s123 + $0x18] sm:$0xff]
        %v6357 = vld [vmem:[%s123 + $0x20] sm:$0xff]
        %v6358 = vld [vmem:[%s123 + $0x28] sm:$0xff]
        %v6359 = vld [vmem:[%s123 + $0x30] sm:$0xff]
        %v6360 = vld [vmem:[%s123 + $0x38] sm:$0xff]
        %6362 = vset.pattern.permute.xlu0 0
        %6363 = vperm.xlu0 %6362, %v6353
        %v6364 = vpop.permute.xlu0 %6363
        %6367 = vset.pattern.permute.xlu0 0
        %6368 = vperm.xlu0 %6367, %v6354
        %v6369 = vpop.permute.xlu0 %6368
        %6372 = vset.pattern.permute.xlu0 0
        %6373 = vperm.xlu0 %6372, %v6355
        %v6374 = vpop.permute.xlu0 %6373
        %6377 = vset.pattern.permute.xlu0 0
        %6378 = vperm.xlu0 %6377, %v6356
        %v6379 = vpop.permute.xlu0 %6378
        %6382 = vset.pattern.permute.xlu0 0
        %6383 = vperm.xlu0 %6382, %v6357
        %v6384 = vpop.permute.xlu0 %6383
        %6387 = vset.pattern.permute.xlu0 0
        %6388 = vperm.xlu0 %6387, %v6358
        %v6389 = vpop.permute.xlu0 %6388
        %6392 = vset.pattern.permute.xlu0 0
        %6393 = vperm.xlu0 %6392, %v6359
        %v6394 = vpop.permute.xlu0 %6393
        %6397 = vset.pattern.permute.xlu0 0
        %6398 = vperm.xlu0 %6397, %v6360
        %v6399 = vpop.permute.xlu0 %6398
        %6401 = vmatpush.msra.mxu0 %v6340
        %6402 = vmatpush.msra.mxu0 %v6338
        %6403 = vmatpush.msra.mxu0 %v6336
        %6404 = vmatpush.msra.mxu0 %v6334
        %6405 = vmatpush.msra.mxu0 %v6328
        %6406 = vmatpush.msra.mxu0 %v6326
        %6407 = vmatpush.msra.mxu0 %v6324
        %6408 = vmatpush.msra.mxu0 %v6322
        %6409 = vmatpush.msra.mxu0 %v6316
        %6410 = vmatpush.msra.mxu0 %v6314
        %6411 = vmatpush.msra.mxu0 %v6312
        %6412 = vmatpush.msra.mxu0 %v6310
        %6413 = vmatpush.msra.mxu0 %v6304
        %6414 = vmatpush.msra.mxu0 %v6303
        %6415 = vmatpush.msra.mxu0 %v6302
        %6416 = vmatpush.msra.mxu0 %v6301
        %6417 = vmatmul.f32.gmra.mxu0 %v6345
        %v6418 = vpop.f32.mrf.mxu0
        %v6419 = vadd.f32 %v6364, %v6418
        %6420 = vmatmul.f32.gmra.mxu0 %v6346
        %v6421 = vpop.f32.mrf.mxu0
        %v6422 = vadd.f32 %v6369, %v6421
        %6423 = vmatmul.f32.gmra.mxu0 %v6347
        %v6424 = vpop.f32.mrf.mxu0
        %v6425 = vadd.f32 %v6374, %v6424
        %6426 = vmatmul.f32.gmra.mxu0 %v6348
        %v6427 = vpop.f32.mrf.mxu0
        %v6428 = vadd.f32 %v6379, %v6427
        %6429 = vmatmul.f32.gmra.mxu0 %v6349
        %v6430 = vpop.f32.mrf.mxu0
        %v6431 = vadd.f32 %v6384, %v6430
        %6432 = vmatmul.f32.gmra.mxu0 %v6350
        %v6433 = vpop.f32.mrf.mxu0
        %v6434 = vadd.f32 %v6389, %v6433
        %6435 = vmatmul.f32.gmra.mxu0 %v6351
        %v6436 = vpop.f32.mrf.mxu0
        %v6437 = vadd.f32 %v6394, %v6436
        %6438 = vmatmul.f32.gmra.mxu0 %v6352
        %v6439 = vpop.f32.mrf.mxu0
        %v6440 = vadd.f32 %v6399, %v6439
        %6441 = vdwg.mxu0
        %v6442 = vld [vmem:[%s125] sm:$0xff]
        %v6443 = vld [vmem:[%s125 + $0x8] sm:$0xff]
        %v6444 = vld [vmem:[%s125 + $0x10] sm:$0xff]
        %v6445 = vld [vmem:[%s125 + $0x18] sm:$0xff]
        %v6446 = vld [vmem:[%s125 + $0x20] sm:$0xff]
        %v6447 = vld [vmem:[%s125 + $0x28] sm:$0xff]
        %v6448 = vld [vmem:[%s125 + $0x30] sm:$0xff]
        %v6449 = vld [vmem:[%s125 + $0x38] sm:$0xff]
        %v6451 = vsel %vm5244, %v6419, 0
        %v6454 = vsel %vm5244, %v6422, 0
        %v6457 = vsel %vm5244, %v6425, 0
        %v6460 = vsel %vm5244, %v6428, 0
        %v6463 = vsel %vm5244, %v6431, 0
        %v6466 = vsel %vm5244, %v6434, 0
        %v6469 = vsel %vm5244, %v6437, 0
        %v6472 = vsel %vm5244, %v6440, 0
        %6474 = vmatpush.msra.mxu0 0.0
        %6475 = vmatpush.msra.mxu0 0.0
        %6476 = vmatpush.msra.mxu0 0.0
        %6477 = vmatpush.msra.mxu0 0.0
        %6478 = vmatpush.msra.mxu0 0.0
        %6479 = vmatpush.msra.mxu0 0.0
        %6480 = vmatpush.msra.mxu0 0.0
        %6481 = vmatpush.msra.mxu0 0.0
        %6482 = vmatpush.msra.mxu0 %v6449
        %6483 = vmatpush.msra.mxu0 %v6448
        %6484 = vmatpush.msra.mxu0 %v6447
        %6485 = vmatpush.msra.mxu0 %v6446
        %6486 = vmatpush.msra.mxu0 %v6445
        %6487 = vmatpush.msra.mxu0 %v6444
        %6488 = vmatpush.msra.mxu0 %v6443
        %6489 = vmatpush.msra.mxu0 %v6442
        %6490 = vmatmul.f32.gmra.mxu0 %v6451
        %v6491 = vpop.f32.mrf.mxu0
        %v6492 = vadd.f32 0.0, %v6491
        %6493 = vmatmul.f32.gmra.mxu0 %v6454
        %v6494 = vpop.f32.mrf.mxu0
        %v6495 = vadd.f32 0.0, %v6494
        %6496 = vmatmul.f32.gmra.mxu0 %v6457
        %v6497 = vpop.f32.mrf.mxu0
        %v6498 = vadd.f32 0.0, %v6497
        %6499 = vmatmul.f32.gmra.mxu0 %v6460
        %v6500 = vpop.f32.mrf.mxu0
        %v6501 = vadd.f32 0.0, %v6500
        %6502 = vmatmul.f32.gmra.mxu0 %v6463
        %v6503 = vpop.f32.mrf.mxu0
        %v6504 = vadd.f32 0.0, %v6503
        %6505 = vmatmul.f32.gmra.mxu0 %v6466
        %v6506 = vpop.f32.mrf.mxu0
        %v6507 = vadd.f32 0.0, %v6506
        %6508 = vmatmul.f32.gmra.mxu0 %v6469
        %v6509 = vpop.f32.mrf.mxu0
        %v6510 = vadd.f32 0.0, %v6509
        %6511 = vmatmul.f32.gmra.mxu0 %v6472
        %v6512 = vpop.f32.mrf.mxu0
        %v6513 = vadd.f32 0.0, %v6512
        %6514 = vdwg.mxu0
        %vm6515 = vcmp.gt.f32.partialorder %v6492, 0.0
        %vm6516 = vcmp.gt.f32.partialorder %v6495, 0.0
        %vm6517 = vcmp.gt.f32.partialorder %v6498, 0.0
        %vm6518 = vcmp.gt.f32.partialorder %v6501, 0.0
        %vm6519 = vcmp.gt.f32.partialorder %v6504, 0.0
        %vm6520 = vcmp.gt.f32.partialorder %v6507, 0.0
        %vm6521 = vcmp.gt.f32.partialorder %v6510, 0.0
        %vm6522 = vcmp.gt.f32.partialorder %v6513, 0.0
        %v6523 = vmul.f32 %v6492, 1.442695
        %v6524 = vpow.pop %v6523
        %v6525 = vmul.f32 %v6495, 1.442695
        %v6526 = vpow.pop %v6525
        %v6527 = vmul.f32 %v6498, 1.442695
        %v6528 = vpow.pop %v6527
        %v6529 = vmul.f32 %v6501, 1.442695
        %v6530 = vpow.pop %v6529
        %v6531 = vmul.f32 %v6504, 1.442695
        %v6532 = vpow.pop %v6531
        %v6533 = vmul.f32 %v6507, 1.442695
        %v6534 = vpow.pop %v6533
        %v6535 = vmul.f32 %v6510, 1.442695
        %v6536 = vpow.pop %v6535
        %v6537 = vmul.f32 %v6513, 1.442695
        %v6538 = vpow.pop %v6537
        %v6539 = vsub.f32 %v6524, 1.0
        %v6540 = vsub.f32 %v6526, 1.0
        %v6541 = vsub.f32 %v6528, 1.0
        %v6542 = vsub.f32 %v6530, 1.0
        %v6543 = vsub.f32 %v6532, 1.0
        %v6544 = vsub.f32 %v6534, 1.0
        %v6545 = vsub.f32 %v6536, 1.0
        %v6546 = vsub.f32 %v6538, 1.0
        %v6547 = vsel %vm6515, %v6492, %v6539
        %v6548 = vsel %vm6516, %v6495, %v6540
        %v6549 = vsel %vm6517, %v6498, %v6541
        %v6550 = vsel %vm6518, %v6501, %v6542
        %v6551 = vsel %vm6519, %v6504, %v6543
        %v6552 = vsel %vm6520, %v6507, %v6544
        %v6553 = vsel %vm6521, %v6510, %v6545
        %v6554 = vsel %vm6522, %v6513, %v6546
        %6563 = vrot.lane.b32.xlu0 %v6547, 2
        %v6564 = vpop.permute.xlu0 %6563
        %6565 = vrot.lane.b32.xlu0 %v6548, 2
        %v6566 = vpop.permute.xlu0 %6565
        %6567 = vrot.lane.b32.xlu0 %v6549, 2
        %v6568 = vpop.permute.xlu0 %6567
        %6569 = vrot.lane.b32.xlu0 %v6550, 2
        %v6570 = vpop.permute.xlu0 %6569
        %6571 = vrot.lane.b32.xlu0 %v6551, 2
        %v6572 = vpop.permute.xlu0 %6571
        %6573 = vrot.lane.b32.xlu0 %v6552, 2
        %v6574 = vpop.permute.xlu0 %6573
        %6575 = vrot.lane.b32.xlu0 %v6553, 2
        %v6576 = vpop.permute.xlu0 %6575
        %6577 = vrot.lane.b32.xlu0 %v6554, 2
        %v6578 = vpop.permute.xlu0 %6577
        %vm6587 = vcmask 15360
        %v6588 = vsel %vm6587, 0.0, %v6564
        %v6589 = vsel %vm6587, 0.0, %v6566
        %v6590 = vsel %vm6587, 0.0, %v6568
        %v6591 = vsel %vm6587, 0.0, %v6570
        %v6592 = vsel %vm6587, 0.0, %v6572
        %v6593 = vsel %vm6587, 0.0, %v6574
        %v6594 = vsel %vm6587, 0.0, %v6576
        %v6595 = vsel %vm6587, 0.0, %v6578
        %6604 = vrot.lane.b32.xlu0 %v6588, 127
        %v6605 = vpop.permute.xlu0 %6604
        %6606 = vrot.lane.b32.xlu0 %v6589, 127
        %v6607 = vpop.permute.xlu0 %6606
        %6608 = vrot.lane.b32.xlu0 %v6590, 127
        %v6609 = vpop.permute.xlu0 %6608
        %6610 = vrot.lane.b32.xlu0 %v6591, 127
        %v6611 = vpop.permute.xlu0 %6610
        %6612 = vrot.lane.b32.xlu0 %v6592, 127
        %v6613 = vpop.permute.xlu0 %6612
        %6614 = vrot.lane.b32.xlu0 %v6593, 127
        %v6615 = vpop.permute.xlu0 %6614
        %6616 = vrot.lane.b32.xlu0 %v6594, 127
        %v6617 = vpop.permute.xlu0 %6616
        %6618 = vrot.lane.b32.xlu0 %v6595, 127
        %v6619 = vpop.permute.xlu0 %6618
        %6628 = vrot.lane.b32.xlu0 %v6588, 126
        %v6629 = vpop.permute.xlu0 %6628
        %6630 = vrot.lane.b32.xlu0 %v6589, 126
        %v6631 = vpop.permute.xlu0 %6630
        %6632 = vrot.lane.b32.xlu0 %v6590, 126
        %v6633 = vpop.permute.xlu0 %6632
        %6634 = vrot.lane.b32.xlu0 %v6591, 126
        %v6635 = vpop.permute.xlu0 %6634
        %6636 = vrot.lane.b32.xlu0 %v6592, 126
        %v6637 = vpop.permute.xlu0 %6636
        %6638 = vrot.lane.b32.xlu0 %v6593, 126
        %v6639 = vpop.permute.xlu0 %6638
        %6640 = vrot.lane.b32.xlu0 %v6594, 126
        %v6641 = vpop.permute.xlu0 %6640
        %6642 = vrot.lane.b32.xlu0 %v6595, 126
        %v6643 = vpop.permute.xlu0 %6642
        %v6652 = vld [vmem:[%s127] sm:$0xff]
        %v6653 = vld [vmem:[%s127 + $0x8] sm:$0xff]
        %v6654 = vld [vmem:[%s127 + $0x10] sm:$0xff]
        %v6655 = vld [vmem:[%s127 + $0x18] sm:$0xff]
        %v6656 = vld [vmem:[%s127 + $0x20] sm:$0xff]
        %v6657 = vld [vmem:[%s127 + $0x28] sm:$0xff]
        %v6658 = vld [vmem:[%s127 + $0x30] sm:$0xff]
        %v6659 = vld [vmem:[%s127 + $0x38] sm:$0xff]
        %v6660 = vld [vmem:[%s129] sm:$0xff]
        %v6661 = vld [vmem:[%s129 + $0x8] sm:$0xff]
        %v6662 = vld [vmem:[%s129 + $0x10] sm:$0xff]
        %v6663 = vld [vmem:[%s129 + $0x18] sm:$0xff]
        %6665 = vset.pattern.permute.xlu0 0
        %6666 = vperm.xlu0 %6665, %v6660
        %v6667 = vpop.permute.xlu0 %6666
        %6670 = vset.pattern.permute.xlu0 0
        %6671 = vperm.xlu0 %6670, %v6661
        %v6672 = vpop.permute.xlu0 %6671
        %6675 = vset.pattern.permute.xlu0 0
        %6676 = vperm.xlu0 %6675, %v6662
        %v6677 = vpop.permute.xlu0 %6676
        %6680 = vset.pattern.permute.xlu0 0
        %6681 = vperm.xlu0 %6680, %v6663
        %v6682 = vpop.permute.xlu0 %6681
        %v6685 = vsel %vm5244, %v6653, 0
        %v6688 = vsel %vm5244, %v6655, 0
        %v6691 = vsel %vm5244, %v6657, 0
        %v6694 = vsel %vm5244, %v6659, 0
        %6696 = vmatpush.msra.mxu0 %v6619
        %6697 = vmatpush.msra.mxu0 %v6617
        %6698 = vmatpush.msra.mxu0 %v6615
        %6699 = vmatpush.msra.mxu0 %v6613
        %6700 = vmatpush.msra.mxu0 %v6611
        %6701 = vmatpush.msra.mxu0 %v6609
        %6702 = vmatpush.msra.mxu0 %v6607
        %6703 = vmatpush.msra.mxu0 %v6605
        %6704 = vmatpush.msra.mxu0 %v6595
        %6705 = vmatpush.msra.mxu0 %v6594
        %6706 = vmatpush.msra.mxu0 %v6593
        %6707 = vmatpush.msra.mxu0 %v6592
        %6708 = vmatpush.msra.mxu0 %v6591
        %6709 = vmatpush.msra.mxu0 %v6590
        %6710 = vmatpush.msra.mxu0 %v6589
        %6711 = vmatpush.msra.mxu0 %v6588
        %6712 = vmatmul.f32.gmra.mxu0 %v6652
        %v6713 = vpop.f32.mrf.mxu0
        %v6714 = vadd.f32 %v6667, %v6713
        %6715 = vmatmul.f32.gmra.mxu0 %v6654
        %v6716 = vpop.f32.mrf.mxu0
        %v6717 = vadd.f32 %v6672, %v6716
        %6718 = vmatmul.f32.gmra.mxu0 %v6656
        %v6719 = vpop.f32.mrf.mxu0
        %v6720 = vadd.f32 %v6677, %v6719
        %6721 = vmatmul.f32.gmra.mxu0 %v6658
        %v6722 = vpop.f32.mrf.mxu0
        %v6723 = vadd.f32 %v6682, %v6722
        %6724 = vdwg.mxu0
        %6725 = vmatpush.msra.mxu0 0.0
        %6726 = vmatpush.msra.mxu0 0.0
        %6727 = vmatpush.msra.mxu0 0.0
        %6728 = vmatpush.msra.mxu0 0.0
        %6729 = vmatpush.msra.mxu0 0.0
        %6730 = vmatpush.msra.mxu0 0.0
        %6731 = vmatpush.msra.mxu0 0.0
        %6732 = vmatpush.msra.mxu0 0.0
        %6733 = vmatpush.msra.mxu0 %v6643
        %6734 = vmatpush.msra.mxu0 %v6641
        %6735 = vmatpush.msra.mxu0 %v6639
        %6736 = vmatpush.msra.mxu0 %v6637
        %6737 = vmatpush.msra.mxu0 %v6635
        %6738 = vmatpush.msra.mxu0 %v6633
        %6739 = vmatpush.msra.mxu0 %v6631
        %6740 = vmatpush.msra.mxu0 %v6629
        %6741 = vmatmul.f32.gmra.mxu0 %v6685
        %v6742 = vpop.f32.mrf.mxu0
        %v6743 = vadd.f32 %v6714, %v6742
        %6744 = vmatmul.f32.gmra.mxu0 %v6688
        %v6745 = vpop.f32.mrf.mxu0
        %v6746 = vadd.f32 %v6717, %v6745
        %6747 = vmatmul.f32.gmra.mxu0 %v6691
        %v6748 = vpop.f32.mrf.mxu0
        %v6749 = vadd.f32 %v6720, %v6748
        %6750 = vmatmul.f32.gmra.mxu0 %v6694
        %v6751 = vpop.f32.mrf.mxu0
        %v6752 = vadd.f32 %v6723, %v6751
        %6753 = vdwg.mxu0
        %6754 = vst.msk [vmem:[%s2024] sm:$0xff] %vm3434, %v6743
        %6755 = vst.msk [vmem:[%s2024 + $0x8] sm:$0xff] %vm3434, %v6746
        %6756 = vst.msk [vmem:[%s2024 + $0x10] sm:$0xff] %vm3434, %v6749
        %6757 = vst.msk [vmem:[%s2024 + $0x18] sm:$0xff] %vm3434, %v6752
        %s6758 = sand.u32 %s1528, 1
        %s6759 = scalar_lea.sflag [#allocation4], %s6758
        %s6760 = sand.u32 %s1528, 1
        %s6761 = smul.addr %s6760, 32
        %s6762 = scalar_lea.vmem [#allocation16], %s6761
        // Predicated region
        $region313: #{encoder_forward.1} parent=279 // pred_check
          %p6763 = pneg %p1538
        $region314: #{encoder_forward.1} parent=279 // pred_check_branch
          %6765 = sbr.rel (%p6763) target = $region316
        $region315: #{encoder_forward.1} parent=279 // pred_region
          %6767 = vsyncadd %s6759, 0
          %s6768 = smul.addr %s150, 4
          %s6769 = smul.addr %s6768, 8
          %s6770 = scalar_lea.hbm %s131, %s6769
          %s6771 = sshll.u32 %s6762, 4
          %s6772 = int_to_ptr.vmem [resolvable:$true] %s6771
          %s6773 = sshll.u32 %s6770, 4
          %s6774 = int_to_ptr.hbm [resolvable:$true] %s6773
          %6779 = dma.vmem_to_hbm [thread:$0]  %s6772, 512, %s6774, %s6759, 128, 128, 8
        $region316: #{encoder_forward.1} parent=279 // pred_fallthru
          _
      $region280: #{encoder_forward.1} parent=5 // pred_fallthru
        _
      %p6780 = scmp.le.s32.totalorder 2, %s145
      // Predicated region
      $region317: #{encoder_forward.1} parent=5 // pred_check
        %p6781 = pneg %p6780
      $region318: #{encoder_forward.1} parent=5 // pred_check_branch
        %6783 = sbr.rel (%p6781) target = $region320
      $region319: #{encoder_forward.1} parent=5 // pred_region
        %s6784 = ssub.s32 %s145, 2
        // Predicated region
        $region321: #{encoder_forward.1} parent=319 // pred_check
          %p6785 = pneg %p1544
        $region322: #{encoder_forward.1} parent=319 // pred_check_branch
          %6787 = sbr.rel (%p6785) target = $region324
        $region323: #{encoder_forward.1} parent=319 // pred_region
          %s6788 = sand.u32 %s1529, 1
          %s6789 = scalar_lea.sflag [#allocation4], %s6788
          %s6790 = sand.u32 %s1529, 1
          %s6791 = smul.addr %s6790, 32
          %s6792 = scalar_lea.vmem [#allocation16], %s6791
          %6794 = dma.done %s6789, 512
        $region324: #{encoder_forward.1} parent=319 // pred_fallthru
          _
      $region320: #{encoder_forward.1} parent=5 // pred_fallthru
        _
    $region6: #{encoder_forward.1} parent=1 // loop_footer
      %s149 = sadd.s32 1, %s145
    $region7: #{encoder_forward.1} parent=1 // loop_footer_branch
      %144 = sbr.rel target = $region3
    $region8: #{encoder_forward.1} parent=1 // loop_exit
      _
    %6795 = vsyncpa [#allocation3], 1
    %s6796 = scalar_lea.sflag [#allocation3], 1
    %6797 = vsyncpa %s6796, 1
    %6798 = vsyncpa [#allocation6], 1
    %6799 = vsyncpa [#allocation9], 1
    %6800 = vsyncpa [#allocation12], 1
    %6801 = vsyncpa [#allocation15], 1
    %6802 = vsyncpa [#allocation4], 1
    %s6803 = scalar_lea.sflag [#allocation4], 1
    %6804 = vsyncpa %s6803, 1

</llo_original>
